<compile_context>
chip_gen: v7x
topology: tpu7x:2x2x1
jax: 0.10.0
libtpu: 0.0.40
codegen_flags: <defaults>
</compile_context>

<pallas_src>
import functools

import numpy as np
import jax
import jax.numpy as jnp
from jax.experimental import pallas as pl
from jax.experimental.pallas import tpu as pltpu

# ----------------- small-but-consistent configuration -----------------------
IMAGE_SIZE = 16
PATCH_SIZE = 8
TEMPORAL_PATCH = 2
IMG_CHANNELS = 3
DIM = 64
DIM_HEAD = 16
HEADS = 4
FF_MULT = 2.0
HIDDEN = int(FF_MULT * DIM)
SPATIAL_DEPTH = 2       # block = 'tt'  (plain attention only)
TEMPORAL_DEPTH = 2      # block = 'tt'
EPS = 1e-5
NEG = -1e9

# TODO(synk): spatial_pos='rel' relative-position bias and the window ('w') /
#   q_strides pooling attention variants are not implemented (Transformer source
#   not provided); block='t...' plain pre-norm attention is used, q_strides='1111'.
# TODO(synk): exact OmniTokenizer FeedForward internals unknown; reconstructed as
#   LayerNorm -> Linear -> GELU -> Linear with ff_mult hidden width; GELU kept as
#   the tanh approximation (PyTorch nn.GELU default is exact erf).
# TODO(synk): temporal-transformer PEG token<->video reshape reconstructed to
#   preserve the (b, h, w, t) token correspondence.


def _ln(x, g, b):
    mu = jnp.mean(x, axis=-1, keepdims=True)
    var = jnp.mean((x - mu) ** 2, axis=-1, keepdims=True)
    return (x - mu) * jax.lax.rsqrt(var + EPS) * g + b


# ------------------------------ the fused kernel -----------------------------
def _encoder_kernel(ff_ref, rf_ref,
                    pf_ln1, pf_w, pf_small,
                    pr_ln1, pr_w, pr_small,
                    scat_ff, scat_rf,
                    shift_ref, pegw_ref, vec_ref, b1_ref,
                    wqkv_ref, wo_ref, w1_ref, w2_ref,
                    bias_ref, qmask_ref, fnorm_ref,
                    o_ref, *, heads, dim_head, sp_depth, tp_depth):
    M = o_ref.shape[0]
    inner = heads * dim_head

    # ---- patch embedding (LayerNorm -> Linear -> LayerNorm) ------------------
    def embed(x, ln1, w, small):
        y = jnp.dot(_ln(x, ln1[0:1, :], ln1[1:2, :]), w,
                    preferred_element_type=jnp.float32) + small[0:1, :]
        return _ln(y, small[1:2, :], small[2:3, :])

    ff_tok = embed(ff_ref[...], pf_ln1[...], pf_w[...], pf_small[...])
    rf_tok = embed(rf_ref[...], pr_ln1[...], pr_w[...], pr_small[...])
    # scatter the patch rows into the (b, t, h, w) token ordering
    x = (jnp.dot(scat_ff[...], ff_tok, preferred_element_type=jnp.float32) +
         jnp.dot(scat_rf[...], rf_tok, preferred_element_type=jnp.float32))

    # invariant constants, loaded once
    qm = qmask_ref[...]        # (heads*M, inner) head-block 0/1 mask
    shift = shift_ref[...]     # (27*M, M) stacked 0/1 shift matrices (PEG taps)
    fn = fnorm_ref[...]        # (4, DIM) final norms

    def layer(x, l, bias):
        vec = vec_ref[l]                  # (6, DIM) packed per-layer vectors
        pegb, alng, alnb = vec[0:1, :], vec[1:2, :], vec[2:3, :]
        flng, flnb, b2 = vec[3:4, :], vec[4:5, :], vec[5:6, :]
        w27 = pegw_ref[l]                 # (27, DIM) depthwise conv taps

        # --- PEG: causal depthwise 3x3x3 conv as one MXU shift matmul followed
        #     by a 27-tap per-channel weighted sum, + residual (conv bias incl.)
        y = jnp.dot(shift, x, preferred_element_type=jnp.float32)   # (27*M, DIM)
        peg = pegb
        for k in range(27):
            peg = peg + y[k * M:(k + 1) * M, :] * w27[k:k + 1, :]
        x = x + peg

        # --- pre-norm multi-head attention + residual
        #     heads are mapped onto sublane row-blocks: one fused QKV matmul,
        #     one score matmul, one PV matmul, one output projection.
        xn = _ln(x, alng, alnb)
        qkv = jnp.dot(xn, wqkv_ref[l], preferred_element_type=jnp.float32)  # (M, 3*inner)
        q = qkv[:, :inner]                 # 1/sqrt(dim_head) folded into Wq
        k_ = qkv[:, inner:2 * inner]
        v = qkv[:, 2 * inner:]
        qb = jnp.concatenate([q] * heads, axis=0) * qm                      # (heads*M, inner)
        s = jax.lax.dot_general(qb, k_, (((1,), (1,)), ((), ())),
                                preferred_element_type=jnp.float32)         # (heads*M, M)
        s = s + bias                       # -1e9 outside the token's sequence
        s = s - jnp.max(s, axis=-1, keepdims=True)
        p = jnp.exp(s)
        p = p * pl.reciprocal(jnp.sum(p, axis=-1, keepdims=True), approx=True)
        ob = jnp.dot(p, v, preferred_element_type=jnp.float32) * qm         # (heads*M, inner)
        o = ob[0:M]
        for h in range(1, heads):
            o = o + ob[h * M:(h + 1) * M]                                   # re-merge heads
        x = x + jnp.dot(o, wo_ref[l], preferred_element_type=jnp.float32)

        # --- pre-norm feed-forward + residual
        xn = _ln(x, flng, flnb)
        hid = jnp.dot(xn, w1_ref[l], preferred_element_type=jnp.float32) + b1_ref[l]
        hid = jax.nn.gelu(hid, approximate=True)
        x = x + jnp.dot(hid, w2_ref[l], preferred_element_type=jnp.float32) + b2
        return x

    # ---------------- spatial transformer (attend within same (b, t)) --------
    bias_sp = bias_ref[0]
    for l in range(sp_depth):
        x = layer(x, l, bias_sp)
    x = _ln(x, fn[0:1, :], fn[1:2, :])

    # ---------------- temporal transformer (attend within same (b, h, w)) ----
    # token ordering is unchanged; the per-(b,h,w) grouping is folded into the
    # bias, so no permutation matmul is needed.
    bias_tp = bias_ref[1]
    for l in range(tp_depth):
        x = layer(x, sp_depth + l, bias_tp)
    x = _ln(x, fn[2:3, :], fn[3:4, :])

    o_ref[...] = x


# --------------------- host-side constant geometry ---------------------------
def _build_geometry(B, T, H, W, heads):
    M = B * T * H * W
    idx = lambda b, t, h, w: ((b * T + t) * H + h) * W + w       # (b, t, h, w) order
    coords = [(b, t, h, w) for b in range(B) for t in range(T)
              for h in range(H) for w in range(W)]

    # 27 taps of the causal depthwise 3x3x3 conv, stacked along rows:
    # row (k*M + n) holds the one-hot source of tap k for token n (or zeros).
    S = np.zeros((27 * M, M), np.float32)
    for (b, t, h, w) in coords:
        n = idx(b, t, h, w)
        k = 0
        for kt in range(3):
            for kh in range(3):
                for kw in range(3):
                    ts, hs, ws = t + kt - 2, h + kh - 1, w + kw - 1
                    if 0 <= ts < T and 0 <= hs < H and 0 <= ws < W:
                        S[k * M + n, idx(b, ts, hs, ws)] = 1.0
                    k += 1

    def seq_bias(key_fn):
        m = np.full((M, M), NEG, np.float32)
        for c0 in coords:
            for c1 in coords:
                if key_fn(c0) == key_fn(c1):
                    m[idx(*c0), idx(*c1)] = 0.0
        return np.tile(m, (heads, 1))           # (heads*M, M)

    bias = np.stack([seq_bias(lambda c: (c[0], c[1])),          # spatial: same (b, t)
                     seq_bias(lambda c: (c[0], c[2], c[3]))],   # temporal: same (b, h, w)
                    axis=0)

    n_ff = B * H * W
    scat_ff = np.zeros((M, n_ff), np.float32)
    for b in range(B):
        for h in range(H):
            for w in range(W):
                scat_ff[idx(b, 0, h, w), (b * H + h) * W + w] = 1.0

    t_rest = T - 1
    n_rf = max(1, B * t_rest * H * W)
    scat_rf = np.zeros((M, n_rf), np.float32)
    for b in range(B):
        for t in range(t_rest):
            for h in range(H):
                for w in range(W):
                    scat_rf[idx(b, t + 1, h, w),
                            ((b * t_rest + t) * H + h) * W + w] = 1.0

    return dict(S=S, bias=bias, scat_ff=scat_ff, scat_rf=scat_rf)


def _head_block_mask(M, heads, dim_head):
    qm = np.zeros((heads * M, heads * dim_head), np.float32)
    for h in range(heads):
        qm[h * M:(h + 1) * M, h * dim_head:(h + 1) * dim_head] = 1.0
    return qm


def _stack_layers(layers):
    """Stack per-layer weights; fold the attention scale into Wq and pack all
    per-layer (DIM,)-sized vectors into one array to minimize operand count."""
    scale = DIM_HEAD ** -0.5
    pegw, vecs, b1s, wqkv, wo, w1, w2 = [], [], [], [], [], [], []
    for lp in layers:
        pegw.append(lp['peg_w'].reshape(27, DIM))
        vecs.append(jnp.stack([lp['peg_b'], lp['attn_ln_g'], lp['attn_ln_b'],
                               lp['ff_ln_g'], lp['ff_ln_b'], lp['b2']], axis=0))
        b1s.append(lp['b1'].reshape(1, HIDDEN))
        wqkv.append(jnp.concatenate([lp['wq'] * scale, lp['wk'], lp['wv']], axis=1))
        wo.append(lp['wo'])
        w1.append(lp['w1'])
        w2.append(lp['w2'])
    stk = lambda xs: jnp.stack(xs, axis=0)
    return (stk(pegw), stk(vecs), stk(b1s), stk(wqkv), stk(wo), stk(w1), stk(w2))


# ------------------------------ forward pass ---------------------------------
@functools.partial(jax.jit, static_argnames=("is_image",))
def omnitokenizer_encoder_forward(video, params, is_image=False):
    if is_image:
        video = video[:, :, None]                  # b c h w -> b c 1 h w
    B, C, F, HH, WW = video.shape
    p, pt = PATCH_SIZE, TEMPORAL_PATCH
    assert (F - 1) % pt == 0
    H, W = HH // p, WW // p
    T = 1 + (F - 1) // pt
    M = B * T * H * W

    # ---- patchify (tiny, done once at the kernel boundary) ----
    first = video[:, :, :1]
    ff = first.reshape(B, C, 1, H, p, W, p).transpose(0, 2, 3, 5, 1, 4, 6)
    ff = ff.reshape(B * H * W, C * p * p).astype(jnp.float32)
    t_rest = T - 1
    if t_rest > 0:
        rest = video[:, :, 1:]
        rf = rest.reshape(B, C, t_rest, pt, H, p, W, p).transpose(0, 2, 4, 6, 1, 3, 5, 7)
        rf = rf.reshape(B * t_rest * H * W, C * pt * p * p).astype(jnp.float32)
    else:
        rf = jnp.zeros((1, C * pt * p * p), jnp.float32)

    geo = _build_geometry(B, T, H, W, HEADS)
    qmask = _head_block_mask(M, HEADS, DIM_HEAD)

    sp_depth = len(params['spatial_layers'])
    tp_depth = len(params['temporal_layers'])
    layers = params['spatial_layers'] + params['temporal_layers']
    pegw, vecs, b1s, wqkv, wo, w1, w2 = _stack_layers(layers)

    pf, pr = params['patch_first'], params['patch_rest']
    pf_ln1 = jnp.stack([pf['ln1_g'], pf['ln1_b']], axis=0)
    pf_small = jnp.stack([pf['b'], pf['ln2_g'], pf['ln2_b']], axis=0)
    pr_ln1 = jnp.stack([pr['ln1_g'], pr['ln1_b']], axis=0)
    pr_small = jnp.stack([pr['b'], pr['ln2_g'], pr['ln2_b']], axis=0)
    fnorm = jnp.stack([params['spatial_norm_g'], params['spatial_norm_b'],
                       params['temporal_norm_g'], params['temporal_norm_b']], axis=0)

    kern = functools.partial(_encoder_kernel, heads=HEADS, dim_head=DIM_HEAD,
                             sp_depth=sp_depth, tp_depth=tp_depth)

    # single launch: every operand is small and lives whole in VMEM.
    x = pl.pallas_call(
        kern,
        out_shape=jax.ShapeDtypeStruct((M, DIM), jnp.float32),
        compiler_params=pltpu.CompilerParams(vmem_limit_bytes=32 * 1024 * 1024),
    )(ff, rf,
      pf_ln1, pf['w'], pf_small,
      pr_ln1, pr['w'], pr_small,
      jnp.asarray(geo['scat_ff']), jnp.asarray(geo['scat_rf']),
      jnp.asarray(geo['S']), pegw, vecs, b1s,
      wqkv, wo, w1, w2,
      jnp.asarray(geo['bias']), jnp.asarray(qmask), fnorm)

    # tokens stay in (b, t, h, w) order -> 'b t h w d -> b d t h w'
    # (spatial_pool / temporal_pool are Identity)
    return x.reshape(B, T, H, W, DIM).transpose(0, 4, 1, 2, 3)


# ------------------------------- parameters ---------------------------------
def init_params(key):
    keys = iter(jax.random.split(key, 64))
    dense = lambda k, shape: jax.random.normal(k, shape, jnp.float32) * 0.02

    def patch_params(din):
        return dict(ln1_g=jnp.ones((din,), jnp.float32), ln1_b=jnp.zeros((din,), jnp.float32),
                    w=dense(next(keys), (din, DIM)), b=jnp.zeros((DIM,), jnp.float32),
                    ln2_g=jnp.ones((DIM,), jnp.float32), ln2_b=jnp.zeros((DIM,), jnp.float32))

    def layer_params():
        inner = HEADS * DIM_HEAD
        return dict(
            peg_w=dense(next(keys), (3, 3, 3, DIM)), peg_b=jnp.zeros((DIM,), jnp.float32),
            attn_ln_g=jnp.ones((DIM,), jnp.float32), attn_ln_b=jnp.zeros((DIM,), jnp.float32),
            wq=dense(next(keys), (DIM, inner)), wk=dense(next(keys), (DIM, inner)),
            wv=dense(next(keys), (DIM, inner)), wo=dense(next(keys), (inner, DIM)),
            ff_ln_g=jnp.ones((DIM,), jnp.float32), ff_ln_b=jnp.zeros((DIM,), jnp.float32),
            w1=dense(next(keys), (DIM, HIDDEN)), b1=jnp.zeros((HIDDEN,), jnp.float32),
            w2=dense(next(keys), (HIDDEN, DIM)), b2=jnp.zeros((DIM,), jnp.float32))

    return dict(
        patch_first=patch_params(IMG_CHANNELS * PATCH_SIZE * PATCH_SIZE),
        patch_rest=patch_params(IMG_CHANNELS * TEMPORAL_PATCH * PATCH_SIZE * PATCH_SIZE),
        spatial_layers=[layer_params() for _ in range(SPATIAL_DEPTH)],
        spatial_norm_g=jnp.ones((DIM,), jnp.float32),
        spatial_norm_b=jnp.zeros((DIM,), jnp.float32),
        temporal_layers=[layer_params() for _ in range(TEMPORAL_DEPTH)],
        temporal_norm_g=jnp.ones((DIM,), jnp.float32),
        temporal_norm_b=jnp.zeros((DIM,), jnp.float32))


if __name__ == "__main__":
    key = jax.random.PRNGKey(0)
    pkey, vkey = jax.random.split(key)
    params = init_params(pkey)

    B = 2
    F = 1 + TEMPORAL_PATCH           # 3 frames: (f-1) divisible by temporal_patch_size
    video = jax.random.normal(vkey, (B, IMG_CHANNELS, F, IMAGE_SIZE, IMAGE_SIZE),
                              jnp.float32)

    out = omnitokenizer_encoder_forward(video, params, is_image=False)
    out = jax.block_until_ready(out)

    expected = (B, DIM, 1 + (F - 1) // TEMPORAL_PATCH,
                IMAGE_SIZE // PATCH_SIZE, IMAGE_SIZE // PATCH_SIZE)
    assert out.shape == expected, (out.shape, expected)
    assert bool(jnp.all(jnp.isfinite(out)))
    print("KERNEL_OK")
</pallas_src>

<mosaic_0001>
module attributes {stable_mosaic.version = 11 : i64} {
  func.func @_encoder_kernel(%arg0: memref<8x192xf32, #tpu.memory_space<vmem>>, %arg1: memref<8x384xf32, #tpu.memory_space<vmem>>, %arg2: memref<2x192xf32, #tpu.memory_space<vmem>>, %arg3: memref<192x64xf32, #tpu.memory_space<vmem>>, %arg4: memref<3x64xf32, #tpu.memory_space<vmem>>, %arg5: memref<2x384xf32, #tpu.memory_space<vmem>>, %arg6: memref<384x64xf32, #tpu.memory_space<vmem>>, %arg7: memref<3x64xf32, #tpu.memory_space<vmem>>, %arg8: memref<16x8xf32, #tpu.memory_space<vmem>>, %arg9: memref<16x8xf32, #tpu.memory_space<vmem>>, %arg10: memref<432x16xf32, #tpu.memory_space<vmem>>, %arg11: memref<4x27x64xf32, #tpu.memory_space<vmem>>, %arg12: memref<4x6x64xf32, #tpu.memory_space<vmem>>, %arg13: memref<4x1x128xf32, #tpu.memory_space<vmem>>, %arg14: memref<4x64x192xf32, #tpu.memory_space<vmem>>, %arg15: memref<4x64x64xf32, #tpu.memory_space<vmem>>, %arg16: memref<4x64x128xf32, #tpu.memory_space<vmem>>, %arg17: memref<4x128x64xf32, #tpu.memory_space<vmem>>, %arg18: memref<2x64x16xf32, #tpu.memory_space<vmem>>, %arg19: memref<64x64xf32, #tpu.memory_space<vmem>>, %arg20: memref<4x64xf32, #tpu.memory_space<vmem>>, %arg21: memref<16x64xf32, #tpu.memory_space<vmem>>) attributes {dimension_semantics = [], scalar_prefetch = 0 : i64, scratch_operands = 0 : i64, tpu.core_type = #tpu.core_type<tc>} {
    %c0 = arith.constant 0 : index
    %c0_0 = arith.constant 0 : index
    %0 = vector.load %arg0[%c0, %c0_0] : memref<8x192xf32, #tpu.memory_space<vmem>>, vector<8x192xf32>
    %c0_1 = arith.constant 0 : index
    %c0_2 = arith.constant 0 : index
    %1 = vector.load %arg2[%c0_1, %c0_2] : memref<2x192xf32, #tpu.memory_space<vmem>>, vector<2x192xf32>
    %c0_3 = arith.constant 0 : index
    %c0_4 = arith.constant 0 : index
    %2 = vector.load %arg3[%c0_3, %c0_4] : memref<192x64xf32, #tpu.memory_space<vmem>>, vector<192x64xf32>
    %c0_5 = arith.constant 0 : index
    %c0_6 = arith.constant 0 : index
    %3 = vector.load %arg4[%c0_5, %c0_6] : memref<3x64xf32, #tpu.memory_space<vmem>>, vector<3x64xf32>
    %4 = vector.extract_strided_slice %1 {offsets = [0, 0], sizes = [1, 192], strides = [1, 1]} : vector<2x192xf32> to vector<1x192xf32>
    %5 = vector.extract_strided_slice %1 {offsets = [1, 0], sizes = [1, 192], strides = [1, 1]} : vector<2x192xf32> to vector<1x192xf32>
    %cst = arith.constant dense<0.000000e+00> : vector<8xf32>
    %6 = vector.multi_reduction <add>, %0, %cst [1] : vector<8x192xf32> to vector<8xf32>
    %7 = vector.shape_cast %6 : vector<8xf32> to vector<8x1xf32>
    %cst_7 = arith.constant 1.920000e+02 : f32
    %8 = vector.broadcast %cst_7 : f32 to vector<8x1xf32>
    %9 = arith.divf %7, %8 : vector<8x1xf32>
    %10 = vector.broadcast %9 : vector<8x1xf32> to vector<8x192xf32>
    %11 = arith.subf %0, %10 : vector<8x192xf32>
    %12 = arith.mulf %11, %11 : vector<8x192xf32>
    %cst_8 = arith.constant dense<0.000000e+00> : vector<8xf32>
    %13 = vector.multi_reduction <add>, %12, %cst_8 [1] : vector<8x192xf32> to vector<8xf32>
    %14 = vector.shape_cast %13 : vector<8xf32> to vector<8x1xf32>
    %cst_9 = arith.constant 1.920000e+02 : f32
    %15 = vector.broadcast %cst_9 : f32 to vector<8x1xf32>
    %16 = arith.divf %14, %15 : vector<8x1xf32>
    %17 = vector.broadcast %9 : vector<8x1xf32> to vector<8x192xf32>
    %18 = arith.subf %0, %17 : vector<8x192xf32>
    %cst_10 = arith.constant 9.99999974E-6 : f32
    %19 = vector.broadcast %cst_10 : f32 to vector<8x1xf32>
    %20 = arith.addf %16, %19 : vector<8x1xf32>
    %21 = math.rsqrt %20 : vector<8x1xf32>
    %22 = vector.broadcast %21 : vector<8x1xf32> to vector<8x192xf32>
    %23 = arith.mulf %18, %22 : vector<8x192xf32>
    %24 = vector.broadcast %4 : vector<1x192xf32> to vector<8x192xf32>
    %25 = arith.mulf %23, %24 : vector<8x192xf32>
    %26 = vector.broadcast %5 : vector<1x192xf32> to vector<8x192xf32>
    %27 = arith.addf %25, %26 : vector<8x192xf32>
    %cst_11 = arith.constant dense<0.000000e+00> : vector<8x64xf32>
    %28 = tpu.matmul %27, %2, %cst_11 {dimension_numbers = #tpu.dot_dimension_numbers<[1], [0], [0], [1], [0, 0, 1, 1], [], []>} : vector<8x192xf32>, vector<192x64xf32>, vector<8x64xf32> -> vector<8x64xf32>
    %29 = vector.extract_strided_slice %3 {offsets = [0, 0], sizes = [1, 64], strides = [1, 1]} : vector<3x64xf32> to vector<1x64xf32>
    %30 = vector.broadcast %29 : vector<1x64xf32> to vector<8x64xf32>
    %31 = arith.addf %28, %30 : vector<8x64xf32>
    %32 = vector.extract_strided_slice %3 {offsets = [1, 0], sizes = [1, 64], strides = [1, 1]} : vector<3x64xf32> to vector<1x64xf32>
    %33 = vector.extract_strided_slice %3 {offsets = [2, 0], sizes = [1, 64], strides = [1, 1]} : vector<3x64xf32> to vector<1x64xf32>
    %cst_12 = arith.constant dense<0.000000e+00> : vector<8xf32>
    %34 = vector.multi_reduction <add>, %31, %cst_12 [1] : vector<8x64xf32> to vector<8xf32>
    %35 = vector.shape_cast %34 : vector<8xf32> to vector<8x1xf32>
    %cst_13 = arith.constant 6.400000e+01 : f32
    %36 = vector.broadcast %cst_13 : f32 to vector<8x1xf32>
    %37 = arith.divf %35, %36 : vector<8x1xf32>
    %38 = vector.broadcast %37 : vector<8x1xf32> to vector<8x64xf32>
    %39 = arith.subf %31, %38 : vector<8x64xf32>
    %40 = arith.mulf %39, %39 : vector<8x64xf32>
    %cst_14 = arith.constant dense<0.000000e+00> : vector<8xf32>
    %41 = vector.multi_reduction <add>, %40, %cst_14 [1] : vector<8x64xf32> to vector<8xf32>
    %42 = vector.shape_cast %41 : vector<8xf32> to vector<8x1xf32>
    %cst_15 = arith.constant 6.400000e+01 : f32
    %43 = vector.broadcast %cst_15 : f32 to vector<8x1xf32>
    %44 = arith.divf %42, %43 : vector<8x1xf32>
    %45 = vector.broadcast %37 : vector<8x1xf32> to vector<8x64xf32>
    %46 = arith.subf %31, %45 : vector<8x64xf32>
    %cst_16 = arith.constant 9.99999974E-6 : f32
    %47 = vector.broadcast %cst_16 : f32 to vector<8x1xf32>
    %48 = arith.addf %44, %47 : vector<8x1xf32>
    %49 = math.rsqrt %48 : vector<8x1xf32>
    %50 = vector.broadcast %49 : vector<8x1xf32> to vector<8x64xf32>
    %51 = arith.mulf %46, %50 : vector<8x64xf32>
    %52 = vector.broadcast %32 : vector<1x64xf32> to vector<8x64xf32>
    %53 = arith.mulf %51, %52 : vector<8x64xf32>
    %54 = vector.broadcast %33 : vector<1x64xf32> to vector<8x64xf32>
    %55 = arith.addf %53, %54 : vector<8x64xf32>
    %c0_17 = arith.constant 0 : index
    %c0_18 = arith.constant 0 : index
    %56 = vector.load %arg1[%c0_17, %c0_18] : memref<8x384xf32, #tpu.memory_space<vmem>>, vector<8x384xf32>
    %c0_19 = arith.constant 0 : index
    %c0_20 = arith.constant 0 : index
    %57 = vector.load %arg5[%c0_19, %c0_20] : memref<2x384xf32, #tpu.memory_space<vmem>>, vector<2x384xf32>
    %c0_21 = arith.constant 0 : index
    %c0_22 = arith.constant 0 : index
    %58 = vector.load %arg6[%c0_21, %c0_22] : memref<384x64xf32, #tpu.memory_space<vmem>>, vector<384x64xf32>
    %c0_23 = arith.constant 0 : index
    %c0_24 = arith.constant 0 : index
    %59 = vector.load %arg7[%c0_23, %c0_24] : memref<3x64xf32, #tpu.memory_space<vmem>>, vector<3x64xf32>
    %60 = vector.extract_strided_slice %57 {offsets = [0, 0], sizes = [1, 384], strides = [1, 1]} : vector<2x384xf32> to vector<1x384xf32>
    %61 = vector.extract_strided_slice %57 {offsets = [1, 0], sizes = [1, 384], strides = [1, 1]} : vector<2x384xf32> to vector<1x384xf32>
    %cst_25 = arith.constant dense<0.000000e+00> : vector<8xf32>
    %62 = vector.multi_reduction <add>, %56, %cst_25 [1] : vector<8x384xf32> to vector<8xf32>
    %63 = vector.shape_cast %62 : vector<8xf32> to vector<8x1xf32>
    %cst_26 = arith.constant 3.840000e+02 : f32
    %64 = vector.broadcast %cst_26 : f32 to vector<8x1xf32>
    %65 = arith.divf %63, %64 : vector<8x1xf32>
    %66 = vector.broadcast %65 : vector<8x1xf32> to vector<8x384xf32>
    %67 = arith.subf %56, %66 : vector<8x384xf32>
    %68 = arith.mulf %67, %67 : vector<8x384xf32>
    %cst_27 = arith.constant dense<0.000000e+00> : vector<8xf32>
    %69 = vector.multi_reduction <add>, %68, %cst_27 [1] : vector<8x384xf32> to vector<8xf32>
    %70 = vector.shape_cast %69 : vector<8xf32> to vector<8x1xf32>
    %cst_28 = arith.constant 3.840000e+02 : f32
    %71 = vector.broadcast %cst_28 : f32 to vector<8x1xf32>
    %72 = arith.divf %70, %71 : vector<8x1xf32>
    %73 = vector.broadcast %65 : vector<8x1xf32> to vector<8x384xf32>
    %74 = arith.subf %56, %73 : vector<8x384xf32>
    %cst_29 = arith.constant 9.99999974E-6 : f32
    %75 = vector.broadcast %cst_29 : f32 to vector<8x1xf32>
    %76 = arith.addf %72, %75 : vector<8x1xf32>
    %77 = math.rsqrt %76 : vector<8x1xf32>
    %78 = vector.broadcast %77 : vector<8x1xf32> to vector<8x384xf32>
    %79 = arith.mulf %74, %78 : vector<8x384xf32>
    %80 = vector.broadcast %60 : vector<1x384xf32> to vector<8x384xf32>
    %81 = arith.mulf %79, %80 : vector<8x384xf32>
    %82 = vector.broadcast %61 : vector<1x384xf32> to vector<8x384xf32>
    %83 = arith.addf %81, %82 : vector<8x384xf32>
    %cst_30 = arith.constant dense<0.000000e+00> : vector<8x64xf32>
    %84 = tpu.matmul %83, %58, %cst_30 {dimension_numbers = #tpu.dot_dimension_numbers<[1], [0], [0], [1], [0, 0, 1, 1], [], []>} : vector<8x384xf32>, vector<384x64xf32>, vector<8x64xf32> -> vector<8x64xf32>
    %85 = vector.extract_strided_slice %59 {offsets = [0, 0], sizes = [1, 64], strides = [1, 1]} : vector<3x64xf32> to vector<1x64xf32>
    %86 = vector.broadcast %85 : vector<1x64xf32> to vector<8x64xf32>
    %87 = arith.addf %84, %86 : vector<8x64xf32>
    %88 = vector.extract_strided_slice %59 {offsets = [1, 0], sizes = [1, 64], strides = [1, 1]} : vector<3x64xf32> to vector<1x64xf32>
    %89 = vector.extract_strided_slice %59 {offsets = [2, 0], sizes = [1, 64], strides = [1, 1]} : vector<3x64xf32> to vector<1x64xf32>
    %cst_31 = arith.constant dense<0.000000e+00> : vector<8xf32>
    %90 = vector.multi_reduction <add>, %87, %cst_31 [1] : vector<8x64xf32> to vector<8xf32>
    %91 = vector.shape_cast %90 : vector<8xf32> to vector<8x1xf32>
    %cst_32 = arith.constant 6.400000e+01 : f32
    %92 = vector.broadcast %cst_32 : f32 to vector<8x1xf32>
    %93 = arith.divf %91, %92 : vector<8x1xf32>
    %94 = vector.broadcast %93 : vector<8x1xf32> to vector<8x64xf32>
    %95 = arith.subf %87, %94 : vector<8x64xf32>
    %96 = arith.mulf %95, %95 : vector<8x64xf32>
    %cst_33 = arith.constant dense<0.000000e+00> : vector<8xf32>
    %97 = vector.multi_reduction <add>, %96, %cst_33 [1] : vector<8x64xf32> to vector<8xf32>
    %98 = vector.shape_cast %97 : vector<8xf32> to vector<8x1xf32>
    %cst_34 = arith.constant 6.400000e+01 : f32
    %99 = vector.broadcast %cst_34 : f32 to vector<8x1xf32>
    %100 = arith.divf %98, %99 : vector<8x1xf32>
    %101 = vector.broadcast %93 : vector<8x1xf32> to vector<8x64xf32>
    %102 = arith.subf %87, %101 : vector<8x64xf32>
    %cst_35 = arith.constant 9.99999974E-6 : f32
    %103 = vector.broadcast %cst_35 : f32 to vector<8x1xf32>
    %104 = arith.addf %100, %103 : vector<8x1xf32>
    %105 = math.rsqrt %104 : vector<8x1xf32>
    %106 = vector.broadcast %105 : vector<8x1xf32> to vector<8x64xf32>
    %107 = arith.mulf %102, %106 : vector<8x64xf32>
    %108 = vector.broadcast %88 : vector<1x64xf32> to vector<8x64xf32>
    %109 = arith.mulf %107, %108 : vector<8x64xf32>
    %110 = vector.broadcast %89 : vector<1x64xf32> to vector<8x64xf32>
    %111 = arith.addf %109, %110 : vector<8x64xf32>
    %c0_36 = arith.constant 0 : index
    %c0_37 = arith.constant 0 : index
    %112 = vector.load %arg8[%c0_36, %c0_37] : memref<16x8xf32, #tpu.memory_space<vmem>>, vector<16x8xf32>
    %cst_38 = arith.constant dense<0.000000e+00> : vector<16x64xf32>
    %113 = tpu.matmul %112, %55, %cst_38 {dimension_numbers = #tpu.dot_dimension_numbers<[1], [0], [0], [1], [0, 0, 1, 1], [], []>} : vector<16x8xf32>, vector<8x64xf32>, vector<16x64xf32> -> vector<16x64xf32>
    %c0_39 = arith.constant 0 : index
    %c0_40 = arith.constant 0 : index
    %114 = vector.load %arg9[%c0_39, %c0_40] : memref<16x8xf32, #tpu.memory_space<vmem>>, vector<16x8xf32>
    %cst_41 = arith.constant dense<0.000000e+00> : vector<16x64xf32>
    %115 = tpu.matmul %114, %111, %cst_41 {dimension_numbers = #tpu.dot_dimension_numbers<[1], [0], [0], [1], [0, 0, 1, 1], [], []>} : vector<16x8xf32>, vector<8x64xf32>, vector<16x64xf32> -> vector<16x64xf32>
    %116 = arith.addf %113, %115 : vector<16x64xf32>
    %c0_42 = arith.constant 0 : index
    %c0_43 = arith.constant 0 : index
    %117 = vector.load %arg19[%c0_42, %c0_43] : memref<64x64xf32, #tpu.memory_space<vmem>>, vector<64x64xf32>
    %c0_44 = arith.constant 0 : index
    %c0_45 = arith.constant 0 : index
    %118 = vector.load %arg10[%c0_44, %c0_45] : memref<432x16xf32, #tpu.memory_space<vmem>>, vector<432x16xf32>
    %c0_46 = arith.constant 0 : index
    %c0_47 = arith.constant 0 : index
    %119 = vector.load %arg20[%c0_46, %c0_47] : memref<4x64xf32, #tpu.memory_space<vmem>>, vector<4x64xf32>
    %c0_48 = arith.constant 0 : index
    %c0_49 = arith.constant 0 : index
    %c0_50 = arith.constant 0 : index
    %120 = vector.load %arg18[%c0_48, %c0_49, %c0_50] : memref<2x64x16xf32, #tpu.memory_space<vmem>>, vector<1x64x16xf32>
    %121 = vector.shape_cast %120 : vector<1x64x16xf32> to vector<64x16xf32>
    %c0_51 = arith.constant 0 : index
    %c0_52 = arith.constant 0 : index
    %c0_53 = arith.constant 0 : index
    %122 = vector.load %arg12[%c0_51, %c0_52, %c0_53] : memref<4x6x64xf32, #tpu.memory_space<vmem>>, vector<1x6x64xf32>
    %123 = vector.shape_cast %122 : vector<1x6x64xf32> to vector<6x64xf32>
    %124 = vector.extract_strided_slice %123 {offsets = [0, 0], sizes = [1, 64], strides = [1, 1]} : vector<6x64xf32> to vector<1x64xf32>
    %125 = vector.extract_strided_slice %123 {offsets = [1, 0], sizes = [1, 64], strides = [1, 1]} : vector<6x64xf32> to vector<1x64xf32>
    %126 = vector.extract_strided_slice %123 {offsets = [2, 0], sizes = [1, 64], strides = [1, 1]} : vector<6x64xf32> to vector<1x64xf32>
    %127 = vector.extract_strided_slice %123 {offsets = [3, 0], sizes = [1, 64], strides = [1, 1]} : vector<6x64xf32> to vector<1x64xf32>
    %128 = vector.extract_strided_slice %123 {offsets = [4, 0], sizes = [1, 64], strides = [1, 1]} : vector<6x64xf32> to vector<1x64xf32>
    %129 = vector.extract_strided_slice %123 {offsets = [5, 0], sizes = [1, 64], strides = [1, 1]} : vector<6x64xf32> to vector<1x64xf32>
    %c0_54 = arith.constant 0 : index
    %c0_55 = arith.constant 0 : index
    %c0_56 = arith.constant 0 : index
    %130 = vector.load %arg11[%c0_54, %c0_55, %c0_56] : memref<4x27x64xf32, #tpu.memory_space<vmem>>, vector<1x27x64xf32>
    %131 = vector.shape_cast %130 : vector<1x27x64xf32> to vector<27x64xf32>
    %cst_57 = arith.constant dense<0.000000e+00> : vector<432x64xf32>
    %132 = tpu.matmul %118, %116, %cst_57 {dimension_numbers = #tpu.dot_dimension_numbers<[1], [0], [0], [1], [0, 0, 1, 1], [], []>} : vector<432x16xf32>, vector<16x64xf32>, vector<432x64xf32> -> vector<432x64xf32>
    %133 = vector.extract_strided_slice %132 {offsets = [0, 0], sizes = [16, 64], strides = [1, 1]} : vector<432x64xf32> to vector<16x64xf32>
    %134 = vector.extract_strided_slice %131 {offsets = [0, 0], sizes = [1, 64], strides = [1, 1]} : vector<27x64xf32> to vector<1x64xf32>
    %135 = vector.broadcast %134 : vector<1x64xf32> to vector<16x64xf32>
    %136 = arith.mulf %133, %135 : vector<16x64xf32>
    %137 = vector.broadcast %124 : vector<1x64xf32> to vector<16x64xf32>
    %138 = arith.addf %137, %136 : vector<16x64xf32>
    %139 = vector.extract_strided_slice %132 {offsets = [16, 0], sizes = [16, 64], strides = [1, 1]} : vector<432x64xf32> to vector<16x64xf32>
    %140 = vector.extract_strided_slice %131 {offsets = [1, 0], sizes = [1, 64], strides = [1, 1]} : vector<27x64xf32> to vector<1x64xf32>
    %141 = vector.broadcast %140 : vector<1x64xf32> to vector<16x64xf32>
    %142 = arith.mulf %139, %141 : vector<16x64xf32>
    %143 = arith.addf %138, %142 : vector<16x64xf32>
    %144 = vector.extract_strided_slice %132 {offsets = [32, 0], sizes = [16, 64], strides = [1, 1]} : vector<432x64xf32> to vector<16x64xf32>
    %145 = vector.extract_strided_slice %131 {offsets = [2, 0], sizes = [1, 64], strides = [1, 1]} : vector<27x64xf32> to vector<1x64xf32>
    %146 = vector.broadcast %145 : vector<1x64xf32> to vector<16x64xf32>
    %147 = arith.mulf %144, %146 : vector<16x64xf32>
    %148 = arith.addf %143, %147 : vector<16x64xf32>
    %149 = vector.extract_strided_slice %132 {offsets = [48, 0], sizes = [16, 64], strides = [1, 1]} : vector<432x64xf32> to vector<16x64xf32>
    %150 = vector.extract_strided_slice %131 {offsets = [3, 0], sizes = [1, 64], strides = [1, 1]} : vector<27x64xf32> to vector<1x64xf32>
    %151 = vector.broadcast %150 : vector<1x64xf32> to vector<16x64xf32>
    %152 = arith.mulf %149, %151 : vector<16x64xf32>
    %153 = arith.addf %148, %152 : vector<16x64xf32>
    %154 = vector.extract_strided_slice %132 {offsets = [64, 0], sizes = [16, 64], strides = [1, 1]} : vector<432x64xf32> to vector<16x64xf32>
    %155 = vector.extract_strided_slice %131 {offsets = [4, 0], sizes = [1, 64], strides = [1, 1]} : vector<27x64xf32> to vector<1x64xf32>
    %156 = vector.broadcast %155 : vector<1x64xf32> to vector<16x64xf32>
    %157 = arith.mulf %154, %156 : vector<16x64xf32>
    %158 = arith.addf %153, %157 : vector<16x64xf32>
    %159 = vector.extract_strided_slice %132 {offsets = [80, 0], sizes = [16, 64], strides = [1, 1]} : vector<432x64xf32> to vector<16x64xf32>
    %160 = vector.extract_strided_slice %131 {offsets = [5, 0], sizes = [1, 64], strides = [1, 1]} : vector<27x64xf32> to vector<1x64xf32>
    %161 = vector.broadcast %160 : vector<1x64xf32> to vector<16x64xf32>
    %162 = arith.mulf %159, %161 : vector<16x64xf32>
    %163 = arith.addf %158, %162 : vector<16x64xf32>
    %164 = vector.extract_strided_slice %132 {offsets = [96, 0], sizes = [16, 64], strides = [1, 1]} : vector<432x64xf32> to vector<16x64xf32>
    %165 = vector.extract_strided_slice %131 {offsets = [6, 0], sizes = [1, 64], strides = [1, 1]} : vector<27x64xf32> to vector<1x64xf32>
    %166 = vector.broadcast %165 : vector<1x64xf32> to vector<16x64xf32>
    %167 = arith.mulf %164, %166 : vector<16x64xf32>
    %168 = arith.addf %163, %167 : vector<16x64xf32>
    %169 = vector.extract_strided_slice %132 {offsets = [112, 0], sizes = [16, 64], strides = [1, 1]} : vector<432x64xf32> to vector<16x64xf32>
    %170 = vector.extract_strided_slice %131 {offsets = [7, 0], sizes = [1, 64], strides = [1, 1]} : vector<27x64xf32> to vector<1x64xf32>
    %171 = vector.broadcast %170 : vector<1x64xf32> to vector<16x64xf32>
    %172 = arith.mulf %169, %171 : vector<16x64xf32>
    %173 = arith.addf %168, %172 : vector<16x64xf32>
    %174 = vector.extract_strided_slice %132 {offsets = [128, 0], sizes = [16, 64], strides = [1, 1]} : vector<432x64xf32> to vector<16x64xf32>
    %175 = vector.extract_strided_slice %131 {offsets = [8, 0], sizes = [1, 64], strides = [1, 1]} : vector<27x64xf32> to vector<1x64xf32>
    %176 = vector.broadcast %175 : vector<1x64xf32> to vector<16x64xf32>
    %177 = arith.mulf %174, %176 : vector<16x64xf32>
    %178 = arith.addf %173, %177 : vector<16x64xf32>
    %179 = vector.extract_strided_slice %132 {offsets = [144, 0], sizes = [16, 64], strides = [1, 1]} : vector<432x64xf32> to vector<16x64xf32>
    %180 = vector.extract_strided_slice %131 {offsets = [9, 0], sizes = [1, 64], strides = [1, 1]} : vector<27x64xf32> to vector<1x64xf32>
    %181 = vector.broadcast %180 : vector<1x64xf32> to vector<16x64xf32>
    %182 = arith.mulf %179, %181 : vector<16x64xf32>
    %183 = arith.addf %178, %182 : vector<16x64xf32>
    %184 = vector.extract_strided_slice %132 {offsets = [160, 0], sizes = [16, 64], strides = [1, 1]} : vector<432x64xf32> to vector<16x64xf32>
    %185 = vector.extract_strided_slice %131 {offsets = [10, 0], sizes = [1, 64], strides = [1, 1]} : vector<27x64xf32> to vector<1x64xf32>
    %186 = vector.broadcast %185 : vector<1x64xf32> to vector<16x64xf32>
    %187 = arith.mulf %184, %186 : vector<16x64xf32>
    %188 = arith.addf %183, %187 : vector<16x64xf32>
    %189 = vector.extract_strided_slice %132 {offsets = [176, 0], sizes = [16, 64], strides = [1, 1]} : vector<432x64xf32> to vector<16x64xf32>
    %190 = vector.extract_strided_slice %131 {offsets = [11, 0], sizes = [1, 64], strides = [1, 1]} : vector<27x64xf32> to vector<1x64xf32>
    %191 = vector.broadcast %190 : vector<1x64xf32> to vector<16x64xf32>
    %192 = arith.mulf %189, %191 : vector<16x64xf32>
    %193 = arith.addf %188, %192 : vector<16x64xf32>
    %194 = vector.extract_strided_slice %132 {offsets = [192, 0], sizes = [16, 64], strides = [1, 1]} : vector<432x64xf32> to vector<16x64xf32>
    %195 = vector.extract_strided_slice %131 {offsets = [12, 0], sizes = [1, 64], strides = [1, 1]} : vector<27x64xf32> to vector<1x64xf32>
    %196 = vector.broadcast %195 : vector<1x64xf32> to vector<16x64xf32>
    %197 = arith.mulf %194, %196 : vector<16x64xf32>
    %198 = arith.addf %193, %197 : vector<16x64xf32>
    %199 = vector.extract_strided_slice %132 {offsets = [208, 0], sizes = [16, 64], strides = [1, 1]} : vector<432x64xf32> to vector<16x64xf32>
    %200 = vector.extract_strided_slice %131 {offsets = [13, 0], sizes = [1, 64], strides = [1, 1]} : vector<27x64xf32> to vector<1x64xf32>
    %201 = vector.broadcast %200 : vector<1x64xf32> to vector<16x64xf32>
    %202 = arith.mulf %199, %201 : vector<16x64xf32>
    %203 = arith.addf %198, %202 : vector<16x64xf32>
    %204 = vector.extract_strided_slice %132 {offsets = [224, 0], sizes = [16, 64], strides = [1, 1]} : vector<432x64xf32> to vector<16x64xf32>
    %205 = vector.extract_strided_slice %131 {offsets = [14, 0], sizes = [1, 64], strides = [1, 1]} : vector<27x64xf32> to vector<1x64xf32>
    %206 = vector.broadcast %205 : vector<1x64xf32> to vector<16x64xf32>
    %207 = arith.mulf %204, %206 : vector<16x64xf32>
    %208 = arith.addf %203, %207 : vector<16x64xf32>
    %209 = vector.extract_strided_slice %132 {offsets = [240, 0], sizes = [16, 64], strides = [1, 1]} : vector<432x64xf32> to vector<16x64xf32>
    %210 = vector.extract_strided_slice %131 {offsets = [15, 0], sizes = [1, 64], strides = [1, 1]} : vector<27x64xf32> to vector<1x64xf32>
    %211 = vector.broadcast %210 : vector<1x64xf32> to vector<16x64xf32>
    %212 = arith.mulf %209, %211 : vector<16x64xf32>
    %213 = arith.addf %208, %212 : vector<16x64xf32>
    %214 = vector.extract_strided_slice %132 {offsets = [256, 0], sizes = [16, 64], strides = [1, 1]} : vector<432x64xf32> to vector<16x64xf32>
    %215 = vector.extract_strided_slice %131 {offsets = [16, 0], sizes = [1, 64], strides = [1, 1]} : vector<27x64xf32> to vector<1x64xf32>
    %216 = vector.broadcast %215 : vector<1x64xf32> to vector<16x64xf32>
    %217 = arith.mulf %214, %216 : vector<16x64xf32>
    %218 = arith.addf %213, %217 : vector<16x64xf32>
    %219 = vector.extract_strided_slice %132 {offsets = [272, 0], sizes = [16, 64], strides = [1, 1]} : vector<432x64xf32> to vector<16x64xf32>
    %220 = vector.extract_strided_slice %131 {offsets = [17, 0], sizes = [1, 64], strides = [1, 1]} : vector<27x64xf32> to vector<1x64xf32>
    %221 = vector.broadcast %220 : vector<1x64xf32> to vector<16x64xf32>
    %222 = arith.mulf %219, %221 : vector<16x64xf32>
    %223 = arith.addf %218, %222 : vector<16x64xf32>
    %224 = vector.extract_strided_slice %132 {offsets = [288, 0], sizes = [16, 64], strides = [1, 1]} : vector<432x64xf32> to vector<16x64xf32>
    %225 = vector.extract_strided_slice %131 {offsets = [18, 0], sizes = [1, 64], strides = [1, 1]} : vector<27x64xf32> to vector<1x64xf32>
    %226 = vector.broadcast %225 : vector<1x64xf32> to vector<16x64xf32>
    %227 = arith.mulf %224, %226 : vector<16x64xf32>
    %228 = arith.addf %223, %227 : vector<16x64xf32>
    %229 = vector.extract_strided_slice %132 {offsets = [304, 0], sizes = [16, 64], strides = [1, 1]} : vector<432x64xf32> to vector<16x64xf32>
    %230 = vector.extract_strided_slice %131 {offsets = [19, 0], sizes = [1, 64], strides = [1, 1]} : vector<27x64xf32> to vector<1x64xf32>
    %231 = vector.broadcast %230 : vector<1x64xf32> to vector<16x64xf32>
    %232 = arith.mulf %229, %231 : vector<16x64xf32>
    %233 = arith.addf %228, %232 : vector<16x64xf32>
    %234 = vector.extract_strided_slice %132 {offsets = [320, 0], sizes = [16, 64], strides = [1, 1]} : vector<432x64xf32> to vector<16x64xf32>
    %235 = vector.extract_strided_slice %131 {offsets = [20, 0], sizes = [1, 64], strides = [1, 1]} : vector<27x64xf32> to vector<1x64xf32>
    %236 = vector.broadcast %235 : vector<1x64xf32> to vector<16x64xf32>
    %237 = arith.mulf %234, %236 : vector<16x64xf32>
    %238 = arith.addf %233, %237 : vector<16x64xf32>
    %239 = vector.extract_strided_slice %132 {offsets = [336, 0], sizes = [16, 64], strides = [1, 1]} : vector<432x64xf32> to vector<16x64xf32>
    %240 = vector.extract_strided_slice %131 {offsets = [21, 0], sizes = [1, 64], strides = [1, 1]} : vector<27x64xf32> to vector<1x64xf32>
    %241 = vector.broadcast %240 : vector<1x64xf32> to vector<16x64xf32>
    %242 = arith.mulf %239, %241 : vector<16x64xf32>
    %243 = arith.addf %238, %242 : vector<16x64xf32>
    %244 = vector.extract_strided_slice %132 {offsets = [352, 0], sizes = [16, 64], strides = [1, 1]} : vector<432x64xf32> to vector<16x64xf32>
    %245 = vector.extract_strided_slice %131 {offsets = [22, 0], sizes = [1, 64], strides = [1, 1]} : vector<27x64xf32> to vector<1x64xf32>
    %246 = vector.broadcast %245 : vector<1x64xf32> to vector<16x64xf32>
    %247 = arith.mulf %244, %246 : vector<16x64xf32>
    %248 = arith.addf %243, %247 : vector<16x64xf32>
    %249 = vector.extract_strided_slice %132 {offsets = [368, 0], sizes = [16, 64], strides = [1, 1]} : vector<432x64xf32> to vector<16x64xf32>
    %250 = vector.extract_strided_slice %131 {offsets = [23, 0], sizes = [1, 64], strides = [1, 1]} : vector<27x64xf32> to vector<1x64xf32>
    %251 = vector.broadcast %250 : vector<1x64xf32> to vector<16x64xf32>
    %252 = arith.mulf %249, %251 : vector<16x64xf32>
    %253 = arith.addf %248, %252 : vector<16x64xf32>
    %254 = vector.extract_strided_slice %132 {offsets = [384, 0], sizes = [16, 64], strides = [1, 1]} : vector<432x64xf32> to vector<16x64xf32>
    %255 = vector.extract_strided_slice %131 {offsets = [24, 0], sizes = [1, 64], strides = [1, 1]} : vector<27x64xf32> to vector<1x64xf32>
    %256 = vector.broadcast %255 : vector<1x64xf32> to vector<16x64xf32>
    %257 = arith.mulf %254, %256 : vector<16x64xf32>
    %258 = arith.addf %253, %257 : vector<16x64xf32>
    %259 = vector.extract_strided_slice %132 {offsets = [400, 0], sizes = [16, 64], strides = [1, 1]} : vector<432x64xf32> to vector<16x64xf32>
    %260 = vector.extract_strided_slice %131 {offsets = [25, 0], sizes = [1, 64], strides = [1, 1]} : vector<27x64xf32> to vector<1x64xf32>
    %261 = vector.broadcast %260 : vector<1x64xf32> to vector<16x64xf32>
    %262 = arith.mulf %259, %261 : vector<16x64xf32>
    %263 = arith.addf %258, %262 : vector<16x64xf32>
    %264 = vector.extract_strided_slice %132 {offsets = [416, 0], sizes = [16, 64], strides = [1, 1]} : vector<432x64xf32> to vector<16x64xf32>
    %265 = vector.extract_strided_slice %131 {offsets = [26, 0], sizes = [1, 64], strides = [1, 1]} : vector<27x64xf32> to vector<1x64xf32>
    %266 = vector.broadcast %265 : vector<1x64xf32> to vector<16x64xf32>
    %267 = arith.mulf %264, %266 : vector<16x64xf32>
    %268 = arith.addf %263, %267 : vector<16x64xf32>
    %269 = arith.addf %116, %268 : vector<16x64xf32>
    %cst_58 = arith.constant dense<0.000000e+00> : vector<16xf32>
    %270 = vector.multi_reduction <add>, %269, %cst_58 [1] : vector<16x64xf32> to vector<16xf32>
    %271 = vector.shape_cast %270 : vector<16xf32> to vector<16x1xf32>
    %cst_59 = arith.constant 6.400000e+01 : f32
    %272 = vector.broadcast %cst_59 : f32 to vector<16x1xf32>
    %273 = arith.divf %271, %272 : vector<16x1xf32>
    %274 = vector.broadcast %273 : vector<16x1xf32> to vector<16x64xf32>
    %275 = arith.subf %269, %274 : vector<16x64xf32>
    %276 = arith.mulf %275, %275 : vector<16x64xf32>
    %cst_60 = arith.constant dense<0.000000e+00> : vector<16xf32>
    %277 = vector.multi_reduction <add>, %276, %cst_60 [1] : vector<16x64xf32> to vector<16xf32>
    %278 = vector.shape_cast %277 : vector<16xf32> to vector<16x1xf32>
    %cst_61 = arith.constant 6.400000e+01 : f32
    %279 = vector.broadcast %cst_61 : f32 to vector<16x1xf32>
    %280 = arith.divf %278, %279 : vector<16x1xf32>
    %281 = vector.broadcast %273 : vector<16x1xf32> to vector<16x64xf32>
    %282 = arith.subf %269, %281 : vector<16x64xf32>
    %cst_62 = arith.constant 9.99999974E-6 : f32
    %283 = vector.broadcast %cst_62 : f32 to vector<16x1xf32>
    %284 = arith.addf %280, %283 : vector<16x1xf32>
    %285 = math.rsqrt %284 : vector<16x1xf32>
    %286 = vector.broadcast %285 : vector<16x1xf32> to vector<16x64xf32>
    %287 = arith.mulf %282, %286 : vector<16x64xf32>
    %288 = vector.broadcast %125 : vector<1x64xf32> to vector<16x64xf32>
    %289 = arith.mulf %287, %288 : vector<16x64xf32>
    %290 = vector.broadcast %126 : vector<1x64xf32> to vector<16x64xf32>
    %291 = arith.addf %289, %290 : vector<16x64xf32>
    %c0_63 = arith.constant 0 : index
    %c0_64 = arith.constant 0 : index
    %c0_65 = arith.constant 0 : index
    %292 = vector.load %arg14[%c0_63, %c0_64, %c0_65] : memref<4x64x192xf32, #tpu.memory_space<vmem>>, vector<1x64x192xf32>
    %293 = vector.shape_cast %292 : vector<1x64x192xf32> to vector<64x192xf32>
    %cst_66 = arith.constant dense<0.000000e+00> : vector<16x192xf32>
    %294 = tpu.matmul %291, %293, %cst_66 {dimension_numbers = #tpu.dot_dimension_numbers<[1], [0], [0], [1], [0, 0, 1, 1], [], []>} : vector<16x64xf32>, vector<64x192xf32>, vector<16x192xf32> -> vector<16x192xf32>
    %295 = vector.extract_strided_slice %294 {offsets = [0, 0], sizes = [16, 64], strides = [1, 1]} : vector<16x192xf32> to vector<16x64xf32>
    %296 = vector.extract_strided_slice %294 {offsets = [0, 64], sizes = [16, 64], strides = [1, 1]} : vector<16x192xf32> to vector<16x64xf32>
    %297 = vector.extract_strided_slice %294 {offsets = [0, 128], sizes = [16, 64], strides = [1, 1]} : vector<16x192xf32> to vector<16x64xf32>
    %298 = tpu.concatenate %295, %295, %295, %295 in 0 : vector<16x64xf32>, vector<16x64xf32>, vector<16x64xf32>, vector<16x64xf32> -> vector<64x64xf32>
    %299 = arith.mulf %298, %117 : vector<64x64xf32>
    %cst_67 = arith.constant dense<0.000000e+00> : vector<64x16xf32>
    %300 = tpu.matmul %299, %296, %cst_67 {dimension_numbers = #tpu.dot_dimension_numbers<[1], [1], [0], [0], [0, 0, 1, 0], [], []>} : vector<64x64xf32>, vector<16x64xf32>, vector<64x16xf32> -> vector<64x16xf32>
    %301 = arith.addf %300, %121 : vector<64x16xf32>
    %cst_68 = arith.constant dense<0xFF800000> : vector<64xf32>
    %302 = vector.multi_reduction <maximumf>, %301, %cst_68 [1] : vector<64x16xf32> to vector<64xf32>
    %303 = vector.shape_cast %302 : vector<64xf32> to vector<64x1xf32>
    %304 = vector.broadcast %303 : vector<64x1xf32> to vector<64x16xf32>
    %305 = arith.subf %301, %304 : vector<64x16xf32>
    %306 = math.exp %305 : vector<64x16xf32>
    %cst_69 = arith.constant dense<0.000000e+00> : vector<64xf32>
    %307 = vector.multi_reduction <add>, %306, %cst_69 [1] : vector<64x16xf32> to vector<64xf32>
    %308 = vector.shape_cast %307 : vector<64xf32> to vector<64x1xf32>
    %309 = tpu.reciprocal %308 {approx = true} : vector<64x1xf32> -> vector<64x1xf32>
    %310 = vector.broadcast %309 : vector<64x1xf32> to vector<64x16xf32>
    %311 = arith.mulf %306, %310 : vector<64x16xf32>
    %cst_70 = arith.constant dense<0.000000e+00> : vector<64x64xf32>
    %312 = tpu.matmul %311, %297, %cst_70 {dimension_numbers = #tpu.dot_dimension_numbers<[1], [0], [0], [1], [0, 0, 1, 1], [], []>} : vector<64x16xf32>, vector<16x64xf32>, vector<64x64xf32> -> vector<64x64xf32>
    %313 = arith.mulf %312, %117 : vector<64x64xf32>
    %314 = vector.extract_strided_slice %313 {offsets = [0, 0], sizes = [16, 64], strides = [1, 1]} : vector<64x64xf32> to vector<16x64xf32>
    %315 = vector.extract_strided_slice %313 {offsets = [16, 0], sizes = [16, 64], strides = [1, 1]} : vector<64x64xf32> to vector<16x64xf32>
    %316 = arith.addf %314, %315 : vector<16x64xf32>
    %317 = vector.extract_strided_slice %313 {offsets = [32, 0], sizes = [16, 64], strides = [1, 1]} : vector<64x64xf32> to vector<16x64xf32>
    %318 = arith.addf %316, %317 : vector<16x64xf32>
    %319 = vector.extract_strided_slice %313 {offsets = [48, 0], sizes = [16, 64], strides = [1, 1]} : vector<64x64xf32> to vector<16x64xf32>
    %320 = arith.addf %318, %319 : vector<16x64xf32>
    %c0_71 = arith.constant 0 : index
    %c0_72 = arith.constant 0 : index
    %c0_73 = arith.constant 0 : index
    %321 = vector.load %arg15[%c0_71, %c0_72, %c0_73] : memref<4x64x64xf32, #tpu.memory_space<vmem>>, vector<1x64x64xf32>
    %322 = vector.shape_cast %321 : vector<1x64x64xf32> to vector<64x64xf32>
    %cst_74 = arith.constant dense<0.000000e+00> : vector<16x64xf32>
    %323 = tpu.matmul %320, %322, %cst_74 {dimension_numbers = #tpu.dot_dimension_numbers<[1], [0], [0], [1], [0, 0, 1, 1], [], []>} : vector<16x64xf32>, vector<64x64xf32>, vector<16x64xf32> -> vector<16x64xf32>
    %324 = arith.addf %269, %323 : vector<16x64xf32>
    %cst_75 = arith.constant dense<0.000000e+00> : vector<16xf32>
    %325 = vector.multi_reduction <add>, %324, %cst_75 [1] : vector<16x64xf32> to vector<16xf32>
    %326 = vector.shape_cast %325 : vector<16xf32> to vector<16x1xf32>
    %cst_76 = arith.constant 6.400000e+01 : f32
    %327 = vector.broadcast %cst_76 : f32 to vector<16x1xf32>
    %328 = arith.divf %326, %327 : vector<16x1xf32>
    %329 = vector.broadcast %328 : vector<16x1xf32> to vector<16x64xf32>
    %330 = arith.subf %324, %329 : vector<16x64xf32>
    %331 = arith.mulf %330, %330 : vector<16x64xf32>
    %cst_77 = arith.constant dense<0.000000e+00> : vector<16xf32>
    %332 = vector.multi_reduction <add>, %331, %cst_77 [1] : vector<16x64xf32> to vector<16xf32>
    %333 = vector.shape_cast %332 : vector<16xf32> to vector<16x1xf32>
    %cst_78 = arith.constant 6.400000e+01 : f32
    %334 = vector.broadcast %cst_78 : f32 to vector<16x1xf32>
    %335 = arith.divf %333, %334 : vector<16x1xf32>
    %336 = vector.broadcast %328 : vector<16x1xf32> to vector<16x64xf32>
    %337 = arith.subf %324, %336 : vector<16x64xf32>
    %cst_79 = arith.constant 9.99999974E-6 : f32
    %338 = vector.broadcast %cst_79 : f32 to vector<16x1xf32>
    %339 = arith.addf %335, %338 : vector<16x1xf32>
    %340 = math.rsqrt %339 : vector<16x1xf32>
    %341 = vector.broadcast %340 : vector<16x1xf32> to vector<16x64xf32>
    %342 = arith.mulf %337, %341 : vector<16x64xf32>
    %343 = vector.broadcast %127 : vector<1x64xf32> to vector<16x64xf32>
    %344 = arith.mulf %342, %343 : vector<16x64xf32>
    %345 = vector.broadcast %128 : vector<1x64xf32> to vector<16x64xf32>
    %346 = arith.addf %344, %345 : vector<16x64xf32>
    %c0_80 = arith.constant 0 : index
    %c0_81 = arith.constant 0 : index
    %c0_82 = arith.constant 0 : index
    %347 = vector.load %arg16[%c0_80, %c0_81, %c0_82] : memref<4x64x128xf32, #tpu.memory_space<vmem>>, vector<1x64x128xf32>
    %348 = vector.shape_cast %347 : vector<1x64x128xf32> to vector<64x128xf32>
    %cst_83 = arith.constant dense<0.000000e+00> : vector<16x128xf32>
    %349 = tpu.matmul %346, %348, %cst_83 {dimension_numbers = #tpu.dot_dimension_numbers<[1], [0], [0], [1], [0, 0, 1, 1], [], []>} : vector<16x64xf32>, vector<64x128xf32>, vector<16x128xf32> -> vector<16x128xf32>
    %c0_84 = arith.constant 0 : index
    %c0_85 = arith.constant 0 : index
    %c0_86 = arith.constant 0 : index
    %350 = vector.load %arg13[%c0_84, %c0_85, %c0_86] : memref<4x1x128xf32, #tpu.memory_space<vmem>>, vector<1x1x128xf32>
    %351 = vector.shape_cast %350 : vector<1x1x128xf32> to vector<1x128xf32>
    %352 = vector.broadcast %351 : vector<1x128xf32> to vector<16x128xf32>
    %353 = arith.addf %349, %352 : vector<16x128xf32>
    %354 = arith.mulf %353, %353 : vector<16x128xf32>
    %355 = arith.mulf %353, %354 : vector<16x128xf32>
    %cst_87 = arith.constant 4.471500e-02 : f32
    %356 = vector.broadcast %cst_87 : f32 to vector<16x128xf32>
    %357 = arith.mulf %356, %355 : vector<16x128xf32>
    %358 = arith.addf %353, %357 : vector<16x128xf32>
    %cst_88 = arith.constant 0.797884583 : f32
    %359 = vector.broadcast %cst_88 : f32 to vector<16x128xf32>
    %360 = arith.mulf %359, %358 : vector<16x128xf32>
    %361 = math.tanh %360 : vector<16x128xf32>
    %cst_89 = arith.constant 1.000000e+00 : f32
    %362 = vector.broadcast %cst_89 : f32 to vector<16x128xf32>
    %363 = arith.addf %362, %361 : vector<16x128xf32>
    %cst_90 = arith.constant 5.000000e-01 : f32
    %364 = vector.broadcast %cst_90 : f32 to vector<16x128xf32>
    %365 = arith.mulf %364, %363 : vector<16x128xf32>
    %366 = arith.mulf %353, %365 : vector<16x128xf32>
    %c0_91 = arith.constant 0 : index
    %c0_92 = arith.constant 0 : index
    %c0_93 = arith.constant 0 : index
    %367 = vector.load %arg17[%c0_91, %c0_92, %c0_93] : memref<4x128x64xf32, #tpu.memory_space<vmem>>, vector<1x128x64xf32>
    %368 = vector.shape_cast %367 : vector<1x128x64xf32> to vector<128x64xf32>
    %cst_94 = arith.constant dense<0.000000e+00> : vector<16x64xf32>
    %369 = tpu.matmul %366, %368, %cst_94 {dimension_numbers = #tpu.dot_dimension_numbers<[1], [0], [0], [1], [0, 0, 1, 1], [], []>} : vector<16x128xf32>, vector<128x64xf32>, vector<16x64xf32> -> vector<16x64xf32>
    %370 = arith.addf %324, %369 : vector<16x64xf32>
    %371 = vector.broadcast %129 : vector<1x64xf32> to vector<16x64xf32>
    %372 = arith.addf %370, %371 : vector<16x64xf32>
    %c1 = arith.constant 1 : index
    %c0_95 = arith.constant 0 : index
    %c0_96 = arith.constant 0 : index
    %373 = vector.load %arg12[%c1, %c0_95, %c0_96] : memref<4x6x64xf32, #tpu.memory_space<vmem>>, vector<1x6x64xf32>
    %374 = vector.shape_cast %373 : vector<1x6x64xf32> to vector<6x64xf32>
    %375 = vector.extract_strided_slice %374 {offsets = [0, 0], sizes = [1, 64], strides = [1, 1]} : vector<6x64xf32> to vector<1x64xf32>
    %376 = vector.extract_strided_slice %374 {offsets = [1, 0], sizes = [1, 64], strides = [1, 1]} : vector<6x64xf32> to vector<1x64xf32>
    %377 = vector.extract_strided_slice %374 {offsets = [2, 0], sizes = [1, 64], strides = [1, 1]} : vector<6x64xf32> to vector<1x64xf32>
    %378 = vector.extract_strided_slice %374 {offsets = [3, 0], sizes = [1, 64], strides = [1, 1]} : vector<6x64xf32> to vector<1x64xf32>
    %379 = vector.extract_strided_slice %374 {offsets = [4, 0], sizes = [1, 64], strides = [1, 1]} : vector<6x64xf32> to vector<1x64xf32>
    %380 = vector.extract_strided_slice %374 {offsets = [5, 0], sizes = [1, 64], strides = [1, 1]} : vector<6x64xf32> to vector<1x64xf32>
    %c1_97 = arith.constant 1 : index
    %c0_98 = arith.constant 0 : index
    %c0_99 = arith.constant 0 : index
    %381 = vector.load %arg11[%c1_97, %c0_98, %c0_99] : memref<4x27x64xf32, #tpu.memory_space<vmem>>, vector<1x27x64xf32>
    %382 = vector.shape_cast %381 : vector<1x27x64xf32> to vector<27x64xf32>
    %cst_100 = arith.constant dense<0.000000e+00> : vector<432x64xf32>
    %383 = tpu.matmul %118, %372, %cst_100 {dimension_numbers = #tpu.dot_dimension_numbers<[1], [0], [0], [1], [0, 0, 1, 1], [], []>} : vector<432x16xf32>, vector<16x64xf32>, vector<432x64xf32> -> vector<432x64xf32>
    %384 = vector.extract_strided_slice %383 {offsets = [0, 0], sizes = [16, 64], strides = [1, 1]} : vector<432x64xf32> to vector<16x64xf32>
    %385 = vector.extract_strided_slice %382 {offsets = [0, 0], sizes = [1, 64], strides = [1, 1]} : vector<27x64xf32> to vector<1x64xf32>
    %386 = vector.broadcast %385 : vector<1x64xf32> to vector<16x64xf32>
    %387 = arith.mulf %384, %386 : vector<16x64xf32>
    %388 = vector.broadcast %375 : vector<1x64xf32> to vector<16x64xf32>
    %389 = arith.addf %388, %387 : vector<16x64xf32>
    %390 = vector.extract_strided_slice %383 {offsets = [16, 0], sizes = [16, 64], strides = [1, 1]} : vector<432x64xf32> to vector<16x64xf32>
    %391 = vector.extract_strided_slice %382 {offsets = [1, 0], sizes = [1, 64], strides = [1, 1]} : vector<27x64xf32> to vector<1x64xf32>
    %392 = vector.broadcast %391 : vector<1x64xf32> to vector<16x64xf32>
    %393 = arith.mulf %390, %392 : vector<16x64xf32>
    %394 = arith.addf %389, %393 : vector<16x64xf32>
    %395 = vector.extract_strided_slice %383 {offsets = [32, 0], sizes = [16, 64], strides = [1, 1]} : vector<432x64xf32> to vector<16x64xf32>
    %396 = vector.extract_strided_slice %382 {offsets = [2, 0], sizes = [1, 64], strides = [1, 1]} : vector<27x64xf32> to vector<1x64xf32>
    %397 = vector.broadcast %396 : vector<1x64xf32> to vector<16x64xf32>
    %398 = arith.mulf %395, %397 : vector<16x64xf32>
    %399 = arith.addf %394, %398 : vector<16x64xf32>
    %400 = vector.extract_strided_slice %383 {offsets = [48, 0], sizes = [16, 64], strides = [1, 1]} : vector<432x64xf32> to vector<16x64xf32>
    %401 = vector.extract_strided_slice %382 {offsets = [3, 0], sizes = [1, 64], strides = [1, 1]} : vector<27x64xf32> to vector<1x64xf32>
    %402 = vector.broadcast %401 : vector<1x64xf32> to vector<16x64xf32>
    %403 = arith.mulf %400, %402 : vector<16x64xf32>
    %404 = arith.addf %399, %403 : vector<16x64xf32>
    %405 = vector.extract_strided_slice %383 {offsets = [64, 0], sizes = [16, 64], strides = [1, 1]} : vector<432x64xf32> to vector<16x64xf32>
    %406 = vector.extract_strided_slice %382 {offsets = [4, 0], sizes = [1, 64], strides = [1, 1]} : vector<27x64xf32> to vector<1x64xf32>
    %407 = vector.broadcast %406 : vector<1x64xf32> to vector<16x64xf32>
    %408 = arith.mulf %405, %407 : vector<16x64xf32>
    %409 = arith.addf %404, %408 : vector<16x64xf32>
    %410 = vector.extract_strided_slice %383 {offsets = [80, 0], sizes = [16, 64], strides = [1, 1]} : vector<432x64xf32> to vector<16x64xf32>
    %411 = vector.extract_strided_slice %382 {offsets = [5, 0], sizes = [1, 64], strides = [1, 1]} : vector<27x64xf32> to vector<1x64xf32>
    %412 = vector.broadcast %411 : vector<1x64xf32> to vector<16x64xf32>
    %413 = arith.mulf %410, %412 : vector<16x64xf32>
    %414 = arith.addf %409, %413 : vector<16x64xf32>
    %415 = vector.extract_strided_slice %383 {offsets = [96, 0], sizes = [16, 64], strides = [1, 1]} : vector<432x64xf32> to vector<16x64xf32>
    %416 = vector.extract_strided_slice %382 {offsets = [6, 0], sizes = [1, 64], strides = [1, 1]} : vector<27x64xf32> to vector<1x64xf32>
    %417 = vector.broadcast %416 : vector<1x64xf32> to vector<16x64xf32>
    %418 = arith.mulf %415, %417 : vector<16x64xf32>
    %419 = arith.addf %414, %418 : vector<16x64xf32>
    %420 = vector.extract_strided_slice %383 {offsets = [112, 0], sizes = [16, 64], strides = [1, 1]} : vector<432x64xf32> to vector<16x64xf32>
    %421 = vector.extract_strided_slice %382 {offsets = [7, 0], sizes = [1, 64], strides = [1, 1]} : vector<27x64xf32> to vector<1x64xf32>
    %422 = vector.broadcast %421 : vector<1x64xf32> to vector<16x64xf32>
    %423 = arith.mulf %420, %422 : vector<16x64xf32>
    %424 = arith.addf %419, %423 : vector<16x64xf32>
    %425 = vector.extract_strided_slice %383 {offsets = [128, 0], sizes = [16, 64], strides = [1, 1]} : vector<432x64xf32> to vector<16x64xf32>
    %426 = vector.extract_strided_slice %382 {offsets = [8, 0], sizes = [1, 64], strides = [1, 1]} : vector<27x64xf32> to vector<1x64xf32>
    %427 = vector.broadcast %426 : vector<1x64xf32> to vector<16x64xf32>
    %428 = arith.mulf %425, %427 : vector<16x64xf32>
    %429 = arith.addf %424, %428 : vector<16x64xf32>
    %430 = vector.extract_strided_slice %383 {offsets = [144, 0], sizes = [16, 64], strides = [1, 1]} : vector<432x64xf32> to vector<16x64xf32>
    %431 = vector.extract_strided_slice %382 {offsets = [9, 0], sizes = [1, 64], strides = [1, 1]} : vector<27x64xf32> to vector<1x64xf32>
    %432 = vector.broadcast %431 : vector<1x64xf32> to vector<16x64xf32>
    %433 = arith.mulf %430, %432 : vector<16x64xf32>
    %434 = arith.addf %429, %433 : vector<16x64xf32>
    %435 = vector.extract_strided_slice %383 {offsets = [160, 0], sizes = [16, 64], strides = [1, 1]} : vector<432x64xf32> to vector<16x64xf32>
    %436 = vector.extract_strided_slice %382 {offsets = [10, 0], sizes = [1, 64], strides = [1, 1]} : vector<27x64xf32> to vector<1x64xf32>
    %437 = vector.broadcast %436 : vector<1x64xf32> to vector<16x64xf32>
    %438 = arith.mulf %435, %437 : vector<16x64xf32>
    %439 = arith.addf %434, %438 : vector<16x64xf32>
    %440 = vector.extract_strided_slice %383 {offsets = [176, 0], sizes = [16, 64], strides = [1, 1]} : vector<432x64xf32> to vector<16x64xf32>
    %441 = vector.extract_strided_slice %382 {offsets = [11, 0], sizes = [1, 64], strides = [1, 1]} : vector<27x64xf32> to vector<1x64xf32>
    %442 = vector.broadcast %441 : vector<1x64xf32> to vector<16x64xf32>
    %443 = arith.mulf %440, %442 : vector<16x64xf32>
    %444 = arith.addf %439, %443 : vector<16x64xf32>
    %445 = vector.extract_strided_slice %383 {offsets = [192, 0], sizes = [16, 64], strides = [1, 1]} : vector<432x64xf32> to vector<16x64xf32>
    %446 = vector.extract_strided_slice %382 {offsets = [12, 0], sizes = [1, 64], strides = [1, 1]} : vector<27x64xf32> to vector<1x64xf32>
    %447 = vector.broadcast %446 : vector<1x64xf32> to vector<16x64xf32>
    %448 = arith.mulf %445, %447 : vector<16x64xf32>
    %449 = arith.addf %444, %448 : vector<16x64xf32>
    %450 = vector.extract_strided_slice %383 {offsets = [208, 0], sizes = [16, 64], strides = [1, 1]} : vector<432x64xf32> to vector<16x64xf32>
    %451 = vector.extract_strided_slice %382 {offsets = [13, 0], sizes = [1, 64], strides = [1, 1]} : vector<27x64xf32> to vector<1x64xf32>
    %452 = vector.broadcast %451 : vector<1x64xf32> to vector<16x64xf32>
    %453 = arith.mulf %450, %452 : vector<16x64xf32>
    %454 = arith.addf %449, %453 : vector<16x64xf32>
    %455 = vector.extract_strided_slice %383 {offsets = [224, 0], sizes = [16, 64], strides = [1, 1]} : vector<432x64xf32> to vector<16x64xf32>
    %456 = vector.extract_strided_slice %382 {offsets = [14, 0], sizes = [1, 64], strides = [1, 1]} : vector<27x64xf32> to vector<1x64xf32>
    %457 = vector.broadcast %456 : vector<1x64xf32> to vector<16x64xf32>
    %458 = arith.mulf %455, %457 : vector<16x64xf32>
    %459 = arith.addf %454, %458 : vector<16x64xf32>
    %460 = vector.extract_strided_slice %383 {offsets = [240, 0], sizes = [16, 64], strides = [1, 1]} : vector<432x64xf32> to vector<16x64xf32>
    %461 = vector.extract_strided_slice %382 {offsets = [15, 0], sizes = [1, 64], strides = [1, 1]} : vector<27x64xf32> to vector<1x64xf32>
    %462 = vector.broadcast %461 : vector<1x64xf32> to vector<16x64xf32>
    %463 = arith.mulf %460, %462 : vector<16x64xf32>
    %464 = arith.addf %459, %463 : vector<16x64xf32>
    %465 = vector.extract_strided_slice %383 {offsets = [256, 0], sizes = [16, 64], strides = [1, 1]} : vector<432x64xf32> to vector<16x64xf32>
    %466 = vector.extract_strided_slice %382 {offsets = [16, 0], sizes = [1, 64], strides = [1, 1]} : vector<27x64xf32> to vector<1x64xf32>
    %467 = vector.broadcast %466 : vector<1x64xf32> to vector<16x64xf32>
    %468 = arith.mulf %465, %467 : vector<16x64xf32>
    %469 = arith.addf %464, %468 : vector<16x64xf32>
    %470 = vector.extract_strided_slice %383 {offsets = [272, 0], sizes = [16, 64], strides = [1, 1]} : vector<432x64xf32> to vector<16x64xf32>
    %471 = vector.extract_strided_slice %382 {offsets = [17, 0], sizes = [1, 64], strides = [1, 1]} : vector<27x64xf32> to vector<1x64xf32>
    %472 = vector.broadcast %471 : vector<1x64xf32> to vector<16x64xf32>
    %473 = arith.mulf %470, %472 : vector<16x64xf32>
    %474 = arith.addf %469, %473 : vector<16x64xf32>
    %475 = vector.extract_strided_slice %383 {offsets = [288, 0], sizes = [16, 64], strides = [1, 1]} : vector<432x64xf32> to vector<16x64xf32>
    %476 = vector.extract_strided_slice %382 {offsets = [18, 0], sizes = [1, 64], strides = [1, 1]} : vector<27x64xf32> to vector<1x64xf32>
    %477 = vector.broadcast %476 : vector<1x64xf32> to vector<16x64xf32>
    %478 = arith.mulf %475, %477 : vector<16x64xf32>
    %479 = arith.addf %474, %478 : vector<16x64xf32>
    %480 = vector.extract_strided_slice %383 {offsets = [304, 0], sizes = [16, 64], strides = [1, 1]} : vector<432x64xf32> to vector<16x64xf32>
    %481 = vector.extract_strided_slice %382 {offsets = [19, 0], sizes = [1, 64], strides = [1, 1]} : vector<27x64xf32> to vector<1x64xf32>
    %482 = vector.broadcast %481 : vector<1x64xf32> to vector<16x64xf32>
    %483 = arith.mulf %480, %482 : vector<16x64xf32>
    %484 = arith.addf %479, %483 : vector<16x64xf32>
    %485 = vector.extract_strided_slice %383 {offsets = [320, 0], sizes = [16, 64], strides = [1, 1]} : vector<432x64xf32> to vector<16x64xf32>
    %486 = vector.extract_strided_slice %382 {offsets = [20, 0], sizes = [1, 64], strides = [1, 1]} : vector<27x64xf32> to vector<1x64xf32>
    %487 = vector.broadcast %486 : vector<1x64xf32> to vector<16x64xf32>
    %488 = arith.mulf %485, %487 : vector<16x64xf32>
    %489 = arith.addf %484, %488 : vector<16x64xf32>
    %490 = vector.extract_strided_slice %383 {offsets = [336, 0], sizes = [16, 64], strides = [1, 1]} : vector<432x64xf32> to vector<16x64xf32>
    %491 = vector.extract_strided_slice %382 {offsets = [21, 0], sizes = [1, 64], strides = [1, 1]} : vector<27x64xf32> to vector<1x64xf32>
    %492 = vector.broadcast %491 : vector<1x64xf32> to vector<16x64xf32>
    %493 = arith.mulf %490, %492 : vector<16x64xf32>
    %494 = arith.addf %489, %493 : vector<16x64xf32>
    %495 = vector.extract_strided_slice %383 {offsets = [352, 0], sizes = [16, 64], strides = [1, 1]} : vector<432x64xf32> to vector<16x64xf32>
    %496 = vector.extract_strided_slice %382 {offsets = [22, 0], sizes = [1, 64], strides = [1, 1]} : vector<27x64xf32> to vector<1x64xf32>
    %497 = vector.broadcast %496 : vector<1x64xf32> to vector<16x64xf32>
    %498 = arith.mulf %495, %497 : vector<16x64xf32>
    %499 = arith.addf %494, %498 : vector<16x64xf32>
    %500 = vector.extract_strided_slice %383 {offsets = [368, 0], sizes = [16, 64], strides = [1, 1]} : vector<432x64xf32> to vector<16x64xf32>
    %501 = vector.extract_strided_slice %382 {offsets = [23, 0], sizes = [1, 64], strides = [1, 1]} : vector<27x64xf32> to vector<1x64xf32>
    %502 = vector.broadcast %501 : vector<1x64xf32> to vector<16x64xf32>
    %503 = arith.mulf %500, %502 : vector<16x64xf32>
    %504 = arith.addf %499, %503 : vector<16x64xf32>
    %505 = vector.extract_strided_slice %383 {offsets = [384, 0], sizes = [16, 64], strides = [1, 1]} : vector<432x64xf32> to vector<16x64xf32>
    %506 = vector.extract_strided_slice %382 {offsets = [24, 0], sizes = [1, 64], strides = [1, 1]} : vector<27x64xf32> to vector<1x64xf32>
    %507 = vector.broadcast %506 : vector<1x64xf32> to vector<16x64xf32>
    %508 = arith.mulf %505, %507 : vector<16x64xf32>
    %509 = arith.addf %504, %508 : vector<16x64xf32>
    %510 = vector.extract_strided_slice %383 {offsets = [400, 0], sizes = [16, 64], strides = [1, 1]} : vector<432x64xf32> to vector<16x64xf32>
    %511 = vector.extract_strided_slice %382 {offsets = [25, 0], sizes = [1, 64], strides = [1, 1]} : vector<27x64xf32> to vector<1x64xf32>
    %512 = vector.broadcast %511 : vector<1x64xf32> to vector<16x64xf32>
    %513 = arith.mulf %510, %512 : vector<16x64xf32>
    %514 = arith.addf %509, %513 : vector<16x64xf32>
    %515 = vector.extract_strided_slice %383 {offsets = [416, 0], sizes = [16, 64], strides = [1, 1]} : vector<432x64xf32> to vector<16x64xf32>
    %516 = vector.extract_strided_slice %382 {offsets = [26, 0], sizes = [1, 64], strides = [1, 1]} : vector<27x64xf32> to vector<1x64xf32>
    %517 = vector.broadcast %516 : vector<1x64xf32> to vector<16x64xf32>
    %518 = arith.mulf %515, %517 : vector<16x64xf32>
    %519 = arith.addf %514, %518 : vector<16x64xf32>
    %520 = arith.addf %372, %519 : vector<16x64xf32>
    %cst_101 = arith.constant dense<0.000000e+00> : vector<16xf32>
    %521 = vector.multi_reduction <add>, %520, %cst_101 [1] : vector<16x64xf32> to vector<16xf32>
    %522 = vector.shape_cast %521 : vector<16xf32> to vector<16x1xf32>
    %cst_102 = arith.constant 6.400000e+01 : f32
    %523 = vector.broadcast %cst_102 : f32 to vector<16x1xf32>
    %524 = arith.divf %522, %523 : vector<16x1xf32>
    %525 = vector.broadcast %524 : vector<16x1xf32> to vector<16x64xf32>
    %526 = arith.subf %520, %525 : vector<16x64xf32>
    %527 = arith.mulf %526, %526 : vector<16x64xf32>
    %cst_103 = arith.constant dense<0.000000e+00> : vector<16xf32>
    %528 = vector.multi_reduction <add>, %527, %cst_103 [1] : vector<16x64xf32> to vector<16xf32>
    %529 = vector.shape_cast %528 : vector<16xf32> to vector<16x1xf32>
    %cst_104 = arith.constant 6.400000e+01 : f32
    %530 = vector.broadcast %cst_104 : f32 to vector<16x1xf32>
    %531 = arith.divf %529, %530 : vector<16x1xf32>
    %532 = vector.broadcast %524 : vector<16x1xf32> to vector<16x64xf32>
    %533 = arith.subf %520, %532 : vector<16x64xf32>
    %cst_105 = arith.constant 9.99999974E-6 : f32
    %534 = vector.broadcast %cst_105 : f32 to vector<16x1xf32>
    %535 = arith.addf %531, %534 : vector<16x1xf32>
    %536 = math.rsqrt %535 : vector<16x1xf32>
    %537 = vector.broadcast %536 : vector<16x1xf32> to vector<16x64xf32>
    %538 = arith.mulf %533, %537 : vector<16x64xf32>
    %539 = vector.broadcast %376 : vector<1x64xf32> to vector<16x64xf32>
    %540 = arith.mulf %538, %539 : vector<16x64xf32>
    %541 = vector.broadcast %377 : vector<1x64xf32> to vector<16x64xf32>
    %542 = arith.addf %540, %541 : vector<16x64xf32>
    %c1_106 = arith.constant 1 : index
    %c0_107 = arith.constant 0 : index
    %c0_108 = arith.constant 0 : index
    %543 = vector.load %arg14[%c1_106, %c0_107, %c0_108] : memref<4x64x192xf32, #tpu.memory_space<vmem>>, vector<1x64x192xf32>
    %544 = vector.shape_cast %543 : vector<1x64x192xf32> to vector<64x192xf32>
    %cst_109 = arith.constant dense<0.000000e+00> : vector<16x192xf32>
    %545 = tpu.matmul %542, %544, %cst_109 {dimension_numbers = #tpu.dot_dimension_numbers<[1], [0], [0], [1], [0, 0, 1, 1], [], []>} : vector<16x64xf32>, vector<64x192xf32>, vector<16x192xf32> -> vector<16x192xf32>
    %546 = vector.extract_strided_slice %545 {offsets = [0, 0], sizes = [16, 64], strides = [1, 1]} : vector<16x192xf32> to vector<16x64xf32>
    %547 = vector.extract_strided_slice %545 {offsets = [0, 64], sizes = [16, 64], strides = [1, 1]} : vector<16x192xf32> to vector<16x64xf32>
    %548 = vector.extract_strided_slice %545 {offsets = [0, 128], sizes = [16, 64], strides = [1, 1]} : vector<16x192xf32> to vector<16x64xf32>
    %549 = tpu.concatenate %546, %546, %546, %546 in 0 : vector<16x64xf32>, vector<16x64xf32>, vector<16x64xf32>, vector<16x64xf32> -> vector<64x64xf32>
    %550 = arith.mulf %549, %117 : vector<64x64xf32>
    %cst_110 = arith.constant dense<0.000000e+00> : vector<64x16xf32>
    %551 = tpu.matmul %550, %547, %cst_110 {dimension_numbers = #tpu.dot_dimension_numbers<[1], [1], [0], [0], [0, 0, 1, 0], [], []>} : vector<64x64xf32>, vector<16x64xf32>, vector<64x16xf32> -> vector<64x16xf32>
    %552 = arith.addf %551, %121 : vector<64x16xf32>
    %cst_111 = arith.constant dense<0xFF800000> : vector<64xf32>
    %553 = vector.multi_reduction <maximumf>, %552, %cst_111 [1] : vector<64x16xf32> to vector<64xf32>
    %554 = vector.shape_cast %553 : vector<64xf32> to vector<64x1xf32>
    %555 = vector.broadcast %554 : vector<64x1xf32> to vector<64x16xf32>
    %556 = arith.subf %552, %555 : vector<64x16xf32>
    %557 = math.exp %556 : vector<64x16xf32>
    %cst_112 = arith.constant dense<0.000000e+00> : vector<64xf32>
    %558 = vector.multi_reduction <add>, %557, %cst_112 [1] : vector<64x16xf32> to vector<64xf32>
    %559 = vector.shape_cast %558 : vector<64xf32> to vector<64x1xf32>
    %560 = tpu.reciprocal %559 {approx = true} : vector<64x1xf32> -> vector<64x1xf32>
    %561 = vector.broadcast %560 : vector<64x1xf32> to vector<64x16xf32>
    %562 = arith.mulf %557, %561 : vector<64x16xf32>
    %cst_113 = arith.constant dense<0.000000e+00> : vector<64x64xf32>
    %563 = tpu.matmul %562, %548, %cst_113 {dimension_numbers = #tpu.dot_dimension_numbers<[1], [0], [0], [1], [0, 0, 1, 1], [], []>} : vector<64x16xf32>, vector<16x64xf32>, vector<64x64xf32> -> vector<64x64xf32>
    %564 = arith.mulf %563, %117 : vector<64x64xf32>
    %565 = vector.extract_strided_slice %564 {offsets = [0, 0], sizes = [16, 64], strides = [1, 1]} : vector<64x64xf32> to vector<16x64xf32>
    %566 = vector.extract_strided_slice %564 {offsets = [16, 0], sizes = [16, 64], strides = [1, 1]} : vector<64x64xf32> to vector<16x64xf32>
    %567 = arith.addf %565, %566 : vector<16x64xf32>
    %568 = vector.extract_strided_slice %564 {offsets = [32, 0], sizes = [16, 64], strides = [1, 1]} : vector<64x64xf32> to vector<16x64xf32>
    %569 = arith.addf %567, %568 : vector<16x64xf32>
    %570 = vector.extract_strided_slice %564 {offsets = [48, 0], sizes = [16, 64], strides = [1, 1]} : vector<64x64xf32> to vector<16x64xf32>
    %571 = arith.addf %569, %570 : vector<16x64xf32>
    %c1_114 = arith.constant 1 : index
    %c0_115 = arith.constant 0 : index
    %c0_116 = arith.constant 0 : index
    %572 = vector.load %arg15[%c1_114, %c0_115, %c0_116] : memref<4x64x64xf32, #tpu.memory_space<vmem>>, vector<1x64x64xf32>
    %573 = vector.shape_cast %572 : vector<1x64x64xf32> to vector<64x64xf32>
    %cst_117 = arith.constant dense<0.000000e+00> : vector<16x64xf32>
    %574 = tpu.matmul %571, %573, %cst_117 {dimension_numbers = #tpu.dot_dimension_numbers<[1], [0], [0], [1], [0, 0, 1, 1], [], []>} : vector<16x64xf32>, vector<64x64xf32>, vector<16x64xf32> -> vector<16x64xf32>
    %575 = arith.addf %520, %574 : vector<16x64xf32>
    %cst_118 = arith.constant dense<0.000000e+00> : vector<16xf32>
    %576 = vector.multi_reduction <add>, %575, %cst_118 [1] : vector<16x64xf32> to vector<16xf32>
    %577 = vector.shape_cast %576 : vector<16xf32> to vector<16x1xf32>
    %cst_119 = arith.constant 6.400000e+01 : f32
    %578 = vector.broadcast %cst_119 : f32 to vector<16x1xf32>
    %579 = arith.divf %577, %578 : vector<16x1xf32>
    %580 = vector.broadcast %579 : vector<16x1xf32> to vector<16x64xf32>
    %581 = arith.subf %575, %580 : vector<16x64xf32>
    %582 = arith.mulf %581, %581 : vector<16x64xf32>
    %cst_120 = arith.constant dense<0.000000e+00> : vector<16xf32>
    %583 = vector.multi_reduction <add>, %582, %cst_120 [1] : vector<16x64xf32> to vector<16xf32>
    %584 = vector.shape_cast %583 : vector<16xf32> to vector<16x1xf32>
    %cst_121 = arith.constant 6.400000e+01 : f32
    %585 = vector.broadcast %cst_121 : f32 to vector<16x1xf32>
    %586 = arith.divf %584, %585 : vector<16x1xf32>
    %587 = vector.broadcast %579 : vector<16x1xf32> to vector<16x64xf32>
    %588 = arith.subf %575, %587 : vector<16x64xf32>
    %cst_122 = arith.constant 9.99999974E-6 : f32
    %589 = vector.broadcast %cst_122 : f32 to vector<16x1xf32>
    %590 = arith.addf %586, %589 : vector<16x1xf32>
    %591 = math.rsqrt %590 : vector<16x1xf32>
    %592 = vector.broadcast %591 : vector<16x1xf32> to vector<16x64xf32>
    %593 = arith.mulf %588, %592 : vector<16x64xf32>
    %594 = vector.broadcast %378 : vector<1x64xf32> to vector<16x64xf32>
    %595 = arith.mulf %593, %594 : vector<16x64xf32>
    %596 = vector.broadcast %379 : vector<1x64xf32> to vector<16x64xf32>
    %597 = arith.addf %595, %596 : vector<16x64xf32>
    %c1_123 = arith.constant 1 : index
    %c0_124 = arith.constant 0 : index
    %c0_125 = arith.constant 0 : index
    %598 = vector.load %arg16[%c1_123, %c0_124, %c0_125] : memref<4x64x128xf32, #tpu.memory_space<vmem>>, vector<1x64x128xf32>
    %599 = vector.shape_cast %598 : vector<1x64x128xf32> to vector<64x128xf32>
    %cst_126 = arith.constant dense<0.000000e+00> : vector<16x128xf32>
    %600 = tpu.matmul %597, %599, %cst_126 {dimension_numbers = #tpu.dot_dimension_numbers<[1], [0], [0], [1], [0, 0, 1, 1], [], []>} : vector<16x64xf32>, vector<64x128xf32>, vector<16x128xf32> -> vector<16x128xf32>
    %c1_127 = arith.constant 1 : index
    %c0_128 = arith.constant 0 : index
    %c0_129 = arith.constant 0 : index
    %601 = vector.load %arg13[%c1_127, %c0_128, %c0_129] : memref<4x1x128xf32, #tpu.memory_space<vmem>>, vector<1x1x128xf32>
    %602 = vector.shape_cast %601 : vector<1x1x128xf32> to vector<1x128xf32>
    %603 = vector.broadcast %602 : vector<1x128xf32> to vector<16x128xf32>
    %604 = arith.addf %600, %603 : vector<16x128xf32>
    %605 = arith.mulf %604, %604 : vector<16x128xf32>
    %606 = arith.mulf %604, %605 : vector<16x128xf32>
    %cst_130 = arith.constant 4.471500e-02 : f32
    %607 = vector.broadcast %cst_130 : f32 to vector<16x128xf32>
    %608 = arith.mulf %607, %606 : vector<16x128xf32>
    %609 = arith.addf %604, %608 : vector<16x128xf32>
    %cst_131 = arith.constant 0.797884583 : f32
    %610 = vector.broadcast %cst_131 : f32 to vector<16x128xf32>
    %611 = arith.mulf %610, %609 : vector<16x128xf32>
    %612 = math.tanh %611 : vector<16x128xf32>
    %cst_132 = arith.constant 1.000000e+00 : f32
    %613 = vector.broadcast %cst_132 : f32 to vector<16x128xf32>
    %614 = arith.addf %613, %612 : vector<16x128xf32>
    %cst_133 = arith.constant 5.000000e-01 : f32
    %615 = vector.broadcast %cst_133 : f32 to vector<16x128xf32>
    %616 = arith.mulf %615, %614 : vector<16x128xf32>
    %617 = arith.mulf %604, %616 : vector<16x128xf32>
    %c1_134 = arith.constant 1 : index
    %c0_135 = arith.constant 0 : index
    %c0_136 = arith.constant 0 : index
    %618 = vector.load %arg17[%c1_134, %c0_135, %c0_136] : memref<4x128x64xf32, #tpu.memory_space<vmem>>, vector<1x128x64xf32>
    %619 = vector.shape_cast %618 : vector<1x128x64xf32> to vector<128x64xf32>
    %cst_137 = arith.constant dense<0.000000e+00> : vector<16x64xf32>
    %620 = tpu.matmul %617, %619, %cst_137 {dimension_numbers = #tpu.dot_dimension_numbers<[1], [0], [0], [1], [0, 0, 1, 1], [], []>} : vector<16x128xf32>, vector<128x64xf32>, vector<16x64xf32> -> vector<16x64xf32>
    %621 = arith.addf %575, %620 : vector<16x64xf32>
    %622 = vector.broadcast %380 : vector<1x64xf32> to vector<16x64xf32>
    %623 = arith.addf %621, %622 : vector<16x64xf32>
    %624 = vector.extract_strided_slice %119 {offsets = [0, 0], sizes = [1, 64], strides = [1, 1]} : vector<4x64xf32> to vector<1x64xf32>
    %625 = vector.extract_strided_slice %119 {offsets = [1, 0], sizes = [1, 64], strides = [1, 1]} : vector<4x64xf32> to vector<1x64xf32>
    %cst_138 = arith.constant dense<0.000000e+00> : vector<16xf32>
    %626 = vector.multi_reduction <add>, %623, %cst_138 [1] : vector<16x64xf32> to vector<16xf32>
    %627 = vector.shape_cast %626 : vector<16xf32> to vector<16x1xf32>
    %cst_139 = arith.constant 6.400000e+01 : f32
    %628 = vector.broadcast %cst_139 : f32 to vector<16x1xf32>
    %629 = arith.divf %627, %628 : vector<16x1xf32>
    %630 = vector.broadcast %629 : vector<16x1xf32> to vector<16x64xf32>
    %631 = arith.subf %623, %630 : vector<16x64xf32>
    %632 = arith.mulf %631, %631 : vector<16x64xf32>
    %cst_140 = arith.constant dense<0.000000e+00> : vector<16xf32>
    %633 = vector.multi_reduction <add>, %632, %cst_140 [1] : vector<16x64xf32> to vector<16xf32>
    %634 = vector.shape_cast %633 : vector<16xf32> to vector<16x1xf32>
    %cst_141 = arith.constant 6.400000e+01 : f32
    %635 = vector.broadcast %cst_141 : f32 to vector<16x1xf32>
    %636 = arith.divf %634, %635 : vector<16x1xf32>
    %637 = vector.broadcast %629 : vector<16x1xf32> to vector<16x64xf32>
    %638 = arith.subf %623, %637 : vector<16x64xf32>
    %cst_142 = arith.constant 9.99999974E-6 : f32
    %639 = vector.broadcast %cst_142 : f32 to vector<16x1xf32>
    %640 = arith.addf %636, %639 : vector<16x1xf32>
    %641 = math.rsqrt %640 : vector<16x1xf32>
    %642 = vector.broadcast %641 : vector<16x1xf32> to vector<16x64xf32>
    %643 = arith.mulf %638, %642 : vector<16x64xf32>
    %644 = vector.broadcast %624 : vector<1x64xf32> to vector<16x64xf32>
    %645 = arith.mulf %643, %644 : vector<16x64xf32>
    %646 = vector.broadcast %625 : vector<1x64xf32> to vector<16x64xf32>
    %647 = arith.addf %645, %646 : vector<16x64xf32>
    %c1_143 = arith.constant 1 : index
    %c0_144 = arith.constant 0 : index
    %c0_145 = arith.constant 0 : index
    %648 = vector.load %arg18[%c1_143, %c0_144, %c0_145] : memref<2x64x16xf32, #tpu.memory_space<vmem>>, vector<1x64x16xf32>
    %649 = vector.shape_cast %648 : vector<1x64x16xf32> to vector<64x16xf32>
    %c2 = arith.constant 2 : index
    %c0_146 = arith.constant 0 : index
    %c0_147 = arith.constant 0 : index
    %650 = vector.load %arg12[%c2, %c0_146, %c0_147] : memref<4x6x64xf32, #tpu.memory_space<vmem>>, vector<1x6x64xf32>
    %651 = vector.shape_cast %650 : vector<1x6x64xf32> to vector<6x64xf32>
    %652 = vector.extract_strided_slice %651 {offsets = [0, 0], sizes = [1, 64], strides = [1, 1]} : vector<6x64xf32> to vector<1x64xf32>
    %653 = vector.extract_strided_slice %651 {offsets = [1, 0], sizes = [1, 64], strides = [1, 1]} : vector<6x64xf32> to vector<1x64xf32>
    %654 = vector.extract_strided_slice %651 {offsets = [2, 0], sizes = [1, 64], strides = [1, 1]} : vector<6x64xf32> to vector<1x64xf32>
    %655 = vector.extract_strided_slice %651 {offsets = [3, 0], sizes = [1, 64], strides = [1, 1]} : vector<6x64xf32> to vector<1x64xf32>
    %656 = vector.extract_strided_slice %651 {offsets = [4, 0], sizes = [1, 64], strides = [1, 1]} : vector<6x64xf32> to vector<1x64xf32>
    %657 = vector.extract_strided_slice %651 {offsets = [5, 0], sizes = [1, 64], strides = [1, 1]} : vector<6x64xf32> to vector<1x64xf32>
    %c2_148 = arith.constant 2 : index
    %c0_149 = arith.constant 0 : index
    %c0_150 = arith.constant 0 : index
    %658 = vector.load %arg11[%c2_148, %c0_149, %c0_150] : memref<4x27x64xf32, #tpu.memory_space<vmem>>, vector<1x27x64xf32>
    %659 = vector.shape_cast %658 : vector<1x27x64xf32> to vector<27x64xf32>
    %cst_151 = arith.constant dense<0.000000e+00> : vector<432x64xf32>
    %660 = tpu.matmul %118, %647, %cst_151 {dimension_numbers = #tpu.dot_dimension_numbers<[1], [0], [0], [1], [0, 0, 1, 1], [], []>} : vector<432x16xf32>, vector<16x64xf32>, vector<432x64xf32> -> vector<432x64xf32>
    %661 = vector.extract_strided_slice %660 {offsets = [0, 0], sizes = [16, 64], strides = [1, 1]} : vector<432x64xf32> to vector<16x64xf32>
    %662 = vector.extract_strided_slice %659 {offsets = [0, 0], sizes = [1, 64], strides = [1, 1]} : vector<27x64xf32> to vector<1x64xf32>
    %663 = vector.broadcast %662 : vector<1x64xf32> to vector<16x64xf32>
    %664 = arith.mulf %661, %663 : vector<16x64xf32>
    %665 = vector.broadcast %652 : vector<1x64xf32> to vector<16x64xf32>
    %666 = arith.addf %665, %664 : vector<16x64xf32>
    %667 = vector.extract_strided_slice %660 {offsets = [16, 0], sizes = [16, 64], strides = [1, 1]} : vector<432x64xf32> to vector<16x64xf32>
    %668 = vector.extract_strided_slice %659 {offsets = [1, 0], sizes = [1, 64], strides = [1, 1]} : vector<27x64xf32> to vector<1x64xf32>
    %669 = vector.broadcast %668 : vector<1x64xf32> to vector<16x64xf32>
    %670 = arith.mulf %667, %669 : vector<16x64xf32>
    %671 = arith.addf %666, %670 : vector<16x64xf32>
    %672 = vector.extract_strided_slice %660 {offsets = [32, 0], sizes = [16, 64], strides = [1, 1]} : vector<432x64xf32> to vector<16x64xf32>
    %673 = vector.extract_strided_slice %659 {offsets = [2, 0], sizes = [1, 64], strides = [1, 1]} : vector<27x64xf32> to vector<1x64xf32>
    %674 = vector.broadcast %673 : vector<1x64xf32> to vector<16x64xf32>
    %675 = arith.mulf %672, %674 : vector<16x64xf32>
    %676 = arith.addf %671, %675 : vector<16x64xf32>
    %677 = vector.extract_strided_slice %660 {offsets = [48, 0], sizes = [16, 64], strides = [1, 1]} : vector<432x64xf32> to vector<16x64xf32>
    %678 = vector.extract_strided_slice %659 {offsets = [3, 0], sizes = [1, 64], strides = [1, 1]} : vector<27x64xf32> to vector<1x64xf32>
    %679 = vector.broadcast %678 : vector<1x64xf32> to vector<16x64xf32>
    %680 = arith.mulf %677, %679 : vector<16x64xf32>
    %681 = arith.addf %676, %680 : vector<16x64xf32>
    %682 = vector.extract_strided_slice %660 {offsets = [64, 0], sizes = [16, 64], strides = [1, 1]} : vector<432x64xf32> to vector<16x64xf32>
    %683 = vector.extract_strided_slice %659 {offsets = [4, 0], sizes = [1, 64], strides = [1, 1]} : vector<27x64xf32> to vector<1x64xf32>
    %684 = vector.broadcast %683 : vector<1x64xf32> to vector<16x64xf32>
    %685 = arith.mulf %682, %684 : vector<16x64xf32>
    %686 = arith.addf %681, %685 : vector<16x64xf32>
    %687 = vector.extract_strided_slice %660 {offsets = [80, 0], sizes = [16, 64], strides = [1, 1]} : vector<432x64xf32> to vector<16x64xf32>
    %688 = vector.extract_strided_slice %659 {offsets = [5, 0], sizes = [1, 64], strides = [1, 1]} : vector<27x64xf32> to vector<1x64xf32>
    %689 = vector.broadcast %688 : vector<1x64xf32> to vector<16x64xf32>
    %690 = arith.mulf %687, %689 : vector<16x64xf32>
    %691 = arith.addf %686, %690 : vector<16x64xf32>
    %692 = vector.extract_strided_slice %660 {offsets = [96, 0], sizes = [16, 64], strides = [1, 1]} : vector<432x64xf32> to vector<16x64xf32>
    %693 = vector.extract_strided_slice %659 {offsets = [6, 0], sizes = [1, 64], strides = [1, 1]} : vector<27x64xf32> to vector<1x64xf32>
    %694 = vector.broadcast %693 : vector<1x64xf32> to vector<16x64xf32>
    %695 = arith.mulf %692, %694 : vector<16x64xf32>
    %696 = arith.addf %691, %695 : vector<16x64xf32>
    %697 = vector.extract_strided_slice %660 {offsets = [112, 0], sizes = [16, 64], strides = [1, 1]} : vector<432x64xf32> to vector<16x64xf32>
    %698 = vector.extract_strided_slice %659 {offsets = [7, 0], sizes = [1, 64], strides = [1, 1]} : vector<27x64xf32> to vector<1x64xf32>
    %699 = vector.broadcast %698 : vector<1x64xf32> to vector<16x64xf32>
    %700 = arith.mulf %697, %699 : vector<16x64xf32>
    %701 = arith.addf %696, %700 : vector<16x64xf32>
    %702 = vector.extract_strided_slice %660 {offsets = [128, 0], sizes = [16, 64], strides = [1, 1]} : vector<432x64xf32> to vector<16x64xf32>
    %703 = vector.extract_strided_slice %659 {offsets = [8, 0], sizes = [1, 64], strides = [1, 1]} : vector<27x64xf32> to vector<1x64xf32>
    %704 = vector.broadcast %703 : vector<1x64xf32> to vector<16x64xf32>
    %705 = arith.mulf %702, %704 : vector<16x64xf32>
    %706 = arith.addf %701, %705 : vector<16x64xf32>
    %707 = vector.extract_strided_slice %660 {offsets = [144, 0], sizes = [16, 64], strides = [1, 1]} : vector<432x64xf32> to vector<16x64xf32>
    %708 = vector.extract_strided_slice %659 {offsets = [9, 0], sizes = [1, 64], strides = [1, 1]} : vector<27x64xf32> to vector<1x64xf32>
    %709 = vector.broadcast %708 : vector<1x64xf32> to vector<16x64xf32>
    %710 = arith.mulf %707, %709 : vector<16x64xf32>
    %711 = arith.addf %706, %710 : vector<16x64xf32>
    %712 = vector.extract_strided_slice %660 {offsets = [160, 0], sizes = [16, 64], strides = [1, 1]} : vector<432x64xf32> to vector<16x64xf32>
    %713 = vector.extract_strided_slice %659 {offsets = [10, 0], sizes = [1, 64], strides = [1, 1]} : vector<27x64xf32> to vector<1x64xf32>
    %714 = vector.broadcast %713 : vector<1x64xf32> to vector<16x64xf32>
    %715 = arith.mulf %712, %714 : vector<16x64xf32>
    %716 = arith.addf %711, %715 : vector<16x64xf32>
    %717 = vector.extract_strided_slice %660 {offsets = [176, 0], sizes = [16, 64], strides = [1, 1]} : vector<432x64xf32> to vector<16x64xf32>
    %718 = vector.extract_strided_slice %659 {offsets = [11, 0], sizes = [1, 64], strides = [1, 1]} : vector<27x64xf32> to vector<1x64xf32>
    %719 = vector.broadcast %718 : vector<1x64xf32> to vector<16x64xf32>
    %720 = arith.mulf %717, %719 : vector<16x64xf32>
    %721 = arith.addf %716, %720 : vector<16x64xf32>
    %722 = vector.extract_strided_slice %660 {offsets = [192, 0], sizes = [16, 64], strides = [1, 1]} : vector<432x64xf32> to vector<16x64xf32>
    %723 = vector.extract_strided_slice %659 {offsets = [12, 0], sizes = [1, 64], strides = [1, 1]} : vector<27x64xf32> to vector<1x64xf32>
    %724 = vector.broadcast %723 : vector<1x64xf32> to vector<16x64xf32>
    %725 = arith.mulf %722, %724 : vector<16x64xf32>
    %726 = arith.addf %721, %725 : vector<16x64xf32>
    %727 = vector.extract_strided_slice %660 {offsets = [208, 0], sizes = [16, 64], strides = [1, 1]} : vector<432x64xf32> to vector<16x64xf32>
    %728 = vector.extract_strided_slice %659 {offsets = [13, 0], sizes = [1, 64], strides = [1, 1]} : vector<27x64xf32> to vector<1x64xf32>
    %729 = vector.broadcast %728 : vector<1x64xf32> to vector<16x64xf32>
    %730 = arith.mulf %727, %729 : vector<16x64xf32>
    %731 = arith.addf %726, %730 : vector<16x64xf32>
    %732 = vector.extract_strided_slice %660 {offsets = [224, 0], sizes = [16, 64], strides = [1, 1]} : vector<432x64xf32> to vector<16x64xf32>
    %733 = vector.extract_strided_slice %659 {offsets = [14, 0], sizes = [1, 64], strides = [1, 1]} : vector<27x64xf32> to vector<1x64xf32>
    %734 = vector.broadcast %733 : vector<1x64xf32> to vector<16x64xf32>
    %735 = arith.mulf %732, %734 : vector<16x64xf32>
    %736 = arith.addf %731, %735 : vector<16x64xf32>
    %737 = vector.extract_strided_slice %660 {offsets = [240, 0], sizes = [16, 64], strides = [1, 1]} : vector<432x64xf32> to vector<16x64xf32>
    %738 = vector.extract_strided_slice %659 {offsets = [15, 0], sizes = [1, 64], strides = [1, 1]} : vector<27x64xf32> to vector<1x64xf32>
    %739 = vector.broadcast %738 : vector<1x64xf32> to vector<16x64xf32>
    %740 = arith.mulf %737, %739 : vector<16x64xf32>
    %741 = arith.addf %736, %740 : vector<16x64xf32>
    %742 = vector.extract_strided_slice %660 {offsets = [256, 0], sizes = [16, 64], strides = [1, 1]} : vector<432x64xf32> to vector<16x64xf32>
    %743 = vector.extract_strided_slice %659 {offsets = [16, 0], sizes = [1, 64], strides = [1, 1]} : vector<27x64xf32> to vector<1x64xf32>
    %744 = vector.broadcast %743 : vector<1x64xf32> to vector<16x64xf32>
    %745 = arith.mulf %742, %744 : vector<16x64xf32>
    %746 = arith.addf %741, %745 : vector<16x64xf32>
    %747 = vector.extract_strided_slice %660 {offsets = [272, 0], sizes = [16, 64], strides = [1, 1]} : vector<432x64xf32> to vector<16x64xf32>
    %748 = vector.extract_strided_slice %659 {offsets = [17, 0], sizes = [1, 64], strides = [1, 1]} : vector<27x64xf32> to vector<1x64xf32>
    %749 = vector.broadcast %748 : vector<1x64xf32> to vector<16x64xf32>
    %750 = arith.mulf %747, %749 : vector<16x64xf32>
    %751 = arith.addf %746, %750 : vector<16x64xf32>
    %752 = vector.extract_strided_slice %660 {offsets = [288, 0], sizes = [16, 64], strides = [1, 1]} : vector<432x64xf32> to vector<16x64xf32>
    %753 = vector.extract_strided_slice %659 {offsets = [18, 0], sizes = [1, 64], strides = [1, 1]} : vector<27x64xf32> to vector<1x64xf32>
    %754 = vector.broadcast %753 : vector<1x64xf32> to vector<16x64xf32>
    %755 = arith.mulf %752, %754 : vector<16x64xf32>
    %756 = arith.addf %751, %755 : vector<16x64xf32>
    %757 = vector.extract_strided_slice %660 {offsets = [304, 0], sizes = [16, 64], strides = [1, 1]} : vector<432x64xf32> to vector<16x64xf32>
    %758 = vector.extract_strided_slice %659 {offsets = [19, 0], sizes = [1, 64], strides = [1, 1]} : vector<27x64xf32> to vector<1x64xf32>
    %759 = vector.broadcast %758 : vector<1x64xf32> to vector<16x64xf32>
    %760 = arith.mulf %757, %759 : vector<16x64xf32>
    %761 = arith.addf %756, %760 : vector<16x64xf32>
    %762 = vector.extract_strided_slice %660 {offsets = [320, 0], sizes = [16, 64], strides = [1, 1]} : vector<432x64xf32> to vector<16x64xf32>
    %763 = vector.extract_strided_slice %659 {offsets = [20, 0], sizes = [1, 64], strides = [1, 1]} : vector<27x64xf32> to vector<1x64xf32>
    %764 = vector.broadcast %763 : vector<1x64xf32> to vector<16x64xf32>
    %765 = arith.mulf %762, %764 : vector<16x64xf32>
    %766 = arith.addf %761, %765 : vector<16x64xf32>
    %767 = vector.extract_strided_slice %660 {offsets = [336, 0], sizes = [16, 64], strides = [1, 1]} : vector<432x64xf32> to vector<16x64xf32>
    %768 = vector.extract_strided_slice %659 {offsets = [21, 0], sizes = [1, 64], strides = [1, 1]} : vector<27x64xf32> to vector<1x64xf32>
    %769 = vector.broadcast %768 : vector<1x64xf32> to vector<16x64xf32>
    %770 = arith.mulf %767, %769 : vector<16x64xf32>
    %771 = arith.addf %766, %770 : vector<16x64xf32>
    %772 = vector.extract_strided_slice %660 {offsets = [352, 0], sizes = [16, 64], strides = [1, 1]} : vector<432x64xf32> to vector<16x64xf32>
    %773 = vector.extract_strided_slice %659 {offsets = [22, 0], sizes = [1, 64], strides = [1, 1]} : vector<27x64xf32> to vector<1x64xf32>
    %774 = vector.broadcast %773 : vector<1x64xf32> to vector<16x64xf32>
    %775 = arith.mulf %772, %774 : vector<16x64xf32>
    %776 = arith.addf %771, %775 : vector<16x64xf32>
    %777 = vector.extract_strided_slice %660 {offsets = [368, 0], sizes = [16, 64], strides = [1, 1]} : vector<432x64xf32> to vector<16x64xf32>
    %778 = vector.extract_strided_slice %659 {offsets = [23, 0], sizes = [1, 64], strides = [1, 1]} : vector<27x64xf32> to vector<1x64xf32>
    %779 = vector.broadcast %778 : vector<1x64xf32> to vector<16x64xf32>
    %780 = arith.mulf %777, %779 : vector<16x64xf32>
    %781 = arith.addf %776, %780 : vector<16x64xf32>
    %782 = vector.extract_strided_slice %660 {offsets = [384, 0], sizes = [16, 64], strides = [1, 1]} : vector<432x64xf32> to vector<16x64xf32>
    %783 = vector.extract_strided_slice %659 {offsets = [24, 0], sizes = [1, 64], strides = [1, 1]} : vector<27x64xf32> to vector<1x64xf32>
    %784 = vector.broadcast %783 : vector<1x64xf32> to vector<16x64xf32>
    %785 = arith.mulf %782, %784 : vector<16x64xf32>
    %786 = arith.addf %781, %785 : vector<16x64xf32>
    %787 = vector.extract_strided_slice %660 {offsets = [400, 0], sizes = [16, 64], strides = [1, 1]} : vector<432x64xf32> to vector<16x64xf32>
    %788 = vector.extract_strided_slice %659 {offsets = [25, 0], sizes = [1, 64], strides = [1, 1]} : vector<27x64xf32> to vector<1x64xf32>
    %789 = vector.broadcast %788 : vector<1x64xf32> to vector<16x64xf32>
    %790 = arith.mulf %787, %789 : vector<16x64xf32>
    %791 = arith.addf %786, %790 : vector<16x64xf32>
    %792 = vector.extract_strided_slice %660 {offsets = [416, 0], sizes = [16, 64], strides = [1, 1]} : vector<432x64xf32> to vector<16x64xf32>
    %793 = vector.extract_strided_slice %659 {offsets = [26, 0], sizes = [1, 64], strides = [1, 1]} : vector<27x64xf32> to vector<1x64xf32>
    %794 = vector.broadcast %793 : vector<1x64xf32> to vector<16x64xf32>
    %795 = arith.mulf %792, %794 : vector<16x64xf32>
    %796 = arith.addf %791, %795 : vector<16x64xf32>
    %797 = arith.addf %647, %796 : vector<16x64xf32>
    %cst_152 = arith.constant dense<0.000000e+00> : vector<16xf32>
    %798 = vector.multi_reduction <add>, %797, %cst_152 [1] : vector<16x64xf32> to vector<16xf32>
    %799 = vector.shape_cast %798 : vector<16xf32> to vector<16x1xf32>
    %cst_153 = arith.constant 6.400000e+01 : f32
    %800 = vector.broadcast %cst_153 : f32 to vector<16x1xf32>
    %801 = arith.divf %799, %800 : vector<16x1xf32>
    %802 = vector.broadcast %801 : vector<16x1xf32> to vector<16x64xf32>
    %803 = arith.subf %797, %802 : vector<16x64xf32>
    %804 = arith.mulf %803, %803 : vector<16x64xf32>
    %cst_154 = arith.constant dense<0.000000e+00> : vector<16xf32>
    %805 = vector.multi_reduction <add>, %804, %cst_154 [1] : vector<16x64xf32> to vector<16xf32>
    %806 = vector.shape_cast %805 : vector<16xf32> to vector<16x1xf32>
    %cst_155 = arith.constant 6.400000e+01 : f32
    %807 = vector.broadcast %cst_155 : f32 to vector<16x1xf32>
    %808 = arith.divf %806, %807 : vector<16x1xf32>
    %809 = vector.broadcast %801 : vector<16x1xf32> to vector<16x64xf32>
    %810 = arith.subf %797, %809 : vector<16x64xf32>
    %cst_156 = arith.constant 9.99999974E-6 : f32
    %811 = vector.broadcast %cst_156 : f32 to vector<16x1xf32>
    %812 = arith.addf %808, %811 : vector<16x1xf32>
    %813 = math.rsqrt %812 : vector<16x1xf32>
    %814 = vector.broadcast %813 : vector<16x1xf32> to vector<16x64xf32>
    %815 = arith.mulf %810, %814 : vector<16x64xf32>
    %816 = vector.broadcast %653 : vector<1x64xf32> to vector<16x64xf32>
    %817 = arith.mulf %815, %816 : vector<16x64xf32>
    %818 = vector.broadcast %654 : vector<1x64xf32> to vector<16x64xf32>
    %819 = arith.addf %817, %818 : vector<16x64xf32>
    %c2_157 = arith.constant 2 : index
    %c0_158 = arith.constant 0 : index
    %c0_159 = arith.constant 0 : index
    %820 = vector.load %arg14[%c2_157, %c0_158, %c0_159] : memref<4x64x192xf32, #tpu.memory_space<vmem>>, vector<1x64x192xf32>
    %821 = vector.shape_cast %820 : vector<1x64x192xf32> to vector<64x192xf32>
    %cst_160 = arith.constant dense<0.000000e+00> : vector<16x192xf32>
    %822 = tpu.matmul %819, %821, %cst_160 {dimension_numbers = #tpu.dot_dimension_numbers<[1], [0], [0], [1], [0, 0, 1, 1], [], []>} : vector<16x64xf32>, vector<64x192xf32>, vector<16x192xf32> -> vector<16x192xf32>
    %823 = vector.extract_strided_slice %822 {offsets = [0, 0], sizes = [16, 64], strides = [1, 1]} : vector<16x192xf32> to vector<16x64xf32>
    %824 = vector.extract_strided_slice %822 {offsets = [0, 64], sizes = [16, 64], strides = [1, 1]} : vector<16x192xf32> to vector<16x64xf32>
    %825 = vector.extract_strided_slice %822 {offsets = [0, 128], sizes = [16, 64], strides = [1, 1]} : vector<16x192xf32> to vector<16x64xf32>
    %826 = tpu.concatenate %823, %823, %823, %823 in 0 : vector<16x64xf32>, vector<16x64xf32>, vector<16x64xf32>, vector<16x64xf32> -> vector<64x64xf32>
    %827 = arith.mulf %826, %117 : vector<64x64xf32>
    %cst_161 = arith.constant dense<0.000000e+00> : vector<64x16xf32>
    %828 = tpu.matmul %827, %824, %cst_161 {dimension_numbers = #tpu.dot_dimension_numbers<[1], [1], [0], [0], [0, 0, 1, 0], [], []>} : vector<64x64xf32>, vector<16x64xf32>, vector<64x16xf32> -> vector<64x16xf32>
    %829 = arith.addf %828, %649 : vector<64x16xf32>
    %cst_162 = arith.constant dense<0xFF800000> : vector<64xf32>
    %830 = vector.multi_reduction <maximumf>, %829, %cst_162 [1] : vector<64x16xf32> to vector<64xf32>
    %831 = vector.shape_cast %830 : vector<64xf32> to vector<64x1xf32>
    %832 = vector.broadcast %831 : vector<64x1xf32> to vector<64x16xf32>
    %833 = arith.subf %829, %832 : vector<64x16xf32>
    %834 = math.exp %833 : vector<64x16xf32>
    %cst_163 = arith.constant dense<0.000000e+00> : vector<64xf32>
    %835 = vector.multi_reduction <add>, %834, %cst_163 [1] : vector<64x16xf32> to vector<64xf32>
    %836 = vector.shape_cast %835 : vector<64xf32> to vector<64x1xf32>
    %837 = tpu.reciprocal %836 {approx = true} : vector<64x1xf32> -> vector<64x1xf32>
    %838 = vector.broadcast %837 : vector<64x1xf32> to vector<64x16xf32>
    %839 = arith.mulf %834, %838 : vector<64x16xf32>
    %cst_164 = arith.constant dense<0.000000e+00> : vector<64x64xf32>
    %840 = tpu.matmul %839, %825, %cst_164 {dimension_numbers = #tpu.dot_dimension_numbers<[1], [0], [0], [1], [0, 0, 1, 1], [], []>} : vector<64x16xf32>, vector<16x64xf32>, vector<64x64xf32> -> vector<64x64xf32>
    %841 = arith.mulf %840, %117 : vector<64x64xf32>
    %842 = vector.extract_strided_slice %841 {offsets = [0, 0], sizes = [16, 64], strides = [1, 1]} : vector<64x64xf32> to vector<16x64xf32>
    %843 = vector.extract_strided_slice %841 {offsets = [16, 0], sizes = [16, 64], strides = [1, 1]} : vector<64x64xf32> to vector<16x64xf32>
    %844 = arith.addf %842, %843 : vector<16x64xf32>
    %845 = vector.extract_strided_slice %841 {offsets = [32, 0], sizes = [16, 64], strides = [1, 1]} : vector<64x64xf32> to vector<16x64xf32>
    %846 = arith.addf %844, %845 : vector<16x64xf32>
    %847 = vector.extract_strided_slice %841 {offsets = [48, 0], sizes = [16, 64], strides = [1, 1]} : vector<64x64xf32> to vector<16x64xf32>
    %848 = arith.addf %846, %847 : vector<16x64xf32>
    %c2_165 = arith.constant 2 : index
    %c0_166 = arith.constant 0 : index
    %c0_167 = arith.constant 0 : index
    %849 = vector.load %arg15[%c2_165, %c0_166, %c0_167] : memref<4x64x64xf32, #tpu.memory_space<vmem>>, vector<1x64x64xf32>
    %850 = vector.shape_cast %849 : vector<1x64x64xf32> to vector<64x64xf32>
    %cst_168 = arith.constant dense<0.000000e+00> : vector<16x64xf32>
    %851 = tpu.matmul %848, %850, %cst_168 {dimension_numbers = #tpu.dot_dimension_numbers<[1], [0], [0], [1], [0, 0, 1, 1], [], []>} : vector<16x64xf32>, vector<64x64xf32>, vector<16x64xf32> -> vector<16x64xf32>
    %852 = arith.addf %797, %851 : vector<16x64xf32>
    %cst_169 = arith.constant dense<0.000000e+00> : vector<16xf32>
    %853 = vector.multi_reduction <add>, %852, %cst_169 [1] : vector<16x64xf32> to vector<16xf32>
    %854 = vector.shape_cast %853 : vector<16xf32> to vector<16x1xf32>
    %cst_170 = arith.constant 6.400000e+01 : f32
    %855 = vector.broadcast %cst_170 : f32 to vector<16x1xf32>
    %856 = arith.divf %854, %855 : vector<16x1xf32>
    %857 = vector.broadcast %856 : vector<16x1xf32> to vector<16x64xf32>
    %858 = arith.subf %852, %857 : vector<16x64xf32>
    %859 = arith.mulf %858, %858 : vector<16x64xf32>
    %cst_171 = arith.constant dense<0.000000e+00> : vector<16xf32>
    %860 = vector.multi_reduction <add>, %859, %cst_171 [1] : vector<16x64xf32> to vector<16xf32>
    %861 = vector.shape_cast %860 : vector<16xf32> to vector<16x1xf32>
    %cst_172 = arith.constant 6.400000e+01 : f32
    %862 = vector.broadcast %cst_172 : f32 to vector<16x1xf32>
    %863 = arith.divf %861, %862 : vector<16x1xf32>
    %864 = vector.broadcast %856 : vector<16x1xf32> to vector<16x64xf32>
    %865 = arith.subf %852, %864 : vector<16x64xf32>
    %cst_173 = arith.constant 9.99999974E-6 : f32
    %866 = vector.broadcast %cst_173 : f32 to vector<16x1xf32>
    %867 = arith.addf %863, %866 : vector<16x1xf32>
    %868 = math.rsqrt %867 : vector<16x1xf32>
    %869 = vector.broadcast %868 : vector<16x1xf32> to vector<16x64xf32>
    %870 = arith.mulf %865, %869 : vector<16x64xf32>
    %871 = vector.broadcast %655 : vector<1x64xf32> to vector<16x64xf32>
    %872 = arith.mulf %870, %871 : vector<16x64xf32>
    %873 = vector.broadcast %656 : vector<1x64xf32> to vector<16x64xf32>
    %874 = arith.addf %872, %873 : vector<16x64xf32>
    %c2_174 = arith.constant 2 : index
    %c0_175 = arith.constant 0 : index
    %c0_176 = arith.constant 0 : index
    %875 = vector.load %arg16[%c2_174, %c0_175, %c0_176] : memref<4x64x128xf32, #tpu.memory_space<vmem>>, vector<1x64x128xf32>
    %876 = vector.shape_cast %875 : vector<1x64x128xf32> to vector<64x128xf32>
    %cst_177 = arith.constant dense<0.000000e+00> : vector<16x128xf32>
    %877 = tpu.matmul %874, %876, %cst_177 {dimension_numbers = #tpu.dot_dimension_numbers<[1], [0], [0], [1], [0, 0, 1, 1], [], []>} : vector<16x64xf32>, vector<64x128xf32>, vector<16x128xf32> -> vector<16x128xf32>
    %c2_178 = arith.constant 2 : index
    %c0_179 = arith.constant 0 : index
    %c0_180 = arith.constant 0 : index
    %878 = vector.load %arg13[%c2_178, %c0_179, %c0_180] : memref<4x1x128xf32, #tpu.memory_space<vmem>>, vector<1x1x128xf32>
    %879 = vector.shape_cast %878 : vector<1x1x128xf32> to vector<1x128xf32>
    %880 = vector.broadcast %879 : vector<1x128xf32> to vector<16x128xf32>
    %881 = arith.addf %877, %880 : vector<16x128xf32>
    %882 = arith.mulf %881, %881 : vector<16x128xf32>
    %883 = arith.mulf %881, %882 : vector<16x128xf32>
    %cst_181 = arith.constant 4.471500e-02 : f32
    %884 = vector.broadcast %cst_181 : f32 to vector<16x128xf32>
    %885 = arith.mulf %884, %883 : vector<16x128xf32>
    %886 = arith.addf %881, %885 : vector<16x128xf32>
    %cst_182 = arith.constant 0.797884583 : f32
    %887 = vector.broadcast %cst_182 : f32 to vector<16x128xf32>
    %888 = arith.mulf %887, %886 : vector<16x128xf32>
    %889 = math.tanh %888 : vector<16x128xf32>
    %cst_183 = arith.constant 1.000000e+00 : f32
    %890 = vector.broadcast %cst_183 : f32 to vector<16x128xf32>
    %891 = arith.addf %890, %889 : vector<16x128xf32>
    %cst_184 = arith.constant 5.000000e-01 : f32
    %892 = vector.broadcast %cst_184 : f32 to vector<16x128xf32>
    %893 = arith.mulf %892, %891 : vector<16x128xf32>
    %894 = arith.mulf %881, %893 : vector<16x128xf32>
    %c2_185 = arith.constant 2 : index
    %c0_186 = arith.constant 0 : index
    %c0_187 = arith.constant 0 : index
    %895 = vector.load %arg17[%c2_185, %c0_186, %c0_187] : memref<4x128x64xf32, #tpu.memory_space<vmem>>, vector<1x128x64xf32>
    %896 = vector.shape_cast %895 : vector<1x128x64xf32> to vector<128x64xf32>
    %cst_188 = arith.constant dense<0.000000e+00> : vector<16x64xf32>
    %897 = tpu.matmul %894, %896, %cst_188 {dimension_numbers = #tpu.dot_dimension_numbers<[1], [0], [0], [1], [0, 0, 1, 1], [], []>} : vector<16x128xf32>, vector<128x64xf32>, vector<16x64xf32> -> vector<16x64xf32>
    %898 = arith.addf %852, %897 : vector<16x64xf32>
    %899 = vector.broadcast %657 : vector<1x64xf32> to vector<16x64xf32>
    %900 = arith.addf %898, %899 : vector<16x64xf32>
    %c3 = arith.constant 3 : index
    %c0_189 = arith.constant 0 : index
    %c0_190 = arith.constant 0 : index
    %901 = vector.load %arg12[%c3, %c0_189, %c0_190] : memref<4x6x64xf32, #tpu.memory_space<vmem>>, vector<1x6x64xf32>
    %902 = vector.shape_cast %901 : vector<1x6x64xf32> to vector<6x64xf32>
    %903 = vector.extract_strided_slice %902 {offsets = [0, 0], sizes = [1, 64], strides = [1, 1]} : vector<6x64xf32> to vector<1x64xf32>
    %904 = vector.extract_strided_slice %902 {offsets = [1, 0], sizes = [1, 64], strides = [1, 1]} : vector<6x64xf32> to vector<1x64xf32>
    %905 = vector.extract_strided_slice %902 {offsets = [2, 0], sizes = [1, 64], strides = [1, 1]} : vector<6x64xf32> to vector<1x64xf32>
    %906 = vector.extract_strided_slice %902 {offsets = [3, 0], sizes = [1, 64], strides = [1, 1]} : vector<6x64xf32> to vector<1x64xf32>
    %907 = vector.extract_strided_slice %902 {offsets = [4, 0], sizes = [1, 64], strides = [1, 1]} : vector<6x64xf32> to vector<1x64xf32>
    %908 = vector.extract_strided_slice %902 {offsets = [5, 0], sizes = [1, 64], strides = [1, 1]} : vector<6x64xf32> to vector<1x64xf32>
    %c3_191 = arith.constant 3 : index
    %c0_192 = arith.constant 0 : index
    %c0_193 = arith.constant 0 : index
    %909 = vector.load %arg11[%c3_191, %c0_192, %c0_193] : memref<4x27x64xf32, #tpu.memory_space<vmem>>, vector<1x27x64xf32>
    %910 = vector.shape_cast %909 : vector<1x27x64xf32> to vector<27x64xf32>
    %cst_194 = arith.constant dense<0.000000e+00> : vector<432x64xf32>
    %911 = tpu.matmul %118, %900, %cst_194 {dimension_numbers = #tpu.dot_dimension_numbers<[1], [0], [0], [1], [0, 0, 1, 1], [], []>} : vector<432x16xf32>, vector<16x64xf32>, vector<432x64xf32> -> vector<432x64xf32>
    %912 = vector.extract_strided_slice %911 {offsets = [0, 0], sizes = [16, 64], strides = [1, 1]} : vector<432x64xf32> to vector<16x64xf32>
    %913 = vector.extract_strided_slice %910 {offsets = [0, 0], sizes = [1, 64], strides = [1, 1]} : vector<27x64xf32> to vector<1x64xf32>
    %914 = vector.broadcast %913 : vector<1x64xf32> to vector<16x64xf32>
    %915 = arith.mulf %912, %914 : vector<16x64xf32>
    %916 = vector.broadcast %903 : vector<1x64xf32> to vector<16x64xf32>
    %917 = arith.addf %916, %915 : vector<16x64xf32>
    %918 = vector.extract_strided_slice %911 {offsets = [16, 0], sizes = [16, 64], strides = [1, 1]} : vector<432x64xf32> to vector<16x64xf32>
    %919 = vector.extract_strided_slice %910 {offsets = [1, 0], sizes = [1, 64], strides = [1, 1]} : vector<27x64xf32> to vector<1x64xf32>
    %920 = vector.broadcast %919 : vector<1x64xf32> to vector<16x64xf32>
    %921 = arith.mulf %918, %920 : vector<16x64xf32>
    %922 = arith.addf %917, %921 : vector<16x64xf32>
    %923 = vector.extract_strided_slice %911 {offsets = [32, 0], sizes = [16, 64], strides = [1, 1]} : vector<432x64xf32> to vector<16x64xf32>
    %924 = vector.extract_strided_slice %910 {offsets = [2, 0], sizes = [1, 64], strides = [1, 1]} : vector<27x64xf32> to vector<1x64xf32>
    %925 = vector.broadcast %924 : vector<1x64xf32> to vector<16x64xf32>
    %926 = arith.mulf %923, %925 : vector<16x64xf32>
    %927 = arith.addf %922, %926 : vector<16x64xf32>
    %928 = vector.extract_strided_slice %911 {offsets = [48, 0], sizes = [16, 64], strides = [1, 1]} : vector<432x64xf32> to vector<16x64xf32>
    %929 = vector.extract_strided_slice %910 {offsets = [3, 0], sizes = [1, 64], strides = [1, 1]} : vector<27x64xf32> to vector<1x64xf32>
    %930 = vector.broadcast %929 : vector<1x64xf32> to vector<16x64xf32>
    %931 = arith.mulf %928, %930 : vector<16x64xf32>
    %932 = arith.addf %927, %931 : vector<16x64xf32>
    %933 = vector.extract_strided_slice %911 {offsets = [64, 0], sizes = [16, 64], strides = [1, 1]} : vector<432x64xf32> to vector<16x64xf32>
    %934 = vector.extract_strided_slice %910 {offsets = [4, 0], sizes = [1, 64], strides = [1, 1]} : vector<27x64xf32> to vector<1x64xf32>
    %935 = vector.broadcast %934 : vector<1x64xf32> to vector<16x64xf32>
    %936 = arith.mulf %933, %935 : vector<16x64xf32>
    %937 = arith.addf %932, %936 : vector<16x64xf32>
    %938 = vector.extract_strided_slice %911 {offsets = [80, 0], sizes = [16, 64], strides = [1, 1]} : vector<432x64xf32> to vector<16x64xf32>
    %939 = vector.extract_strided_slice %910 {offsets = [5, 0], sizes = [1, 64], strides = [1, 1]} : vector<27x64xf32> to vector<1x64xf32>
    %940 = vector.broadcast %939 : vector<1x64xf32> to vector<16x64xf32>
    %941 = arith.mulf %938, %940 : vector<16x64xf32>
    %942 = arith.addf %937, %941 : vector<16x64xf32>
    %943 = vector.extract_strided_slice %911 {offsets = [96, 0], sizes = [16, 64], strides = [1, 1]} : vector<432x64xf32> to vector<16x64xf32>
    %944 = vector.extract_strided_slice %910 {offsets = [6, 0], sizes = [1, 64], strides = [1, 1]} : vector<27x64xf32> to vector<1x64xf32>
    %945 = vector.broadcast %944 : vector<1x64xf32> to vector<16x64xf32>
    %946 = arith.mulf %943, %945 : vector<16x64xf32>
    %947 = arith.addf %942, %946 : vector<16x64xf32>
    %948 = vector.extract_strided_slice %911 {offsets = [112, 0], sizes = [16, 64], strides = [1, 1]} : vector<432x64xf32> to vector<16x64xf32>
    %949 = vector.extract_strided_slice %910 {offsets = [7, 0], sizes = [1, 64], strides = [1, 1]} : vector<27x64xf32> to vector<1x64xf32>
    %950 = vector.broadcast %949 : vector<1x64xf32> to vector<16x64xf32>
    %951 = arith.mulf %948, %950 : vector<16x64xf32>
    %952 = arith.addf %947, %951 : vector<16x64xf32>
    %953 = vector.extract_strided_slice %911 {offsets = [128, 0], sizes = [16, 64], strides = [1, 1]} : vector<432x64xf32> to vector<16x64xf32>
    %954 = vector.extract_strided_slice %910 {offsets = [8, 0], sizes = [1, 64], strides = [1, 1]} : vector<27x64xf32> to vector<1x64xf32>
    %955 = vector.broadcast %954 : vector<1x64xf32> to vector<16x64xf32>
    %956 = arith.mulf %953, %955 : vector<16x64xf32>
    %957 = arith.addf %952, %956 : vector<16x64xf32>
    %958 = vector.extract_strided_slice %911 {offsets = [144, 0], sizes = [16, 64], strides = [1, 1]} : vector<432x64xf32> to vector<16x64xf32>
    %959 = vector.extract_strided_slice %910 {offsets = [9, 0], sizes = [1, 64], strides = [1, 1]} : vector<27x64xf32> to vector<1x64xf32>
    %960 = vector.broadcast %959 : vector<1x64xf32> to vector<16x64xf32>
    %961 = arith.mulf %958, %960 : vector<16x64xf32>
    %962 = arith.addf %957, %961 : vector<16x64xf32>
    %963 = vector.extract_strided_slice %911 {offsets = [160, 0], sizes = [16, 64], strides = [1, 1]} : vector<432x64xf32> to vector<16x64xf32>
    %964 = vector.extract_strided_slice %910 {offsets = [10, 0], sizes = [1, 64], strides = [1, 1]} : vector<27x64xf32> to vector<1x64xf32>
    %965 = vector.broadcast %964 : vector<1x64xf32> to vector<16x64xf32>
    %966 = arith.mulf %963, %965 : vector<16x64xf32>
    %967 = arith.addf %962, %966 : vector<16x64xf32>
    %968 = vector.extract_strided_slice %911 {offsets = [176, 0], sizes = [16, 64], strides = [1, 1]} : vector<432x64xf32> to vector<16x64xf32>
    %969 = vector.extract_strided_slice %910 {offsets = [11, 0], sizes = [1, 64], strides = [1, 1]} : vector<27x64xf32> to vector<1x64xf32>
    %970 = vector.broadcast %969 : vector<1x64xf32> to vector<16x64xf32>
    %971 = arith.mulf %968, %970 : vector<16x64xf32>
    %972 = arith.addf %967, %971 : vector<16x64xf32>
    %973 = vector.extract_strided_slice %911 {offsets = [192, 0], sizes = [16, 64], strides = [1, 1]} : vector<432x64xf32> to vector<16x64xf32>
    %974 = vector.extract_strided_slice %910 {offsets = [12, 0], sizes = [1, 64], strides = [1, 1]} : vector<27x64xf32> to vector<1x64xf32>
    %975 = vector.broadcast %974 : vector<1x64xf32> to vector<16x64xf32>
    %976 = arith.mulf %973, %975 : vector<16x64xf32>
    %977 = arith.addf %972, %976 : vector<16x64xf32>
    %978 = vector.extract_strided_slice %911 {offsets = [208, 0], sizes = [16, 64], strides = [1, 1]} : vector<432x64xf32> to vector<16x64xf32>
    %979 = vector.extract_strided_slice %910 {offsets = [13, 0], sizes = [1, 64], strides = [1, 1]} : vector<27x64xf32> to vector<1x64xf32>
    %980 = vector.broadcast %979 : vector<1x64xf32> to vector<16x64xf32>
    %981 = arith.mulf %978, %980 : vector<16x64xf32>
    %982 = arith.addf %977, %981 : vector<16x64xf32>
    %983 = vector.extract_strided_slice %911 {offsets = [224, 0], sizes = [16, 64], strides = [1, 1]} : vector<432x64xf32> to vector<16x64xf32>
    %984 = vector.extract_strided_slice %910 {offsets = [14, 0], sizes = [1, 64], strides = [1, 1]} : vector<27x64xf32> to vector<1x64xf32>
    %985 = vector.broadcast %984 : vector<1x64xf32> to vector<16x64xf32>
    %986 = arith.mulf %983, %985 : vector<16x64xf32>
    %987 = arith.addf %982, %986 : vector<16x64xf32>
    %988 = vector.extract_strided_slice %911 {offsets = [240, 0], sizes = [16, 64], strides = [1, 1]} : vector<432x64xf32> to vector<16x64xf32>
    %989 = vector.extract_strided_slice %910 {offsets = [15, 0], sizes = [1, 64], strides = [1, 1]} : vector<27x64xf32> to vector<1x64xf32>
    %990 = vector.broadcast %989 : vector<1x64xf32> to vector<16x64xf32>
    %991 = arith.mulf %988, %990 : vector<16x64xf32>
    %992 = arith.addf %987, %991 : vector<16x64xf32>
    %993 = vector.extract_strided_slice %911 {offsets = [256, 0], sizes = [16, 64], strides = [1, 1]} : vector<432x64xf32> to vector<16x64xf32>
    %994 = vector.extract_strided_slice %910 {offsets = [16, 0], sizes = [1, 64], strides = [1, 1]} : vector<27x64xf32> to vector<1x64xf32>
    %995 = vector.broadcast %994 : vector<1x64xf32> to vector<16x64xf32>
    %996 = arith.mulf %993, %995 : vector<16x64xf32>
    %997 = arith.addf %992, %996 : vector<16x64xf32>
    %998 = vector.extract_strided_slice %911 {offsets = [272, 0], sizes = [16, 64], strides = [1, 1]} : vector<432x64xf32> to vector<16x64xf32>
    %999 = vector.extract_strided_slice %910 {offsets = [17, 0], sizes = [1, 64], strides = [1, 1]} : vector<27x64xf32> to vector<1x64xf32>
    %1000 = vector.broadcast %999 : vector<1x64xf32> to vector<16x64xf32>
    %1001 = arith.mulf %998, %1000 : vector<16x64xf32>
    %1002 = arith.addf %997, %1001 : vector<16x64xf32>
    %1003 = vector.extract_strided_slice %911 {offsets = [288, 0], sizes = [16, 64], strides = [1, 1]} : vector<432x64xf32> to vector<16x64xf32>
    %1004 = vector.extract_strided_slice %910 {offsets = [18, 0], sizes = [1, 64], strides = [1, 1]} : vector<27x64xf32> to vector<1x64xf32>
    %1005 = vector.broadcast %1004 : vector<1x64xf32> to vector<16x64xf32>
    %1006 = arith.mulf %1003, %1005 : vector<16x64xf32>
    %1007 = arith.addf %1002, %1006 : vector<16x64xf32>
    %1008 = vector.extract_strided_slice %911 {offsets = [304, 0], sizes = [16, 64], strides = [1, 1]} : vector<432x64xf32> to vector<16x64xf32>
    %1009 = vector.extract_strided_slice %910 {offsets = [19, 0], sizes = [1, 64], strides = [1, 1]} : vector<27x64xf32> to vector<1x64xf32>
    %1010 = vector.broadcast %1009 : vector<1x64xf32> to vector<16x64xf32>
    %1011 = arith.mulf %1008, %1010 : vector<16x64xf32>
    %1012 = arith.addf %1007, %1011 : vector<16x64xf32>
    %1013 = vector.extract_strided_slice %911 {offsets = [320, 0], sizes = [16, 64], strides = [1, 1]} : vector<432x64xf32> to vector<16x64xf32>
    %1014 = vector.extract_strided_slice %910 {offsets = [20, 0], sizes = [1, 64], strides = [1, 1]} : vector<27x64xf32> to vector<1x64xf32>
    %1015 = vector.broadcast %1014 : vector<1x64xf32> to vector<16x64xf32>
    %1016 = arith.mulf %1013, %1015 : vector<16x64xf32>
    %1017 = arith.addf %1012, %1016 : vector<16x64xf32>
    %1018 = vector.extract_strided_slice %911 {offsets = [336, 0], sizes = [16, 64], strides = [1, 1]} : vector<432x64xf32> to vector<16x64xf32>
    %1019 = vector.extract_strided_slice %910 {offsets = [21, 0], sizes = [1, 64], strides = [1, 1]} : vector<27x64xf32> to vector<1x64xf32>
    %1020 = vector.broadcast %1019 : vector<1x64xf32> to vector<16x64xf32>
    %1021 = arith.mulf %1018, %1020 : vector<16x64xf32>
    %1022 = arith.addf %1017, %1021 : vector<16x64xf32>
    %1023 = vector.extract_strided_slice %911 {offsets = [352, 0], sizes = [16, 64], strides = [1, 1]} : vector<432x64xf32> to vector<16x64xf32>
    %1024 = vector.extract_strided_slice %910 {offsets = [22, 0], sizes = [1, 64], strides = [1, 1]} : vector<27x64xf32> to vector<1x64xf32>
    %1025 = vector.broadcast %1024 : vector<1x64xf32> to vector<16x64xf32>
    %1026 = arith.mulf %1023, %1025 : vector<16x64xf32>
    %1027 = arith.addf %1022, %1026 : vector<16x64xf32>
    %1028 = vector.extract_strided_slice %911 {offsets = [368, 0], sizes = [16, 64], strides = [1, 1]} : vector<432x64xf32> to vector<16x64xf32>
    %1029 = vector.extract_strided_slice %910 {offsets = [23, 0], sizes = [1, 64], strides = [1, 1]} : vector<27x64xf32> to vector<1x64xf32>
    %1030 = vector.broadcast %1029 : vector<1x64xf32> to vector<16x64xf32>
    %1031 = arith.mulf %1028, %1030 : vector<16x64xf32>
    %1032 = arith.addf %1027, %1031 : vector<16x64xf32>
    %1033 = vector.extract_strided_slice %911 {offsets = [384, 0], sizes = [16, 64], strides = [1, 1]} : vector<432x64xf32> to vector<16x64xf32>
    %1034 = vector.extract_strided_slice %910 {offsets = [24, 0], sizes = [1, 64], strides = [1, 1]} : vector<27x64xf32> to vector<1x64xf32>
    %1035 = vector.broadcast %1034 : vector<1x64xf32> to vector<16x64xf32>
    %1036 = arith.mulf %1033, %1035 : vector<16x64xf32>
    %1037 = arith.addf %1032, %1036 : vector<16x64xf32>
    %1038 = vector.extract_strided_slice %911 {offsets = [400, 0], sizes = [16, 64], strides = [1, 1]} : vector<432x64xf32> to vector<16x64xf32>
    %1039 = vector.extract_strided_slice %910 {offsets = [25, 0], sizes = [1, 64], strides = [1, 1]} : vector<27x64xf32> to vector<1x64xf32>
    %1040 = vector.broadcast %1039 : vector<1x64xf32> to vector<16x64xf32>
    %1041 = arith.mulf %1038, %1040 : vector<16x64xf32>
    %1042 = arith.addf %1037, %1041 : vector<16x64xf32>
    %1043 = vector.extract_strided_slice %911 {offsets = [416, 0], sizes = [16, 64], strides = [1, 1]} : vector<432x64xf32> to vector<16x64xf32>
    %1044 = vector.extract_strided_slice %910 {offsets = [26, 0], sizes = [1, 64], strides = [1, 1]} : vector<27x64xf32> to vector<1x64xf32>
    %1045 = vector.broadcast %1044 : vector<1x64xf32> to vector<16x64xf32>
    %1046 = arith.mulf %1043, %1045 : vector<16x64xf32>
    %1047 = arith.addf %1042, %1046 : vector<16x64xf32>
    %1048 = arith.addf %900, %1047 : vector<16x64xf32>
    %cst_195 = arith.constant dense<0.000000e+00> : vector<16xf32>
    %1049 = vector.multi_reduction <add>, %1048, %cst_195 [1] : vector<16x64xf32> to vector<16xf32>
    %1050 = vector.shape_cast %1049 : vector<16xf32> to vector<16x1xf32>
    %cst_196 = arith.constant 6.400000e+01 : f32
    %1051 = vector.broadcast %cst_196 : f32 to vector<16x1xf32>
    %1052 = arith.divf %1050, %1051 : vector<16x1xf32>
    %1053 = vector.broadcast %1052 : vector<16x1xf32> to vector<16x64xf32>
    %1054 = arith.subf %1048, %1053 : vector<16x64xf32>
    %1055 = arith.mulf %1054, %1054 : vector<16x64xf32>
    %cst_197 = arith.constant dense<0.000000e+00> : vector<16xf32>
    %1056 = vector.multi_reduction <add>, %1055, %cst_197 [1] : vector<16x64xf32> to vector<16xf32>
    %1057 = vector.shape_cast %1056 : vector<16xf32> to vector<16x1xf32>
    %cst_198 = arith.constant 6.400000e+01 : f32
    %1058 = vector.broadcast %cst_198 : f32 to vector<16x1xf32>
    %1059 = arith.divf %1057, %1058 : vector<16x1xf32>
    %1060 = vector.broadcast %1052 : vector<16x1xf32> to vector<16x64xf32>
    %1061 = arith.subf %1048, %1060 : vector<16x64xf32>
    %cst_199 = arith.constant 9.99999974E-6 : f32
    %1062 = vector.broadcast %cst_199 : f32 to vector<16x1xf32>
    %1063 = arith.addf %1059, %1062 : vector<16x1xf32>
    %1064 = math.rsqrt %1063 : vector<16x1xf32>
    %1065 = vector.broadcast %1064 : vector<16x1xf32> to vector<16x64xf32>
    %1066 = arith.mulf %1061, %1065 : vector<16x64xf32>
    %1067 = vector.broadcast %904 : vector<1x64xf32> to vector<16x64xf32>
    %1068 = arith.mulf %1066, %1067 : vector<16x64xf32>
    %1069 = vector.broadcast %905 : vector<1x64xf32> to vector<16x64xf32>
    %1070 = arith.addf %1068, %1069 : vector<16x64xf32>
    %c3_200 = arith.constant 3 : index
    %c0_201 = arith.constant 0 : index
    %c0_202 = arith.constant 0 : index
    %1071 = vector.load %arg14[%c3_200, %c0_201, %c0_202] : memref<4x64x192xf32, #tpu.memory_space<vmem>>, vector<1x64x192xf32>
    %1072 = vector.shape_cast %1071 : vector<1x64x192xf32> to vector<64x192xf32>
    %cst_203 = arith.constant dense<0.000000e+00> : vector<16x192xf32>
    %1073 = tpu.matmul %1070, %1072, %cst_203 {dimension_numbers = #tpu.dot_dimension_numbers<[1], [0], [0], [1], [0, 0, 1, 1], [], []>} : vector<16x64xf32>, vector<64x192xf32>, vector<16x192xf32> -> vector<16x192xf32>
    %1074 = vector.extract_strided_slice %1073 {offsets = [0, 0], sizes = [16, 64], strides = [1, 1]} : vector<16x192xf32> to vector<16x64xf32>
    %1075 = vector.extract_strided_slice %1073 {offsets = [0, 64], sizes = [16, 64], strides = [1, 1]} : vector<16x192xf32> to vector<16x64xf32>
    %1076 = vector.extract_strided_slice %1073 {offsets = [0, 128], sizes = [16, 64], strides = [1, 1]} : vector<16x192xf32> to vector<16x64xf32>
    %1077 = tpu.concatenate %1074, %1074, %1074, %1074 in 0 : vector<16x64xf32>, vector<16x64xf32>, vector<16x64xf32>, vector<16x64xf32> -> vector<64x64xf32>
    %1078 = arith.mulf %1077, %117 : vector<64x64xf32>
    %cst_204 = arith.constant dense<0.000000e+00> : vector<64x16xf32>
    %1079 = tpu.matmul %1078, %1075, %cst_204 {dimension_numbers = #tpu.dot_dimension_numbers<[1], [1], [0], [0], [0, 0, 1, 0], [], []>} : vector<64x64xf32>, vector<16x64xf32>, vector<64x16xf32> -> vector<64x16xf32>
    %1080 = arith.addf %1079, %649 : vector<64x16xf32>
    %cst_205 = arith.constant dense<0xFF800000> : vector<64xf32>
    %1081 = vector.multi_reduction <maximumf>, %1080, %cst_205 [1] : vector<64x16xf32> to vector<64xf32>
    %1082 = vector.shape_cast %1081 : vector<64xf32> to vector<64x1xf32>
    %1083 = vector.broadcast %1082 : vector<64x1xf32> to vector<64x16xf32>
    %1084 = arith.subf %1080, %1083 : vector<64x16xf32>
    %1085 = math.exp %1084 : vector<64x16xf32>
    %cst_206 = arith.constant dense<0.000000e+00> : vector<64xf32>
    %1086 = vector.multi_reduction <add>, %1085, %cst_206 [1] : vector<64x16xf32> to vector<64xf32>
    %1087 = vector.shape_cast %1086 : vector<64xf32> to vector<64x1xf32>
    %1088 = tpu.reciprocal %1087 {approx = true} : vector<64x1xf32> -> vector<64x1xf32>
    %1089 = vector.broadcast %1088 : vector<64x1xf32> to vector<64x16xf32>
    %1090 = arith.mulf %1085, %1089 : vector<64x16xf32>
    %cst_207 = arith.constant dense<0.000000e+00> : vector<64x64xf32>
    %1091 = tpu.matmul %1090, %1076, %cst_207 {dimension_numbers = #tpu.dot_dimension_numbers<[1], [0], [0], [1], [0, 0, 1, 1], [], []>} : vector<64x16xf32>, vector<16x64xf32>, vector<64x64xf32> -> vector<64x64xf32>
    %1092 = arith.mulf %1091, %117 : vector<64x64xf32>
    %1093 = vector.extract_strided_slice %1092 {offsets = [0, 0], sizes = [16, 64], strides = [1, 1]} : vector<64x64xf32> to vector<16x64xf32>
    %1094 = vector.extract_strided_slice %1092 {offsets = [16, 0], sizes = [16, 64], strides = [1, 1]} : vector<64x64xf32> to vector<16x64xf32>
    %1095 = arith.addf %1093, %1094 : vector<16x64xf32>
    %1096 = vector.extract_strided_slice %1092 {offsets = [32, 0], sizes = [16, 64], strides = [1, 1]} : vector<64x64xf32> to vector<16x64xf32>
    %1097 = arith.addf %1095, %1096 : vector<16x64xf32>
    %1098 = vector.extract_strided_slice %1092 {offsets = [48, 0], sizes = [16, 64], strides = [1, 1]} : vector<64x64xf32> to vector<16x64xf32>
    %1099 = arith.addf %1097, %1098 : vector<16x64xf32>
    %c3_208 = arith.constant 3 : index
    %c0_209 = arith.constant 0 : index
    %c0_210 = arith.constant 0 : index
    %1100 = vector.load %arg15[%c3_208, %c0_209, %c0_210] : memref<4x64x64xf32, #tpu.memory_space<vmem>>, vector<1x64x64xf32>
    %1101 = vector.shape_cast %1100 : vector<1x64x64xf32> to vector<64x64xf32>
    %cst_211 = arith.constant dense<0.000000e+00> : vector<16x64xf32>
    %1102 = tpu.matmul %1099, %1101, %cst_211 {dimension_numbers = #tpu.dot_dimension_numbers<[1], [0], [0], [1], [0, 0, 1, 1], [], []>} : vector<16x64xf32>, vector<64x64xf32>, vector<16x64xf32> -> vector<16x64xf32>
    %1103 = arith.addf %1048, %1102 : vector<16x64xf32>
    %cst_212 = arith.constant dense<0.000000e+00> : vector<16xf32>
    %1104 = vector.multi_reduction <add>, %1103, %cst_212 [1] : vector<16x64xf32> to vector<16xf32>
    %1105 = vector.shape_cast %1104 : vector<16xf32> to vector<16x1xf32>
    %cst_213 = arith.constant 6.400000e+01 : f32
    %1106 = vector.broadcast %cst_213 : f32 to vector<16x1xf32>
    %1107 = arith.divf %1105, %1106 : vector<16x1xf32>
    %1108 = vector.broadcast %1107 : vector<16x1xf32> to vector<16x64xf32>
    %1109 = arith.subf %1103, %1108 : vector<16x64xf32>
    %1110 = arith.mulf %1109, %1109 : vector<16x64xf32>
    %cst_214 = arith.constant dense<0.000000e+00> : vector<16xf32>
    %1111 = vector.multi_reduction <add>, %1110, %cst_214 [1] : vector<16x64xf32> to vector<16xf32>
    %1112 = vector.shape_cast %1111 : vector<16xf32> to vector<16x1xf32>
    %cst_215 = arith.constant 6.400000e+01 : f32
    %1113 = vector.broadcast %cst_215 : f32 to vector<16x1xf32>
    %1114 = arith.divf %1112, %1113 : vector<16x1xf32>
    %1115 = vector.broadcast %1107 : vector<16x1xf32> to vector<16x64xf32>
    %1116 = arith.subf %1103, %1115 : vector<16x64xf32>
    %cst_216 = arith.constant 9.99999974E-6 : f32
    %1117 = vector.broadcast %cst_216 : f32 to vector<16x1xf32>
    %1118 = arith.addf %1114, %1117 : vector<16x1xf32>
    %1119 = math.rsqrt %1118 : vector<16x1xf32>
    %1120 = vector.broadcast %1119 : vector<16x1xf32> to vector<16x64xf32>
    %1121 = arith.mulf %1116, %1120 : vector<16x64xf32>
    %1122 = vector.broadcast %906 : vector<1x64xf32> to vector<16x64xf32>
    %1123 = arith.mulf %1121, %1122 : vector<16x64xf32>
    %1124 = vector.broadcast %907 : vector<1x64xf32> to vector<16x64xf32>
    %1125 = arith.addf %1123, %1124 : vector<16x64xf32>
    %c3_217 = arith.constant 3 : index
    %c0_218 = arith.constant 0 : index
    %c0_219 = arith.constant 0 : index
    %1126 = vector.load %arg16[%c3_217, %c0_218, %c0_219] : memref<4x64x128xf32, #tpu.memory_space<vmem>>, vector<1x64x128xf32>
    %1127 = vector.shape_cast %1126 : vector<1x64x128xf32> to vector<64x128xf32>
    %cst_220 = arith.constant dense<0.000000e+00> : vector<16x128xf32>
    %1128 = tpu.matmul %1125, %1127, %cst_220 {dimension_numbers = #tpu.dot_dimension_numbers<[1], [0], [0], [1], [0, 0, 1, 1], [], []>} : vector<16x64xf32>, vector<64x128xf32>, vector<16x128xf32> -> vector<16x128xf32>
    %c3_221 = arith.constant 3 : index
    %c0_222 = arith.constant 0 : index
    %c0_223 = arith.constant 0 : index
    %1129 = vector.load %arg13[%c3_221, %c0_222, %c0_223] : memref<4x1x128xf32, #tpu.memory_space<vmem>>, vector<1x1x128xf32>
    %1130 = vector.shape_cast %1129 : vector<1x1x128xf32> to vector<1x128xf32>
    %1131 = vector.broadcast %1130 : vector<1x128xf32> to vector<16x128xf32>
    %1132 = arith.addf %1128, %1131 : vector<16x128xf32>
    %1133 = arith.mulf %1132, %1132 : vector<16x128xf32>
    %1134 = arith.mulf %1132, %1133 : vector<16x128xf32>
    %cst_224 = arith.constant 4.471500e-02 : f32
    %1135 = vector.broadcast %cst_224 : f32 to vector<16x128xf32>
    %1136 = arith.mulf %1135, %1134 : vector<16x128xf32>
    %1137 = arith.addf %1132, %1136 : vector<16x128xf32>
    %cst_225 = arith.constant 0.797884583 : f32
    %1138 = vector.broadcast %cst_225 : f32 to vector<16x128xf32>
    %1139 = arith.mulf %1138, %1137 : vector<16x128xf32>
    %1140 = math.tanh %1139 : vector<16x128xf32>
    %cst_226 = arith.constant 1.000000e+00 : f32
    %1141 = vector.broadcast %cst_226 : f32 to vector<16x128xf32>
    %1142 = arith.addf %1141, %1140 : vector<16x128xf32>
    %cst_227 = arith.constant 5.000000e-01 : f32
    %1143 = vector.broadcast %cst_227 : f32 to vector<16x128xf32>
    %1144 = arith.mulf %1143, %1142 : vector<16x128xf32>
    %1145 = arith.mulf %1132, %1144 : vector<16x128xf32>
    %c3_228 = arith.constant 3 : index
    %c0_229 = arith.constant 0 : index
    %c0_230 = arith.constant 0 : index
    %1146 = vector.load %arg17[%c3_228, %c0_229, %c0_230] : memref<4x128x64xf32, #tpu.memory_space<vmem>>, vector<1x128x64xf32>
    %1147 = vector.shape_cast %1146 : vector<1x128x64xf32> to vector<128x64xf32>
    %cst_231 = arith.constant dense<0.000000e+00> : vector<16x64xf32>
    %1148 = tpu.matmul %1145, %1147, %cst_231 {dimension_numbers = #tpu.dot_dimension_numbers<[1], [0], [0], [1], [0, 0, 1, 1], [], []>} : vector<16x128xf32>, vector<128x64xf32>, vector<16x64xf32> -> vector<16x64xf32>
    %1149 = arith.addf %1103, %1148 : vector<16x64xf32>
    %1150 = vector.broadcast %908 : vector<1x64xf32> to vector<16x64xf32>
    %1151 = arith.addf %1149, %1150 : vector<16x64xf32>
    %1152 = vector.extract_strided_slice %119 {offsets = [2, 0], sizes = [1, 64], strides = [1, 1]} : vector<4x64xf32> to vector<1x64xf32>
    %1153 = vector.extract_strided_slice %119 {offsets = [3, 0], sizes = [1, 64], strides = [1, 1]} : vector<4x64xf32> to vector<1x64xf32>
    %cst_232 = arith.constant dense<0.000000e+00> : vector<16xf32>
    %1154 = vector.multi_reduction <add>, %1151, %cst_232 [1] : vector<16x64xf32> to vector<16xf32>
    %1155 = vector.shape_cast %1154 : vector<16xf32> to vector<16x1xf32>
    %cst_233 = arith.constant 6.400000e+01 : f32
    %1156 = vector.broadcast %cst_233 : f32 to vector<16x1xf32>
    %1157 = arith.divf %1155, %1156 : vector<16x1xf32>
    %1158 = vector.broadcast %1157 : vector<16x1xf32> to vector<16x64xf32>
    %1159 = arith.subf %1151, %1158 : vector<16x64xf32>
    %1160 = arith.mulf %1159, %1159 : vector<16x64xf32>
    %cst_234 = arith.constant dense<0.000000e+00> : vector<16xf32>
    %1161 = vector.multi_reduction <add>, %1160, %cst_234 [1] : vector<16x64xf32> to vector<16xf32>
    %1162 = vector.shape_cast %1161 : vector<16xf32> to vector<16x1xf32>
    %cst_235 = arith.constant 6.400000e+01 : f32
    %1163 = vector.broadcast %cst_235 : f32 to vector<16x1xf32>
    %1164 = arith.divf %1162, %1163 : vector<16x1xf32>
    %1165 = vector.broadcast %1157 : vector<16x1xf32> to vector<16x64xf32>
    %1166 = arith.subf %1151, %1165 : vector<16x64xf32>
    %cst_236 = arith.constant 9.99999974E-6 : f32
    %1167 = vector.broadcast %cst_236 : f32 to vector<16x1xf32>
    %1168 = arith.addf %1164, %1167 : vector<16x1xf32>
    %1169 = math.rsqrt %1168 : vector<16x1xf32>
    %1170 = vector.broadcast %1169 : vector<16x1xf32> to vector<16x64xf32>
    %1171 = arith.mulf %1166, %1170 : vector<16x64xf32>
    %1172 = vector.broadcast %1152 : vector<1x64xf32> to vector<16x64xf32>
    %1173 = arith.mulf %1171, %1172 : vector<16x64xf32>
    %1174 = vector.broadcast %1153 : vector<1x64xf32> to vector<16x64xf32>
    %1175 = arith.addf %1173, %1174 : vector<16x64xf32>
    %c0_237 = arith.constant 0 : index
    %c0_238 = arith.constant 0 : index
    %1176 = vector.load %arg21[%c0_237, %c0_238] : memref<16x64xf32, #tpu.memory_space<vmem>>, vector<16x64xf32>
    tpu.vector_store %arg21[%c0_237, %c0_238], %1175 {strides = array<i32>} : memref<16x64xf32, #tpu.memory_space<vmem>>, vector<16x64xf32>,
    return
  }
}

</mosaic_0001>

<llo_original>
// kernel: omnitokenizer_encoder_forward.1
$region0: #{omnitokenizer_encoder_forward.1}
  #allocation0 [shape = 'u32[]', space=smem, size = 0x4, offset = 0x4, fixed_abs, tag = 'smem constant byte address 0x4 - core index']
  #allocation1 [shape = 'u32[144,128]{1,0:T(1,128)}', space=vmem, size = 0x12000, scoped, tag = 'internal scratch']
  %s0 = inlined_call_operand.vmem [shape: f32[8,192], index: 0, kind: input, shape index: {}]
  %s1 = inlined_call_operand.vmem [shape: f32[8,384], index: 1, kind: input, shape index: {}]
  %s2 = inlined_call_operand.vmem [shape: f32[2,192], index: 2, kind: input, shape index: {}]
  %s3 = inlined_call_operand.vmem [shape: f32[192,64], index: 3, kind: input, shape index: {}]
  %s4 = inlined_call_operand.vmem [shape: f32[3,64], index: 4, kind: input, shape index: {}]
  %s5 = inlined_call_operand.vmem [shape: f32[2,384], index: 5, kind: input, shape index: {}]
  %s6 = inlined_call_operand.vmem [shape: f32[384,64], index: 6, kind: input, shape index: {}]
  %s7 = inlined_call_operand.vmem [shape: f32[3,64], index: 7, kind: input, shape index: {}]
  %s8 = inlined_call_operand.vmem [shape: f32[16,8], index: 8, kind: input, shape index: {}]
  %s9 = inlined_call_operand.vmem [shape: f32[16,8], index: 9, kind: input, shape index: {}]
  %s10 = inlined_call_operand.vmem [shape: f32[432,16], index: 10, kind: input, shape index: {}]
  %s11 = inlined_call_operand.vmem [shape: f32[4,27,64], index: 11, kind: input, shape index: {}]
  %s12 = inlined_call_operand.vmem [shape: f32[4,6,64], index: 12, kind: input, shape index: {}]
  %s13 = inlined_call_operand.vmem [shape: f32[4,1,128], index: 13, kind: input, shape index: {}]
  %s14 = inlined_call_operand.vmem [shape: f32[4,64,192], index: 14, kind: input, shape index: {}]
  %s15 = inlined_call_operand.vmem [shape: f32[4,64,64], index: 15, kind: input, shape index: {}]
  %s16 = inlined_call_operand.vmem [shape: f32[4,64,128], index: 16, kind: input, shape index: {}]
  %s17 = inlined_call_operand.vmem [shape: f32[4,128,64], index: 17, kind: input, shape index: {}]
  %s18 = inlined_call_operand.vmem [shape: f32[2,64,16], index: 18, kind: input, shape index: {}]
  %s19 = inlined_call_operand.vmem [shape: f32[64,64], index: 19, kind: input, shape index: {}]
  %s20 = inlined_call_operand.vmem [shape: f32[4,64], index: 20, kind: input, shape index: {}]
  %s21 = inlined_call_operand.hbm [shape: f32[16,64], index: 21, kind: output, shape index: {}]
  %s22 = sld [smem:[#allocation0]]
  $region94: #{omnitokenizer_encoder_forward.1} parent=0
    _
  %s24 = ssub.s32 1, %s22
  %s25 = scalar_select 0, %s24, %s22
  $region1: #{omnitokenizer_encoder_forward.1} parent=0
    #allocation2 [shape = 'u8[8192]{0}', space=vmem, size = 0x2000, scoped, tag = 'output window, operand 0, single buffered']
    #allocation3 [shape = 's32[1]{0}', space=sflag, size = 0x4, scoped, tag = 'scoped memory for omnitokenizer_encoder_forward.1']
    %26 = vsyncpa [#allocation3], 0
    // Predicated region
    $region2: #{omnitokenizer_encoder_forward.1} parent=1 // pred_check
      _
    $region3: #{omnitokenizer_encoder_forward.1} parent=1 // pred_check_branch
      %28 = sbr.rel (0) target = $region5
    $region4: #{omnitokenizer_encoder_forward.1} parent=1 // pred_region
      _
    $region5: #{omnitokenizer_encoder_forward.1} parent=1 // pred_fallthru
      _
    // Predicated region
    $region6: #{omnitokenizer_encoder_forward.1} parent=1 // pred_check
      _
    $region7: #{omnitokenizer_encoder_forward.1} parent=1 // pred_check_branch
      %30 = sbr.rel (0) target = $region9
    $region8: #{omnitokenizer_encoder_forward.1} parent=1 // pred_region
      _
    $region9: #{omnitokenizer_encoder_forward.1} parent=1 // pred_fallthru
      _
    // Predicated region
    $region10: #{omnitokenizer_encoder_forward.1} parent=1 // pred_check
      _
    $region11: #{omnitokenizer_encoder_forward.1} parent=1 // pred_check_branch
      %32 = sbr.rel (0) target = $region13
    $region12: #{omnitokenizer_encoder_forward.1} parent=1 // pred_region
      _
    $region13: #{omnitokenizer_encoder_forward.1} parent=1 // pred_fallthru
      _
    // Predicated region
    $region14: #{omnitokenizer_encoder_forward.1} parent=1 // pred_check
      _
    $region15: #{omnitokenizer_encoder_forward.1} parent=1 // pred_check_branch
      %34 = sbr.rel (0) target = $region17
    $region16: #{omnitokenizer_encoder_forward.1} parent=1 // pred_region
      _
    $region17: #{omnitokenizer_encoder_forward.1} parent=1 // pred_fallthru
      _
    // Predicated region
    $region18: #{omnitokenizer_encoder_forward.1} parent=1 // pred_check
      _
    $region19: #{omnitokenizer_encoder_forward.1} parent=1 // pred_check_branch
      %36 = sbr.rel (0) target = $region21
    $region20: #{omnitokenizer_encoder_forward.1} parent=1 // pred_region
      _
    $region21: #{omnitokenizer_encoder_forward.1} parent=1 // pred_fallthru
      _
    // Predicated region
    $region22: #{omnitokenizer_encoder_forward.1} parent=1 // pred_check
      _
    $region23: #{omnitokenizer_encoder_forward.1} parent=1 // pred_check_branch
      %38 = sbr.rel (0) target = $region25
    $region24: #{omnitokenizer_encoder_forward.1} parent=1 // pred_region
      _
    $region25: #{omnitokenizer_encoder_forward.1} parent=1 // pred_fallthru
      _
    // Predicated region
    $region26: #{omnitokenizer_encoder_forward.1} parent=1 // pred_check
      _
    $region27: #{omnitokenizer_encoder_forward.1} parent=1 // pred_check_branch
      %40 = sbr.rel (0) target = $region29
    $region28: #{omnitokenizer_encoder_forward.1} parent=1 // pred_region
      _
    $region29: #{omnitokenizer_encoder_forward.1} parent=1 // pred_fallthru
      _
    // Predicated region
    $region30: #{omnitokenizer_encoder_forward.1} parent=1 // pred_check
      _
    $region31: #{omnitokenizer_encoder_forward.1} parent=1 // pred_check_branch
      %42 = sbr.rel (0) target = $region33
    $region32: #{omnitokenizer_encoder_forward.1} parent=1 // pred_region
      _
    $region33: #{omnitokenizer_encoder_forward.1} parent=1 // pred_fallthru
      _
    // Predicated region
    $region34: #{omnitokenizer_encoder_forward.1} parent=1 // pred_check
      _
    $region35: #{omnitokenizer_encoder_forward.1} parent=1 // pred_check_branch
      %44 = sbr.rel (0) target = $region37
    $region36: #{omnitokenizer_encoder_forward.1} parent=1 // pred_region
      _
    $region37: #{omnitokenizer_encoder_forward.1} parent=1 // pred_fallthru
      _
    // Predicated region
    $region38: #{omnitokenizer_encoder_forward.1} parent=1 // pred_check
      _
    $region39: #{omnitokenizer_encoder_forward.1} parent=1 // pred_check_branch
      %46 = sbr.rel (0) target = $region41
    $region40: #{omnitokenizer_encoder_forward.1} parent=1 // pred_region
      _
    $region41: #{omnitokenizer_encoder_forward.1} parent=1 // pred_fallthru
      _
    // Predicated region
    $region42: #{omnitokenizer_encoder_forward.1} parent=1 // pred_check
      _
    $region43: #{omnitokenizer_encoder_forward.1} parent=1 // pred_check_branch
      %48 = sbr.rel (0) target = $region45
    $region44: #{omnitokenizer_encoder_forward.1} parent=1 // pred_region
      _
    $region45: #{omnitokenizer_encoder_forward.1} parent=1 // pred_fallthru
      _
    // Predicated region
    $region46: #{omnitokenizer_encoder_forward.1} parent=1 // pred_check
      _
    $region47: #{omnitokenizer_encoder_forward.1} parent=1 // pred_check_branch
      %50 = sbr.rel (0) target = $region49
    $region48: #{omnitokenizer_encoder_forward.1} parent=1 // pred_region
      _
    $region49: #{omnitokenizer_encoder_forward.1} parent=1 // pred_fallthru
      _
    // Predicated region
    $region50: #{omnitokenizer_encoder_forward.1} parent=1 // pred_check
      _
    $region51: #{omnitokenizer_encoder_forward.1} parent=1 // pred_check_branch
      %52 = sbr.rel (0) target = $region53
    $region52: #{omnitokenizer_encoder_forward.1} parent=1 // pred_region
      _
    $region53: #{omnitokenizer_encoder_forward.1} parent=1 // pred_fallthru
      _
    // Predicated region
    $region54: #{omnitokenizer_encoder_forward.1} parent=1 // pred_check
      _
    $region55: #{omnitokenizer_encoder_forward.1} parent=1 // pred_check_branch
      %54 = sbr.rel (0) target = $region57
    $region56: #{omnitokenizer_encoder_forward.1} parent=1 // pred_region
      _
    $region57: #{omnitokenizer_encoder_forward.1} parent=1 // pred_fallthru
      _
    // Predicated region
    $region58: #{omnitokenizer_encoder_forward.1} parent=1 // pred_check
      _
    $region59: #{omnitokenizer_encoder_forward.1} parent=1 // pred_check_branch
      %56 = sbr.rel (0) target = $region61
    $region60: #{omnitokenizer_encoder_forward.1} parent=1 // pred_region
      _
    $region61: #{omnitokenizer_encoder_forward.1} parent=1 // pred_fallthru
      _
    // Predicated region
    $region62: #{omnitokenizer_encoder_forward.1} parent=1 // pred_check
      _
    $region63: #{omnitokenizer_encoder_forward.1} parent=1 // pred_check_branch
      %58 = sbr.rel (0) target = $region65
    $region64: #{omnitokenizer_encoder_forward.1} parent=1 // pred_region
      _
    $region65: #{omnitokenizer_encoder_forward.1} parent=1 // pred_fallthru
      _
    // Predicated region
    $region66: #{omnitokenizer_encoder_forward.1} parent=1 // pred_check
      _
    $region67: #{omnitokenizer_encoder_forward.1} parent=1 // pred_check_branch
      %60 = sbr.rel (0) target = $region69
    $region68: #{omnitokenizer_encoder_forward.1} parent=1 // pred_region
      _
    $region69: #{omnitokenizer_encoder_forward.1} parent=1 // pred_fallthru
      _
    // Predicated region
    $region70: #{omnitokenizer_encoder_forward.1} parent=1 // pred_check
      _
    $region71: #{omnitokenizer_encoder_forward.1} parent=1 // pred_check_branch
      %62 = sbr.rel (0) target = $region73
    $region72: #{omnitokenizer_encoder_forward.1} parent=1 // pred_region
      _
    $region73: #{omnitokenizer_encoder_forward.1} parent=1 // pred_fallthru
      _
    // Predicated region
    $region74: #{omnitokenizer_encoder_forward.1} parent=1 // pred_check
      _
    $region75: #{omnitokenizer_encoder_forward.1} parent=1 // pred_check_branch
      %64 = sbr.rel (0) target = $region77
    $region76: #{omnitokenizer_encoder_forward.1} parent=1 // pred_region
      _
    $region77: #{omnitokenizer_encoder_forward.1} parent=1 // pred_fallthru
      _
    // Predicated region
    $region78: #{omnitokenizer_encoder_forward.1} parent=1 // pred_check
      _
    $region79: #{omnitokenizer_encoder_forward.1} parent=1 // pred_check_branch
      %66 = sbr.rel (0) target = $region81
    $region80: #{omnitokenizer_encoder_forward.1} parent=1 // pred_region
      _
    $region81: #{omnitokenizer_encoder_forward.1} parent=1 // pred_fallthru
      _
    // Predicated region
    $region82: #{omnitokenizer_encoder_forward.1} parent=1 // pred_check
      _
    $region83: #{omnitokenizer_encoder_forward.1} parent=1 // pred_check_branch
      %68 = sbr.rel (0) target = $region85
    $region84: #{omnitokenizer_encoder_forward.1} parent=1 // pred_region
      _
    $region85: #{omnitokenizer_encoder_forward.1} parent=1 // pred_fallthru
      _
    %v69 = vld [vmem:[%s0] sm:$0xff]
    %v70 = vld [vmem:[%s0 + $0x8] sm:$0xff]
    %v71 = vld [vmem:[%s2] sm:$0xf]
    %v72 = vld [vmem:[%s3] sm:$0xff]
    %v73 = vld [vmem:[%s3 + $0x8] sm:$0xff]
    %v74 = vld [vmem:[%s3 + $0x10] sm:$0xff]
    %v75 = vld [vmem:[%s3 + $0x18] sm:$0xff]
    %v76 = vld [vmem:[%s3 + $0x20] sm:$0xff]
    %v77 = vld [vmem:[%s3 + $0x28] sm:$0xff]
    %v78 = vld [vmem:[%s3 + $0x30] sm:$0xff]
    %v79 = vld [vmem:[%s3 + $0x38] sm:$0xff]
    %v80 = vld [vmem:[%s3 + $0x40] sm:$0xff]
    %v81 = vld [vmem:[%s3 + $0x48] sm:$0xff]
    %v82 = vld [vmem:[%s3 + $0x50] sm:$0xff]
    %v83 = vld [vmem:[%s3 + $0x58] sm:$0xff]
    %v84 = vld [vmem:[%s3 + $0x60] sm:$0xff]
    %v85 = vld [vmem:[%s3 + $0x68] sm:$0xff]
    %v86 = vld [vmem:[%s3 + $0x70] sm:$0xff]
    %v87 = vld [vmem:[%s3 + $0x78] sm:$0xff]
    %v88 = vld [vmem:[%s3 + $0x80] sm:$0xff]
    %v89 = vld [vmem:[%s3 + $0x88] sm:$0xff]
    %v90 = vld [vmem:[%s3 + $0x90] sm:$0xff]
    %v91 = vld [vmem:[%s3 + $0x98] sm:$0xff]
    %v92 = vld [vmem:[%s3 + $0xa0] sm:$0xff]
    %v93 = vld [vmem:[%s3 + $0xa8] sm:$0xff]
    %v94 = vld [vmem:[%s3 + $0xb0] sm:$0xff]
    %v95 = vld [vmem:[%s3 + $0xb8] sm:$0xff]
    %v96 = vld [vmem:[%s4] sm:$0x7]
    %vm97 = vcmask 523264
    %v98 = vsel %vm97, %v70, 0.0
    %v99 = vadd.f32 %v69, %v98
    %100 = vadd.xlane.f32.xlu0 %v99
    %v101 = vpop.xlane.xlu0 %100
    %v102 = vrcp.pop 192.0
    %v103 = vmul.f32 %v101, %v102
    %v104 = vsub.f32 %v69, %v103
    %v105 = vsub.f32 %v70, %v103
    %v106 = vmul.f32 %v104, %v104
    %v107 = vmul.f32 %v105, %v105
    %v108 = vsel %vm97, %v107, 0.0
    %v109 = vadd.f32 %v106, %v108
    %110 = vadd.xlane.f32.xlu0 %v109
    %v111 = vpop.xlane.xlu0 %110
    %v112 = vmul.f32 %v111, %v102
    %v113 = vadd.f32 %v112, 1e-05
    %v114 = vrsqrt.pop %v113
    %v115 = vmul.f32 %v104, %v114
    %v116 = vmul.f32 %v105, %v114
    %v118 = vlaneseq
    %v119 = vshrl.u32 %v118, 7
    %v120 = vsub.s32 0, %v119
    %v121 = vrot.slane %v71, %v120
    %v122 = vlaneseq
    %v123 = vshrl.u32 %v122, 7
    %v124 = vsub.s32 2, %v123
    %v125 = vrot.slane %v71, %v124
    %v128 = vlaneseq
    %v129 = vshrl.u32 %v128, 7
    %v130 = vsub.s32 0, %v129
    %v131 = vrot.slane %v121, %v130
    %v132 = vlaneseq
    %v133 = vshrl.u32 %v132, 7
    %v134 = vsub.s32 0, %v133
    %v135 = vrot.slane %v125, %v134
    %v136 = vmul.f32 %v115, %v131
    %v137 = vmul.f32 %v116, %v135
    %v138 = vlaneseq
    %v139 = vshrl.u32 %v138, 7
    %v140 = vsub.s32 1, %v139
    %v141 = vrot.slane %v71, %v140
    %v142 = vlaneseq
    %v143 = vshrl.u32 %v142, 7
    %v144 = vsub.s32 3, %v143
    %v145 = vrot.slane %v71, %v144
    %v148 = vlaneseq
    %v149 = vshrl.u32 %v148, 7
    %v150 = vsub.s32 1, %v149
    %v151 = vrot.slane %v141, %v150
    %v152 = vlaneseq
    %v153 = vshrl.u32 %v152, 7
    %v154 = vsub.s32 1, %v153
    %v155 = vrot.slane %v145, %v154
    %v156 = vadd.f32 %v136, %v151
    %v157 = vadd.f32 %v137, %v155
    %v158 = vlaneseq
    %v159 = vshrl.u32 %v158, 7
    %v160 = vsub.s32 0, %v159
    %v161 = vrot.slane %v96, %v160
    %v163 = vsel %vm97, %v157, 0
    %165 = vmatprep.subr.mxu0 0.0
    %166 = vmatpush1.msra.mxu0 %v72
    %167 = vmatprep.subr.mxu0 0.0
    %168 = vmatpush1.msra.mxu0 %v73
    %169 = vmatprep.subr.mxu0 0.0
    %170 = vmatpush1.msra.mxu0 %v74
    %171 = vmatprep.subr.mxu0 0.0
    %172 = vmatpush1.msra.mxu0 %v75
    %173 = vmatprep.subr.mxu0 0.0
    %174 = vmatpush1.msra.mxu0 %v76
    %175 = vmatprep.subr.mxu0 0.0
    %176 = vmatpush1.msra.mxu0 %v77
    %177 = vmatprep.subr.mxu0 0.0
    %178 = vmatpush1.msra.mxu0 %v78
    %179 = vmatprep.subr.mxu0 0.0
    %180 = vmatpush1.msra.mxu0 %v79
    %181 = vmatprep.subr.mxu0 0.0
    %182 = vmatpush1.msra.mxu0 %v80
    %183 = vmatprep.subr.mxu0 0.0
    %184 = vmatpush1.msra.mxu0 %v81
    %185 = vmatprep.subr.mxu0 0.0
    %186 = vmatpush1.msra.mxu0 %v82
    %187 = vmatprep.subr.mxu0 0.0
    %188 = vmatpush1.msra.mxu0 %v83
    %189 = vmatprep.subr.mxu0 0.0
    %190 = vmatpush1.msra.mxu0 %v84
    %191 = vmatprep.subr.mxu0 0.0
    %192 = vmatpush1.msra.mxu0 %v85
    %193 = vmatprep.subr.mxu0 0.0
    %194 = vmatpush1.msra.mxu0 %v86
    %195 = vmatprep.subr.mxu0 0.0
    %196 = vmatpush1.msra.mxu0 %v87
    %197 = vmatprep.subr.mxu0 0.0
    %198 = vmatpush1.msra.mxu0 %v88
    %199 = vmatprep.subr.mxu0 0.0
    %200 = vmatpush1.msra.mxu0 %v89
    %201 = vmatprep.subr.mxu0 0.0
    %202 = vmatpush1.msra.mxu0 %v90
    %203 = vmatprep.subr.mxu0 0.0
    %204 = vmatpush1.msra.mxu0 %v91
    %205 = vmatprep.subr.mxu0 0.0
    %206 = vmatpush1.msra.mxu0 %v92
    %207 = vmatprep.subr.mxu0 0.0
    %208 = vmatpush1.msra.mxu0 %v93
    %209 = vmatprep.subr.mxu0 0.0
    %210 = vmatpush1.msra.mxu0 %v94
    %211 = vmatprep.subr.mxu0 0.0
    %212 = vmatpush1.msra.mxu0 %v95
    %213 = vmatprep.subr.mxu0 0.0
    %214 = vmatpush1.msra.mxu0 0.0
    %215 = vmatprep.subr.mxu0 0.0
    %216 = vmatpush1.msra.mxu0 0.0
    %217 = vmatprep.subr.mxu0 0.0
    %218 = vmatpush1.msra.mxu0 0.0
    %219 = vmatprep.subr.mxu0 0.0
    %220 = vmatpush1.msra.mxu0 0.0
    %221 = vmatprep.subr.mxu0 0.0
    %222 = vmatpush1.msra.mxu0 0.0
    %223 = vmatprep.subr.mxu0 0.0
    %224 = vmatpush1.msra.mxu0 0.0
    %225 = vmatprep.subr.mxu0 0.0
    %226 = vmatpush1.msra.mxu0 0.0
    %227 = vmatprep.subr.mxu0 0.0
    %228 = vmatpush1.msra.mxu0 0.0
    %229 = vmatprep.mubr.f32.mxu0 %v163
    %230 = vmatmul.mubr.f32.gmra.mrb[0].mxu0 %v156
    %v231 = vpop.f32.mrb[0].mxu0
    %v232 = vadd.f32 %v161, %v231
    %v233 = vpop.f32.mrb[0].mxu0
    %234 = vdwg.mxu0
    %v235 = vsel %vm97, %v232, 0.0
    %236 = vadd.xlane.f32.xlu0 %v235
    %v237 = vpop.xlane.xlu0 %236
    %v238 = vrcp.pop 64.0
    %v239 = vmul.f32 %v237, %v238
    %v240 = vsub.f32 %v232, %v239
    %v241 = vmul.f32 %v240, %v240
    %v242 = vsel %vm97, %v241, 0.0
    %243 = vadd.xlane.f32.xlu0 %v242
    %v244 = vpop.xlane.xlu0 %243
    %v245 = vmul.f32 %v244, %v238
    %v246 = vadd.f32 %v245, 1e-05
    %v247 = vrsqrt.pop %v246
    %v248 = vmul.f32 %v240, %v247
    %v249 = vlaneseq
    %v250 = vshrl.u32 %v249, 7
    %v251 = vsub.s32 1, %v250
    %v252 = vrot.slane %v96, %v251
    %v253 = vmul.f32 %v248, %v252
    %v254 = vlaneseq
    %v255 = vshrl.u32 %v254, 7
    %v256 = vsub.s32 2, %v255
    %v257 = vrot.slane %v96, %v256
    %v258 = vadd.f32 %v253, %v257
    %v259 = vld [vmem:[%s1] sm:$0xff]
    %v260 = vld [vmem:[%s1 + $0x8] sm:$0xff]
    %v261 = vld [vmem:[%s1 + $0x10] sm:$0xff]
    %v262 = vld [vmem:[%s5] sm:$0x3f]
    %v263 = vld [vmem:[%s6] sm:$0xff]
    %v264 = vld [vmem:[%s6 + $0x8] sm:$0xff]
    %v265 = vld [vmem:[%s6 + $0x10] sm:$0xff]
    %v266 = vld [vmem:[%s6 + $0x18] sm:$0xff]
    %v267 = vld [vmem:[%s6 + $0x20] sm:$0xff]
    %v268 = vld [vmem:[%s6 + $0x28] sm:$0xff]
    %v269 = vld [vmem:[%s6 + $0x30] sm:$0xff]
    %v270 = vld [vmem:[%s6 + $0x38] sm:$0xff]
    %v271 = vld [vmem:[%s6 + $0x40] sm:$0xff]
    %v272 = vld [vmem:[%s6 + $0x48] sm:$0xff]
    %v273 = vld [vmem:[%s6 + $0x50] sm:$0xff]
    %v274 = vld [vmem:[%s6 + $0x58] sm:$0xff]
    %v275 = vld [vmem:[%s6 + $0x60] sm:$0xff]
    %v276 = vld [vmem:[%s6 + $0x68] sm:$0xff]
    %v277 = vld [vmem:[%s6 + $0x70] sm:$0xff]
    %v278 = vld [vmem:[%s6 + $0x78] sm:$0xff]
    %v279 = vld [vmem:[%s6 + $0x80] sm:$0xff]
    %v280 = vld [vmem:[%s6 + $0x88] sm:$0xff]
    %v281 = vld [vmem:[%s6 + $0x90] sm:$0xff]
    %v282 = vld [vmem:[%s6 + $0x98] sm:$0xff]
    %v283 = vld [vmem:[%s6 + $0xa0] sm:$0xff]
    %v284 = vld [vmem:[%s6 + $0xa8] sm:$0xff]
    %v285 = vld [vmem:[%s6 + $0xb0] sm:$0xff]
    %v286 = vld [vmem:[%s6 + $0xb8] sm:$0xff]
    %v287 = vld [vmem:[%s6 + $0xc0] sm:$0xff]
    %v288 = vld [vmem:[%s6 + $0xc8] sm:$0xff]
    %v289 = vld [vmem:[%s6 + $0xd0] sm:$0xff]
    %v290 = vld [vmem:[%s6 + $0xd8] sm:$0xff]
    %v291 = vld [vmem:[%s6 + $0xe0] sm:$0xff]
    %v292 = vld [vmem:[%s6 + $0xe8] sm:$0xff]
    %v293 = vld [vmem:[%s6 + $0xf0] sm:$0xff]
    %v294 = vld [vmem:[%s6 + $0xf8] sm:$0xff]
    %v295 = vld [vmem:[%s6 + $0x100] sm:$0xff]
    %v296 = vld [vmem:[%s6 + $0x108] sm:$0xff]
    %v297 = vld [vmem:[%s6 + $0x110] sm:$0xff]
    %v298 = vld [vmem:[%s6 + $0x118] sm:$0xff]
    %v299 = vld [vmem:[%s6 + $0x120] sm:$0xff]
    %v300 = vld [vmem:[%s6 + $0x128] sm:$0xff]
    %v301 = vld [vmem:[%s6 + $0x130] sm:$0xff]
    %v302 = vld [vmem:[%s6 + $0x138] sm:$0xff]
    %v303 = vld [vmem:[%s6 + $0x140] sm:$0xff]
    %v304 = vld [vmem:[%s6 + $0x148] sm:$0xff]
    %v305 = vld [vmem:[%s6 + $0x150] sm:$0xff]
    %v306 = vld [vmem:[%s6 + $0x158] sm:$0xff]
    %v307 = vld [vmem:[%s6 + $0x160] sm:$0xff]
    %v308 = vld [vmem:[%s6 + $0x168] sm:$0xff]
    %v309 = vld [vmem:[%s6 + $0x170] sm:$0xff]
    %v310 = vld [vmem:[%s6 + $0x178] sm:$0xff]
    %v311 = vld [vmem:[%s7] sm:$0x7]
    %v312 = vadd.f32 %v259, %v260
    %v313 = vadd.f32 %v312, %v261
    %314 = vadd.xlane.f32.xlu0 %v313
    %v315 = vpop.xlane.xlu0 %314
    %v316 = vrcp.pop 384.0
    %v317 = vmul.f32 %v315, %v316
    %v318 = vsub.f32 %v259, %v317
    %v319 = vsub.f32 %v260, %v317
    %v320 = vsub.f32 %v261, %v317
    %v321 = vmul.f32 %v318, %v318
    %v322 = vmul.f32 %v319, %v319
    %v323 = vmul.f32 %v320, %v320
    %v324 = vadd.f32 %v321, %v322
    %v325 = vadd.f32 %v324, %v323
    %326 = vadd.xlane.f32.xlu0 %v325
    %v327 = vpop.xlane.xlu0 %326
    %v328 = vmul.f32 %v327, %v316
    %v329 = vadd.f32 %v328, 1e-05
    %v330 = vrsqrt.pop %v329
    %v331 = vmul.f32 %v318, %v330
    %v332 = vmul.f32 %v319, %v330
    %v333 = vmul.f32 %v320, %v330
    %v335 = vlaneseq
    %v336 = vshrl.u32 %v335, 7
    %v337 = vsub.s32 0, %v336
    %v338 = vrot.slane %v262, %v337
    %v339 = vlaneseq
    %v340 = vshrl.u32 %v339, 7
    %v341 = vsub.s32 2, %v340
    %v342 = vrot.slane %v262, %v341
    %v343 = vlaneseq
    %v344 = vshrl.u32 %v343, 7
    %v345 = vsub.s32 4, %v344
    %v346 = vrot.slane %v262, %v345
    %v350 = vlaneseq
    %v351 = vshrl.u32 %v350, 7
    %v352 = vsub.s32 0, %v351
    %v353 = vrot.slane %v338, %v352
    %v354 = vlaneseq
    %v355 = vshrl.u32 %v354, 7
    %v356 = vsub.s32 0, %v355
    %v357 = vrot.slane %v342, %v356
    %v358 = vlaneseq
    %v359 = vshrl.u32 %v358, 7
    %v360 = vsub.s32 0, %v359
    %v361 = vrot.slane %v346, %v360
    %v362 = vmul.f32 %v331, %v353
    %v363 = vmul.f32 %v332, %v357
    %v364 = vmul.f32 %v333, %v361
    %v365 = vlaneseq
    %v366 = vshrl.u32 %v365, 7
    %v367 = vsub.s32 1, %v366
    %v368 = vrot.slane %v262, %v367
    %v369 = vlaneseq
    %v370 = vshrl.u32 %v369, 7
    %v371 = vsub.s32 3, %v370
    %v372 = vrot.slane %v262, %v371
    %v373 = vlaneseq
    %v374 = vshrl.u32 %v373, 7
    %v375 = vsub.s32 5, %v374
    %v376 = vrot.slane %v262, %v375
    %v380 = vlaneseq
    %v381 = vshrl.u32 %v380, 7
    %v382 = vsub.s32 1, %v381
    %v383 = vrot.slane %v368, %v382
    %v384 = vlaneseq
    %v385 = vshrl.u32 %v384, 7
    %v386 = vsub.s32 1, %v385
    %v387 = vrot.slane %v372, %v386
    %v388 = vlaneseq
    %v389 = vshrl.u32 %v388, 7
    %v390 = vsub.s32 1, %v389
    %v391 = vrot.slane %v376, %v390
    %v392 = vadd.f32 %v362, %v383
    %v393 = vadd.f32 %v363, %v387
    %v394 = vadd.f32 %v364, %v391
    %v395 = vlaneseq
    %v396 = vshrl.u32 %v395, 7
    %v397 = vsub.s32 0, %v396
    %v398 = vrot.slane %v311, %v397
    %399 = vmatprep.subr.mxu0 0.0
    %400 = vmatpush1.msra.mxu0 %v263
    %401 = vmatprep.subr.mxu0 0.0
    %402 = vmatpush1.msra.mxu0 %v264
    %403 = vmatprep.subr.mxu0 0.0
    %404 = vmatpush1.msra.mxu0 %v265
    %405 = vmatprep.subr.mxu0 0.0
    %406 = vmatpush1.msra.mxu0 %v266
    %407 = vmatprep.subr.mxu0 0.0
    %408 = vmatpush1.msra.mxu0 %v267
    %409 = vmatprep.subr.mxu0 0.0
    %410 = vmatpush1.msra.mxu0 %v268
    %411 = vmatprep.subr.mxu0 0.0
    %412 = vmatpush1.msra.mxu0 %v269
    %413 = vmatprep.subr.mxu0 0.0
    %414 = vmatpush1.msra.mxu0 %v270
    %415 = vmatprep.subr.mxu0 0.0
    %416 = vmatpush1.msra.mxu0 %v271
    %417 = vmatprep.subr.mxu0 0.0
    %418 = vmatpush1.msra.mxu0 %v272
    %419 = vmatprep.subr.mxu0 0.0
    %420 = vmatpush1.msra.mxu0 %v273
    %421 = vmatprep.subr.mxu0 0.0
    %422 = vmatpush1.msra.mxu0 %v274
    %423 = vmatprep.subr.mxu0 0.0
    %424 = vmatpush1.msra.mxu0 %v275
    %425 = vmatprep.subr.mxu0 0.0
    %426 = vmatpush1.msra.mxu0 %v276
    %427 = vmatprep.subr.mxu0 0.0
    %428 = vmatpush1.msra.mxu0 %v277
    %429 = vmatprep.subr.mxu0 0.0
    %430 = vmatpush1.msra.mxu0 %v278
    %431 = vmatprep.subr.mxu0 0.0
    %432 = vmatpush1.msra.mxu0 %v279
    %433 = vmatprep.subr.mxu0 0.0
    %434 = vmatpush1.msra.mxu0 %v280
    %435 = vmatprep.subr.mxu0 0.0
    %436 = vmatpush1.msra.mxu0 %v281
    %437 = vmatprep.subr.mxu0 0.0
    %438 = vmatpush1.msra.mxu0 %v282
    %439 = vmatprep.subr.mxu0 0.0
    %440 = vmatpush1.msra.mxu0 %v283
    %441 = vmatprep.subr.mxu0 0.0
    %442 = vmatpush1.msra.mxu0 %v284
    %443 = vmatprep.subr.mxu0 0.0
    %444 = vmatpush1.msra.mxu0 %v285
    %445 = vmatprep.subr.mxu0 0.0
    %446 = vmatpush1.msra.mxu0 %v286
    %447 = vmatprep.subr.mxu0 0.0
    %448 = vmatpush1.msra.mxu0 %v287
    %449 = vmatprep.subr.mxu0 0.0
    %450 = vmatpush1.msra.mxu0 %v288
    %451 = vmatprep.subr.mxu0 0.0
    %452 = vmatpush1.msra.mxu0 %v289
    %453 = vmatprep.subr.mxu0 0.0
    %454 = vmatpush1.msra.mxu0 %v290
    %455 = vmatprep.subr.mxu0 0.0
    %456 = vmatpush1.msra.mxu0 %v291
    %457 = vmatprep.subr.mxu0 0.0
    %458 = vmatpush1.msra.mxu0 %v292
    %459 = vmatprep.subr.mxu0 0.0
    %460 = vmatpush1.msra.mxu0 %v293
    %461 = vmatprep.subr.mxu0 0.0
    %462 = vmatpush1.msra.mxu0 %v294
    %463 = vmatprep.mubr.f32.mxu0 %v393
    %464 = vmatmul.mubr.f32.gmra.mrb[0].mxu0 %v392
    %v465 = vpop.f32.mrb[0].mxu0
    %v466 = vadd.f32 %v398, %v465
    %v467 = vpop.f32.mrb[0].mxu0
    %468 = vdwg.mxu0
    %469 = vmatprep.subr.mxu0 0.0
    %470 = vmatpush1.msra.mxu0 %v295
    %471 = vmatprep.subr.mxu0 0.0
    %472 = vmatpush1.msra.mxu0 %v296
    %473 = vmatprep.subr.mxu0 0.0
    %474 = vmatpush1.msra.mxu0 %v297
    %475 = vmatprep.subr.mxu0 0.0
    %476 = vmatpush1.msra.mxu0 %v298
    %477 = vmatprep.subr.mxu0 0.0
    %478 = vmatpush1.msra.mxu0 %v299
    %479 = vmatprep.subr.mxu0 0.0
    %480 = vmatpush1.msra.mxu0 %v300
    %481 = vmatprep.subr.mxu0 0.0
    %482 = vmatpush1.msra.mxu0 %v301
    %483 = vmatprep.subr.mxu0 0.0
    %484 = vmatpush1.msra.mxu0 %v302
    %485 = vmatprep.subr.mxu0 0.0
    %486 = vmatpush1.msra.mxu0 %v303
    %487 = vmatprep.subr.mxu0 0.0
    %488 = vmatpush1.msra.mxu0 %v304
    %489 = vmatprep.subr.mxu0 0.0
    %490 = vmatpush1.msra.mxu0 %v305
    %491 = vmatprep.subr.mxu0 0.0
    %492 = vmatpush1.msra.mxu0 %v306
    %493 = vmatprep.subr.mxu0 0.0
    %494 = vmatpush1.msra.mxu0 %v307
    %495 = vmatprep.subr.mxu0 0.0
    %496 = vmatpush1.msra.mxu0 %v308
    %497 = vmatprep.subr.mxu0 0.0
    %498 = vmatpush1.msra.mxu0 %v309
    %499 = vmatprep.subr.mxu0 0.0
    %500 = vmatpush1.msra.mxu0 %v310
    %501 = vmatprep.subr.mxu0 0.0
    %502 = vmatpush1.msra.mxu0 0.0
    %503 = vmatprep.subr.mxu0 0.0
    %504 = vmatpush1.msra.mxu0 0.0
    %505 = vmatprep.subr.mxu0 0.0
    %506 = vmatpush1.msra.mxu0 0.0
    %507 = vmatprep.subr.mxu0 0.0
    %508 = vmatpush1.msra.mxu0 0.0
    %509 = vmatprep.subr.mxu0 0.0
    %510 = vmatpush1.msra.mxu0 0.0
    %511 = vmatprep.subr.mxu0 0.0
    %512 = vmatpush1.msra.mxu0 0.0
    %513 = vmatprep.subr.mxu0 0.0
    %514 = vmatpush1.msra.mxu0 0.0
    %515 = vmatprep.subr.mxu0 0.0
    %516 = vmatpush1.msra.mxu0 0.0
    %517 = vmatprep.subr.mxu0 0.0
    %518 = vmatpush1.msra.mxu0 0.0
    %519 = vmatprep.subr.mxu0 0.0
    %520 = vmatpush1.msra.mxu0 0.0
    %521 = vmatprep.subr.mxu0 0.0
    %522 = vmatpush1.msra.mxu0 0.0
    %523 = vmatprep.subr.mxu0 0.0
    %524 = vmatpush1.msra.mxu0 0.0
    %525 = vmatprep.subr.mxu0 0.0
    %526 = vmatpush1.msra.mxu0 0.0
    %527 = vmatprep.subr.mxu0 0.0
    %528 = vmatpush1.msra.mxu0 0.0
    %529 = vmatprep.subr.mxu0 0.0
    %530 = vmatpush1.msra.mxu0 0.0
    %531 = vmatprep.subr.mxu0 0.0
    %532 = vmatpush1.msra.mxu0 0.0
    %533 = vmatprep.mubr.f32.mxu0 0.0
    %534 = vmatmul.mubr.f32.gmra.mrb[0].mxu0 %v394
    %v535 = vpop.f32.mrb[0].mxu0
    %v536 = vadd.f32 %v466, %v535
    %v537 = vpop.f32.mrb[0].mxu0
    %538 = vdwg.mxu0
    %v539 = vsel %vm97, %v536, 0.0
    %540 = vadd.xlane.f32.xlu0 %v539
    %v541 = vpop.xlane.xlu0 %540
    %v542 = vmul.f32 %v541, %v238
    %v543 = vsub.f32 %v536, %v542
    %v544 = vmul.f32 %v543, %v543
    %v545 = vsel %vm97, %v544, 0.0
    %546 = vadd.xlane.f32.xlu0 %v545
    %v547 = vpop.xlane.xlu0 %546
    %v548 = vmul.f32 %v547, %v238
    %v549 = vadd.f32 %v548, 1e-05
    %v550 = vrsqrt.pop %v549
    %v551 = vmul.f32 %v543, %v550
    %v552 = vlaneseq
    %v553 = vshrl.u32 %v552, 7
    %v554 = vsub.s32 1, %v553
    %v555 = vrot.slane %v311, %v554
    %v556 = vmul.f32 %v551, %v555
    %v557 = vlaneseq
    %v558 = vshrl.u32 %v557, 7
    %v559 = vsub.s32 2, %v558
    %v560 = vrot.slane %v311, %v559
    %v561 = vadd.f32 %v556, %v560
    %v562 = vld [vmem:[%s8] sm:$0xff]
    %v563 = vld [vmem:[%s8 + $0x8] sm:$0xff]
    %v564 = vld [vmem:[%s9] sm:$0xff]
    %v565 = vld [vmem:[%s9 + $0x8] sm:$0xff]
    %vm566 = vcmask 64512
    %v568 = vsel %vm566, %v564, 0
    %v571 = vsel %vm566, %v565, 0
    %573 = vmatprep.subr.mxu0 0.0
    %574 = vmatpush1.msra.mxu0 %v561
    %575 = vmatprep.subr.mxu0 0.0
    %576 = vmatpush1.msra.mxu0 0.0
    %577 = vmatprep.subr.mxu0 0.0
    %578 = vmatpush1.msra.mxu0 0.0
    %579 = vmatprep.subr.mxu0 0.0
    %580 = vmatpush1.msra.mxu0 0.0
    %581 = vmatprep.subr.mxu0 0.0
    %582 = vmatpush1.msra.mxu0 0.0
    %583 = vmatprep.subr.mxu0 0.0
    %584 = vmatpush1.msra.mxu0 0.0
    %585 = vmatprep.subr.mxu0 0.0
    %586 = vmatpush1.msra.mxu0 0.0
    %587 = vmatprep.subr.mxu0 0.0
    %588 = vmatpush1.msra.mxu0 0.0
    %589 = vmatprep.subr.mxu0 0.0
    %590 = vmatpush1.msra.mxu0 0.0
    %591 = vmatprep.subr.mxu0 0.0
    %592 = vmatpush1.msra.mxu0 0.0
    %593 = vmatprep.subr.mxu0 0.0
    %594 = vmatpush1.msra.mxu0 0.0
    %595 = vmatprep.subr.mxu0 0.0
    %596 = vmatpush1.msra.mxu0 0.0
    %597 = vmatprep.subr.mxu0 0.0
    %598 = vmatpush1.msra.mxu0 0.0
    %599 = vmatprep.subr.mxu0 0.0
    %600 = vmatpush1.msra.mxu0 0.0
    %601 = vmatprep.subr.mxu0 0.0
    %602 = vmatpush1.msra.mxu0 0.0
    %603 = vmatprep.subr.mxu0 0.0
    %604 = vmatpush1.msra.mxu0 0.0
    %605 = vmatprep.subr.mxu0 0.0
    %606 = vmatpush1.msra.mxu0 0.0
    %607 = vmatprep.subr.mxu0 0.0
    %608 = vmatpush1.msra.mxu0 0.0
    %609 = vmatprep.subr.mxu0 0.0
    %610 = vmatpush1.msra.mxu0 0.0
    %611 = vmatprep.subr.mxu0 0.0
    %612 = vmatpush1.msra.mxu0 0.0
    %613 = vmatprep.subr.mxu0 0.0
    %614 = vmatpush1.msra.mxu0 0.0
    %615 = vmatprep.subr.mxu0 0.0
    %616 = vmatpush1.msra.mxu0 0.0
    %617 = vmatprep.subr.mxu0 0.0
    %618 = vmatpush1.msra.mxu0 0.0
    %619 = vmatprep.subr.mxu0 0.0
    %620 = vmatpush1.msra.mxu0 0.0
    %621 = vmatprep.subr.mxu0 0.0
    %622 = vmatpush1.msra.mxu0 0.0
    %623 = vmatprep.subr.mxu0 0.0
    %624 = vmatpush1.msra.mxu0 0.0
    %625 = vmatprep.subr.mxu0 0.0
    %626 = vmatpush1.msra.mxu0 0.0
    %627 = vmatprep.subr.mxu0 0.0
    %628 = vmatpush1.msra.mxu0 0.0
    %629 = vmatprep.subr.mxu0 0.0
    %630 = vmatpush1.msra.mxu0 0.0
    %631 = vmatprep.subr.mxu0 0.0
    %632 = vmatpush1.msra.mxu0 0.0
    %633 = vmatprep.subr.mxu0 0.0
    %634 = vmatpush1.msra.mxu0 0.0
    %635 = vmatprep.subr.mxu0 0.0
    %636 = vmatpush1.msra.mxu0 0.0
    %637 = vmatprep.mubr.f32.mxu0 0.0
    %638 = vmatmul.mubr.f32.gmra.mrb[0].mxu0 %v568
    %v639 = vpop.f32.mrb[0].mxu0
    %v640 = vadd.f32 0.0, %v639
    %v641 = vpop.f32.mrb[0].mxu0
    %642 = vmatprep.mubr.f32.mxu0 0.0
    %643 = vmatmul.mubr.f32.gmra.mrb[0].mxu0 %v571
    %v644 = vpop.f32.mrb[0].mxu0
    %v645 = vadd.f32 0.0, %v644
    %v646 = vpop.f32.mrb[0].mxu0
    %647 = vdwg.mxu0
    %v649 = vsel %vm566, %v562, 0
    %v652 = vsel %vm566, %v563, 0
    %654 = vmatprep.subr.mxu0 0.0
    %655 = vmatpush1.msra.mxu0 %v258
    %656 = vmatprep.subr.mxu0 0.0
    %657 = vmatpush1.msra.mxu0 0.0
    %658 = vmatprep.subr.mxu0 0.0
    %659 = vmatpush1.msra.mxu0 0.0
    %660 = vmatprep.subr.mxu0 0.0
    %661 = vmatpush1.msra.mxu0 0.0
    %662 = vmatprep.subr.mxu0 0.0
    %663 = vmatpush1.msra.mxu0 0.0
    %664 = vmatprep.subr.mxu0 0.0
    %665 = vmatpush1.msra.mxu0 0.0
    %666 = vmatprep.subr.mxu0 0.0
    %667 = vmatpush1.msra.mxu0 0.0
    %668 = vmatprep.subr.mxu0 0.0
    %669 = vmatpush1.msra.mxu0 0.0
    %670 = vmatprep.subr.mxu0 0.0
    %671 = vmatpush1.msra.mxu0 0.0
    %672 = vmatprep.subr.mxu0 0.0
    %673 = vmatpush1.msra.mxu0 0.0
    %674 = vmatprep.subr.mxu0 0.0
    %675 = vmatpush1.msra.mxu0 0.0
    %676 = vmatprep.subr.mxu0 0.0
    %677 = vmatpush1.msra.mxu0 0.0
    %678 = vmatprep.subr.mxu0 0.0
    %679 = vmatpush1.msra.mxu0 0.0
    %680 = vmatprep.subr.mxu0 0.0
    %681 = vmatpush1.msra.mxu0 0.0
    %682 = vmatprep.subr.mxu0 0.0
    %683 = vmatpush1.msra.mxu0 0.0
    %684 = vmatprep.subr.mxu0 0.0
    %685 = vmatpush1.msra.mxu0 0.0
    %686 = vmatprep.subr.mxu0 0.0
    %687 = vmatpush1.msra.mxu0 0.0
    %688 = vmatprep.subr.mxu0 0.0
    %689 = vmatpush1.msra.mxu0 0.0
    %690 = vmatprep.subr.mxu0 0.0
    %691 = vmatpush1.msra.mxu0 0.0
    %692 = vmatprep.subr.mxu0 0.0
    %693 = vmatpush1.msra.mxu0 0.0
    %694 = vmatprep.subr.mxu0 0.0
    %695 = vmatpush1.msra.mxu0 0.0
    %696 = vmatprep.subr.mxu0 0.0
    %697 = vmatpush1.msra.mxu0 0.0
    %698 = vmatprep.subr.mxu0 0.0
    %699 = vmatpush1.msra.mxu0 0.0
    %700 = vmatprep.subr.mxu0 0.0
    %701 = vmatpush1.msra.mxu0 0.0
    %702 = vmatprep.subr.mxu0 0.0
    %703 = vmatpush1.msra.mxu0 0.0
    %704 = vmatprep.subr.mxu0 0.0
    %705 = vmatpush1.msra.mxu0 0.0
    %706 = vmatprep.subr.mxu0 0.0
    %707 = vmatpush1.msra.mxu0 0.0
    %708 = vmatprep.subr.mxu0 0.0
    %709 = vmatpush1.msra.mxu0 0.0
    %710 = vmatprep.subr.mxu0 0.0
    %711 = vmatpush1.msra.mxu0 0.0
    %712 = vmatprep.subr.mxu0 0.0
    %713 = vmatpush1.msra.mxu0 0.0
    %714 = vmatprep.subr.mxu0 0.0
    %715 = vmatpush1.msra.mxu0 0.0
    %716 = vmatprep.subr.mxu0 0.0
    %717 = vmatpush1.msra.mxu0 0.0
    %718 = vmatprep.mubr.f32.mxu0 0.0
    %719 = vmatmul.mubr.f32.gmra.mrb[0].mxu0 %v649
    %v720 = vpop.f32.mrb[0].mxu0
    %v721 = vadd.f32 %v640, %v720
    %v722 = vpop.f32.mrb[0].mxu0
    %723 = vmatprep.mubr.f32.mxu0 0.0
    %724 = vmatmul.mubr.f32.gmra.mrb[0].mxu0 %v652
    %v725 = vpop.f32.mrb[0].mxu0
    %v726 = vadd.f32 %v645, %v725
    %v727 = vpop.f32.mrb[0].mxu0
    %728 = vdwg.mxu0
    %v729 = vld [vmem:[%s19] sm:$0xff]
    %v730 = vld [vmem:[%s19 + $0x8] sm:$0xff]
    %v731 = vld [vmem:[%s19 + $0x10] sm:$0xff]
    %v732 = vld [vmem:[%s19 + $0x18] sm:$0xff]
    %v733 = vld [vmem:[%s19 + $0x20] sm:$0xff]
    %v734 = vld [vmem:[%s19 + $0x28] sm:$0xff]
    %v735 = vld [vmem:[%s19 + $0x30] sm:$0xff]
    %v736 = vld [vmem:[%s19 + $0x38] sm:$0xff]
    %v737 = vld [vmem:[%s10] sm:$0xff]
    %v738 = vld [vmem:[%s10 + $0x8] sm:$0xff]
    %v739 = vld [vmem:[%s10 + $0x10] sm:$0xff]
    %v740 = vld [vmem:[%s10 + $0x18] sm:$0xff]
    %v741 = vld [vmem:[%s10 + $0x20] sm:$0xff]
    %v742 = vld [vmem:[%s10 + $0x28] sm:$0xff]
    %v743 = vld [vmem:[%s10 + $0x30] sm:$0xff]
    %v744 = vld [vmem:[%s10 + $0x38] sm:$0xff]
    %v745 = vld [vmem:[%s10 + $0x40] sm:$0xff]
    %v746 = vld [vmem:[%s10 + $0x48] sm:$0xff]
    %v747 = vld [vmem:[%s10 + $0x50] sm:$0xff]
    %v748 = vld [vmem:[%s10 + $0x58] sm:$0xff]
    %v749 = vld [vmem:[%s10 + $0x60] sm:$0xff]
    %v750 = vld [vmem:[%s10 + $0x68] sm:$0xff]
    %v751 = vld [vmem:[%s10 + $0x70] sm:$0xff]
    %v752 = vld [vmem:[%s10 + $0x78] sm:$0xff]
    %v753 = vld [vmem:[%s10 + $0x80] sm:$0xff]
    %v754 = vld [vmem:[%s10 + $0x88] sm:$0xff]
    %v755 = vld [vmem:[%s10 + $0x90] sm:$0xff]
    %v756 = vld [vmem:[%s10 + $0x98] sm:$0xff]
    %v757 = vld [vmem:[%s10 + $0xa0] sm:$0xff]
    %v758 = vld [vmem:[%s10 + $0xa8] sm:$0xff]
    %v759 = vld [vmem:[%s10 + $0xb0] sm:$0xff]
    %v760 = vld [vmem:[%s10 + $0xb8] sm:$0xff]
    %v761 = vld [vmem:[%s10 + $0xc0] sm:$0xff]
    %v762 = vld [vmem:[%s10 + $0xc8] sm:$0xff]
    %v763 = vld [vmem:[%s10 + $0xd0] sm:$0xff]
    %v764 = vld [vmem:[%s10 + $0xd8] sm:$0xff]
    %v765 = vld [vmem:[%s10 + $0xe0] sm:$0xff]
    %v766 = vld [vmem:[%s10 + $0xe8] sm:$0xff]
    %v767 = vld [vmem:[%s10 + $0xf0] sm:$0xff]
    %v768 = vld [vmem:[%s10 + $0xf8] sm:$0xff]
    %v769 = vld [vmem:[%s10 + $0x100] sm:$0xff]
    %v770 = vld [vmem:[%s10 + $0x108] sm:$0xff]
    %v771 = vld [vmem:[%s10 + $0x110] sm:$0xff]
    %v772 = vld [vmem:[%s10 + $0x118] sm:$0xff]
    %v773 = vld [vmem:[%s10 + $0x120] sm:$0xff]
    %v774 = vld [vmem:[%s10 + $0x128] sm:$0xff]
    %v775 = vld [vmem:[%s10 + $0x130] sm:$0xff]
    %v776 = vld [vmem:[%s10 + $0x138] sm:$0xff]
    %v777 = vld [vmem:[%s10 + $0x140] sm:$0xff]
    %v778 = vld [vmem:[%s10 + $0x148] sm:$0xff]
    %v779 = vld [vmem:[%s10 + $0x150] sm:$0xff]
    %v780 = vld [vmem:[%s10 + $0x158] sm:$0xff]
    %v781 = vld [vmem:[%s10 + $0x160] sm:$0xff]
    %v782 = vld [vmem:[%s10 + $0x168] sm:$0xff]
    %v783 = vld [vmem:[%s10 + $0x170] sm:$0xff]
    %v784 = vld [vmem:[%s10 + $0x178] sm:$0xff]
    %v785 = vld [vmem:[%s10 + $0x180] sm:$0xff]
    %v786 = vld [vmem:[%s10 + $0x188] sm:$0xff]
    %v787 = vld [vmem:[%s10 + $0x190] sm:$0xff]
    %v788 = vld [vmem:[%s10 + $0x198] sm:$0xff]
    %v789 = vld [vmem:[%s10 + $0x1a0] sm:$0xff]
    %v790 = vld [vmem:[%s10 + $0x1a8] sm:$0xff]
    %v791 = vld [vmem:[%s20] sm:$0xf]
    %v792 = vld [vmem:[%s18] sm:$0xff]
    %v793 = vld [vmem:[%s18 + $0x8] sm:$0xff]
    %v794 = vld [vmem:[%s18 + $0x10] sm:$0xff]
    %v795 = vld [vmem:[%s18 + $0x18] sm:$0xff]
    %v796 = vld [vmem:[%s18 + $0x20] sm:$0xff]
    %v797 = vld [vmem:[%s18 + $0x28] sm:$0xff]
    %v798 = vld [vmem:[%s18 + $0x30] sm:$0xff]
    %v799 = vld [vmem:[%s18 + $0x38] sm:$0xff]
    %v800 = vld [vmem:[%s12] sm:$0x3f]
    %v801 = vld [vmem:[%s11] sm:$0xff]
    %v802 = vld [vmem:[%s11 + $0x8] sm:$0xff]
    %v803 = vld [vmem:[%s11 + $0x10] sm:$0xff]
    %v804 = vld [vmem:[%s11 + $0x18] sm:$0x7]
    %vm805 = vcmask 130048
    %v807 = vsel %vm805, %v737, 0
    %v810 = vsel %vm805, %v738, 0
    %v813 = vsel %vm805, %v739, 0
    %v816 = vsel %vm805, %v740, 0
    %v819 = vsel %vm805, %v741, 0
    %v822 = vsel %vm805, %v742, 0
    %v825 = vsel %vm805, %v743, 0
    %v828 = vsel %vm805, %v744, 0
    %v831 = vsel %vm805, %v745, 0
    %v834 = vsel %vm805, %v746, 0
    %v837 = vsel %vm805, %v747, 0
    %v840 = vsel %vm805, %v748, 0
    %v843 = vsel %vm805, %v749, 0
    %v846 = vsel %vm805, %v750, 0
    %v849 = vsel %vm805, %v751, 0
    %v852 = vsel %vm805, %v752, 0
    %v855 = vsel %vm805, %v753, 0
    %v858 = vsel %vm805, %v754, 0
    %v861 = vsel %vm805, %v755, 0
    %v864 = vsel %vm805, %v756, 0
    %v867 = vsel %vm805, %v757, 0
    %v870 = vsel %vm805, %v758, 0
    %v873 = vsel %vm805, %v759, 0
    %v876 = vsel %vm805, %v760, 0
    %v879 = vsel %vm805, %v761, 0
    %v882 = vsel %vm805, %v762, 0
    %v885 = vsel %vm805, %v763, 0
    %v888 = vsel %vm805, %v764, 0
    %v891 = vsel %vm805, %v765, 0
    %v894 = vsel %vm805, %v766, 0
    %v897 = vsel %vm805, %v767, 0
    %v900 = vsel %vm805, %v768, 0
    %v903 = vsel %vm805, %v769, 0
    %v906 = vsel %vm805, %v770, 0
    %v909 = vsel %vm805, %v771, 0
    %v912 = vsel %vm805, %v772, 0
    %v915 = vsel %vm805, %v773, 0
    %v918 = vsel %vm805, %v774, 0
    %v921 = vsel %vm805, %v775, 0
    %v924 = vsel %vm805, %v776, 0
    %v927 = vsel %vm805, %v777, 0
    %v930 = vsel %vm805, %v778, 0
    %v933 = vsel %vm805, %v779, 0
    %v936 = vsel %vm805, %v780, 0
    %v939 = vsel %vm805, %v781, 0
    %v942 = vsel %vm805, %v782, 0
    %v945 = vsel %vm805, %v783, 0
    %v948 = vsel %vm805, %v784, 0
    %v951 = vsel %vm805, %v785, 0
    %v954 = vsel %vm805, %v786, 0
    %v957 = vsel %vm805, %v787, 0
    %v960 = vsel %vm805, %v788, 0
    %v963 = vsel %vm805, %v789, 0
    %v966 = vsel %vm805, %v790, 0
    %968 = vmatprep.subr.mxu0 0.0
    %969 = vmatpush1.msra.mxu0 %v721
    %970 = vmatprep.subr.mxu0 0.0
    %971 = vmatpush1.msra.mxu0 %v726
    %972 = vmatprep.subr.mxu0 0.0
    %973 = vmatpush1.msra.mxu0 0.0
    %974 = vmatprep.subr.mxu0 0.0
    %975 = vmatpush1.msra.mxu0 0.0
    %976 = vmatprep.subr.mxu0 0.0
    %977 = vmatpush1.msra.mxu0 0.0
    %978 = vmatprep.subr.mxu0 0.0
    %979 = vmatpush1.msra.mxu0 0.0
    %980 = vmatprep.subr.mxu0 0.0
    %981 = vmatpush1.msra.mxu0 0.0
    %982 = vmatprep.subr.mxu0 0.0
    %983 = vmatpush1.msra.mxu0 0.0
    %984 = vmatprep.subr.mxu0 0.0
    %985 = vmatpush1.msra.mxu0 0.0
    %986 = vmatprep.subr.mxu0 0.0
    %987 = vmatpush1.msra.mxu0 0.0
    %988 = vmatprep.subr.mxu0 0.0
    %989 = vmatpush1.msra.mxu0 0.0
    %990 = vmatprep.subr.mxu0 0.0
    %991 = vmatpush1.msra.mxu0 0.0
    %992 = vmatprep.subr.mxu0 0.0
    %993 = vmatpush1.msra.mxu0 0.0
    %994 = vmatprep.subr.mxu0 0.0
    %995 = vmatpush1.msra.mxu0 0.0
    %996 = vmatprep.subr.mxu0 0.0
    %997 = vmatpush1.msra.mxu0 0.0
    %998 = vmatprep.subr.mxu0 0.0
    %999 = vmatpush1.msra.mxu0 0.0
    %1000 = vmatprep.subr.mxu0 0.0
    %1001 = vmatpush1.msra.mxu0 0.0
    %1002 = vmatprep.subr.mxu0 0.0
    %1003 = vmatpush1.msra.mxu0 0.0
    %1004 = vmatprep.subr.mxu0 0.0
    %1005 = vmatpush1.msra.mxu0 0.0
    %1006 = vmatprep.subr.mxu0 0.0
    %1007 = vmatpush1.msra.mxu0 0.0
    %1008 = vmatprep.subr.mxu0 0.0
    %1009 = vmatpush1.msra.mxu0 0.0
    %1010 = vmatprep.subr.mxu0 0.0
    %1011 = vmatpush1.msra.mxu0 0.0
    %1012 = vmatprep.subr.mxu0 0.0
    %1013 = vmatpush1.msra.mxu0 0.0
    %1014 = vmatprep.subr.mxu0 0.0
    %1015 = vmatpush1.msra.mxu0 0.0
    %1016 = vmatprep.subr.mxu0 0.0
    %1017 = vmatpush1.msra.mxu0 0.0
    %1018 = vmatprep.subr.mxu0 0.0
    %1019 = vmatpush1.msra.mxu0 0.0
    %1020 = vmatprep.subr.mxu0 0.0
    %1021 = vmatpush1.msra.mxu0 0.0
    %1022 = vmatprep.subr.mxu0 0.0
    %1023 = vmatpush1.msra.mxu0 0.0
    %1024 = vmatprep.subr.mxu0 0.0
    %1025 = vmatpush1.msra.mxu0 0.0
    %1026 = vmatprep.subr.mxu0 0.0
    %1027 = vmatpush1.msra.mxu0 0.0
    %1028 = vmatprep.subr.mxu0 0.0
    %1029 = vmatpush1.msra.mxu0 0.0
    %1030 = vmatprep.subr.mxu0 0.0
    %1031 = vmatpush1.msra.mxu0 0.0
    %1032 = vmatprep.mubr.f32.mxu0 0.0
    %1033 = vmatmul.mubr.f32.gmra.mrb[0].mxu0 %v807
    %v1034 = vpop.f32.mrb[0].mxu0
    %v1035 = vadd.f32 0.0, %v1034
    %v1036 = vpop.f32.mrb[0].mxu0
    %1037 = vmatprep.mubr.f32.mxu0 0.0
    %1038 = vmatmul.mubr.f32.gmra.mrb[0].mxu0 %v810
    %v1039 = vpop.f32.mrb[0].mxu0
    %v1040 = vadd.f32 0.0, %v1039
    %v1041 = vpop.f32.mrb[0].mxu0
    %1042 = vmatprep.mubr.f32.mxu0 0.0
    %1043 = vmatmul.mubr.f32.gmra.mrb[0].mxu0 %v813
    %v1044 = vpop.f32.mrb[0].mxu0
    %v1045 = vadd.f32 0.0, %v1044
    %v1046 = vpop.f32.mrb[0].mxu0
    %1047 = vmatprep.mubr.f32.mxu0 0.0
    %1048 = vmatmul.mubr.f32.gmra.mrb[0].mxu0 %v816
    %v1049 = vpop.f32.mrb[0].mxu0
    %v1050 = vadd.f32 0.0, %v1049
    %v1051 = vpop.f32.mrb[0].mxu0
    %1052 = vmatprep.mubr.f32.mxu0 0.0
    %1053 = vmatmul.mubr.f32.gmra.mrb[0].mxu0 %v819
    %v1054 = vpop.f32.mrb[0].mxu0
    %v1055 = vadd.f32 0.0, %v1054
    %v1056 = vpop.f32.mrb[0].mxu0
    %1057 = vmatprep.mubr.f32.mxu0 0.0
    %1058 = vmatmul.mubr.f32.gmra.mrb[0].mxu0 %v822
    %v1059 = vpop.f32.mrb[0].mxu0
    %v1060 = vadd.f32 0.0, %v1059
    %v1061 = vpop.f32.mrb[0].mxu0
    %1062 = vmatprep.mubr.f32.mxu0 0.0
    %1063 = vmatmul.mubr.f32.gmra.mrb[0].mxu0 %v825
    %v1064 = vpop.f32.mrb[0].mxu0
    %v1065 = vadd.f32 0.0, %v1064
    %v1066 = vpop.f32.mrb[0].mxu0
    %1067 = vmatprep.mubr.f32.mxu0 0.0
    %1068 = vmatmul.mubr.f32.gmra.mrb[0].mxu0 %v828
    %v1069 = vpop.f32.mrb[0].mxu0
    %v1070 = vadd.f32 0.0, %v1069
    %v1071 = vpop.f32.mrb[0].mxu0
    %1072 = vmatprep.mubr.f32.mxu0 0.0
    %1073 = vmatmul.mubr.f32.gmra.mrb[0].mxu0 %v831
    %v1074 = vpop.f32.mrb[0].mxu0
    %v1075 = vadd.f32 0.0, %v1074
    %v1076 = vpop.f32.mrb[0].mxu0
    %1077 = vmatprep.mubr.f32.mxu0 0.0
    %1078 = vmatmul.mubr.f32.gmra.mrb[0].mxu0 %v834
    %v1079 = vpop.f32.mrb[0].mxu0
    %v1080 = vadd.f32 0.0, %v1079
    %v1081 = vpop.f32.mrb[0].mxu0
    %1082 = vmatprep.mubr.f32.mxu0 0.0
    %1083 = vmatmul.mubr.f32.gmra.mrb[0].mxu0 %v837
    %v1084 = vpop.f32.mrb[0].mxu0
    %v1085 = vadd.f32 0.0, %v1084
    %v1086 = vpop.f32.mrb[0].mxu0
    %1087 = vmatprep.mubr.f32.mxu0 0.0
    %1088 = vmatmul.mubr.f32.gmra.mrb[0].mxu0 %v840
    %v1089 = vpop.f32.mrb[0].mxu0
    %v1090 = vadd.f32 0.0, %v1089
    %v1091 = vpop.f32.mrb[0].mxu0
    %1092 = vmatprep.mubr.f32.mxu0 0.0
    %1093 = vmatmul.mubr.f32.gmra.mrb[0].mxu0 %v843
    %v1094 = vpop.f32.mrb[0].mxu0
    %v1095 = vadd.f32 0.0, %v1094
    %v1096 = vpop.f32.mrb[0].mxu0
    %1097 = vmatprep.mubr.f32.mxu0 0.0
    %1098 = vmatmul.mubr.f32.gmra.mrb[0].mxu0 %v846
    %v1099 = vpop.f32.mrb[0].mxu0
    %v1100 = vadd.f32 0.0, %v1099
    %v1101 = vpop.f32.mrb[0].mxu0
    %1102 = vmatprep.mubr.f32.mxu0 0.0
    %1103 = vmatmul.mubr.f32.gmra.mrb[0].mxu0 %v849
    %v1104 = vpop.f32.mrb[0].mxu0
    %v1105 = vadd.f32 0.0, %v1104
    %v1106 = vpop.f32.mrb[0].mxu0
    %1107 = vmatprep.mubr.f32.mxu0 0.0
    %1108 = vmatmul.mubr.f32.gmra.mrb[0].mxu0 %v852
    %v1109 = vpop.f32.mrb[0].mxu0
    %v1110 = vadd.f32 0.0, %v1109
    %v1111 = vpop.f32.mrb[0].mxu0
    %1112 = vmatprep.mubr.f32.mxu0 0.0
    %1113 = vmatmul.mubr.f32.gmra.mrb[0].mxu0 %v855
    %v1114 = vpop.f32.mrb[0].mxu0
    %v1115 = vadd.f32 0.0, %v1114
    %v1116 = vpop.f32.mrb[0].mxu0
    %1117 = vmatprep.mubr.f32.mxu0 0.0
    %1118 = vmatmul.mubr.f32.gmra.mrb[0].mxu0 %v858
    %v1119 = vpop.f32.mrb[0].mxu0
    %v1120 = vadd.f32 0.0, %v1119
    %v1121 = vpop.f32.mrb[0].mxu0
    %1122 = vmatprep.mubr.f32.mxu0 0.0
    %1123 = vmatmul.mubr.f32.gmra.mrb[0].mxu0 %v861
    %v1124 = vpop.f32.mrb[0].mxu0
    %v1125 = vadd.f32 0.0, %v1124
    %v1126 = vpop.f32.mrb[0].mxu0
    %1127 = vmatprep.mubr.f32.mxu0 0.0
    %1128 = vmatmul.mubr.f32.gmra.mrb[0].mxu0 %v864
    %v1129 = vpop.f32.mrb[0].mxu0
    %v1130 = vadd.f32 0.0, %v1129
    %v1131 = vpop.f32.mrb[0].mxu0
    %1132 = vmatprep.mubr.f32.mxu0 0.0
    %1133 = vmatmul.mubr.f32.gmra.mrb[0].mxu0 %v867
    %v1134 = vpop.f32.mrb[0].mxu0
    %v1135 = vadd.f32 0.0, %v1134
    %v1136 = vpop.f32.mrb[0].mxu0
    %1137 = vmatprep.mubr.f32.mxu0 0.0
    %1138 = vmatmul.mubr.f32.gmra.mrb[0].mxu0 %v870
    %v1139 = vpop.f32.mrb[0].mxu0
    %v1140 = vadd.f32 0.0, %v1139
    %v1141 = vpop.f32.mrb[0].mxu0
    %1142 = vmatprep.mubr.f32.mxu0 0.0
    %1143 = vmatmul.mubr.f32.gmra.mrb[0].mxu0 %v873
    %v1144 = vpop.f32.mrb[0].mxu0
    %v1145 = vadd.f32 0.0, %v1144
    %v1146 = vpop.f32.mrb[0].mxu0
    %1147 = vmatprep.mubr.f32.mxu0 0.0
    %1148 = vmatmul.mubr.f32.gmra.mrb[0].mxu0 %v876
    %v1149 = vpop.f32.mrb[0].mxu0
    %v1150 = vadd.f32 0.0, %v1149
    %v1151 = vpop.f32.mrb[0].mxu0
    %1152 = vmatprep.mubr.f32.mxu0 0.0
    %1153 = vmatmul.mubr.f32.gmra.mrb[0].mxu0 %v879
    %v1154 = vpop.f32.mrb[0].mxu0
    %v1155 = vadd.f32 0.0, %v1154
    %v1156 = vpop.f32.mrb[0].mxu0
    %1157 = vmatprep.mubr.f32.mxu0 0.0
    %1158 = vmatmul.mubr.f32.gmra.mrb[0].mxu0 %v882
    %v1159 = vpop.f32.mrb[0].mxu0
    %v1160 = vadd.f32 0.0, %v1159
    %v1161 = vpop.f32.mrb[0].mxu0
    %1162 = vmatprep.mubr.f32.mxu0 0.0
    %1163 = vmatmul.mubr.f32.gmra.mrb[0].mxu0 %v885
    %v1164 = vpop.f32.mrb[0].mxu0
    %v1165 = vadd.f32 0.0, %v1164
    %v1166 = vpop.f32.mrb[0].mxu0
    %1167 = vmatprep.mubr.f32.mxu0 0.0
    %1168 = vmatmul.mubr.f32.gmra.mrb[0].mxu0 %v888
    %v1169 = vpop.f32.mrb[0].mxu0
    %v1170 = vadd.f32 0.0, %v1169
    %v1171 = vpop.f32.mrb[0].mxu0
    %1172 = vmatprep.mubr.f32.mxu0 0.0
    %1173 = vmatmul.mubr.f32.gmra.mrb[0].mxu0 %v891
    %v1174 = vpop.f32.mrb[0].mxu0
    %v1175 = vadd.f32 0.0, %v1174
    %v1176 = vpop.f32.mrb[0].mxu0
    %1177 = vmatprep.mubr.f32.mxu0 0.0
    %1178 = vmatmul.mubr.f32.gmra.mrb[0].mxu0 %v894
    %v1179 = vpop.f32.mrb[0].mxu0
    %v1180 = vadd.f32 0.0, %v1179
    %v1181 = vpop.f32.mrb[0].mxu0
    %1182 = vmatprep.mubr.f32.mxu0 0.0
    %1183 = vmatmul.mubr.f32.gmra.mrb[0].mxu0 %v897
    %v1184 = vpop.f32.mrb[0].mxu0
    %v1185 = vadd.f32 0.0, %v1184
    %v1186 = vpop.f32.mrb[0].mxu0
    %1187 = vmatprep.mubr.f32.mxu0 0.0
    %1188 = vmatmul.mubr.f32.gmra.mrb[0].mxu0 %v900
    %v1189 = vpop.f32.mrb[0].mxu0
    %v1190 = vadd.f32 0.0, %v1189
    %v1191 = vpop.f32.mrb[0].mxu0
    %1192 = vmatprep.mubr.f32.mxu0 0.0
    %1193 = vmatmul.mubr.f32.gmra.mrb[0].mxu0 %v903
    %v1194 = vpop.f32.mrb[0].mxu0
    %v1195 = vadd.f32 0.0, %v1194
    %v1196 = vpop.f32.mrb[0].mxu0
    %1197 = vmatprep.mubr.f32.mxu0 0.0
    %1198 = vmatmul.mubr.f32.gmra.mrb[0].mxu0 %v906
    %v1199 = vpop.f32.mrb[0].mxu0
    %v1200 = vadd.f32 0.0, %v1199
    %v1201 = vpop.f32.mrb[0].mxu0
    %1202 = vmatprep.mubr.f32.mxu0 0.0
    %1203 = vmatmul.mubr.f32.gmra.mrb[0].mxu0 %v909
    %v1204 = vpop.f32.mrb[0].mxu0
    %v1205 = vadd.f32 0.0, %v1204
    %v1206 = vpop.f32.mrb[0].mxu0
    %1207 = vmatprep.mubr.f32.mxu0 0.0
    %1208 = vmatmul.mubr.f32.gmra.mrb[0].mxu0 %v912
    %v1209 = vpop.f32.mrb[0].mxu0
    %v1210 = vadd.f32 0.0, %v1209
    %v1211 = vpop.f32.mrb[0].mxu0
    %1212 = vmatprep.mubr.f32.mxu0 0.0
    %1213 = vmatmul.mubr.f32.gmra.mrb[0].mxu0 %v915
    %v1214 = vpop.f32.mrb[0].mxu0
    %v1215 = vadd.f32 0.0, %v1214
    %v1216 = vpop.f32.mrb[0].mxu0
    %1217 = vmatprep.mubr.f32.mxu0 0.0
    %1218 = vmatmul.mubr.f32.gmra.mrb[0].mxu0 %v918
    %v1219 = vpop.f32.mrb[0].mxu0
    %v1220 = vadd.f32 0.0, %v1219
    %v1221 = vpop.f32.mrb[0].mxu0
    %1222 = vmatprep.mubr.f32.mxu0 0.0
    %1223 = vmatmul.mubr.f32.gmra.mrb[0].mxu0 %v921
    %v1224 = vpop.f32.mrb[0].mxu0
    %v1225 = vadd.f32 0.0, %v1224
    %v1226 = vpop.f32.mrb[0].mxu0
    %1227 = vmatprep.mubr.f32.mxu0 0.0
    %1228 = vmatmul.mubr.f32.gmra.mrb[0].mxu0 %v924
    %v1229 = vpop.f32.mrb[0].mxu0
    %v1230 = vadd.f32 0.0, %v1229
    %v1231 = vpop.f32.mrb[0].mxu0
    %1232 = vmatprep.mubr.f32.mxu0 0.0
    %1233 = vmatmul.mubr.f32.gmra.mrb[0].mxu0 %v927
    %v1234 = vpop.f32.mrb[0].mxu0
    %v1235 = vadd.f32 0.0, %v1234
    %v1236 = vpop.f32.mrb[0].mxu0
    %1237 = vmatprep.mubr.f32.mxu0 0.0
    %1238 = vmatmul.mubr.f32.gmra.mrb[0].mxu0 %v930
    %v1239 = vpop.f32.mrb[0].mxu0
    %v1240 = vadd.f32 0.0, %v1239
    %v1241 = vpop.f32.mrb[0].mxu0
    %1242 = vmatprep.mubr.f32.mxu0 0.0
    %1243 = vmatmul.mubr.f32.gmra.mrb[0].mxu0 %v933
    %v1244 = vpop.f32.mrb[0].mxu0
    %v1245 = vadd.f32 0.0, %v1244
    %v1246 = vpop.f32.mrb[0].mxu0
    %1247 = vmatprep.mubr.f32.mxu0 0.0
    %1248 = vmatmul.mubr.f32.gmra.mrb[0].mxu0 %v936
    %v1249 = vpop.f32.mrb[0].mxu0
    %v1250 = vadd.f32 0.0, %v1249
    %v1251 = vpop.f32.mrb[0].mxu0
    %1252 = vmatprep.mubr.f32.mxu0 0.0
    %1253 = vmatmul.mubr.f32.gmra.mrb[0].mxu0 %v939
    %v1254 = vpop.f32.mrb[0].mxu0
    %v1255 = vadd.f32 0.0, %v1254
    %v1256 = vpop.f32.mrb[0].mxu0
    %1257 = vmatprep.mubr.f32.mxu0 0.0
    %1258 = vmatmul.mubr.f32.gmra.mrb[0].mxu0 %v942
    %v1259 = vpop.f32.mrb[0].mxu0
    %v1260 = vadd.f32 0.0, %v1259
    %v1261 = vpop.f32.mrb[0].mxu0
    %1262 = vmatprep.mubr.f32.mxu0 0.0
    %1263 = vmatmul.mubr.f32.gmra.mrb[0].mxu0 %v945
    %v1264 = vpop.f32.mrb[0].mxu0
    %v1265 = vadd.f32 0.0, %v1264
    %v1266 = vpop.f32.mrb[0].mxu0
    %1267 = vmatprep.mubr.f32.mxu0 0.0
    %1268 = vmatmul.mubr.f32.gmra.mrb[0].mxu0 %v948
    %v1269 = vpop.f32.mrb[0].mxu0
    %v1270 = vadd.f32 0.0, %v1269
    %v1271 = vpop.f32.mrb[0].mxu0
    %1272 = vmatprep.mubr.f32.mxu0 0.0
    %1273 = vmatmul.mubr.f32.gmra.mrb[0].mxu0 %v951
    %v1274 = vpop.f32.mrb[0].mxu0
    %v1275 = vadd.f32 0.0, %v1274
    %v1276 = vpop.f32.mrb[0].mxu0
    %1277 = vmatprep.mubr.f32.mxu0 0.0
    %1278 = vmatmul.mubr.f32.gmra.mrb[0].mxu0 %v954
    %v1279 = vpop.f32.mrb[0].mxu0
    %v1280 = vadd.f32 0.0, %v1279
    %v1281 = vpop.f32.mrb[0].mxu0
    %1282 = vmatprep.mubr.f32.mxu0 0.0
    %1283 = vmatmul.mubr.f32.gmra.mrb[0].mxu0 %v957
    %v1284 = vpop.f32.mrb[0].mxu0
    %v1285 = vadd.f32 0.0, %v1284
    %v1286 = vpop.f32.mrb[0].mxu0
    %1287 = vmatprep.mubr.f32.mxu0 0.0
    %1288 = vmatmul.mubr.f32.gmra.mrb[0].mxu0 %v960
    %v1289 = vpop.f32.mrb[0].mxu0
    %v1290 = vadd.f32 0.0, %v1289
    %v1291 = vpop.f32.mrb[0].mxu0
    %1292 = vmatprep.mubr.f32.mxu0 0.0
    %1293 = vmatmul.mubr.f32.gmra.mrb[0].mxu0 %v963
    %v1294 = vpop.f32.mrb[0].mxu0
    %v1295 = vadd.f32 0.0, %v1294
    %v1296 = vpop.f32.mrb[0].mxu0
    %1297 = vmatprep.mubr.f32.mxu0 0.0
    %1298 = vmatmul.mubr.f32.gmra.mrb[0].mxu0 %v966
    %v1299 = vpop.f32.mrb[0].mxu0
    %v1300 = vadd.f32 0.0, %v1299
    %v1301 = vpop.f32.mrb[0].mxu0
    %1302 = vdwg.mxu0
    %v1303 = vlaneseq
    %v1304 = vshrl.u32 %v1303, 7
    %v1305 = vsub.s32 0, %v1304
    %v1306 = vrot.slane %v801, %v1305
    %v1307 = vmul.f32 %v1035, %v1306
    %v1308 = vmul.f32 %v1040, %v1306
    %v1309 = vlaneseq
    %v1310 = vshrl.u32 %v1309, 7
    %v1311 = vsub.s32 0, %v1310
    %v1312 = vrot.slane %v800, %v1311
    %v1313 = vadd.f32 %v1312, %v1307
    %v1314 = vadd.f32 %v1312, %v1308
    %v1315 = vlaneseq
    %v1316 = vshrl.u32 %v1315, 7
    %v1317 = vsub.s32 1, %v1316
    %v1318 = vrot.slane %v801, %v1317
    %v1319 = vmul.f32 %v1045, %v1318
    %v1320 = vmul.f32 %v1050, %v1318
    %v1321 = vadd.f32 %v1313, %v1319
    %v1322 = vadd.f32 %v1314, %v1320
    %v1323 = vlaneseq
    %v1324 = vshrl.u32 %v1323, 7
    %v1325 = vsub.s32 2, %v1324
    %v1326 = vrot.slane %v801, %v1325
    %v1327 = vmul.f32 %v1055, %v1326
    %v1328 = vmul.f32 %v1060, %v1326
    %v1329 = vadd.f32 %v1321, %v1327
    %v1330 = vadd.f32 %v1322, %v1328
    %v1331 = vlaneseq
    %v1332 = vshrl.u32 %v1331, 7
    %v1333 = vsub.s32 3, %v1332
    %v1334 = vrot.slane %v801, %v1333
    %v1335 = vmul.f32 %v1065, %v1334
    %v1336 = vmul.f32 %v1070, %v1334
    %v1337 = vadd.f32 %v1329, %v1335
    %v1338 = vadd.f32 %v1330, %v1336
    %v1339 = vlaneseq
    %v1340 = vshrl.u32 %v1339, 7
    %v1341 = vsub.s32 4, %v1340
    %v1342 = vrot.slane %v801, %v1341
    %v1343 = vmul.f32 %v1075, %v1342
    %v1344 = vmul.f32 %v1080, %v1342
    %v1345 = vadd.f32 %v1337, %v1343
    %v1346 = vadd.f32 %v1338, %v1344
    %v1347 = vlaneseq
    %v1348 = vshrl.u32 %v1347, 7
    %v1349 = vsub.s32 5, %v1348
    %v1350 = vrot.slane %v801, %v1349
    %v1351 = vmul.f32 %v1085, %v1350
    %v1352 = vmul.f32 %v1090, %v1350
    %v1353 = vadd.f32 %v1345, %v1351
    %v1354 = vadd.f32 %v1346, %v1352
    %v1355 = vlaneseq
    %v1356 = vshrl.u32 %v1355, 7
    %v1357 = vsub.s32 6, %v1356
    %v1358 = vrot.slane %v801, %v1357
    %v1359 = vmul.f32 %v1095, %v1358
    %v1360 = vmul.f32 %v1100, %v1358
    %v1361 = vadd.f32 %v1353, %v1359
    %v1362 = vadd.f32 %v1354, %v1360
    %v1363 = vlaneseq
    %v1364 = vshrl.u32 %v1363, 7
    %v1365 = vsub.s32 7, %v1364
    %v1366 = vrot.slane %v801, %v1365
    %v1367 = vmul.f32 %v1105, %v1366
    %v1368 = vmul.f32 %v1110, %v1366
    %v1369 = vadd.f32 %v1361, %v1367
    %v1370 = vadd.f32 %v1362, %v1368
    %v1371 = vlaneseq
    %v1372 = vshrl.u32 %v1371, 7
    %v1373 = vsub.s32 0, %v1372
    %v1374 = vrot.slane %v802, %v1373
    %v1375 = vmul.f32 %v1115, %v1374
    %v1376 = vmul.f32 %v1120, %v1374
    %v1377 = vadd.f32 %v1369, %v1375
    %v1378 = vadd.f32 %v1370, %v1376
    %v1379 = vlaneseq
    %v1380 = vshrl.u32 %v1379, 7
    %v1381 = vsub.s32 1, %v1380
    %v1382 = vrot.slane %v802, %v1381
    %v1383 = vmul.f32 %v1125, %v1382
    %v1384 = vmul.f32 %v1130, %v1382
    %v1385 = vadd.f32 %v1377, %v1383
    %v1386 = vadd.f32 %v1378, %v1384
    %v1387 = vlaneseq
    %v1388 = vshrl.u32 %v1387, 7
    %v1389 = vsub.s32 2, %v1388
    %v1390 = vrot.slane %v802, %v1389
    %v1391 = vmul.f32 %v1135, %v1390
    %v1392 = vmul.f32 %v1140, %v1390
    %v1393 = vadd.f32 %v1385, %v1391
    %v1394 = vadd.f32 %v1386, %v1392
    %v1395 = vlaneseq
    %v1396 = vshrl.u32 %v1395, 7
    %v1397 = vsub.s32 3, %v1396
    %v1398 = vrot.slane %v802, %v1397
    %v1399 = vmul.f32 %v1145, %v1398
    %v1400 = vmul.f32 %v1150, %v1398
    %v1401 = vadd.f32 %v1393, %v1399
    %v1402 = vadd.f32 %v1394, %v1400
    %v1403 = vlaneseq
    %v1404 = vshrl.u32 %v1403, 7
    %v1405 = vsub.s32 4, %v1404
    %v1406 = vrot.slane %v802, %v1405
    %v1407 = vmul.f32 %v1155, %v1406
    %v1408 = vmul.f32 %v1160, %v1406
    %v1409 = vadd.f32 %v1401, %v1407
    %v1410 = vadd.f32 %v1402, %v1408
    %v1411 = vlaneseq
    %v1412 = vshrl.u32 %v1411, 7
    %v1413 = vsub.s32 5, %v1412
    %v1414 = vrot.slane %v802, %v1413
    %v1415 = vmul.f32 %v1165, %v1414
    %v1416 = vmul.f32 %v1170, %v1414
    %v1417 = vadd.f32 %v1409, %v1415
    %v1418 = vadd.f32 %v1410, %v1416
    %v1419 = vlaneseq
    %v1420 = vshrl.u32 %v1419, 7
    %v1421 = vsub.s32 6, %v1420
    %v1422 = vrot.slane %v802, %v1421
    %v1423 = vmul.f32 %v1175, %v1422
    %v1424 = vmul.f32 %v1180, %v1422
    %v1425 = vadd.f32 %v1417, %v1423
    %v1426 = vadd.f32 %v1418, %v1424
    %v1427 = vlaneseq
    %v1428 = vshrl.u32 %v1427, 7
    %v1429 = vsub.s32 7, %v1428
    %v1430 = vrot.slane %v802, %v1429
    %v1431 = vmul.f32 %v1185, %v1430
    %v1432 = vmul.f32 %v1190, %v1430
    %v1433 = vadd.f32 %v1425, %v1431
    %v1434 = vadd.f32 %v1426, %v1432
    %v1435 = vlaneseq
    %v1436 = vshrl.u32 %v1435, 7
    %v1437 = vsub.s32 0, %v1436
    %v1438 = vrot.slane %v803, %v1437
    %v1439 = vmul.f32 %v1195, %v1438
    %v1440 = vmul.f32 %v1200, %v1438
    %v1441 = vadd.f32 %v1433, %v1439
    %v1442 = vadd.f32 %v1434, %v1440
    %v1443 = vlaneseq
    %v1444 = vshrl.u32 %v1443, 7
    %v1445 = vsub.s32 1, %v1444
    %v1446 = vrot.slane %v803, %v1445
    %v1447 = vmul.f32 %v1205, %v1446
    %v1448 = vmul.f32 %v1210, %v1446
    %v1449 = vadd.f32 %v1441, %v1447
    %v1450 = vadd.f32 %v1442, %v1448
    %v1451 = vlaneseq
    %v1452 = vshrl.u32 %v1451, 7
    %v1453 = vsub.s32 2, %v1452
    %v1454 = vrot.slane %v803, %v1453
    %v1455 = vmul.f32 %v1215, %v1454
    %v1456 = vmul.f32 %v1220, %v1454
    %v1457 = vadd.f32 %v1449, %v1455
    %v1458 = vadd.f32 %v1450, %v1456
    %v1459 = vlaneseq
    %v1460 = vshrl.u32 %v1459, 7
    %v1461 = vsub.s32 3, %v1460
    %v1462 = vrot.slane %v803, %v1461
    %v1463 = vmul.f32 %v1225, %v1462
    %v1464 = vmul.f32 %v1230, %v1462
    %v1465 = vadd.f32 %v1457, %v1463
    %v1466 = vadd.f32 %v1458, %v1464
    %v1467 = vlaneseq
    %v1468 = vshrl.u32 %v1467, 7
    %v1469 = vsub.s32 4, %v1468
    %v1470 = vrot.slane %v803, %v1469
    %v1471 = vmul.f32 %v1235, %v1470
    %v1472 = vmul.f32 %v1240, %v1470
    %v1473 = vadd.f32 %v1465, %v1471
    %v1474 = vadd.f32 %v1466, %v1472
    %v1475 = vlaneseq
    %v1476 = vshrl.u32 %v1475, 7
    %v1477 = vsub.s32 5, %v1476
    %v1478 = vrot.slane %v803, %v1477
    %v1479 = vmul.f32 %v1245, %v1478
    %v1480 = vmul.f32 %v1250, %v1478
    %v1481 = vadd.f32 %v1473, %v1479
    %v1482 = vadd.f32 %v1474, %v1480
    %v1483 = vlaneseq
    %v1484 = vshrl.u32 %v1483, 7
    %v1485 = vsub.s32 6, %v1484
    %v1486 = vrot.slane %v803, %v1485
    %v1487 = vmul.f32 %v1255, %v1486
    %v1488 = vmul.f32 %v1260, %v1486
    %v1489 = vadd.f32 %v1481, %v1487
    %v1490 = vadd.f32 %v1482, %v1488
    %v1491 = vlaneseq
    %v1492 = vshrl.u32 %v1491, 7
    %v1493 = vsub.s32 7, %v1492
    %v1494 = vrot.slane %v803, %v1493
    %v1495 = vmul.f32 %v1265, %v1494
    %v1496 = vmul.f32 %v1270, %v1494
    %v1497 = vadd.f32 %v1489, %v1495
    %v1498 = vadd.f32 %v1490, %v1496
    %v1499 = vlaneseq
    %v1500 = vshrl.u32 %v1499, 7
    %v1501 = vsub.s32 0, %v1500
    %v1502 = vrot.slane %v804, %v1501
    %v1503 = vmul.f32 %v1275, %v1502
    %v1504 = vmul.f32 %v1280, %v1502
    %v1505 = vadd.f32 %v1497, %v1503
    %v1506 = vadd.f32 %v1498, %v1504
    %v1507 = vlaneseq
    %v1508 = vshrl.u32 %v1507, 7
    %v1509 = vsub.s32 1, %v1508
    %v1510 = vrot.slane %v804, %v1509
    %v1511 = vmul.f32 %v1285, %v1510
    %v1512 = vmul.f32 %v1290, %v1510
    %v1513 = vadd.f32 %v1505, %v1511
    %v1514 = vadd.f32 %v1506, %v1512
    %v1515 = vlaneseq
    %v1516 = vshrl.u32 %v1515, 7
    %v1517 = vsub.s32 2, %v1516
    %v1518 = vrot.slane %v804, %v1517
    %v1519 = vmul.f32 %v1295, %v1518
    %v1520 = vmul.f32 %v1300, %v1518
    %v1521 = vadd.f32 %v1513, %v1519
    %v1522 = vadd.f32 %v1514, %v1520
    %v1523 = vadd.f32 %v721, %v1521
    %v1524 = vadd.f32 %v726, %v1522
    %v1525 = vsel %vm97, %v1523, 0.0
    %1526 = vadd.xlane.f32.xlu0 %v1525
    %v1527 = vpop.xlane.xlu0 %1526
    %v1528 = vsel %vm97, %v1524, 0.0
    %1529 = vadd.xlane.f32.xlu0 %v1528
    %v1530 = vpop.xlane.xlu0 %1529
    %v1531 = vmul.f32 %v1527, %v238
    %v1532 = vmul.f32 %v1530, %v238
    %v1533 = vsub.f32 %v1523, %v1531
    %v1534 = vsub.f32 %v1524, %v1532
    %v1535 = vmul.f32 %v1533, %v1533
    %v1536 = vmul.f32 %v1534, %v1534
    %v1537 = vsel %vm97, %v1535, 0.0
    %1538 = vadd.xlane.f32.xlu0 %v1537
    %v1539 = vpop.xlane.xlu0 %1538
    %v1540 = vsel %vm97, %v1536, 0.0
    %1541 = vadd.xlane.f32.xlu0 %v1540
    %v1542 = vpop.xlane.xlu0 %1541
    %v1543 = vmul.f32 %v1539, %v238
    %v1544 = vmul.f32 %v1542, %v238
    %v1545 = vadd.f32 %v1543, 1e-05
    %v1546 = vadd.f32 %v1544, 1e-05
    %v1547 = vrsqrt.pop %v1545
    %v1548 = vrsqrt.pop %v1546
    %v1549 = vmul.f32 %v1533, %v1547
    %v1550 = vmul.f32 %v1534, %v1548
    %v1551 = vlaneseq
    %v1552 = vshrl.u32 %v1551, 7
    %v1553 = vsub.s32 1, %v1552
    %v1554 = vrot.slane %v800, %v1553
    %v1555 = vmul.f32 %v1549, %v1554
    %v1556 = vmul.f32 %v1550, %v1554
    %v1557 = vlaneseq
    %v1558 = vshrl.u32 %v1557, 7
    %v1559 = vsub.s32 2, %v1558
    %v1560 = vrot.slane %v800, %v1559
    %v1561 = vadd.f32 %v1555, %v1560
    %v1562 = vadd.f32 %v1556, %v1560
    %v1563 = vld [vmem:[%s14] sm:$0xff]
    %v1564 = vld [vmem:[%s14 + $0x8] sm:$0xff]
    %v1565 = vld [vmem:[%s14 + $0x10] sm:$0xff]
    %v1566 = vld [vmem:[%s14 + $0x18] sm:$0xff]
    %v1567 = vld [vmem:[%s14 + $0x20] sm:$0xff]
    %v1568 = vld [vmem:[%s14 + $0x28] sm:$0xff]
    %v1569 = vld [vmem:[%s14 + $0x30] sm:$0xff]
    %v1570 = vld [vmem:[%s14 + $0x38] sm:$0xff]
    %v1571 = vld [vmem:[%s14 + $0x40] sm:$0xff]
    %v1572 = vld [vmem:[%s14 + $0x48] sm:$0xff]
    %v1573 = vld [vmem:[%s14 + $0x50] sm:$0xff]
    %v1574 = vld [vmem:[%s14 + $0x58] sm:$0xff]
    %v1575 = vld [vmem:[%s14 + $0x60] sm:$0xff]
    %v1576 = vld [vmem:[%s14 + $0x68] sm:$0xff]
    %v1577 = vld [vmem:[%s14 + $0x70] sm:$0xff]
    %v1578 = vld [vmem:[%s14 + $0x78] sm:$0xff]
    %v1580 = vsel %vm97, %v1561, 0
    %v1583 = vsel %vm97, %v1562, 0
    %1585 = vmatprep.subr.mxu0 %v1564
    %1586 = vmatpush1.msra.mxu0 %v1563
    %1587 = vmatprep.subr.mxu0 %v1566
    %1588 = vmatpush1.msra.mxu0 %v1565
    %1589 = vmatprep.subr.mxu0 %v1568
    %1590 = vmatpush1.msra.mxu0 %v1567
    %1591 = vmatprep.subr.mxu0 %v1570
    %1592 = vmatpush1.msra.mxu0 %v1569
    %1593 = vmatprep.subr.mxu0 %v1572
    %1594 = vmatpush1.msra.mxu0 %v1571
    %1595 = vmatprep.subr.mxu0 %v1574
    %1596 = vmatpush1.msra.mxu0 %v1573
    %1597 = vmatprep.subr.mxu0 %v1576
    %1598 = vmatpush1.msra.mxu0 %v1575
    %1599 = vmatprep.subr.mxu0 %v1578
    %1600 = vmatpush1.msra.mxu0 %v1577
    %1601 = vmatprep.subr.mxu0 0.0
    %1602 = vmatpush1.msra.mxu0 0.0
    %1603 = vmatprep.subr.mxu0 0.0
    %1604 = vmatpush1.msra.mxu0 0.0
    %1605 = vmatprep.subr.mxu0 0.0
    %1606 = vmatpush1.msra.mxu0 0.0
    %1607 = vmatprep.subr.mxu0 0.0
    %1608 = vmatpush1.msra.mxu0 0.0
    %1609 = vmatprep.subr.mxu0 0.0
    %1610 = vmatpush1.msra.mxu0 0.0
    %1611 = vmatprep.subr.mxu0 0.0
    %1612 = vmatpush1.msra.mxu0 0.0
    %1613 = vmatprep.subr.mxu0 0.0
    %1614 = vmatpush1.msra.mxu0 0.0
    %1615 = vmatprep.subr.mxu0 0.0
    %1616 = vmatpush1.msra.mxu0 0.0
    %1617 = vmatprep.subr.mxu0 0.0
    %1618 = vmatpush1.msra.mxu0 0.0
    %1619 = vmatprep.subr.mxu0 0.0
    %1620 = vmatpush1.msra.mxu0 0.0
    %1621 = vmatprep.subr.mxu0 0.0
    %1622 = vmatpush1.msra.mxu0 0.0
    %1623 = vmatprep.subr.mxu0 0.0
    %1624 = vmatpush1.msra.mxu0 0.0
    %1625 = vmatprep.subr.mxu0 0.0
    %1626 = vmatpush1.msra.mxu0 0.0
    %1627 = vmatprep.subr.mxu0 0.0
    %1628 = vmatpush1.msra.mxu0 0.0
    %1629 = vmatprep.subr.mxu0 0.0
    %1630 = vmatpush1.msra.mxu0 0.0
    %1631 = vmatprep.subr.mxu0 0.0
    %1632 = vmatpush1.msra.mxu0 0.0
    %1633 = vmatprep.subr.mxu0 0.0
    %1634 = vmatpush1.msra.mxu0 0.0
    %1635 = vmatprep.subr.mxu0 0.0
    %1636 = vmatpush1.msra.mxu0 0.0
    %1637 = vmatprep.subr.mxu0 0.0
    %1638 = vmatpush1.msra.mxu0 0.0
    %1639 = vmatprep.subr.mxu0 0.0
    %1640 = vmatpush1.msra.mxu0 0.0
    %1641 = vmatprep.subr.mxu0 0.0
    %1642 = vmatpush1.msra.mxu0 0.0
    %1643 = vmatprep.subr.mxu0 0.0
    %1644 = vmatpush1.msra.mxu0 0.0
    %1645 = vmatprep.subr.mxu0 0.0
    %1646 = vmatpush1.msra.mxu0 0.0
    %1647 = vmatprep.subr.mxu0 0.0
    %1648 = vmatpush1.msra.mxu0 0.0
    %1649 = vmatprep.mubr.f32.mxu0 0.0
    %1650 = vmatmul.mubr.f32.gmra.mrb[0].mxu0 %v1580
    %v1651 = vpop.f32.mrb[0].mxu0
    %v1652 = vadd.f32 0.0, %v1651
    %v1653 = vpop.f32.mrb[0].mxu0
    %v1654 = vadd.f32 0.0, %v1653
    %1655 = vmatprep.mubr.f32.mxu0 0.0
    %1656 = vmatmul.mubr.f32.gmra.mrb[0].mxu0 %v1583
    %v1657 = vpop.f32.mrb[0].mxu0
    %v1658 = vadd.f32 0.0, %v1657
    %v1659 = vpop.f32.mrb[0].mxu0
    %v1660 = vadd.f32 0.0, %v1659
    %1661 = vdwg.mxu0
    %v1662 = vmul.f32 %v1652, %v729
    %v1663 = vmul.f32 %v1658, %v730
    %v1664 = vmul.f32 %v1652, %v731
    %v1665 = vmul.f32 %v1658, %v732
    %v1666 = vmul.f32 %v1652, %v733
    %v1667 = vmul.f32 %v1658, %v734
    %v1668 = vmul.f32 %v1652, %v735
    %v1669 = vmul.f32 %v1658, %v736
    %1672 = vrot.lane.b32.xlu0 %v1652, 64
    %v1673 = vpop.permute.xlu0 %1672
    %1674 = vrot.lane.b32.xlu0 %v1658, 64
    %v1675 = vpop.permute.xlu0 %1674
    %v1677 = vsel %vm97, %v1662, 0
    %v1680 = vsel %vm97, %v1663, 0
    %v1683 = vsel %vm97, %v1664, 0
    %v1686 = vsel %vm97, %v1665, 0
    %v1689 = vsel %vm97, %v1666, 0
    %v1692 = vsel %vm97, %v1667, 0
    %v1695 = vsel %vm97, %v1668, 0
    %v1698 = vsel %vm97, %v1669, 0
    %v1700 = vsel %vm97, %v1673, 0
    %v1702 = vsel %vm97, %v1675, 0
    %1704 = vmatprep.subr.mxu0 0.0
    %1705 = vmatpush1.xpose.msra.mxu0 %v1700
    %1706 = vmatprep.subr.mxu0 0.0
    %1707 = vmatpush1.xpose.msra.mxu0 %v1702
    %1708 = vmatprep.subr.mxu0 0.0
    %1709 = vmatpush1.xpose.msra.mxu0 0.0
    %1710 = vmatprep.subr.mxu0 0.0
    %1711 = vmatpush1.xpose.msra.mxu0 0.0
    %1712 = vmatprep.subr.mxu0 0.0
    %1713 = vmatpush1.xpose.msra.mxu0 0.0
    %1714 = vmatprep.subr.mxu0 0.0
    %1715 = vmatpush1.xpose.msra.mxu0 0.0
    %1716 = vmatprep.subr.mxu0 0.0
    %1717 = vmatpush1.xpose.msra.mxu0 0.0
    %1718 = vmatprep.subr.mxu0 0.0
    %1719 = vmatpush1.xpose.msra.mxu0 0.0
    %1720 = vmatprep.subr.mxu0 0.0
    %1721 = vmatpush1.xpose.msra.mxu0 0.0
    %1722 = vmatprep.subr.mxu0 0.0
    %1723 = vmatpush1.xpose.msra.mxu0 0.0
    %1724 = vmatprep.subr.mxu0 0.0
    %1725 = vmatpush1.xpose.msra.mxu0 0.0
    %1726 = vmatprep.subr.mxu0 0.0
    %1727 = vmatpush1.xpose.msra.mxu0 0.0
    %1728 = vmatprep.subr.mxu0 0.0
    %1729 = vmatpush1.xpose.msra.mxu0 0.0
    %1730 = vmatprep.subr.mxu0 0.0
    %1731 = vmatpush1.xpose.msra.mxu0 0.0
    %1732 = vmatprep.subr.mxu0 0.0
    %1733 = vmatpush1.xpose.msra.mxu0 0.0
    %1734 = vmatprep.subr.mxu0 0.0
    %1735 = vmatpush1.xpose.msra.mxu0 0.0
    %1736 = vmatprep.subr.mxu0 0.0
    %1737 = vmatpush1.xpose.msra.mxu0 0.0
    %1738 = vmatprep.subr.mxu0 0.0
    %1739 = vmatpush1.xpose.msra.mxu0 0.0
    %1740 = vmatprep.subr.mxu0 0.0
    %1741 = vmatpush1.xpose.msra.mxu0 0.0
    %1742 = vmatprep.subr.mxu0 0.0
    %1743 = vmatpush1.xpose.msra.mxu0 0.0
    %1744 = vmatprep.subr.mxu0 0.0
    %1745 = vmatpush1.xpose.msra.mxu0 0.0
    %1746 = vmatprep.subr.mxu0 0.0
    %1747 = vmatpush1.xpose.msra.mxu0 0.0
    %1748 = vmatprep.subr.mxu0 0.0
    %1749 = vmatpush1.xpose.msra.mxu0 0.0
    %1750 = vmatprep.subr.mxu0 0.0
    %1751 = vmatpush1.xpose.msra.mxu0 0.0
    %1752 = vmatprep.subr.mxu0 0.0
    %1753 = vmatpush1.xpose.msra.mxu0 0.0
    %1754 = vmatprep.subr.mxu0 0.0
    %1755 = vmatpush1.xpose.msra.mxu0 0.0
    %1756 = vmatprep.subr.mxu0 0.0
    %1757 = vmatpush1.xpose.msra.mxu0 0.0
    %1758 = vmatprep.subr.mxu0 0.0
    %1759 = vmatpush1.xpose.msra.mxu0 0.0
    %1760 = vmatprep.subr.mxu0 0.0
    %1761 = vmatpush1.xpose.msra.mxu0 0.0
    %1762 = vmatprep.subr.mxu0 0.0
    %1763 = vmatpush1.xpose.msra.mxu0 0.0
    %1764 = vmatprep.subr.mxu0 0.0
    %1765 = vmatpush1.xpose.msra.mxu0 0.0
    %1766 = vmatprep.subr.mxu0 0.0
    %1767 = vmatpush1.xpose.msra.mxu0 0.0
    %1768 = vmatprep.mubr.f32.mxu0 0.0
    %1769 = vmatmul.mubr.f32.gmra.mrb[0].mxu0 %v1677
    %v1770 = vpop.f32.mrb[0].mxu0
    %v1771 = vadd.f32 %v792, %v1770
    %v1772 = vpop.f32.mrb[0].mxu0
    %1773 = vmatprep.mubr.f32.mxu0 0.0
    %1774 = vmatmul.mubr.f32.gmra.mrb[0].mxu0 %v1680
    %v1775 = vpop.f32.mrb[0].mxu0
    %v1776 = vadd.f32 %v793, %v1775
    %v1777 = vpop.f32.mrb[0].mxu0
    %1778 = vmatprep.mubr.f32.mxu0 0.0
    %1779 = vmatmul.mubr.f32.gmra.mrb[0].mxu0 %v1683
    %v1780 = vpop.f32.mrb[0].mxu0
    %v1781 = vadd.f32 %v794, %v1780
    %v1782 = vpop.f32.mrb[0].mxu0
    %1783 = vmatprep.mubr.f32.mxu0 0.0
    %1784 = vmatmul.mubr.f32.gmra.mrb[0].mxu0 %v1686
    %v1785 = vpop.f32.mrb[0].mxu0
    %v1786 = vadd.f32 %v795, %v1785
    %v1787 = vpop.f32.mrb[0].mxu0
    %1788 = vmatprep.mubr.f32.mxu0 0.0
    %1789 = vmatmul.mubr.f32.gmra.mrb[0].mxu0 %v1689
    %v1790 = vpop.f32.mrb[0].mxu0
    %v1791 = vadd.f32 %v796, %v1790
    %v1792 = vpop.f32.mrb[0].mxu0
    %1793 = vmatprep.mubr.f32.mxu0 0.0
    %1794 = vmatmul.mubr.f32.gmra.mrb[0].mxu0 %v1692
    %v1795 = vpop.f32.mrb[0].mxu0
    %v1796 = vadd.f32 %v797, %v1795
    %v1797 = vpop.f32.mrb[0].mxu0
    %1798 = vmatprep.mubr.f32.mxu0 0.0
    %1799 = vmatmul.mubr.f32.gmra.mrb[0].mxu0 %v1695
    %v1800 = vpop.f32.mrb[0].mxu0
    %v1801 = vadd.f32 %v798, %v1800
    %v1802 = vpop.f32.mrb[0].mxu0
    %1803 = vmatprep.mubr.f32.mxu0 0.0
    %1804 = vmatmul.mubr.f32.gmra.mrb[0].mxu0 %v1698
    %v1805 = vpop.f32.mrb[0].mxu0
    %v1806 = vadd.f32 %v799, %v1805
    %v1807 = vpop.f32.mrb[0].mxu0
    %1808 = vdwg.mxu0
    %v1809 = vsel %vm805, %v1771, -inf
    %1810 = vmax.xlane.f32.xlu0 %v1809
    %v1811 = vpop.xlane.xlu0 %1810
    %v1812 = vsel %vm805, %v1776, -inf
    %1813 = vmax.xlane.f32.xlu0 %v1812
    %v1814 = vpop.xlane.xlu0 %1813
    %v1815 = vsel %vm805, %v1781, -inf
    %1816 = vmax.xlane.f32.xlu0 %v1815
    %v1817 = vpop.xlane.xlu0 %1816
    %v1818 = vsel %vm805, %v1786, -inf
    %1819 = vmax.xlane.f32.xlu0 %v1818
    %v1820 = vpop.xlane.xlu0 %1819
    %v1821 = vsel %vm805, %v1791, -inf
    %1822 = vmax.xlane.f32.xlu0 %v1821
    %v1823 = vpop.xlane.xlu0 %1822
    %v1824 = vsel %vm805, %v1796, -inf
    %1825 = vmax.xlane.f32.xlu0 %v1824
    %v1826 = vpop.xlane.xlu0 %1825
    %v1827 = vsel %vm805, %v1801, -inf
    %1828 = vmax.xlane.f32.xlu0 %v1827
    %v1829 = vpop.xlane.xlu0 %1828
    %v1830 = vsel %vm805, %v1806, -inf
    %1831 = vmax.xlane.f32.xlu0 %v1830
    %v1832 = vpop.xlane.xlu0 %1831
    %v1833 = vsub.f32 %v1771, %v1811
    %v1834 = vsub.f32 %v1776, %v1814
    %v1835 = vsub.f32 %v1781, %v1817
    %v1836 = vsub.f32 %v1786, %v1820
    %v1837 = vsub.f32 %v1791, %v1823
    %v1838 = vsub.f32 %v1796, %v1826
    %v1839 = vsub.f32 %v1801, %v1829
    %v1840 = vsub.f32 %v1806, %v1832
    %v1841 = vmul.f32 %v1833, 1.442695
    %v1842 = vpow.pop %v1841
    %v1843 = vmul.f32 %v1834, 1.442695
    %v1844 = vpow.pop %v1843
    %v1845 = vmul.f32 %v1835, 1.442695
    %v1846 = vpow.pop %v1845
    %v1847 = vmul.f32 %v1836, 1.442695
    %v1848 = vpow.pop %v1847
    %v1849 = vmul.f32 %v1837, 1.442695
    %v1850 = vpow.pop %v1849
    %v1851 = vmul.f32 %v1838, 1.442695
    %v1852 = vpow.pop %v1851
    %v1853 = vmul.f32 %v1839, 1.442695
    %v1854 = vpow.pop %v1853
    %v1855 = vmul.f32 %v1840, 1.442695
    %v1856 = vpow.pop %v1855
    %v1857 = vsel %vm805, %v1842, 0.0
    %1858 = vadd.xlane.f32.xlu0 %v1857
    %v1859 = vpop.xlane.xlu0 %1858
    %v1860 = vsel %vm805, %v1844, 0.0
    %1861 = vadd.xlane.f32.xlu0 %v1860
    %v1862 = vpop.xlane.xlu0 %1861
    %v1863 = vsel %vm805, %v1846, 0.0
    %1864 = vadd.xlane.f32.xlu0 %v1863
    %v1865 = vpop.xlane.xlu0 %1864
    %v1866 = vsel %vm805, %v1848, 0.0
    %1867 = vadd.xlane.f32.xlu0 %v1866
    %v1868 = vpop.xlane.xlu0 %1867
    %v1869 = vsel %vm805, %v1850, 0.0
    %1870 = vadd.xlane.f32.xlu0 %v1869
    %v1871 = vpop.xlane.xlu0 %1870
    %v1872 = vsel %vm805, %v1852, 0.0
    %1873 = vadd.xlane.f32.xlu0 %v1872
    %v1874 = vpop.xlane.xlu0 %1873
    %v1875 = vsel %vm805, %v1854, 0.0
    %1876 = vadd.xlane.f32.xlu0 %v1875
    %v1877 = vpop.xlane.xlu0 %1876
    %v1878 = vsel %vm805, %v1856, 0.0
    %1879 = vadd.xlane.f32.xlu0 %v1878
    %v1880 = vpop.xlane.xlu0 %1879
    %v1881 = vrcp.pop %v1859
    %v1882 = vrcp.pop %v1862
    %v1883 = vrcp.pop %v1865
    %v1884 = vrcp.pop %v1868
    %v1885 = vrcp.pop %v1871
    %v1886 = vrcp.pop %v1874
    %v1887 = vrcp.pop %v1877
    %v1888 = vrcp.pop %v1880
    %v1889 = vmul.f32 %v1842, %v1881
    %v1890 = vmul.f32 %v1844, %v1882
    %v1891 = vmul.f32 %v1846, %v1883
    %v1892 = vmul.f32 %v1848, %v1884
    %v1893 = vmul.f32 %v1850, %v1885
    %v1894 = vmul.f32 %v1852, %v1886
    %v1895 = vmul.f32 %v1854, %v1887
    %v1896 = vmul.f32 %v1856, %v1888
    %v1898 = vsel %vm805, %v1889, 0
    %v1901 = vsel %vm805, %v1890, 0
    %v1904 = vsel %vm805, %v1891, 0
    %v1907 = vsel %vm805, %v1892, 0
    %v1910 = vsel %vm805, %v1893, 0
    %v1913 = vsel %vm805, %v1894, 0
    %v1916 = vsel %vm805, %v1895, 0
    %v1919 = vsel %vm805, %v1896, 0
    %1921 = vmatprep.subr.mxu0 0.0
    %1922 = vmatpush1.msra.mxu0 %v1654
    %1923 = vmatprep.subr.mxu0 0.0
    %1924 = vmatpush1.msra.mxu0 %v1660
    %1925 = vmatprep.subr.mxu0 0.0
    %1926 = vmatpush1.msra.mxu0 0.0
    %1927 = vmatprep.subr.mxu0 0.0
    %1928 = vmatpush1.msra.mxu0 0.0
    %1929 = vmatprep.subr.mxu0 0.0
    %1930 = vmatpush1.msra.mxu0 0.0
    %1931 = vmatprep.subr.mxu0 0.0
    %1932 = vmatpush1.msra.mxu0 0.0
    %1933 = vmatprep.subr.mxu0 0.0
    %1934 = vmatpush1.msra.mxu0 0.0
    %1935 = vmatprep.subr.mxu0 0.0
    %1936 = vmatpush1.msra.mxu0 0.0
    %1937 = vmatprep.subr.mxu0 0.0
    %1938 = vmatpush1.msra.mxu0 0.0
    %1939 = vmatprep.subr.mxu0 0.0
    %1940 = vmatpush1.msra.mxu0 0.0
    %1941 = vmatprep.subr.mxu0 0.0
    %1942 = vmatpush1.msra.mxu0 0.0
    %1943 = vmatprep.subr.mxu0 0.0
    %1944 = vmatpush1.msra.mxu0 0.0
    %1945 = vmatprep.subr.mxu0 0.0
    %1946 = vmatpush1.msra.mxu0 0.0
    %1947 = vmatprep.subr.mxu0 0.0
    %1948 = vmatpush1.msra.mxu0 0.0
    %1949 = vmatprep.subr.mxu0 0.0
    %1950 = vmatpush1.msra.mxu0 0.0
    %1951 = vmatprep.subr.mxu0 0.0
    %1952 = vmatpush1.msra.mxu0 0.0
    %1953 = vmatprep.subr.mxu0 0.0
    %1954 = vmatpush1.msra.mxu0 0.0
    %1955 = vmatprep.subr.mxu0 0.0
    %1956 = vmatpush1.msra.mxu0 0.0
    %1957 = vmatprep.subr.mxu0 0.0
    %1958 = vmatpush1.msra.mxu0 0.0
    %1959 = vmatprep.subr.mxu0 0.0
    %1960 = vmatpush1.msra.mxu0 0.0
    %1961 = vmatprep.subr.mxu0 0.0
    %1962 = vmatpush1.msra.mxu0 0.0
    %1963 = vmatprep.subr.mxu0 0.0
    %1964 = vmatpush1.msra.mxu0 0.0
    %1965 = vmatprep.subr.mxu0 0.0
    %1966 = vmatpush1.msra.mxu0 0.0
    %1967 = vmatprep.subr.mxu0 0.0
    %1968 = vmatpush1.msra.mxu0 0.0
    %1969 = vmatprep.subr.mxu0 0.0
    %1970 = vmatpush1.msra.mxu0 0.0
    %1971 = vmatprep.subr.mxu0 0.0
    %1972 = vmatpush1.msra.mxu0 0.0
    %1973 = vmatprep.subr.mxu0 0.0
    %1974 = vmatpush1.msra.mxu0 0.0
    %1975 = vmatprep.subr.mxu0 0.0
    %1976 = vmatpush1.msra.mxu0 0.0
    %1977 = vmatprep.subr.mxu0 0.0
    %1978 = vmatpush1.msra.mxu0 0.0
    %1979 = vmatprep.subr.mxu0 0.0
    %1980 = vmatpush1.msra.mxu0 0.0
    %1981 = vmatprep.subr.mxu0 0.0
    %1982 = vmatpush1.msra.mxu0 0.0
    %1983 = vmatprep.subr.mxu0 0.0
    %1984 = vmatpush1.msra.mxu0 0.0
    %1985 = vmatprep.mubr.f32.mxu0 0.0
    %1986 = vmatmul.mubr.f32.gmra.mrb[0].mxu0 %v1898
    %v1987 = vpop.f32.mrb[0].mxu0
    %v1988 = vadd.f32 0.0, %v1987
    %v1989 = vpop.f32.mrb[0].mxu0
    %1990 = vmatprep.mubr.f32.mxu0 0.0
    %1991 = vmatmul.mubr.f32.gmra.mrb[0].mxu0 %v1901
    %v1992 = vpop.f32.mrb[0].mxu0
    %v1993 = vadd.f32 0.0, %v1992
    %v1994 = vpop.f32.mrb[0].mxu0
    %1995 = vmatprep.mubr.f32.mxu0 0.0
    %1996 = vmatmul.mubr.f32.gmra.mrb[0].mxu0 %v1904
    %v1997 = vpop.f32.mrb[0].mxu0
    %v1998 = vadd.f32 0.0, %v1997
    %v1999 = vpop.f32.mrb[0].mxu0
    %2000 = vmatprep.mubr.f32.mxu0 0.0
    %2001 = vmatmul.mubr.f32.gmra.mrb[0].mxu0 %v1907
    %v2002 = vpop.f32.mrb[0].mxu0
    %v2003 = vadd.f32 0.0, %v2002
    %v2004 = vpop.f32.mrb[0].mxu0
    %2005 = vmatprep.mubr.f32.mxu0 0.0
    %2006 = vmatmul.mubr.f32.gmra.mrb[0].mxu0 %v1910
    %v2007 = vpop.f32.mrb[0].mxu0
    %v2008 = vadd.f32 0.0, %v2007
    %v2009 = vpop.f32.mrb[0].mxu0
    %2010 = vmatprep.mubr.f32.mxu0 0.0
    %2011 = vmatmul.mubr.f32.gmra.mrb[0].mxu0 %v1913
    %v2012 = vpop.f32.mrb[0].mxu0
    %v2013 = vadd.f32 0.0, %v2012
    %v2014 = vpop.f32.mrb[0].mxu0
    %2015 = vmatprep.mubr.f32.mxu0 0.0
    %2016 = vmatmul.mubr.f32.gmra.mrb[0].mxu0 %v1916
    %v2017 = vpop.f32.mrb[0].mxu0
    %v2018 = vadd.f32 0.0, %v2017
    %v2019 = vpop.f32.mrb[0].mxu0
    %2020 = vmatprep.mubr.f32.mxu0 0.0
    %2021 = vmatmul.mubr.f32.gmra.mrb[0].mxu0 %v1919
    %v2022 = vpop.f32.mrb[0].mxu0
    %v2023 = vadd.f32 0.0, %v2022
    %v2024 = vpop.f32.mrb[0].mxu0
    %2025 = vdwg.mxu0
    %v2026 = vmul.f32 %v1988, %v729
    %v2027 = vmul.f32 %v1993, %v730
    %v2028 = vmul.f32 %v1998, %v731
    %v2029 = vmul.f32 %v2003, %v732
    %v2030 = vmul.f32 %v2008, %v733
    %v2031 = vmul.f32 %v2013, %v734
    %v2032 = vmul.f32 %v2018, %v735
    %v2033 = vmul.f32 %v2023, %v736
    %v2034 = vadd.f32 %v2026, %v2028
    %v2035 = vadd.f32 %v2027, %v2029
    %v2036 = vadd.f32 %v2034, %v2030
    %v2037 = vadd.f32 %v2035, %v2031
    %v2038 = vadd.f32 %v2036, %v2032
    %v2039 = vadd.f32 %v2037, %v2033
    %v2040 = vld [vmem:[%s15] sm:$0xff]
    %v2041 = vld [vmem:[%s15 + $0x8] sm:$0xff]
    %v2042 = vld [vmem:[%s15 + $0x10] sm:$0xff]
    %v2043 = vld [vmem:[%s15 + $0x18] sm:$0xff]
    %v2044 = vld [vmem:[%s15 + $0x20] sm:$0xff]
    %v2045 = vld [vmem:[%s15 + $0x28] sm:$0xff]
    %v2046 = vld [vmem:[%s15 + $0x30] sm:$0xff]
    %v2047 = vld [vmem:[%s15 + $0x38] sm:$0xff]
    %v2049 = vsel %vm97, %v2038, 0
    %v2052 = vsel %vm97, %v2039, 0
    %2054 = vmatprep.subr.mxu0 0.0
    %2055 = vmatpush1.msra.mxu0 %v2040
    %2056 = vmatprep.subr.mxu0 0.0
    %2057 = vmatpush1.msra.mxu0 %v2041
    %2058 = vmatprep.subr.mxu0 0.0
    %2059 = vmatpush1.msra.mxu0 %v2042
    %2060 = vmatprep.subr.mxu0 0.0
    %2061 = vmatpush1.msra.mxu0 %v2043
    %2062 = vmatprep.subr.mxu0 0.0
    %2063 = vmatpush1.msra.mxu0 %v2044
    %2064 = vmatprep.subr.mxu0 0.0
    %2065 = vmatpush1.msra.mxu0 %v2045
    %2066 = vmatprep.subr.mxu0 0.0
    %2067 = vmatpush1.msra.mxu0 %v2046
    %2068 = vmatprep.subr.mxu0 0.0
    %2069 = vmatpush1.msra.mxu0 %v2047
    %2070 = vmatprep.subr.mxu0 0.0
    %2071 = vmatpush1.msra.mxu0 0.0
    %2072 = vmatprep.subr.mxu0 0.0
    %2073 = vmatpush1.msra.mxu0 0.0
    %2074 = vmatprep.subr.mxu0 0.0
    %2075 = vmatpush1.msra.mxu0 0.0
    %2076 = vmatprep.subr.mxu0 0.0
    %2077 = vmatpush1.msra.mxu0 0.0
    %2078 = vmatprep.subr.mxu0 0.0
    %2079 = vmatpush1.msra.mxu0 0.0
    %2080 = vmatprep.subr.mxu0 0.0
    %2081 = vmatpush1.msra.mxu0 0.0
    %2082 = vmatprep.subr.mxu0 0.0
    %2083 = vmatpush1.msra.mxu0 0.0
    %2084 = vmatprep.subr.mxu0 0.0
    %2085 = vmatpush1.msra.mxu0 0.0
    %2086 = vmatprep.subr.mxu0 0.0
    %2087 = vmatpush1.msra.mxu0 0.0
    %2088 = vmatprep.subr.mxu0 0.0
    %2089 = vmatpush1.msra.mxu0 0.0
    %2090 = vmatprep.subr.mxu0 0.0
    %2091 = vmatpush1.msra.mxu0 0.0
    %2092 = vmatprep.subr.mxu0 0.0
    %2093 = vmatpush1.msra.mxu0 0.0
    %2094 = vmatprep.subr.mxu0 0.0
    %2095 = vmatpush1.msra.mxu0 0.0
    %2096 = vmatprep.subr.mxu0 0.0
    %2097 = vmatpush1.msra.mxu0 0.0
    %2098 = vmatprep.subr.mxu0 0.0
    %2099 = vmatpush1.msra.mxu0 0.0
    %2100 = vmatprep.subr.mxu0 0.0
    %2101 = vmatpush1.msra.mxu0 0.0
    %2102 = vmatprep.subr.mxu0 0.0
    %2103 = vmatpush1.msra.mxu0 0.0
    %2104 = vmatprep.subr.mxu0 0.0
    %2105 = vmatpush1.msra.mxu0 0.0
    %2106 = vmatprep.subr.mxu0 0.0
    %2107 = vmatpush1.msra.mxu0 0.0
    %2108 = vmatprep.subr.mxu0 0.0
    %2109 = vmatpush1.msra.mxu0 0.0
    %2110 = vmatprep.subr.mxu0 0.0
    %2111 = vmatpush1.msra.mxu0 0.0
    %2112 = vmatprep.subr.mxu0 0.0
    %2113 = vmatpush1.msra.mxu0 0.0
    %2114 = vmatprep.subr.mxu0 0.0
    %2115 = vmatpush1.msra.mxu0 0.0
    %2116 = vmatprep.subr.mxu0 0.0
    %2117 = vmatpush1.msra.mxu0 0.0
    %2118 = vmatprep.mubr.f32.mxu0 0.0
    %2119 = vmatmul.mubr.f32.gmra.mrb[0].mxu0 %v2049
    %v2120 = vpop.f32.mrb[0].mxu0
    %v2121 = vadd.f32 0.0, %v2120
    %v2122 = vpop.f32.mrb[0].mxu0
    %2123 = vmatprep.mubr.f32.mxu0 0.0
    %2124 = vmatmul.mubr.f32.gmra.mrb[0].mxu0 %v2052
    %v2125 = vpop.f32.mrb[0].mxu0
    %v2126 = vadd.f32 0.0, %v2125
    %v2127 = vpop.f32.mrb[0].mxu0
    %2128 = vdwg.mxu0
    %v2129 = vadd.f32 %v1523, %v2121
    %v2130 = vadd.f32 %v1524, %v2126
    %v2131 = vsel %vm97, %v2129, 0.0
    %2132 = vadd.xlane.f32.xlu0 %v2131
    %v2133 = vpop.xlane.xlu0 %2132
    %v2134 = vsel %vm97, %v2130, 0.0
    %2135 = vadd.xlane.f32.xlu0 %v2134
    %v2136 = vpop.xlane.xlu0 %2135
    %v2137 = vmul.f32 %v2133, %v238
    %v2138 = vmul.f32 %v2136, %v238
    %v2139 = vsub.f32 %v2129, %v2137
    %v2140 = vsub.f32 %v2130, %v2138
    %v2141 = vmul.f32 %v2139, %v2139
    %v2142 = vmul.f32 %v2140, %v2140
    %v2143 = vsel %vm97, %v2141, 0.0
    %2144 = vadd.xlane.f32.xlu0 %v2143
    %v2145 = vpop.xlane.xlu0 %2144
    %v2146 = vsel %vm97, %v2142, 0.0
    %2147 = vadd.xlane.f32.xlu0 %v2146
    %v2148 = vpop.xlane.xlu0 %2147
    %v2149 = vmul.f32 %v2145, %v238
    %v2150 = vmul.f32 %v2148, %v238
    %v2151 = vadd.f32 %v2149, 1e-05
    %v2152 = vadd.f32 %v2150, 1e-05
    %v2153 = vrsqrt.pop %v2151
    %v2154 = vrsqrt.pop %v2152
    %v2155 = vmul.f32 %v2139, %v2153
    %v2156 = vmul.f32 %v2140, %v2154
    %v2157 = vlaneseq
    %v2158 = vshrl.u32 %v2157, 7
    %v2159 = vsub.s32 3, %v2158
    %v2160 = vrot.slane %v800, %v2159
    %v2161 = vmul.f32 %v2155, %v2160
    %v2162 = vmul.f32 %v2156, %v2160
    %v2163 = vlaneseq
    %v2164 = vshrl.u32 %v2163, 7
    %v2165 = vsub.s32 4, %v2164
    %v2166 = vrot.slane %v800, %v2165
    %v2167 = vadd.f32 %v2161, %v2166
    %v2168 = vadd.f32 %v2162, %v2166
    %v2169 = vld [vmem:[%s16] sm:$0xff]
    %v2170 = vld [vmem:[%s16 + $0x8] sm:$0xff]
    %v2171 = vld [vmem:[%s16 + $0x10] sm:$0xff]
    %v2172 = vld [vmem:[%s16 + $0x18] sm:$0xff]
    %v2173 = vld [vmem:[%s16 + $0x20] sm:$0xff]
    %v2174 = vld [vmem:[%s16 + $0x28] sm:$0xff]
    %v2175 = vld [vmem:[%s16 + $0x30] sm:$0xff]
    %v2176 = vld [vmem:[%s16 + $0x38] sm:$0xff]
    %v2177 = vld [vmem:[%s13] sm:$0x1]
    %v2179 = vlaneseq
    %v2180 = vshrl.u32 %v2179, 7
    %v2181 = vsub.s32 0, %v2180
    %v2182 = vrot.slane %v2177, %v2181
    %v2185 = vsel %vm97, %v2167, 0
    %v2188 = vsel %vm97, %v2168, 0
    %2190 = vmatprep.subr.mxu0 0.0
    %2191 = vmatpush1.msra.mxu0 %v2169
    %2192 = vmatprep.subr.mxu0 0.0
    %2193 = vmatpush1.msra.mxu0 %v2170
    %2194 = vmatprep.subr.mxu0 0.0
    %2195 = vmatpush1.msra.mxu0 %v2171
    %2196 = vmatprep.subr.mxu0 0.0
    %2197 = vmatpush1.msra.mxu0 %v2172
    %2198 = vmatprep.subr.mxu0 0.0
    %2199 = vmatpush1.msra.mxu0 %v2173
    %2200 = vmatprep.subr.mxu0 0.0
    %2201 = vmatpush1.msra.mxu0 %v2174
    %2202 = vmatprep.subr.mxu0 0.0
    %2203 = vmatpush1.msra.mxu0 %v2175
    %2204 = vmatprep.subr.mxu0 0.0
    %2205 = vmatpush1.msra.mxu0 %v2176
    %2206 = vmatprep.subr.mxu0 0.0
    %2207 = vmatpush1.msra.mxu0 0.0
    %2208 = vmatprep.subr.mxu0 0.0
    %2209 = vmatpush1.msra.mxu0 0.0
    %2210 = vmatprep.subr.mxu0 0.0
    %2211 = vmatpush1.msra.mxu0 0.0
    %2212 = vmatprep.subr.mxu0 0.0
    %2213 = vmatpush1.msra.mxu0 0.0
    %2214 = vmatprep.subr.mxu0 0.0
    %2215 = vmatpush1.msra.mxu0 0.0
    %2216 = vmatprep.subr.mxu0 0.0
    %2217 = vmatpush1.msra.mxu0 0.0
    %2218 = vmatprep.subr.mxu0 0.0
    %2219 = vmatpush1.msra.mxu0 0.0
    %2220 = vmatprep.subr.mxu0 0.0
    %2221 = vmatpush1.msra.mxu0 0.0
    %2222 = vmatprep.subr.mxu0 0.0
    %2223 = vmatpush1.msra.mxu0 0.0
    %2224 = vmatprep.subr.mxu0 0.0
    %2225 = vmatpush1.msra.mxu0 0.0
    %2226 = vmatprep.subr.mxu0 0.0
    %2227 = vmatpush1.msra.mxu0 0.0
    %2228 = vmatprep.subr.mxu0 0.0
    %2229 = vmatpush1.msra.mxu0 0.0
    %2230 = vmatprep.subr.mxu0 0.0
    %2231 = vmatpush1.msra.mxu0 0.0
    %2232 = vmatprep.subr.mxu0 0.0
    %2233 = vmatpush1.msra.mxu0 0.0
    %2234 = vmatprep.subr.mxu0 0.0
    %2235 = vmatpush1.msra.mxu0 0.0
    %2236 = vmatprep.subr.mxu0 0.0
    %2237 = vmatpush1.msra.mxu0 0.0
    %2238 = vmatprep.subr.mxu0 0.0
    %2239 = vmatpush1.msra.mxu0 0.0
    %2240 = vmatprep.subr.mxu0 0.0
    %2241 = vmatpush1.msra.mxu0 0.0
    %2242 = vmatprep.subr.mxu0 0.0
    %2243 = vmatpush1.msra.mxu0 0.0
    %2244 = vmatprep.subr.mxu0 0.0
    %2245 = vmatpush1.msra.mxu0 0.0
    %2246 = vmatprep.subr.mxu0 0.0
    %2247 = vmatpush1.msra.mxu0 0.0
    %2248 = vmatprep.subr.mxu0 0.0
    %2249 = vmatpush1.msra.mxu0 0.0
    %2250 = vmatprep.subr.mxu0 0.0
    %2251 = vmatpush1.msra.mxu0 0.0
    %2252 = vmatprep.subr.mxu0 0.0
    %2253 = vmatpush1.msra.mxu0 0.0
    %2254 = vmatprep.mubr.f32.mxu0 0.0
    %2255 = vmatmul.mubr.f32.gmra.mrb[0].mxu0 %v2185
    %v2256 = vpop.f32.mrb[0].mxu0
    %v2257 = vadd.f32 %v2182, %v2256
    %v2258 = vpop.f32.mrb[0].mxu0
    %2259 = vmatprep.mubr.f32.mxu0 0.0
    %2260 = vmatmul.mubr.f32.gmra.mrb[0].mxu0 %v2188
    %v2261 = vpop.f32.mrb[0].mxu0
    %v2262 = vadd.f32 %v2182, %v2261
    %v2263 = vpop.f32.mrb[0].mxu0
    %2264 = vdwg.mxu0
    %v2265 = vmul.f32 %v2257, %v2257
    %v2266 = vmul.f32 %v2262, %v2262
    %v2267 = vmul.f32 %v2257, %v2265
    %v2268 = vmul.f32 %v2262, %v2266
    %v2269 = vmul.f32 %v2267, 0.044715
    %v2270 = vmul.f32 %v2268, 0.044715
    %v2271 = vadd.f32 %v2257, %v2269
    %v2272 = vadd.f32 %v2262, %v2270
    %v2273 = vmul.f32 %v2271, 0.7978846
    %v2274 = vmul.f32 %v2272, 0.7978846
    %v2275 = vtanh.pop %v2273
    %v2276 = vtanh.pop %v2274
    %v2277 = vadd.f32 %v2275, 1.0
    %v2278 = vadd.f32 %v2276, 1.0
    %v2279 = vmul.f32 %v2277, 0.5
    %v2280 = vmul.f32 %v2278, 0.5
    %v2281 = vmul.f32 %v2257, %v2279
    %v2282 = vmul.f32 %v2262, %v2280
    %v2283 = vld [vmem:[%s17] sm:$0xff]
    %v2284 = vld [vmem:[%s17 + $0x8] sm:$0xff]
    %v2285 = vld [vmem:[%s17 + $0x10] sm:$0xff]
    %v2286 = vld [vmem:[%s17 + $0x18] sm:$0xff]
    %v2287 = vld [vmem:[%s17 + $0x20] sm:$0xff]
    %v2288 = vld [vmem:[%s17 + $0x28] sm:$0xff]
    %v2289 = vld [vmem:[%s17 + $0x30] sm:$0xff]
    %v2290 = vld [vmem:[%s17 + $0x38] sm:$0xff]
    %v2291 = vld [vmem:[%s17 + $0x40] sm:$0xff]
    %v2292 = vld [vmem:[%s17 + $0x48] sm:$0xff]
    %v2293 = vld [vmem:[%s17 + $0x50] sm:$0xff]
    %v2294 = vld [vmem:[%s17 + $0x58] sm:$0xff]
    %v2295 = vld [vmem:[%s17 + $0x60] sm:$0xff]
    %v2296 = vld [vmem:[%s17 + $0x68] sm:$0xff]
    %v2297 = vld [vmem:[%s17 + $0x70] sm:$0xff]
    %v2298 = vld [vmem:[%s17 + $0x78] sm:$0xff]
    %2299 = vmatprep.subr.mxu0 0.0
    %2300 = vmatpush1.msra.mxu0 %v2283
    %2301 = vmatprep.subr.mxu0 0.0
    %2302 = vmatpush1.msra.mxu0 %v2284
    %2303 = vmatprep.subr.mxu0 0.0
    %2304 = vmatpush1.msra.mxu0 %v2285
    %2305 = vmatprep.subr.mxu0 0.0
    %2306 = vmatpush1.msra.mxu0 %v2286
    %2307 = vmatprep.subr.mxu0 0.0
    %2308 = vmatpush1.msra.mxu0 %v2287
    %2309 = vmatprep.subr.mxu0 0.0
    %2310 = vmatpush1.msra.mxu0 %v2288
    %2311 = vmatprep.subr.mxu0 0.0
    %2312 = vmatpush1.msra.mxu0 %v2289
    %2313 = vmatprep.subr.mxu0 0.0
    %2314 = vmatpush1.msra.mxu0 %v2290
    %2315 = vmatprep.subr.mxu0 0.0
    %2316 = vmatpush1.msra.mxu0 %v2291
    %2317 = vmatprep.subr.mxu0 0.0
    %2318 = vmatpush1.msra.mxu0 %v2292
    %2319 = vmatprep.subr.mxu0 0.0
    %2320 = vmatpush1.msra.mxu0 %v2293
    %2321 = vmatprep.subr.mxu0 0.0
    %2322 = vmatpush1.msra.mxu0 %v2294
    %2323 = vmatprep.subr.mxu0 0.0
    %2324 = vmatpush1.msra.mxu0 %v2295
    %2325 = vmatprep.subr.mxu0 0.0
    %2326 = vmatpush1.msra.mxu0 %v2296
    %2327 = vmatprep.subr.mxu0 0.0
    %2328 = vmatpush1.msra.mxu0 %v2297
    %2329 = vmatprep.subr.mxu0 0.0
    %2330 = vmatpush1.msra.mxu0 %v2298
    %2331 = vmatprep.subr.mxu0 0.0
    %2332 = vmatpush1.msra.mxu0 0.0
    %2333 = vmatprep.subr.mxu0 0.0
    %2334 = vmatpush1.msra.mxu0 0.0
    %2335 = vmatprep.subr.mxu0 0.0
    %2336 = vmatpush1.msra.mxu0 0.0
    %2337 = vmatprep.subr.mxu0 0.0
    %2338 = vmatpush1.msra.mxu0 0.0
    %2339 = vmatprep.subr.mxu0 0.0
    %2340 = vmatpush1.msra.mxu0 0.0
    %2341 = vmatprep.subr.mxu0 0.0
    %2342 = vmatpush1.msra.mxu0 0.0
    %2343 = vmatprep.subr.mxu0 0.0
    %2344 = vmatpush1.msra.mxu0 0.0
    %2345 = vmatprep.subr.mxu0 0.0
    %2346 = vmatpush1.msra.mxu0 0.0
    %2347 = vmatprep.subr.mxu0 0.0
    %2348 = vmatpush1.msra.mxu0 0.0
    %2349 = vmatprep.subr.mxu0 0.0
    %2350 = vmatpush1.msra.mxu0 0.0
    %2351 = vmatprep.subr.mxu0 0.0
    %2352 = vmatpush1.msra.mxu0 0.0
    %2353 = vmatprep.subr.mxu0 0.0
    %2354 = vmatpush1.msra.mxu0 0.0
    %2355 = vmatprep.subr.mxu0 0.0
    %2356 = vmatpush1.msra.mxu0 0.0
    %2357 = vmatprep.subr.mxu0 0.0
    %2358 = vmatpush1.msra.mxu0 0.0
    %2359 = vmatprep.subr.mxu0 0.0
    %2360 = vmatpush1.msra.mxu0 0.0
    %2361 = vmatprep.subr.mxu0 0.0
    %2362 = vmatpush1.msra.mxu0 0.0
    %2363 = vmatprep.mubr.f32.mxu0 0.0
    %2364 = vmatmul.mubr.f32.gmra.mrb[0].mxu0 %v2281
    %v2365 = vpop.f32.mrb[0].mxu0
    %v2366 = vadd.f32 0.0, %v2365
    %v2367 = vpop.f32.mrb[0].mxu0
    %2368 = vmatprep.mubr.f32.mxu0 0.0
    %2369 = vmatmul.mubr.f32.gmra.mrb[0].mxu0 %v2282
    %v2370 = vpop.f32.mrb[0].mxu0
    %v2371 = vadd.f32 0.0, %v2370
    %v2372 = vpop.f32.mrb[0].mxu0
    %2373 = vdwg.mxu0
    %v2374 = vadd.f32 %v2129, %v2366
    %v2375 = vadd.f32 %v2130, %v2371
    %v2376 = vlaneseq
    %v2377 = vshrl.u32 %v2376, 7
    %v2378 = vsub.s32 5, %v2377
    %v2379 = vrot.slane %v800, %v2378
    %v2380 = vadd.f32 %v2374, %v2379
    %v2381 = vadd.f32 %v2375, %v2379
    %s2382 = scalar_lea.vmem %s12, 8
    %v2383 = vld [vmem:[%s2382] sm:$0x3f]
    %s2384 = scalar_lea.vmem %s11, 32
    %v2385 = vld [vmem:[%s2384] sm:$0xff]
    %v2386 = vld [vmem:[%s2384 + $0x8] sm:$0xff]
    %v2387 = vld [vmem:[%s2384 + $0x10] sm:$0xff]
    %v2388 = vld [vmem:[%s2384 + $0x18] sm:$0x7]
    %2389 = vmatprep.subr.mxu0 0.0
    %2390 = vmatpush1.msra.mxu0 %v2380
    %2391 = vmatprep.subr.mxu0 0.0
    %2392 = vmatpush1.msra.mxu0 %v2381
    %2393 = vmatprep.subr.mxu0 0.0
    %2394 = vmatpush1.msra.mxu0 0.0
    %2395 = vmatprep.subr.mxu0 0.0
    %2396 = vmatpush1.msra.mxu0 0.0
    %2397 = vmatprep.subr.mxu0 0.0
    %2398 = vmatpush1.msra.mxu0 0.0
    %2399 = vmatprep.subr.mxu0 0.0
    %2400 = vmatpush1.msra.mxu0 0.0
    %2401 = vmatprep.subr.mxu0 0.0
    %2402 = vmatpush1.msra.mxu0 0.0
    %2403 = vmatprep.subr.mxu0 0.0
    %2404 = vmatpush1.msra.mxu0 0.0
    %2405 = vmatprep.subr.mxu0 0.0
    %2406 = vmatpush1.msra.mxu0 0.0
    %2407 = vmatprep.subr.mxu0 0.0
    %2408 = vmatpush1.msra.mxu0 0.0
    %2409 = vmatprep.subr.mxu0 0.0
    %2410 = vmatpush1.msra.mxu0 0.0
    %2411 = vmatprep.subr.mxu0 0.0
    %2412 = vmatpush1.msra.mxu0 0.0
    %2413 = vmatprep.subr.mxu0 0.0
    %2414 = vmatpush1.msra.mxu0 0.0
    %2415 = vmatprep.subr.mxu0 0.0
    %2416 = vmatpush1.msra.mxu0 0.0
    %2417 = vmatprep.subr.mxu0 0.0
    %2418 = vmatpush1.msra.mxu0 0.0
    %2419 = vmatprep.subr.mxu0 0.0
    %2420 = vmatpush1.msra.mxu0 0.0
    %2421 = vmatprep.subr.mxu0 0.0
    %2422 = vmatpush1.msra.mxu0 0.0
    %2423 = vmatprep.subr.mxu0 0.0
    %2424 = vmatpush1.msra.mxu0 0.0
    %2425 = vmatprep.subr.mxu0 0.0
    %2426 = vmatpush1.msra.mxu0 0.0
    %2427 = vmatprep.subr.mxu0 0.0
    %2428 = vmatpush1.msra.mxu0 0.0
    %2429 = vmatprep.subr.mxu0 0.0
    %2430 = vmatpush1.msra.mxu0 0.0
    %2431 = vmatprep.subr.mxu0 0.0
    %2432 = vmatpush1.msra.mxu0 0.0
    %2433 = vmatprep.subr.mxu0 0.0
    %2434 = vmatpush1.msra.mxu0 0.0
    %2435 = vmatprep.subr.mxu0 0.0
    %2436 = vmatpush1.msra.mxu0 0.0
    %2437 = vmatprep.subr.mxu0 0.0
    %2438 = vmatpush1.msra.mxu0 0.0
    %2439 = vmatprep.subr.mxu0 0.0
    %2440 = vmatpush1.msra.mxu0 0.0
    %2441 = vmatprep.subr.mxu0 0.0
    %2442 = vmatpush1.msra.mxu0 0.0
    %2443 = vmatprep.subr.mxu0 0.0
    %2444 = vmatpush1.msra.mxu0 0.0
    %2445 = vmatprep.subr.mxu0 0.0
    %2446 = vmatpush1.msra.mxu0 0.0
    %2447 = vmatprep.subr.mxu0 0.0
    %2448 = vmatpush1.msra.mxu0 0.0
    %2449 = vmatprep.subr.mxu0 0.0
    %2450 = vmatpush1.msra.mxu0 0.0
    %2451 = vmatprep.subr.mxu0 0.0
    %2452 = vmatpush1.msra.mxu0 0.0
    %2453 = vmatprep.mubr.f32.mxu0 0.0
    %2454 = vmatmul.mubr.f32.gmra.mrb[0].mxu0 %v807
    %v2455 = vpop.f32.mrb[0].mxu0
    %v2456 = vadd.f32 0.0, %v2455
    %v2457 = vpop.f32.mrb[0].mxu0
    %2458 = vmatprep.mubr.f32.mxu0 0.0
    %2459 = vmatmul.mubr.f32.gmra.mrb[0].mxu0 %v810
    %v2460 = vpop.f32.mrb[0].mxu0
    %v2461 = vadd.f32 0.0, %v2460
    %v2462 = vpop.f32.mrb[0].mxu0
    %2463 = vmatprep.mubr.f32.mxu0 0.0
    %2464 = vmatmul.mubr.f32.gmra.mrb[0].mxu0 %v813
    %v2465 = vpop.f32.mrb[0].mxu0
    %v2466 = vadd.f32 0.0, %v2465
    %v2467 = vpop.f32.mrb[0].mxu0
    %2468 = vmatprep.mubr.f32.mxu0 0.0
    %2469 = vmatmul.mubr.f32.gmra.mrb[0].mxu0 %v816
    %v2470 = vpop.f32.mrb[0].mxu0
    %v2471 = vadd.f32 0.0, %v2470
    %v2472 = vpop.f32.mrb[0].mxu0
    %2473 = vmatprep.mubr.f32.mxu0 0.0
    %2474 = vmatmul.mubr.f32.gmra.mrb[0].mxu0 %v819
    %v2475 = vpop.f32.mrb[0].mxu0
    %v2476 = vadd.f32 0.0, %v2475
    %v2477 = vpop.f32.mrb[0].mxu0
    %2478 = vmatprep.mubr.f32.mxu0 0.0
    %2479 = vmatmul.mubr.f32.gmra.mrb[0].mxu0 %v822
    %v2480 = vpop.f32.mrb[0].mxu0
    %v2481 = vadd.f32 0.0, %v2480
    %v2482 = vpop.f32.mrb[0].mxu0
    %2483 = vmatprep.mubr.f32.mxu0 0.0
    %2484 = vmatmul.mubr.f32.gmra.mrb[0].mxu0 %v825
    %v2485 = vpop.f32.mrb[0].mxu0
    %v2486 = vadd.f32 0.0, %v2485
    %v2487 = vpop.f32.mrb[0].mxu0
    %2488 = vmatprep.mubr.f32.mxu0 0.0
    %2489 = vmatmul.mubr.f32.gmra.mrb[0].mxu0 %v828
    %v2490 = vpop.f32.mrb[0].mxu0
    %v2491 = vadd.f32 0.0, %v2490
    %v2492 = vpop.f32.mrb[0].mxu0
    %2493 = vmatprep.mubr.f32.mxu0 0.0
    %2494 = vmatmul.mubr.f32.gmra.mrb[0].mxu0 %v831
    %v2495 = vpop.f32.mrb[0].mxu0
    %v2496 = vadd.f32 0.0, %v2495
    %v2497 = vpop.f32.mrb[0].mxu0
    %2498 = vmatprep.mubr.f32.mxu0 0.0
    %2499 = vmatmul.mubr.f32.gmra.mrb[0].mxu0 %v834
    %v2500 = vpop.f32.mrb[0].mxu0
    %v2501 = vadd.f32 0.0, %v2500
    %v2502 = vpop.f32.mrb[0].mxu0
    %2503 = vmatprep.mubr.f32.mxu0 0.0
    %2504 = vmatmul.mubr.f32.gmra.mrb[0].mxu0 %v837
    %v2505 = vpop.f32.mrb[0].mxu0
    %v2506 = vadd.f32 0.0, %v2505
    %v2507 = vpop.f32.mrb[0].mxu0
    %2508 = vmatprep.mubr.f32.mxu0 0.0
    %2509 = vmatmul.mubr.f32.gmra.mrb[0].mxu0 %v840
    %v2510 = vpop.f32.mrb[0].mxu0
    %v2511 = vadd.f32 0.0, %v2510
    %v2512 = vpop.f32.mrb[0].mxu0
    %2513 = vmatprep.mubr.f32.mxu0 0.0
    %2514 = vmatmul.mubr.f32.gmra.mrb[0].mxu0 %v843
    %v2515 = vpop.f32.mrb[0].mxu0
    %v2516 = vadd.f32 0.0, %v2515
    %v2517 = vpop.f32.mrb[0].mxu0
    %2518 = vmatprep.mubr.f32.mxu0 0.0
    %2519 = vmatmul.mubr.f32.gmra.mrb[0].mxu0 %v846
    %v2520 = vpop.f32.mrb[0].mxu0
    %v2521 = vadd.f32 0.0, %v2520
    %v2522 = vpop.f32.mrb[0].mxu0
    %2523 = vmatprep.mubr.f32.mxu0 0.0
    %2524 = vmatmul.mubr.f32.gmra.mrb[0].mxu0 %v849
    %v2525 = vpop.f32.mrb[0].mxu0
    %v2526 = vadd.f32 0.0, %v2525
    %v2527 = vpop.f32.mrb[0].mxu0
    %2528 = vmatprep.mubr.f32.mxu0 0.0
    %2529 = vmatmul.mubr.f32.gmra.mrb[0].mxu0 %v852
    %v2530 = vpop.f32.mrb[0].mxu0
    %v2531 = vadd.f32 0.0, %v2530
    %v2532 = vpop.f32.mrb[0].mxu0
    %2533 = vmatprep.mubr.f32.mxu0 0.0
    %2534 = vmatmul.mubr.f32.gmra.mrb[0].mxu0 %v855
    %v2535 = vpop.f32.mrb[0].mxu0
    %v2536 = vadd.f32 0.0, %v2535
    %v2537 = vpop.f32.mrb[0].mxu0
    %2538 = vmatprep.mubr.f32.mxu0 0.0
    %2539 = vmatmul.mubr.f32.gmra.mrb[0].mxu0 %v858
    %v2540 = vpop.f32.mrb[0].mxu0
    %v2541 = vadd.f32 0.0, %v2540
    %v2542 = vpop.f32.mrb[0].mxu0
    %2543 = vmatprep.mubr.f32.mxu0 0.0
    %2544 = vmatmul.mubr.f32.gmra.mrb[0].mxu0 %v861
    %v2545 = vpop.f32.mrb[0].mxu0
    %v2546 = vadd.f32 0.0, %v2545
    %v2547 = vpop.f32.mrb[0].mxu0
    %2548 = vmatprep.mubr.f32.mxu0 0.0
    %2549 = vmatmul.mubr.f32.gmra.mrb[0].mxu0 %v864
    %v2550 = vpop.f32.mrb[0].mxu0
    %v2551 = vadd.f32 0.0, %v2550
    %v2552 = vpop.f32.mrb[0].mxu0
    %2553 = vmatprep.mubr.f32.mxu0 0.0
    %2554 = vmatmul.mubr.f32.gmra.mrb[0].mxu0 %v867
    %v2555 = vpop.f32.mrb[0].mxu0
    %v2556 = vadd.f32 0.0, %v2555
    %v2557 = vpop.f32.mrb[0].mxu0
    %2558 = vmatprep.mubr.f32.mxu0 0.0
    %2559 = vmatmul.mubr.f32.gmra.mrb[0].mxu0 %v870
    %v2560 = vpop.f32.mrb[0].mxu0
    %v2561 = vadd.f32 0.0, %v2560
    %v2562 = vpop.f32.mrb[0].mxu0
    %2563 = vmatprep.mubr.f32.mxu0 0.0
    %2564 = vmatmul.mubr.f32.gmra.mrb[0].mxu0 %v873
    %v2565 = vpop.f32.mrb[0].mxu0
    %v2566 = vadd.f32 0.0, %v2565
    %v2567 = vpop.f32.mrb[0].mxu0
    %2568 = vmatprep.mubr.f32.mxu0 0.0
    %2569 = vmatmul.mubr.f32.gmra.mrb[0].mxu0 %v876
    %v2570 = vpop.f32.mrb[0].mxu0
    %v2571 = vadd.f32 0.0, %v2570
    %v2572 = vpop.f32.mrb[0].mxu0
    %2573 = vmatprep.mubr.f32.mxu0 0.0
    %2574 = vmatmul.mubr.f32.gmra.mrb[0].mxu0 %v879
    %v2575 = vpop.f32.mrb[0].mxu0
    %v2576 = vadd.f32 0.0, %v2575
    %v2577 = vpop.f32.mrb[0].mxu0
    %2578 = vmatprep.mubr.f32.mxu0 0.0
    %2579 = vmatmul.mubr.f32.gmra.mrb[0].mxu0 %v882
    %v2580 = vpop.f32.mrb[0].mxu0
    %v2581 = vadd.f32 0.0, %v2580
    %v2582 = vpop.f32.mrb[0].mxu0
    %2583 = vmatprep.mubr.f32.mxu0 0.0
    %2584 = vmatmul.mubr.f32.gmra.mrb[0].mxu0 %v885
    %v2585 = vpop.f32.mrb[0].mxu0
    %v2586 = vadd.f32 0.0, %v2585
    %v2587 = vpop.f32.mrb[0].mxu0
    %2588 = vmatprep.mubr.f32.mxu0 0.0
    %2589 = vmatmul.mubr.f32.gmra.mrb[0].mxu0 %v888
    %v2590 = vpop.f32.mrb[0].mxu0
    %v2591 = vadd.f32 0.0, %v2590
    %v2592 = vpop.f32.mrb[0].mxu0
    %2593 = vmatprep.mubr.f32.mxu0 0.0
    %2594 = vmatmul.mubr.f32.gmra.mrb[0].mxu0 %v891
    %v2595 = vpop.f32.mrb[0].mxu0
    %v2596 = vadd.f32 0.0, %v2595
    %v2597 = vpop.f32.mrb[0].mxu0
    %2598 = vmatprep.mubr.f32.mxu0 0.0
    %2599 = vmatmul.mubr.f32.gmra.mrb[0].mxu0 %v894
    %v2600 = vpop.f32.mrb[0].mxu0
    %v2601 = vadd.f32 0.0, %v2600
    %v2602 = vpop.f32.mrb[0].mxu0
    %2603 = vmatprep.mubr.f32.mxu0 0.0
    %2604 = vmatmul.mubr.f32.gmra.mrb[0].mxu0 %v897
    %v2605 = vpop.f32.mrb[0].mxu0
    %v2606 = vadd.f32 0.0, %v2605
    %v2607 = vpop.f32.mrb[0].mxu0
    %2608 = vmatprep.mubr.f32.mxu0 0.0
    %2609 = vmatmul.mubr.f32.gmra.mrb[0].mxu0 %v900
    %v2610 = vpop.f32.mrb[0].mxu0
    %v2611 = vadd.f32 0.0, %v2610
    %v2612 = vpop.f32.mrb[0].mxu0
    %2613 = vmatprep.mubr.f32.mxu0 0.0
    %2614 = vmatmul.mubr.f32.gmra.mrb[0].mxu0 %v903
    %v2615 = vpop.f32.mrb[0].mxu0
    %v2616 = vadd.f32 0.0, %v2615
    %v2617 = vpop.f32.mrb[0].mxu0
    %2618 = vmatprep.mubr.f32.mxu0 0.0
    %2619 = vmatmul.mubr.f32.gmra.mrb[0].mxu0 %v906
    %v2620 = vpop.f32.mrb[0].mxu0
    %v2621 = vadd.f32 0.0, %v2620
    %v2622 = vpop.f32.mrb[0].mxu0
    %2623 = vmatprep.mubr.f32.mxu0 0.0
    %2624 = vmatmul.mubr.f32.gmra.mrb[0].mxu0 %v909
    %v2625 = vpop.f32.mrb[0].mxu0
    %v2626 = vadd.f32 0.0, %v2625
    %v2627 = vpop.f32.mrb[0].mxu0
    %2628 = vmatprep.mubr.f32.mxu0 0.0
    %2629 = vmatmul.mubr.f32.gmra.mrb[0].mxu0 %v912
    %v2630 = vpop.f32.mrb[0].mxu0
    %v2631 = vadd.f32 0.0, %v2630
    %v2632 = vpop.f32.mrb[0].mxu0
    %2633 = vmatprep.mubr.f32.mxu0 0.0
    %2634 = vmatmul.mubr.f32.gmra.mrb[0].mxu0 %v915
    %v2635 = vpop.f32.mrb[0].mxu0
    %v2636 = vadd.f32 0.0, %v2635
    %v2637 = vpop.f32.mrb[0].mxu0
    %2638 = vmatprep.mubr.f32.mxu0 0.0
    %2639 = vmatmul.mubr.f32.gmra.mrb[0].mxu0 %v918
    %v2640 = vpop.f32.mrb[0].mxu0
    %v2641 = vadd.f32 0.0, %v2640
    %v2642 = vpop.f32.mrb[0].mxu0
    %2643 = vmatprep.mubr.f32.mxu0 0.0
    %2644 = vmatmul.mubr.f32.gmra.mrb[0].mxu0 %v921
    %v2645 = vpop.f32.mrb[0].mxu0
    %v2646 = vadd.f32 0.0, %v2645
    %v2647 = vpop.f32.mrb[0].mxu0
    %2648 = vmatprep.mubr.f32.mxu0 0.0
    %2649 = vmatmul.mubr.f32.gmra.mrb[0].mxu0 %v924
    %v2650 = vpop.f32.mrb[0].mxu0
    %v2651 = vadd.f32 0.0, %v2650
    %v2652 = vpop.f32.mrb[0].mxu0
    %2653 = vmatprep.mubr.f32.mxu0 0.0
    %2654 = vmatmul.mubr.f32.gmra.mrb[0].mxu0 %v927
    %v2655 = vpop.f32.mrb[0].mxu0
    %v2656 = vadd.f32 0.0, %v2655
    %v2657 = vpop.f32.mrb[0].mxu0
    %2658 = vmatprep.mubr.f32.mxu0 0.0
    %2659 = vmatmul.mubr.f32.gmra.mrb[0].mxu0 %v930
    %v2660 = vpop.f32.mrb[0].mxu0
    %v2661 = vadd.f32 0.0, %v2660
    %v2662 = vpop.f32.mrb[0].mxu0
    %2663 = vmatprep.mubr.f32.mxu0 0.0
    %2664 = vmatmul.mubr.f32.gmra.mrb[0].mxu0 %v933
    %v2665 = vpop.f32.mrb[0].mxu0
    %v2666 = vadd.f32 0.0, %v2665
    %v2667 = vpop.f32.mrb[0].mxu0
    %2668 = vmatprep.mubr.f32.mxu0 0.0
    %2669 = vmatmul.mubr.f32.gmra.mrb[0].mxu0 %v936
    %v2670 = vpop.f32.mrb[0].mxu0
    %v2671 = vadd.f32 0.0, %v2670
    %v2672 = vpop.f32.mrb[0].mxu0
    %2673 = vmatprep.mubr.f32.mxu0 0.0
    %2674 = vmatmul.mubr.f32.gmra.mrb[0].mxu0 %v939
    %v2675 = vpop.f32.mrb[0].mxu0
    %v2676 = vadd.f32 0.0, %v2675
    %v2677 = vpop.f32.mrb[0].mxu0
    %2678 = vmatprep.mubr.f32.mxu0 0.0
    %2679 = vmatmul.mubr.f32.gmra.mrb[0].mxu0 %v942
    %v2680 = vpop.f32.mrb[0].mxu0
    %v2681 = vadd.f32 0.0, %v2680
    %v2682 = vpop.f32.mrb[0].mxu0
    %2683 = vmatprep.mubr.f32.mxu0 0.0
    %2684 = vmatmul.mubr.f32.gmra.mrb[0].mxu0 %v945
    %v2685 = vpop.f32.mrb[0].mxu0
    %v2686 = vadd.f32 0.0, %v2685
    %v2687 = vpop.f32.mrb[0].mxu0
    %2688 = vmatprep.mubr.f32.mxu0 0.0
    %2689 = vmatmul.mubr.f32.gmra.mrb[0].mxu0 %v948
    %v2690 = vpop.f32.mrb[0].mxu0
    %v2691 = vadd.f32 0.0, %v2690
    %v2692 = vpop.f32.mrb[0].mxu0
    %2693 = vmatprep.mubr.f32.mxu0 0.0
    %2694 = vmatmul.mubr.f32.gmra.mrb[0].mxu0 %v951
    %v2695 = vpop.f32.mrb[0].mxu0
    %v2696 = vadd.f32 0.0, %v2695
    %v2697 = vpop.f32.mrb[0].mxu0
    %2698 = vmatprep.mubr.f32.mxu0 0.0
    %2699 = vmatmul.mubr.f32.gmra.mrb[0].mxu0 %v954
    %v2700 = vpop.f32.mrb[0].mxu0
    %v2701 = vadd.f32 0.0, %v2700
    %v2702 = vpop.f32.mrb[0].mxu0
    %2703 = vmatprep.mubr.f32.mxu0 0.0
    %2704 = vmatmul.mubr.f32.gmra.mrb[0].mxu0 %v957
    %v2705 = vpop.f32.mrb[0].mxu0
    %v2706 = vadd.f32 0.0, %v2705
    %v2707 = vpop.f32.mrb[0].mxu0
    %2708 = vmatprep.mubr.f32.mxu0 0.0
    %2709 = vmatmul.mubr.f32.gmra.mrb[0].mxu0 %v960
    %v2710 = vpop.f32.mrb[0].mxu0
    %v2711 = vadd.f32 0.0, %v2710
    %v2712 = vpop.f32.mrb[0].mxu0
    %2713 = vmatprep.mubr.f32.mxu0 0.0
    %2714 = vmatmul.mubr.f32.gmra.mrb[0].mxu0 %v963
    %v2715 = vpop.f32.mrb[0].mxu0
    %v2716 = vadd.f32 0.0, %v2715
    %v2717 = vpop.f32.mrb[0].mxu0
    %2718 = vmatprep.mubr.f32.mxu0 0.0
    %2719 = vmatmul.mubr.f32.gmra.mrb[0].mxu0 %v966
    %v2720 = vpop.f32.mrb[0].mxu0
    %v2721 = vadd.f32 0.0, %v2720
    %v2722 = vpop.f32.mrb[0].mxu0
    %2723 = vdwg.mxu0
    %v2724 = vlaneseq
    %v2725 = vshrl.u32 %v2724, 7
    %v2726 = vsub.s32 0, %v2725
    %v2727 = vrot.slane %v2385, %v2726
    %v2728 = vmul.f32 %v2456, %v2727
    %v2729 = vmul.f32 %v2461, %v2727
    %v2730 = vlaneseq
    %v2731 = vshrl.u32 %v2730, 7
    %v2732 = vsub.s32 0, %v2731
    %v2733 = vrot.slane %v2383, %v2732
    %v2734 = vadd.f32 %v2733, %v2728
    %v2735 = vadd.f32 %v2733, %v2729
    %v2736 = vlaneseq
    %v2737 = vshrl.u32 %v2736, 7
    %v2738 = vsub.s32 1, %v2737
    %v2739 = vrot.slane %v2385, %v2738
    %v2740 = vmul.f32 %v2466, %v2739
    %v2741 = vmul.f32 %v2471, %v2739
    %v2742 = vadd.f32 %v2734, %v2740
    %v2743 = vadd.f32 %v2735, %v2741
    %v2744 = vlaneseq
    %v2745 = vshrl.u32 %v2744, 7
    %v2746 = vsub.s32 2, %v2745
    %v2747 = vrot.slane %v2385, %v2746
    %v2748 = vmul.f32 %v2476, %v2747
    %v2749 = vmul.f32 %v2481, %v2747
    %v2750 = vadd.f32 %v2742, %v2748
    %v2751 = vadd.f32 %v2743, %v2749
    %v2752 = vlaneseq
    %v2753 = vshrl.u32 %v2752, 7
    %v2754 = vsub.s32 3, %v2753
    %v2755 = vrot.slane %v2385, %v2754
    %v2756 = vmul.f32 %v2486, %v2755
    %v2757 = vmul.f32 %v2491, %v2755
    %v2758 = vadd.f32 %v2750, %v2756
    %v2759 = vadd.f32 %v2751, %v2757
    %v2760 = vlaneseq
    %v2761 = vshrl.u32 %v2760, 7
    %v2762 = vsub.s32 4, %v2761
    %v2763 = vrot.slane %v2385, %v2762
    %v2764 = vmul.f32 %v2496, %v2763
    %v2765 = vmul.f32 %v2501, %v2763
    %v2766 = vadd.f32 %v2758, %v2764
    %v2767 = vadd.f32 %v2759, %v2765
    %v2768 = vlaneseq
    %v2769 = vshrl.u32 %v2768, 7
    %v2770 = vsub.s32 5, %v2769
    %v2771 = vrot.slane %v2385, %v2770
    %v2772 = vmul.f32 %v2506, %v2771
    %v2773 = vmul.f32 %v2511, %v2771
    %v2774 = vadd.f32 %v2766, %v2772
    %v2775 = vadd.f32 %v2767, %v2773
    %v2776 = vlaneseq
    %v2777 = vshrl.u32 %v2776, 7
    %v2778 = vsub.s32 6, %v2777
    %v2779 = vrot.slane %v2385, %v2778
    %v2780 = vmul.f32 %v2516, %v2779
    %v2781 = vmul.f32 %v2521, %v2779
    %v2782 = vadd.f32 %v2774, %v2780
    %v2783 = vadd.f32 %v2775, %v2781
    %v2784 = vlaneseq
    %v2785 = vshrl.u32 %v2784, 7
    %v2786 = vsub.s32 7, %v2785
    %v2787 = vrot.slane %v2385, %v2786
    %v2788 = vmul.f32 %v2526, %v2787
    %v2789 = vmul.f32 %v2531, %v2787
    %v2790 = vadd.f32 %v2782, %v2788
    %v2791 = vadd.f32 %v2783, %v2789
    %v2792 = vlaneseq
    %v2793 = vshrl.u32 %v2792, 7
    %v2794 = vsub.s32 0, %v2793
    %v2795 = vrot.slane %v2386, %v2794
    %v2796 = vmul.f32 %v2536, %v2795
    %v2797 = vmul.f32 %v2541, %v2795
    %v2798 = vadd.f32 %v2790, %v2796
    %v2799 = vadd.f32 %v2791, %v2797
    %v2800 = vlaneseq
    %v2801 = vshrl.u32 %v2800, 7
    %v2802 = vsub.s32 1, %v2801
    %v2803 = vrot.slane %v2386, %v2802
    %v2804 = vmul.f32 %v2546, %v2803
    %v2805 = vmul.f32 %v2551, %v2803
    %v2806 = vadd.f32 %v2798, %v2804
    %v2807 = vadd.f32 %v2799, %v2805
    %v2808 = vlaneseq
    %v2809 = vshrl.u32 %v2808, 7
    %v2810 = vsub.s32 2, %v2809
    %v2811 = vrot.slane %v2386, %v2810
    %v2812 = vmul.f32 %v2556, %v2811
    %v2813 = vmul.f32 %v2561, %v2811
    %v2814 = vadd.f32 %v2806, %v2812
    %v2815 = vadd.f32 %v2807, %v2813
    %v2816 = vlaneseq
    %v2817 = vshrl.u32 %v2816, 7
    %v2818 = vsub.s32 3, %v2817
    %v2819 = vrot.slane %v2386, %v2818
    %v2820 = vmul.f32 %v2566, %v2819
    %v2821 = vmul.f32 %v2571, %v2819
    %v2822 = vadd.f32 %v2814, %v2820
    %v2823 = vadd.f32 %v2815, %v2821
    %v2824 = vlaneseq
    %v2825 = vshrl.u32 %v2824, 7
    %v2826 = vsub.s32 4, %v2825
    %v2827 = vrot.slane %v2386, %v2826
    %v2828 = vmul.f32 %v2576, %v2827
    %v2829 = vmul.f32 %v2581, %v2827
    %v2830 = vadd.f32 %v2822, %v2828
    %v2831 = vadd.f32 %v2823, %v2829
    %v2832 = vlaneseq
    %v2833 = vshrl.u32 %v2832, 7
    %v2834 = vsub.s32 5, %v2833
    %v2835 = vrot.slane %v2386, %v2834
    %v2836 = vmul.f32 %v2586, %v2835
    %v2837 = vmul.f32 %v2591, %v2835
    %v2838 = vadd.f32 %v2830, %v2836
    %v2839 = vadd.f32 %v2831, %v2837
    %v2840 = vlaneseq
    %v2841 = vshrl.u32 %v2840, 7
    %v2842 = vsub.s32 6, %v2841
    %v2843 = vrot.slane %v2386, %v2842
    %v2844 = vmul.f32 %v2596, %v2843
    %v2845 = vmul.f32 %v2601, %v2843
    %v2846 = vadd.f32 %v2838, %v2844
    %v2847 = vadd.f32 %v2839, %v2845
    %v2848 = vlaneseq
    %v2849 = vshrl.u32 %v2848, 7
    %v2850 = vsub.s32 7, %v2849
    %v2851 = vrot.slane %v2386, %v2850
    %v2852 = vmul.f32 %v2606, %v2851
    %v2853 = vmul.f32 %v2611, %v2851
    %v2854 = vadd.f32 %v2846, %v2852
    %v2855 = vadd.f32 %v2847, %v2853
    %v2856 = vlaneseq
    %v2857 = vshrl.u32 %v2856, 7
    %v2858 = vsub.s32 0, %v2857
    %v2859 = vrot.slane %v2387, %v2858
    %v2860 = vmul.f32 %v2616, %v2859
    %v2861 = vmul.f32 %v2621, %v2859
    %v2862 = vadd.f32 %v2854, %v2860
    %v2863 = vadd.f32 %v2855, %v2861
    %v2864 = vlaneseq
    %v2865 = vshrl.u32 %v2864, 7
    %v2866 = vsub.s32 1, %v2865
    %v2867 = vrot.slane %v2387, %v2866
    %v2868 = vmul.f32 %v2626, %v2867
    %v2869 = vmul.f32 %v2631, %v2867
    %v2870 = vadd.f32 %v2862, %v2868
    %v2871 = vadd.f32 %v2863, %v2869
    %v2872 = vlaneseq
    %v2873 = vshrl.u32 %v2872, 7
    %v2874 = vsub.s32 2, %v2873
    %v2875 = vrot.slane %v2387, %v2874
    %v2876 = vmul.f32 %v2636, %v2875
    %v2877 = vmul.f32 %v2641, %v2875
    %v2878 = vadd.f32 %v2870, %v2876
    %v2879 = vadd.f32 %v2871, %v2877
    %v2880 = vlaneseq
    %v2881 = vshrl.u32 %v2880, 7
    %v2882 = vsub.s32 3, %v2881
    %v2883 = vrot.slane %v2387, %v2882
    %v2884 = vmul.f32 %v2646, %v2883
    %v2885 = vmul.f32 %v2651, %v2883
    %v2886 = vadd.f32 %v2878, %v2884
    %v2887 = vadd.f32 %v2879, %v2885
    %v2888 = vlaneseq
    %v2889 = vshrl.u32 %v2888, 7
    %v2890 = vsub.s32 4, %v2889
    %v2891 = vrot.slane %v2387, %v2890
    %v2892 = vmul.f32 %v2656, %v2891
    %v2893 = vmul.f32 %v2661, %v2891
    %v2894 = vadd.f32 %v2886, %v2892
    %v2895 = vadd.f32 %v2887, %v2893
    %v2896 = vlaneseq
    %v2897 = vshrl.u32 %v2896, 7
    %v2898 = vsub.s32 5, %v2897
    %v2899 = vrot.slane %v2387, %v2898
    %v2900 = vmul.f32 %v2666, %v2899
    %v2901 = vmul.f32 %v2671, %v2899
    %v2902 = vadd.f32 %v2894, %v2900
    %v2903 = vadd.f32 %v2895, %v2901
    %v2904 = vlaneseq
    %v2905 = vshrl.u32 %v2904, 7
    %v2906 = vsub.s32 6, %v2905
    %v2907 = vrot.slane %v2387, %v2906
    %v2908 = vmul.f32 %v2676, %v2907
    %v2909 = vmul.f32 %v2681, %v2907
    %v2910 = vadd.f32 %v2902, %v2908
    %v2911 = vadd.f32 %v2903, %v2909
    %v2912 = vlaneseq
    %v2913 = vshrl.u32 %v2912, 7
    %v2914 = vsub.s32 7, %v2913
    %v2915 = vrot.slane %v2387, %v2914
    %v2916 = vmul.f32 %v2686, %v2915
    %v2917 = vmul.f32 %v2691, %v2915
    %v2918 = vadd.f32 %v2910, %v2916
    %v2919 = vadd.f32 %v2911, %v2917
    %v2920 = vlaneseq
    %v2921 = vshrl.u32 %v2920, 7
    %v2922 = vsub.s32 0, %v2921
    %v2923 = vrot.slane %v2388, %v2922
    %v2924 = vmul.f32 %v2696, %v2923
    %v2925 = vmul.f32 %v2701, %v2923
    %v2926 = vadd.f32 %v2918, %v2924
    %v2927 = vadd.f32 %v2919, %v2925
    %v2928 = vlaneseq
    %v2929 = vshrl.u32 %v2928, 7
    %v2930 = vsub.s32 1, %v2929
    %v2931 = vrot.slane %v2388, %v2930
    %v2932 = vmul.f32 %v2706, %v2931
    %v2933 = vmul.f32 %v2711, %v2931
    %v2934 = vadd.f32 %v2926, %v2932
    %v2935 = vadd.f32 %v2927, %v2933
    %v2936 = vlaneseq
    %v2937 = vshrl.u32 %v2936, 7
    %v2938 = vsub.s32 2, %v2937
    %v2939 = vrot.slane %v2388, %v2938
    %v2940 = vmul.f32 %v2716, %v2939
    %v2941 = vmul.f32 %v2721, %v2939
    %v2942 = vadd.f32 %v2934, %v2940
    %v2943 = vadd.f32 %v2935, %v2941
    %v2944 = vadd.f32 %v2380, %v2942
    %v2945 = vadd.f32 %v2381, %v2943
    %v2946 = vsel %vm97, %v2944, 0.0
    %2947 = vadd.xlane.f32.xlu0 %v2946
    %v2948 = vpop.xlane.xlu0 %2947
    %v2949 = vsel %vm97, %v2945, 0.0
    %2950 = vadd.xlane.f32.xlu0 %v2949
    %v2951 = vpop.xlane.xlu0 %2950
    %v2952 = vmul.f32 %v2948, %v238
    %v2953 = vmul.f32 %v2951, %v238
    %v2954 = vsub.f32 %v2944, %v2952
    %v2955 = vsub.f32 %v2945, %v2953
    %v2956 = vmul.f32 %v2954, %v2954
    %v2957 = vmul.f32 %v2955, %v2955
    %v2958 = vsel %vm97, %v2956, 0.0
    %2959 = vadd.xlane.f32.xlu0 %v2958
    %v2960 = vpop.xlane.xlu0 %2959
    %v2961 = vsel %vm97, %v2957, 0.0
    %2962 = vadd.xlane.f32.xlu0 %v2961
    %v2963 = vpop.xlane.xlu0 %2962
    %v2964 = vmul.f32 %v2960, %v238
    %v2965 = vmul.f32 %v2963, %v238
    %v2966 = vadd.f32 %v2964, 1e-05
    %v2967 = vadd.f32 %v2965, 1e-05
    %v2968 = vrsqrt.pop %v2966
    %v2969 = vrsqrt.pop %v2967
    %v2970 = vmul.f32 %v2954, %v2968
    %v2971 = vmul.f32 %v2955, %v2969
    %v2972 = vlaneseq
    %v2973 = vshrl.u32 %v2972, 7
    %v2974 = vsub.s32 1, %v2973
    %v2975 = vrot.slane %v2383, %v2974
    %v2976 = vmul.f32 %v2970, %v2975
    %v2977 = vmul.f32 %v2971, %v2975
    %v2978 = vlaneseq
    %v2979 = vshrl.u32 %v2978, 7
    %v2980 = vsub.s32 2, %v2979
    %v2981 = vrot.slane %v2383, %v2980
    %v2982 = vadd.f32 %v2976, %v2981
    %v2983 = vadd.f32 %v2977, %v2981
    %s2984 = scalar_lea.vmem %s14, 128
    %v2985 = vld [vmem:[%s2984] sm:$0xff]
    %v2986 = vld [vmem:[%s2984 + $0x8] sm:$0xff]
    %v2987 = vld [vmem:[%s2984 + $0x10] sm:$0xff]
    %v2988 = vld [vmem:[%s2984 + $0x18] sm:$0xff]
    %v2989 = vld [vmem:[%s2984 + $0x20] sm:$0xff]
    %v2990 = vld [vmem:[%s2984 + $0x28] sm:$0xff]
    %v2991 = vld [vmem:[%s2984 + $0x30] sm:$0xff]
    %v2992 = vld [vmem:[%s2984 + $0x38] sm:$0xff]
    %v2993 = vld [vmem:[%s2984 + $0x40] sm:$0xff]
    %v2994 = vld [vmem:[%s2984 + $0x48] sm:$0xff]
    %v2995 = vld [vmem:[%s2984 + $0x50] sm:$0xff]
    %v2996 = vld [vmem:[%s2984 + $0x58] sm:$0xff]
    %v2997 = vld [vmem:[%s2984 + $0x60] sm:$0xff]
    %v2998 = vld [vmem:[%s2984 + $0x68] sm:$0xff]
    %v2999 = vld [vmem:[%s2984 + $0x70] sm:$0xff]
    %v3000 = vld [vmem:[%s2984 + $0x78] sm:$0xff]
    %v3002 = vsel %vm97, %v2982, 0
    %v3005 = vsel %vm97, %v2983, 0
    %3007 = vmatprep.subr.mxu0 %v2986
    %3008 = vmatpush1.msra.mxu0 %v2985
    %3009 = vmatprep.subr.mxu0 %v2988
    %3010 = vmatpush1.msra.mxu0 %v2987
    %3011 = vmatprep.subr.mxu0 %v2990
    %3012 = vmatpush1.msra.mxu0 %v2989
    %3013 = vmatprep.subr.mxu0 %v2992
    %3014 = vmatpush1.msra.mxu0 %v2991
    %3015 = vmatprep.subr.mxu0 %v2994
    %3016 = vmatpush1.msra.mxu0 %v2993
    %3017 = vmatprep.subr.mxu0 %v2996
    %3018 = vmatpush1.msra.mxu0 %v2995
    %3019 = vmatprep.subr.mxu0 %v2998
    %3020 = vmatpush1.msra.mxu0 %v2997
    %3021 = vmatprep.subr.mxu0 %v3000
    %3022 = vmatpush1.msra.mxu0 %v2999
    %3023 = vmatprep.subr.mxu0 0.0
    %3024 = vmatpush1.msra.mxu0 0.0
    %3025 = vmatprep.subr.mxu0 0.0
    %3026 = vmatpush1.msra.mxu0 0.0
    %3027 = vmatprep.subr.mxu0 0.0
    %3028 = vmatpush1.msra.mxu0 0.0
    %3029 = vmatprep.subr.mxu0 0.0
    %3030 = vmatpush1.msra.mxu0 0.0
    %3031 = vmatprep.subr.mxu0 0.0
    %3032 = vmatpush1.msra.mxu0 0.0
    %3033 = vmatprep.subr.mxu0 0.0
    %3034 = vmatpush1.msra.mxu0 0.0
    %3035 = vmatprep.subr.mxu0 0.0
    %3036 = vmatpush1.msra.mxu0 0.0
    %3037 = vmatprep.subr.mxu0 0.0
    %3038 = vmatpush1.msra.mxu0 0.0
    %3039 = vmatprep.subr.mxu0 0.0
    %3040 = vmatpush1.msra.mxu0 0.0
    %3041 = vmatprep.subr.mxu0 0.0
    %3042 = vmatpush1.msra.mxu0 0.0
    %3043 = vmatprep.subr.mxu0 0.0
    %3044 = vmatpush1.msra.mxu0 0.0
    %3045 = vmatprep.subr.mxu0 0.0
    %3046 = vmatpush1.msra.mxu0 0.0
    %3047 = vmatprep.subr.mxu0 0.0
    %3048 = vmatpush1.msra.mxu0 0.0
    %3049 = vmatprep.subr.mxu0 0.0
    %3050 = vmatpush1.msra.mxu0 0.0
    %3051 = vmatprep.subr.mxu0 0.0
    %3052 = vmatpush1.msra.mxu0 0.0
    %3053 = vmatprep.subr.mxu0 0.0
    %3054 = vmatpush1.msra.mxu0 0.0
    %3055 = vmatprep.subr.mxu0 0.0
    %3056 = vmatpush1.msra.mxu0 0.0
    %3057 = vmatprep.subr.mxu0 0.0
    %3058 = vmatpush1.msra.mxu0 0.0
    %3059 = vmatprep.subr.mxu0 0.0
    %3060 = vmatpush1.msra.mxu0 0.0
    %3061 = vmatprep.subr.mxu0 0.0
    %3062 = vmatpush1.msra.mxu0 0.0
    %3063 = vmatprep.subr.mxu0 0.0
    %3064 = vmatpush1.msra.mxu0 0.0
    %3065 = vmatprep.subr.mxu0 0.0
    %3066 = vmatpush1.msra.mxu0 0.0
    %3067 = vmatprep.subr.mxu0 0.0
    %3068 = vmatpush1.msra.mxu0 0.0
    %3069 = vmatprep.subr.mxu0 0.0
    %3070 = vmatpush1.msra.mxu0 0.0
    %3071 = vmatprep.mubr.f32.mxu0 0.0
    %3072 = vmatmul.mubr.f32.gmra.mrb[0].mxu0 %v3002
    %v3073 = vpop.f32.mrb[0].mxu0
    %v3074 = vadd.f32 0.0, %v3073
    %v3075 = vpop.f32.mrb[0].mxu0
    %v3076 = vadd.f32 0.0, %v3075
    %3077 = vmatprep.mubr.f32.mxu0 0.0
    %3078 = vmatmul.mubr.f32.gmra.mrb[0].mxu0 %v3005
    %v3079 = vpop.f32.mrb[0].mxu0
    %v3080 = vadd.f32 0.0, %v3079
    %v3081 = vpop.f32.mrb[0].mxu0
    %v3082 = vadd.f32 0.0, %v3081
    %3083 = vdwg.mxu0
    %v3084 = vmul.f32 %v3074, %v729
    %v3085 = vmul.f32 %v3080, %v730
    %v3086 = vmul.f32 %v3074, %v731
    %v3087 = vmul.f32 %v3080, %v732
    %v3088 = vmul.f32 %v3074, %v733
    %v3089 = vmul.f32 %v3080, %v734
    %v3090 = vmul.f32 %v3074, %v735
    %v3091 = vmul.f32 %v3080, %v736
    %3094 = vrot.lane.b32.xlu0 %v3074, 64
    %v3095 = vpop.permute.xlu0 %3094
    %3096 = vrot.lane.b32.xlu0 %v3080, 64
    %v3097 = vpop.permute.xlu0 %3096
    %v3099 = vsel %vm97, %v3084, 0
    %v3102 = vsel %vm97, %v3085, 0
    %v3105 = vsel %vm97, %v3086, 0
    %v3108 = vsel %vm97, %v3087, 0
    %v3111 = vsel %vm97, %v3088, 0
    %v3114 = vsel %vm97, %v3089, 0
    %v3117 = vsel %vm97, %v3090, 0
    %v3120 = vsel %vm97, %v3091, 0
    %v3122 = vsel %vm97, %v3095, 0
    %v3124 = vsel %vm97, %v3097, 0
    %3126 = vmatprep.subr.mxu0 0.0
    %3127 = vmatpush1.xpose.msra.mxu0 %v3122
    %3128 = vmatprep.subr.mxu0 0.0
    %3129 = vmatpush1.xpose.msra.mxu0 %v3124
    %3130 = vmatprep.subr.mxu0 0.0
    %3131 = vmatpush1.xpose.msra.mxu0 0.0
    %3132 = vmatprep.subr.mxu0 0.0
    %3133 = vmatpush1.xpose.msra.mxu0 0.0
    %3134 = vmatprep.subr.mxu0 0.0
    %3135 = vmatpush1.xpose.msra.mxu0 0.0
    %3136 = vmatprep.subr.mxu0 0.0
    %3137 = vmatpush1.xpose.msra.mxu0 0.0
    %3138 = vmatprep.subr.mxu0 0.0
    %3139 = vmatpush1.xpose.msra.mxu0 0.0
    %3140 = vmatprep.subr.mxu0 0.0
    %3141 = vmatpush1.xpose.msra.mxu0 0.0
    %3142 = vmatprep.subr.mxu0 0.0
    %3143 = vmatpush1.xpose.msra.mxu0 0.0
    %3144 = vmatprep.subr.mxu0 0.0
    %3145 = vmatpush1.xpose.msra.mxu0 0.0
    %3146 = vmatprep.subr.mxu0 0.0
    %3147 = vmatpush1.xpose.msra.mxu0 0.0
    %3148 = vmatprep.subr.mxu0 0.0
    %3149 = vmatpush1.xpose.msra.mxu0 0.0
    %3150 = vmatprep.subr.mxu0 0.0
    %3151 = vmatpush1.xpose.msra.mxu0 0.0
    %3152 = vmatprep.subr.mxu0 0.0
    %3153 = vmatpush1.xpose.msra.mxu0 0.0
    %3154 = vmatprep.subr.mxu0 0.0
    %3155 = vmatpush1.xpose.msra.mxu0 0.0
    %3156 = vmatprep.subr.mxu0 0.0
    %3157 = vmatpush1.xpose.msra.mxu0 0.0
    %3158 = vmatprep.subr.mxu0 0.0
    %3159 = vmatpush1.xpose.msra.mxu0 0.0
    %3160 = vmatprep.subr.mxu0 0.0
    %3161 = vmatpush1.xpose.msra.mxu0 0.0
    %3162 = vmatprep.subr.mxu0 0.0
    %3163 = vmatpush1.xpose.msra.mxu0 0.0
    %3164 = vmatprep.subr.mxu0 0.0
    %3165 = vmatpush1.xpose.msra.mxu0 0.0
    %3166 = vmatprep.subr.mxu0 0.0
    %3167 = vmatpush1.xpose.msra.mxu0 0.0
    %3168 = vmatprep.subr.mxu0 0.0
    %3169 = vmatpush1.xpose.msra.mxu0 0.0
    %3170 = vmatprep.subr.mxu0 0.0
    %3171 = vmatpush1.xpose.msra.mxu0 0.0
    %3172 = vmatprep.subr.mxu0 0.0
    %3173 = vmatpush1.xpose.msra.mxu0 0.0
    %3174 = vmatprep.subr.mxu0 0.0
    %3175 = vmatpush1.xpose.msra.mxu0 0.0
    %3176 = vmatprep.subr.mxu0 0.0
    %3177 = vmatpush1.xpose.msra.mxu0 0.0
    %3178 = vmatprep.subr.mxu0 0.0
    %3179 = vmatpush1.xpose.msra.mxu0 0.0
    %3180 = vmatprep.subr.mxu0 0.0
    %3181 = vmatpush1.xpose.msra.mxu0 0.0
    %3182 = vmatprep.subr.mxu0 0.0
    %3183 = vmatpush1.xpose.msra.mxu0 0.0
    %3184 = vmatprep.subr.mxu0 0.0
    %3185 = vmatpush1.xpose.msra.mxu0 0.0
    %3186 = vmatprep.subr.mxu0 0.0
    %3187 = vmatpush1.xpose.msra.mxu0 0.0
    %3188 = vmatprep.subr.mxu0 0.0
    %3189 = vmatpush1.xpose.msra.mxu0 0.0
    %3190 = vmatprep.mubr.f32.mxu0 0.0
    %3191 = vmatmul.mubr.f32.gmra.mrb[0].mxu0 %v3099
    %v3192 = vpop.f32.mrb[0].mxu0
    %v3193 = vadd.f32 %v792, %v3192
    %v3194 = vpop.f32.mrb[0].mxu0
    %3195 = vmatprep.mubr.f32.mxu0 0.0
    %3196 = vmatmul.mubr.f32.gmra.mrb[0].mxu0 %v3102
    %v3197 = vpop.f32.mrb[0].mxu0
    %v3198 = vadd.f32 %v793, %v3197
    %v3199 = vpop.f32.mrb[0].mxu0
    %3200 = vmatprep.mubr.f32.mxu0 0.0
    %3201 = vmatmul.mubr.f32.gmra.mrb[0].mxu0 %v3105
    %v3202 = vpop.f32.mrb[0].mxu0
    %v3203 = vadd.f32 %v794, %v3202
    %v3204 = vpop.f32.mrb[0].mxu0
    %3205 = vmatprep.mubr.f32.mxu0 0.0
    %3206 = vmatmul.mubr.f32.gmra.mrb[0].mxu0 %v3108
    %v3207 = vpop.f32.mrb[0].mxu0
    %v3208 = vadd.f32 %v795, %v3207
    %v3209 = vpop.f32.mrb[0].mxu0
    %3210 = vmatprep.mubr.f32.mxu0 0.0
    %3211 = vmatmul.mubr.f32.gmra.mrb[0].mxu0 %v3111
    %v3212 = vpop.f32.mrb[0].mxu0
    %v3213 = vadd.f32 %v796, %v3212
    %v3214 = vpop.f32.mrb[0].mxu0
    %3215 = vmatprep.mubr.f32.mxu0 0.0
    %3216 = vmatmul.mubr.f32.gmra.mrb[0].mxu0 %v3114
    %v3217 = vpop.f32.mrb[0].mxu0
    %v3218 = vadd.f32 %v797, %v3217
    %v3219 = vpop.f32.mrb[0].mxu0
    %3220 = vmatprep.mubr.f32.mxu0 0.0
    %3221 = vmatmul.mubr.f32.gmra.mrb[0].mxu0 %v3117
    %v3222 = vpop.f32.mrb[0].mxu0
    %v3223 = vadd.f32 %v798, %v3222
    %v3224 = vpop.f32.mrb[0].mxu0
    %3225 = vmatprep.mubr.f32.mxu0 0.0
    %3226 = vmatmul.mubr.f32.gmra.mrb[0].mxu0 %v3120
    %v3227 = vpop.f32.mrb[0].mxu0
    %v3228 = vadd.f32 %v799, %v3227
    %v3229 = vpop.f32.mrb[0].mxu0
    %3230 = vdwg.mxu0
    %v3231 = vsel %vm805, %v3193, -inf
    %3232 = vmax.xlane.f32.xlu0 %v3231
    %v3233 = vpop.xlane.xlu0 %3232
    %v3234 = vsel %vm805, %v3198, -inf
    %3235 = vmax.xlane.f32.xlu0 %v3234
    %v3236 = vpop.xlane.xlu0 %3235
    %v3237 = vsel %vm805, %v3203, -inf
    %3238 = vmax.xlane.f32.xlu0 %v3237
    %v3239 = vpop.xlane.xlu0 %3238
    %v3240 = vsel %vm805, %v3208, -inf
    %3241 = vmax.xlane.f32.xlu0 %v3240
    %v3242 = vpop.xlane.xlu0 %3241
    %v3243 = vsel %vm805, %v3213, -inf
    %3244 = vmax.xlane.f32.xlu0 %v3243
    %v3245 = vpop.xlane.xlu0 %3244
    %v3246 = vsel %vm805, %v3218, -inf
    %3247 = vmax.xlane.f32.xlu0 %v3246
    %v3248 = vpop.xlane.xlu0 %3247
    %v3249 = vsel %vm805, %v3223, -inf
    %3250 = vmax.xlane.f32.xlu0 %v3249
    %v3251 = vpop.xlane.xlu0 %3250
    %v3252 = vsel %vm805, %v3228, -inf
    %3253 = vmax.xlane.f32.xlu0 %v3252
    %v3254 = vpop.xlane.xlu0 %3253
    %v3255 = vsub.f32 %v3193, %v3233
    %v3256 = vsub.f32 %v3198, %v3236
    %v3257 = vsub.f32 %v3203, %v3239
    %v3258 = vsub.f32 %v3208, %v3242
    %v3259 = vsub.f32 %v3213, %v3245
    %v3260 = vsub.f32 %v3218, %v3248
    %v3261 = vsub.f32 %v3223, %v3251
    %v3262 = vsub.f32 %v3228, %v3254
    %v3263 = vmul.f32 %v3255, 1.442695
    %v3264 = vpow.pop %v3263
    %v3265 = vmul.f32 %v3256, 1.442695
    %v3266 = vpow.pop %v3265
    %v3267 = vmul.f32 %v3257, 1.442695
    %v3268 = vpow.pop %v3267
    %v3269 = vmul.f32 %v3258, 1.442695
    %v3270 = vpow.pop %v3269
    %v3271 = vmul.f32 %v3259, 1.442695
    %v3272 = vpow.pop %v3271
    %v3273 = vmul.f32 %v3260, 1.442695
    %v3274 = vpow.pop %v3273
    %v3275 = vmul.f32 %v3261, 1.442695
    %v3276 = vpow.pop %v3275
    %v3277 = vmul.f32 %v3262, 1.442695
    %v3278 = vpow.pop %v3277
    %v3279 = vsel %vm805, %v3264, 0.0
    %3280 = vadd.xlane.f32.xlu0 %v3279
    %v3281 = vpop.xlane.xlu0 %3280
    %v3282 = vsel %vm805, %v3266, 0.0
    %3283 = vadd.xlane.f32.xlu0 %v3282
    %v3284 = vpop.xlane.xlu0 %3283
    %v3285 = vsel %vm805, %v3268, 0.0
    %3286 = vadd.xlane.f32.xlu0 %v3285
    %v3287 = vpop.xlane.xlu0 %3286
    %v3288 = vsel %vm805, %v3270, 0.0
    %3289 = vadd.xlane.f32.xlu0 %v3288
    %v3290 = vpop.xlane.xlu0 %3289
    %v3291 = vsel %vm805, %v3272, 0.0
    %3292 = vadd.xlane.f32.xlu0 %v3291
    %v3293 = vpop.xlane.xlu0 %3292
    %v3294 = vsel %vm805, %v3274, 0.0
    %3295 = vadd.xlane.f32.xlu0 %v3294
    %v3296 = vpop.xlane.xlu0 %3295
    %v3297 = vsel %vm805, %v3276, 0.0
    %3298 = vadd.xlane.f32.xlu0 %v3297
    %v3299 = vpop.xlane.xlu0 %3298
    %v3300 = vsel %vm805, %v3278, 0.0
    %3301 = vadd.xlane.f32.xlu0 %v3300
    %v3302 = vpop.xlane.xlu0 %3301
    %v3303 = vrcp.pop %v3281
    %v3304 = vrcp.pop %v3284
    %v3305 = vrcp.pop %v3287
    %v3306 = vrcp.pop %v3290
    %v3307 = vrcp.pop %v3293
    %v3308 = vrcp.pop %v3296
    %v3309 = vrcp.pop %v3299
    %v3310 = vrcp.pop %v3302
    %v3311 = vmul.f32 %v3264, %v3303
    %v3312 = vmul.f32 %v3266, %v3304
    %v3313 = vmul.f32 %v3268, %v3305
    %v3314 = vmul.f32 %v3270, %v3306
    %v3315 = vmul.f32 %v3272, %v3307
    %v3316 = vmul.f32 %v3274, %v3308
    %v3317 = vmul.f32 %v3276, %v3309
    %v3318 = vmul.f32 %v3278, %v3310
    %v3320 = vsel %vm805, %v3311, 0
    %v3323 = vsel %vm805, %v3312, 0
    %v3326 = vsel %vm805, %v3313, 0
    %v3329 = vsel %vm805, %v3314, 0
    %v3332 = vsel %vm805, %v3315, 0
    %v3335 = vsel %vm805, %v3316, 0
    %v3338 = vsel %vm805, %v3317, 0
    %v3341 = vsel %vm805, %v3318, 0
    %3343 = vmatprep.subr.mxu0 0.0
    %3344 = vmatpush1.msra.mxu0 %v3076
    %3345 = vmatprep.subr.mxu0 0.0
    %3346 = vmatpush1.msra.mxu0 %v3082
    %3347 = vmatprep.subr.mxu0 0.0
    %3348 = vmatpush1.msra.mxu0 0.0
    %3349 = vmatprep.subr.mxu0 0.0
    %3350 = vmatpush1.msra.mxu0 0.0
    %3351 = vmatprep.subr.mxu0 0.0
    %3352 = vmatpush1.msra.mxu0 0.0
    %3353 = vmatprep.subr.mxu0 0.0
    %3354 = vmatpush1.msra.mxu0 0.0
    %3355 = vmatprep.subr.mxu0 0.0
    %3356 = vmatpush1.msra.mxu0 0.0
    %3357 = vmatprep.subr.mxu0 0.0
    %3358 = vmatpush1.msra.mxu0 0.0
    %3359 = vmatprep.subr.mxu0 0.0
    %3360 = vmatpush1.msra.mxu0 0.0
    %3361 = vmatprep.subr.mxu0 0.0
    %3362 = vmatpush1.msra.mxu0 0.0
    %3363 = vmatprep.subr.mxu0 0.0
    %3364 = vmatpush1.msra.mxu0 0.0
    %3365 = vmatprep.subr.mxu0 0.0
    %3366 = vmatpush1.msra.mxu0 0.0
    %3367 = vmatprep.subr.mxu0 0.0
    %3368 = vmatpush1.msra.mxu0 0.0
    %3369 = vmatprep.subr.mxu0 0.0
    %3370 = vmatpush1.msra.mxu0 0.0
    %3371 = vmatprep.subr.mxu0 0.0
    %3372 = vmatpush1.msra.mxu0 0.0
    %3373 = vmatprep.subr.mxu0 0.0
    %3374 = vmatpush1.msra.mxu0 0.0
    %3375 = vmatprep.subr.mxu0 0.0
    %3376 = vmatpush1.msra.mxu0 0.0
    %3377 = vmatprep.subr.mxu0 0.0
    %3378 = vmatpush1.msra.mxu0 0.0
    %3379 = vmatprep.subr.mxu0 0.0
    %3380 = vmatpush1.msra.mxu0 0.0
    %3381 = vmatprep.subr.mxu0 0.0
    %3382 = vmatpush1.msra.mxu0 0.0
    %3383 = vmatprep.subr.mxu0 0.0
    %3384 = vmatpush1.msra.mxu0 0.0
    %3385 = vmatprep.subr.mxu0 0.0
    %3386 = vmatpush1.msra.mxu0 0.0
    %3387 = vmatprep.subr.mxu0 0.0
    %3388 = vmatpush1.msra.mxu0 0.0
    %3389 = vmatprep.subr.mxu0 0.0
    %3390 = vmatpush1.msra.mxu0 0.0
    %3391 = vmatprep.subr.mxu0 0.0
    %3392 = vmatpush1.msra.mxu0 0.0
    %3393 = vmatprep.subr.mxu0 0.0
    %3394 = vmatpush1.msra.mxu0 0.0
    %3395 = vmatprep.subr.mxu0 0.0
    %3396 = vmatpush1.msra.mxu0 0.0
    %3397 = vmatprep.subr.mxu0 0.0
    %3398 = vmatpush1.msra.mxu0 0.0
    %3399 = vmatprep.subr.mxu0 0.0
    %3400 = vmatpush1.msra.mxu0 0.0
    %3401 = vmatprep.subr.mxu0 0.0
    %3402 = vmatpush1.msra.mxu0 0.0
    %3403 = vmatprep.subr.mxu0 0.0
    %3404 = vmatpush1.msra.mxu0 0.0
    %3405 = vmatprep.subr.mxu0 0.0
    %3406 = vmatpush1.msra.mxu0 0.0
    %3407 = vmatprep.mubr.f32.mxu0 0.0
    %3408 = vmatmul.mubr.f32.gmra.mrb[0].mxu0 %v3320
    %v3409 = vpop.f32.mrb[0].mxu0
    %v3410 = vadd.f32 0.0, %v3409
    %v3411 = vpop.f32.mrb[0].mxu0
    %3412 = vmatprep.mubr.f32.mxu0 0.0
    %3413 = vmatmul.mubr.f32.gmra.mrb[0].mxu0 %v3323
    %v3414 = vpop.f32.mrb[0].mxu0
    %v3415 = vadd.f32 0.0, %v3414
    %v3416 = vpop.f32.mrb[0].mxu0
    %3417 = vmatprep.mubr.f32.mxu0 0.0
    %3418 = vmatmul.mubr.f32.gmra.mrb[0].mxu0 %v3326
    %v3419 = vpop.f32.mrb[0].mxu0
    %v3420 = vadd.f32 0.0, %v3419
    %v3421 = vpop.f32.mrb[0].mxu0
    %3422 = vmatprep.mubr.f32.mxu0 0.0
    %3423 = vmatmul.mubr.f32.gmra.mrb[0].mxu0 %v3329
    %v3424 = vpop.f32.mrb[0].mxu0
    %v3425 = vadd.f32 0.0, %v3424
    %v3426 = vpop.f32.mrb[0].mxu0
    %3427 = vmatprep.mubr.f32.mxu0 0.0
    %3428 = vmatmul.mubr.f32.gmra.mrb[0].mxu0 %v3332
    %v3429 = vpop.f32.mrb[0].mxu0
    %v3430 = vadd.f32 0.0, %v3429
    %v3431 = vpop.f32.mrb[0].mxu0
    %3432 = vmatprep.mubr.f32.mxu0 0.0
    %3433 = vmatmul.mubr.f32.gmra.mrb[0].mxu0 %v3335
    %v3434 = vpop.f32.mrb[0].mxu0
    %v3435 = vadd.f32 0.0, %v3434
    %v3436 = vpop.f32.mrb[0].mxu0
    %3437 = vmatprep.mubr.f32.mxu0 0.0
    %3438 = vmatmul.mubr.f32.gmra.mrb[0].mxu0 %v3338
    %v3439 = vpop.f32.mrb[0].mxu0
    %v3440 = vadd.f32 0.0, %v3439
    %v3441 = vpop.f32.mrb[0].mxu0
    %3442 = vmatprep.mubr.f32.mxu0 0.0
    %3443 = vmatmul.mubr.f32.gmra.mrb[0].mxu0 %v3341
    %v3444 = vpop.f32.mrb[0].mxu0
    %v3445 = vadd.f32 0.0, %v3444
    %v3446 = vpop.f32.mrb[0].mxu0
    %3447 = vdwg.mxu0
    %v3448 = vmul.f32 %v3410, %v729
    %v3449 = vmul.f32 %v3415, %v730
    %v3450 = vmul.f32 %v3420, %v731
    %v3451 = vmul.f32 %v3425, %v732
    %v3452 = vmul.f32 %v3430, %v733
    %v3453 = vmul.f32 %v3435, %v734
    %v3454 = vmul.f32 %v3440, %v735
    %v3455 = vmul.f32 %v3445, %v736
    %v3456 = vadd.f32 %v3448, %v3450
    %v3457 = vadd.f32 %v3449, %v3451
    %v3458 = vadd.f32 %v3456, %v3452
    %v3459 = vadd.f32 %v3457, %v3453
    %v3460 = vadd.f32 %v3458, %v3454
    %v3461 = vadd.f32 %v3459, %v3455
    %s3462 = scalar_lea.vmem %s15, 64
    %v3463 = vld [vmem:[%s3462] sm:$0xff]
    %v3464 = vld [vmem:[%s3462 + $0x8] sm:$0xff]
    %v3465 = vld [vmem:[%s3462 + $0x10] sm:$0xff]
    %v3466 = vld [vmem:[%s3462 + $0x18] sm:$0xff]
    %v3467 = vld [vmem:[%s3462 + $0x20] sm:$0xff]
    %v3468 = vld [vmem:[%s3462 + $0x28] sm:$0xff]
    %v3469 = vld [vmem:[%s3462 + $0x30] sm:$0xff]
    %v3470 = vld [vmem:[%s3462 + $0x38] sm:$0xff]
    %v3472 = vsel %vm97, %v3460, 0
    %v3475 = vsel %vm97, %v3461, 0
    %3477 = vmatprep.subr.mxu0 0.0
    %3478 = vmatpush1.msra.mxu0 %v3463
    %3479 = vmatprep.subr.mxu0 0.0
    %3480 = vmatpush1.msra.mxu0 %v3464
    %3481 = vmatprep.subr.mxu0 0.0
    %3482 = vmatpush1.msra.mxu0 %v3465
    %3483 = vmatprep.subr.mxu0 0.0
    %3484 = vmatpush1.msra.mxu0 %v3466
    %3485 = vmatprep.subr.mxu0 0.0
    %3486 = vmatpush1.msra.mxu0 %v3467
    %3487 = vmatprep.subr.mxu0 0.0
    %3488 = vmatpush1.msra.mxu0 %v3468
    %3489 = vmatprep.subr.mxu0 0.0
    %3490 = vmatpush1.msra.mxu0 %v3469
    %3491 = vmatprep.subr.mxu0 0.0
    %3492 = vmatpush1.msra.mxu0 %v3470
    %3493 = vmatprep.subr.mxu0 0.0
    %3494 = vmatpush1.msra.mxu0 0.0
    %3495 = vmatprep.subr.mxu0 0.0
    %3496 = vmatpush1.msra.mxu0 0.0
    %3497 = vmatprep.subr.mxu0 0.0
    %3498 = vmatpush1.msra.mxu0 0.0
    %3499 = vmatprep.subr.mxu0 0.0
    %3500 = vmatpush1.msra.mxu0 0.0
    %3501 = vmatprep.subr.mxu0 0.0
    %3502 = vmatpush1.msra.mxu0 0.0
    %3503 = vmatprep.subr.mxu0 0.0
    %3504 = vmatpush1.msra.mxu0 0.0
    %3505 = vmatprep.subr.mxu0 0.0
    %3506 = vmatpush1.msra.mxu0 0.0
    %3507 = vmatprep.subr.mxu0 0.0
    %3508 = vmatpush1.msra.mxu0 0.0
    %3509 = vmatprep.subr.mxu0 0.0
    %3510 = vmatpush1.msra.mxu0 0.0
    %3511 = vmatprep.subr.mxu0 0.0
    %3512 = vmatpush1.msra.mxu0 0.0
    %3513 = vmatprep.subr.mxu0 0.0
    %3514 = vmatpush1.msra.mxu0 0.0
    %3515 = vmatprep.subr.mxu0 0.0
    %3516 = vmatpush1.msra.mxu0 0.0
    %3517 = vmatprep.subr.mxu0 0.0
    %3518 = vmatpush1.msra.mxu0 0.0
    %3519 = vmatprep.subr.mxu0 0.0
    %3520 = vmatpush1.msra.mxu0 0.0
    %3521 = vmatprep.subr.mxu0 0.0
    %3522 = vmatpush1.msra.mxu0 0.0
    %3523 = vmatprep.subr.mxu0 0.0
    %3524 = vmatpush1.msra.mxu0 0.0
    %3525 = vmatprep.subr.mxu0 0.0
    %3526 = vmatpush1.msra.mxu0 0.0
    %3527 = vmatprep.subr.mxu0 0.0
    %3528 = vmatpush1.msra.mxu0 0.0
    %3529 = vmatprep.subr.mxu0 0.0
    %3530 = vmatpush1.msra.mxu0 0.0
    %3531 = vmatprep.subr.mxu0 0.0
    %3532 = vmatpush1.msra.mxu0 0.0
    %3533 = vmatprep.subr.mxu0 0.0
    %3534 = vmatpush1.msra.mxu0 0.0
    %3535 = vmatprep.subr.mxu0 0.0
    %3536 = vmatpush1.msra.mxu0 0.0
    %3537 = vmatprep.subr.mxu0 0.0
    %3538 = vmatpush1.msra.mxu0 0.0
    %3539 = vmatprep.subr.mxu0 0.0
    %3540 = vmatpush1.msra.mxu0 0.0
    %3541 = vmatprep.mubr.f32.mxu0 0.0
    %3542 = vmatmul.mubr.f32.gmra.mrb[0].mxu0 %v3472
    %v3543 = vpop.f32.mrb[0].mxu0
    %v3544 = vadd.f32 0.0, %v3543
    %v3545 = vpop.f32.mrb[0].mxu0
    %3546 = vmatprep.mubr.f32.mxu0 0.0
    %3547 = vmatmul.mubr.f32.gmra.mrb[0].mxu0 %v3475
    %v3548 = vpop.f32.mrb[0].mxu0
    %v3549 = vadd.f32 0.0, %v3548
    %v3550 = vpop.f32.mrb[0].mxu0
    %3551 = vdwg.mxu0
    %v3552 = vadd.f32 %v2944, %v3544
    %v3553 = vadd.f32 %v2945, %v3549
    %v3554 = vsel %vm97, %v3552, 0.0
    %3555 = vadd.xlane.f32.xlu0 %v3554
    %v3556 = vpop.xlane.xlu0 %3555
    %v3557 = vsel %vm97, %v3553, 0.0
    %3558 = vadd.xlane.f32.xlu0 %v3557
    %v3559 = vpop.xlane.xlu0 %3558
    %v3560 = vmul.f32 %v3556, %v238
    %v3561 = vmul.f32 %v3559, %v238
    %v3562 = vsub.f32 %v3552, %v3560
    %v3563 = vsub.f32 %v3553, %v3561
    %v3564 = vmul.f32 %v3562, %v3562
    %v3565 = vmul.f32 %v3563, %v3563
    %v3566 = vsel %vm97, %v3564, 0.0
    %3567 = vadd.xlane.f32.xlu0 %v3566
    %v3568 = vpop.xlane.xlu0 %3567
    %v3569 = vsel %vm97, %v3565, 0.0
    %3570 = vadd.xlane.f32.xlu0 %v3569
    %v3571 = vpop.xlane.xlu0 %3570
    %v3572 = vmul.f32 %v3568, %v238
    %v3573 = vmul.f32 %v3571, %v238
    %v3574 = vadd.f32 %v3572, 1e-05
    %v3575 = vadd.f32 %v3573, 1e-05
    %v3576 = vrsqrt.pop %v3574
    %v3577 = vrsqrt.pop %v3575
    %v3578 = vmul.f32 %v3562, %v3576
    %v3579 = vmul.f32 %v3563, %v3577
    %v3580 = vlaneseq
    %v3581 = vshrl.u32 %v3580, 7
    %v3582 = vsub.s32 3, %v3581
    %v3583 = vrot.slane %v2383, %v3582
    %v3584 = vmul.f32 %v3578, %v3583
    %v3585 = vmul.f32 %v3579, %v3583
    %v3586 = vlaneseq
    %v3587 = vshrl.u32 %v3586, 7
    %v3588 = vsub.s32 4, %v3587
    %v3589 = vrot.slane %v2383, %v3588
    %v3590 = vadd.f32 %v3584, %v3589
    %v3591 = vadd.f32 %v3585, %v3589
    %s3592 = scalar_lea.vmem %s16, 64
    %v3593 = vld [vmem:[%s3592] sm:$0xff]
    %v3594 = vld [vmem:[%s3592 + $0x8] sm:$0xff]
    %v3595 = vld [vmem:[%s3592 + $0x10] sm:$0xff]
    %v3596 = vld [vmem:[%s3592 + $0x18] sm:$0xff]
    %v3597 = vld [vmem:[%s3592 + $0x20] sm:$0xff]
    %v3598 = vld [vmem:[%s3592 + $0x28] sm:$0xff]
    %v3599 = vld [vmem:[%s3592 + $0x30] sm:$0xff]
    %v3600 = vld [vmem:[%s3592 + $0x38] sm:$0xff]
    %s3601 = scalar_lea.vmem %s13, 1
    %v3602 = vld [vmem:[%s3601] sm:$0x1]
    %v3604 = vlaneseq
    %v3605 = vshrl.u32 %v3604, 7
    %v3606 = vsub.s32 0, %v3605
    %v3607 = vrot.slane %v3602, %v3606
    %v3610 = vsel %vm97, %v3590, 0
    %v3613 = vsel %vm97, %v3591, 0
    %3615 = vmatprep.subr.mxu0 0.0
    %3616 = vmatpush1.msra.mxu0 %v3593
    %3617 = vmatprep.subr.mxu0 0.0
    %3618 = vmatpush1.msra.mxu0 %v3594
    %3619 = vmatprep.subr.mxu0 0.0
    %3620 = vmatpush1.msra.mxu0 %v3595
    %3621 = vmatprep.subr.mxu0 0.0
    %3622 = vmatpush1.msra.mxu0 %v3596
    %3623 = vmatprep.subr.mxu0 0.0
    %3624 = vmatpush1.msra.mxu0 %v3597
    %3625 = vmatprep.subr.mxu0 0.0
    %3626 = vmatpush1.msra.mxu0 %v3598
    %3627 = vmatprep.subr.mxu0 0.0
    %3628 = vmatpush1.msra.mxu0 %v3599
    %3629 = vmatprep.subr.mxu0 0.0
    %3630 = vmatpush1.msra.mxu0 %v3600
    %3631 = vmatprep.subr.mxu0 0.0
    %3632 = vmatpush1.msra.mxu0 0.0
    %3633 = vmatprep.subr.mxu0 0.0
    %3634 = vmatpush1.msra.mxu0 0.0
    %3635 = vmatprep.subr.mxu0 0.0
    %3636 = vmatpush1.msra.mxu0 0.0
    %3637 = vmatprep.subr.mxu0 0.0
    %3638 = vmatpush1.msra.mxu0 0.0
    %3639 = vmatprep.subr.mxu0 0.0
    %3640 = vmatpush1.msra.mxu0 0.0
    %3641 = vmatprep.subr.mxu0 0.0
    %3642 = vmatpush1.msra.mxu0 0.0
    %3643 = vmatprep.subr.mxu0 0.0
    %3644 = vmatpush1.msra.mxu0 0.0
    %3645 = vmatprep.subr.mxu0 0.0
    %3646 = vmatpush1.msra.mxu0 0.0
    %3647 = vmatprep.subr.mxu0 0.0
    %3648 = vmatpush1.msra.mxu0 0.0
    %3649 = vmatprep.subr.mxu0 0.0
    %3650 = vmatpush1.msra.mxu0 0.0
    %3651 = vmatprep.subr.mxu0 0.0
    %3652 = vmatpush1.msra.mxu0 0.0
    %3653 = vmatprep.subr.mxu0 0.0
    %3654 = vmatpush1.msra.mxu0 0.0
    %3655 = vmatprep.subr.mxu0 0.0
    %3656 = vmatpush1.msra.mxu0 0.0
    %3657 = vmatprep.subr.mxu0 0.0
    %3658 = vmatpush1.msra.mxu0 0.0
    %3659 = vmatprep.subr.mxu0 0.0
    %3660 = vmatpush1.msra.mxu0 0.0
    %3661 = vmatprep.subr.mxu0 0.0
    %3662 = vmatpush1.msra.mxu0 0.0
    %3663 = vmatprep.subr.mxu0 0.0
    %3664 = vmatpush1.msra.mxu0 0.0
    %3665 = vmatprep.subr.mxu0 0.0
    %3666 = vmatpush1.msra.mxu0 0.0
    %3667 = vmatprep.subr.mxu0 0.0
    %3668 = vmatpush1.msra.mxu0 0.0
    %3669 = vmatprep.subr.mxu0 0.0
    %3670 = vmatpush1.msra.mxu0 0.0
    %3671 = vmatprep.subr.mxu0 0.0
    %3672 = vmatpush1.msra.mxu0 0.0
    %3673 = vmatprep.subr.mxu0 0.0
    %3674 = vmatpush1.msra.mxu0 0.0
    %3675 = vmatprep.subr.mxu0 0.0
    %3676 = vmatpush1.msra.mxu0 0.0
    %3677 = vmatprep.subr.mxu0 0.0
    %3678 = vmatpush1.msra.mxu0 0.0
    %3679 = vmatprep.mubr.f32.mxu0 0.0
    %3680 = vmatmul.mubr.f32.gmra.mrb[0].mxu0 %v3610
    %v3681 = vpop.f32.mrb[0].mxu0
    %v3682 = vadd.f32 %v3607, %v3681
    %v3683 = vpop.f32.mrb[0].mxu0
    %3684 = vmatprep.mubr.f32.mxu0 0.0
    %3685 = vmatmul.mubr.f32.gmra.mrb[0].mxu0 %v3613
    %v3686 = vpop.f32.mrb[0].mxu0
    %v3687 = vadd.f32 %v3607, %v3686
    %v3688 = vpop.f32.mrb[0].mxu0
    %3689 = vdwg.mxu0
    %v3690 = vmul.f32 %v3682, %v3682
    %v3691 = vmul.f32 %v3687, %v3687
    %v3692 = vmul.f32 %v3682, %v3690
    %v3693 = vmul.f32 %v3687, %v3691
    %v3694 = vmul.f32 %v3692, 0.044715
    %v3695 = vmul.f32 %v3693, 0.044715
    %v3696 = vadd.f32 %v3682, %v3694
    %v3697 = vadd.f32 %v3687, %v3695
    %v3698 = vmul.f32 %v3696, 0.7978846
    %v3699 = vmul.f32 %v3697, 0.7978846
    %v3700 = vtanh.pop %v3698
    %v3701 = vtanh.pop %v3699
    %v3702 = vadd.f32 %v3700, 1.0
    %v3703 = vadd.f32 %v3701, 1.0
    %v3704 = vmul.f32 %v3702, 0.5
    %v3705 = vmul.f32 %v3703, 0.5
    %v3706 = vmul.f32 %v3682, %v3704
    %v3707 = vmul.f32 %v3687, %v3705
    %s3708 = scalar_lea.vmem %s17, 128
    %v3709 = vld [vmem:[%s3708] sm:$0xff]
    %v3710 = vld [vmem:[%s3708 + $0x8] sm:$0xff]
    %v3711 = vld [vmem:[%s3708 + $0x10] sm:$0xff]
    %v3712 = vld [vmem:[%s3708 + $0x18] sm:$0xff]
    %v3713 = vld [vmem:[%s3708 + $0x20] sm:$0xff]
    %v3714 = vld [vmem:[%s3708 + $0x28] sm:$0xff]
    %v3715 = vld [vmem:[%s3708 + $0x30] sm:$0xff]
    %v3716 = vld [vmem:[%s3708 + $0x38] sm:$0xff]
    %v3717 = vld [vmem:[%s3708 + $0x40] sm:$0xff]
    %v3718 = vld [vmem:[%s3708 + $0x48] sm:$0xff]
    %v3719 = vld [vmem:[%s3708 + $0x50] sm:$0xff]
    %v3720 = vld [vmem:[%s3708 + $0x58] sm:$0xff]
    %v3721 = vld [vmem:[%s3708 + $0x60] sm:$0xff]
    %v3722 = vld [vmem:[%s3708 + $0x68] sm:$0xff]
    %v3723 = vld [vmem:[%s3708 + $0x70] sm:$0xff]
    %v3724 = vld [vmem:[%s3708 + $0x78] sm:$0xff]
    %3725 = vmatprep.subr.mxu0 0.0
    %3726 = vmatpush1.msra.mxu0 %v3709
    %3727 = vmatprep.subr.mxu0 0.0
    %3728 = vmatpush1.msra.mxu0 %v3710
    %3729 = vmatprep.subr.mxu0 0.0
    %3730 = vmatpush1.msra.mxu0 %v3711
    %3731 = vmatprep.subr.mxu0 0.0
    %3732 = vmatpush1.msra.mxu0 %v3712
    %3733 = vmatprep.subr.mxu0 0.0
    %3734 = vmatpush1.msra.mxu0 %v3713
    %3735 = vmatprep.subr.mxu0 0.0
    %3736 = vmatpush1.msra.mxu0 %v3714
    %3737 = vmatprep.subr.mxu0 0.0
    %3738 = vmatpush1.msra.mxu0 %v3715
    %3739 = vmatprep.subr.mxu0 0.0
    %3740 = vmatpush1.msra.mxu0 %v3716
    %3741 = vmatprep.subr.mxu0 0.0
    %3742 = vmatpush1.msra.mxu0 %v3717
    %3743 = vmatprep.subr.mxu0 0.0
    %3744 = vmatpush1.msra.mxu0 %v3718
    %3745 = vmatprep.subr.mxu0 0.0
    %3746 = vmatpush1.msra.mxu0 %v3719
    %3747 = vmatprep.subr.mxu0 0.0
    %3748 = vmatpush1.msra.mxu0 %v3720
    %3749 = vmatprep.subr.mxu0 0.0
    %3750 = vmatpush1.msra.mxu0 %v3721
    %3751 = vmatprep.subr.mxu0 0.0
    %3752 = vmatpush1.msra.mxu0 %v3722
    %3753 = vmatprep.subr.mxu0 0.0
    %3754 = vmatpush1.msra.mxu0 %v3723
    %3755 = vmatprep.subr.mxu0 0.0
    %3756 = vmatpush1.msra.mxu0 %v3724
    %3757 = vmatprep.subr.mxu0 0.0
    %3758 = vmatpush1.msra.mxu0 0.0
    %3759 = vmatprep.subr.mxu0 0.0
    %3760 = vmatpush1.msra.mxu0 0.0
    %3761 = vmatprep.subr.mxu0 0.0
    %3762 = vmatpush1.msra.mxu0 0.0
    %3763 = vmatprep.subr.mxu0 0.0
    %3764 = vmatpush1.msra.mxu0 0.0
    %3765 = vmatprep.subr.mxu0 0.0
    %3766 = vmatpush1.msra.mxu0 0.0
    %3767 = vmatprep.subr.mxu0 0.0
    %3768 = vmatpush1.msra.mxu0 0.0
    %3769 = vmatprep.subr.mxu0 0.0
    %3770 = vmatpush1.msra.mxu0 0.0
    %3771 = vmatprep.subr.mxu0 0.0
    %3772 = vmatpush1.msra.mxu0 0.0
    %3773 = vmatprep.subr.mxu0 0.0
    %3774 = vmatpush1.msra.mxu0 0.0
    %3775 = vmatprep.subr.mxu0 0.0
    %3776 = vmatpush1.msra.mxu0 0.0
    %3777 = vmatprep.subr.mxu0 0.0
    %3778 = vmatpush1.msra.mxu0 0.0
    %3779 = vmatprep.subr.mxu0 0.0
    %3780 = vmatpush1.msra.mxu0 0.0
    %3781 = vmatprep.subr.mxu0 0.0
    %3782 = vmatpush1.msra.mxu0 0.0
    %3783 = vmatprep.subr.mxu0 0.0
    %3784 = vmatpush1.msra.mxu0 0.0
    %3785 = vmatprep.subr.mxu0 0.0
    %3786 = vmatpush1.msra.mxu0 0.0
    %3787 = vmatprep.subr.mxu0 0.0
    %3788 = vmatpush1.msra.mxu0 0.0
    %3789 = vmatprep.mubr.f32.mxu0 0.0
    %3790 = vmatmul.mubr.f32.gmra.mrb[0].mxu0 %v3706
    %v3791 = vpop.f32.mrb[0].mxu0
    %v3792 = vadd.f32 0.0, %v3791
    %v3793 = vpop.f32.mrb[0].mxu0
    %3794 = vmatprep.mubr.f32.mxu0 0.0
    %3795 = vmatmul.mubr.f32.gmra.mrb[0].mxu0 %v3707
    %v3796 = vpop.f32.mrb[0].mxu0
    %v3797 = vadd.f32 0.0, %v3796
    %v3798 = vpop.f32.mrb[0].mxu0
    %3799 = vdwg.mxu0
    %v3800 = vadd.f32 %v3552, %v3792
    %v3801 = vadd.f32 %v3553, %v3797
    %v3802 = vlaneseq
    %v3803 = vshrl.u32 %v3802, 7
    %v3804 = vsub.s32 5, %v3803
    %v3805 = vrot.slane %v2383, %v3804
    %v3806 = vadd.f32 %v3800, %v3805
    %v3807 = vadd.f32 %v3801, %v3805
    %v3808 = vsel %vm97, %v3806, 0.0
    %3809 = vadd.xlane.f32.xlu0 %v3808
    %v3810 = vpop.xlane.xlu0 %3809
    %v3811 = vsel %vm97, %v3807, 0.0
    %3812 = vadd.xlane.f32.xlu0 %v3811
    %v3813 = vpop.xlane.xlu0 %3812
    %v3814 = vmul.f32 %v3810, %v238
    %v3815 = vmul.f32 %v3813, %v238
    %v3816 = vsub.f32 %v3806, %v3814
    %v3817 = vsub.f32 %v3807, %v3815
    %v3818 = vmul.f32 %v3816, %v3816
    %v3819 = vmul.f32 %v3817, %v3817
    %v3820 = vsel %vm97, %v3818, 0.0
    %3821 = vadd.xlane.f32.xlu0 %v3820
    %v3822 = vpop.xlane.xlu0 %3821
    %v3823 = vsel %vm97, %v3819, 0.0
    %3824 = vadd.xlane.f32.xlu0 %v3823
    %v3825 = vpop.xlane.xlu0 %3824
    %v3826 = vmul.f32 %v3822, %v238
    %v3827 = vmul.f32 %v3825, %v238
    %v3828 = vadd.f32 %v3826, 1e-05
    %v3829 = vadd.f32 %v3827, 1e-05
    %v3830 = vrsqrt.pop %v3828
    %v3831 = vrsqrt.pop %v3829
    %v3832 = vmul.f32 %v3816, %v3830
    %v3833 = vmul.f32 %v3817, %v3831
    %v3834 = vlaneseq
    %v3835 = vshrl.u32 %v3834, 7
    %v3836 = vsub.s32 0, %v3835
    %v3837 = vrot.slane %v791, %v3836
    %v3838 = vmul.f32 %v3832, %v3837
    %v3839 = vmul.f32 %v3833, %v3837
    %v3840 = vlaneseq
    %v3841 = vshrl.u32 %v3840, 7
    %v3842 = vsub.s32 1, %v3841
    %v3843 = vrot.slane %v791, %v3842
    %v3844 = vadd.f32 %v3838, %v3843
    %v3845 = vadd.f32 %v3839, %v3843
    %s3846 = scalar_lea.vmem %s18, 64
    %v3847 = vld [vmem:[%s3846] sm:$0xff]
    %v3848 = vld [vmem:[%s3846 + $0x8] sm:$0xff]
    %v3849 = vld [vmem:[%s3846 + $0x10] sm:$0xff]
    %v3850 = vld [vmem:[%s3846 + $0x18] sm:$0xff]
    %v3851 = vld [vmem:[%s3846 + $0x20] sm:$0xff]
    %v3852 = vld [vmem:[%s3846 + $0x28] sm:$0xff]
    %v3853 = vld [vmem:[%s3846 + $0x30] sm:$0xff]
    %v3854 = vld [vmem:[%s3846 + $0x38] sm:$0xff]
    %s3855 = scalar_lea.vmem %s12, 16
    %v3856 = vld [vmem:[%s3855] sm:$0x3f]
    %s3857 = scalar_lea.vmem %s11, 64
    %v3858 = vld [vmem:[%s3857] sm:$0xff]
    %v3859 = vld [vmem:[%s3857 + $0x8] sm:$0xff]
    %v3860 = vld [vmem:[%s3857 + $0x10] sm:$0xff]
    %v3861 = vld [vmem:[%s3857 + $0x18] sm:$0x7]
    %3862 = vmatprep.subr.mxu0 0.0
    %3863 = vmatpush1.msra.mxu0 %v3844
    %3864 = vmatprep.subr.mxu0 0.0
    %3865 = vmatpush1.msra.mxu0 %v3845
    %3866 = vmatprep.subr.mxu0 0.0
    %3867 = vmatpush1.msra.mxu0 0.0
    %3868 = vmatprep.subr.mxu0 0.0
    %3869 = vmatpush1.msra.mxu0 0.0
    %3870 = vmatprep.subr.mxu0 0.0
    %3871 = vmatpush1.msra.mxu0 0.0
    %3872 = vmatprep.subr.mxu0 0.0
    %3873 = vmatpush1.msra.mxu0 0.0
    %3874 = vmatprep.subr.mxu0 0.0
    %3875 = vmatpush1.msra.mxu0 0.0
    %3876 = vmatprep.subr.mxu0 0.0
    %3877 = vmatpush1.msra.mxu0 0.0
    %3878 = vmatprep.subr.mxu0 0.0
    %3879 = vmatpush1.msra.mxu0 0.0
    %3880 = vmatprep.subr.mxu0 0.0
    %3881 = vmatpush1.msra.mxu0 0.0
    %3882 = vmatprep.subr.mxu0 0.0
    %3883 = vmatpush1.msra.mxu0 0.0
    %3884 = vmatprep.subr.mxu0 0.0
    %3885 = vmatpush1.msra.mxu0 0.0
    %3886 = vmatprep.subr.mxu0 0.0
    %3887 = vmatpush1.msra.mxu0 0.0
    %3888 = vmatprep.subr.mxu0 0.0
    %3889 = vmatpush1.msra.mxu0 0.0
    %3890 = vmatprep.subr.mxu0 0.0
    %3891 = vmatpush1.msra.mxu0 0.0
    %3892 = vmatprep.subr.mxu0 0.0
    %3893 = vmatpush1.msra.mxu0 0.0
    %3894 = vmatprep.subr.mxu0 0.0
    %3895 = vmatpush1.msra.mxu0 0.0
    %3896 = vmatprep.subr.mxu0 0.0
    %3897 = vmatpush1.msra.mxu0 0.0
    %3898 = vmatprep.subr.mxu0 0.0
    %3899 = vmatpush1.msra.mxu0 0.0
    %3900 = vmatprep.subr.mxu0 0.0
    %3901 = vmatpush1.msra.mxu0 0.0
    %3902 = vmatprep.subr.mxu0 0.0
    %3903 = vmatpush1.msra.mxu0 0.0
    %3904 = vmatprep.subr.mxu0 0.0
    %3905 = vmatpush1.msra.mxu0 0.0
    %3906 = vmatprep.subr.mxu0 0.0
    %3907 = vmatpush1.msra.mxu0 0.0
    %3908 = vmatprep.subr.mxu0 0.0
    %3909 = vmatpush1.msra.mxu0 0.0
    %3910 = vmatprep.subr.mxu0 0.0
    %3911 = vmatpush1.msra.mxu0 0.0
    %3912 = vmatprep.subr.mxu0 0.0
    %3913 = vmatpush1.msra.mxu0 0.0
    %3914 = vmatprep.subr.mxu0 0.0
    %3915 = vmatpush1.msra.mxu0 0.0
    %3916 = vmatprep.subr.mxu0 0.0
    %3917 = vmatpush1.msra.mxu0 0.0
    %3918 = vmatprep.subr.mxu0 0.0
    %3919 = vmatpush1.msra.mxu0 0.0
    %3920 = vmatprep.subr.mxu0 0.0
    %3921 = vmatpush1.msra.mxu0 0.0
    %3922 = vmatprep.subr.mxu0 0.0
    %3923 = vmatpush1.msra.mxu0 0.0
    %3924 = vmatprep.subr.mxu0 0.0
    %3925 = vmatpush1.msra.mxu0 0.0
    %3926 = vmatprep.mubr.f32.mxu0 0.0
    %3927 = vmatmul.mubr.f32.gmra.mrb[0].mxu0 %v807
    %v3928 = vpop.f32.mrb[0].mxu0
    %v3929 = vadd.f32 0.0, %v3928
    %v3930 = vpop.f32.mrb[0].mxu0
    %3931 = vmatprep.mubr.f32.mxu0 0.0
    %3932 = vmatmul.mubr.f32.gmra.mrb[0].mxu0 %v810
    %v3933 = vpop.f32.mrb[0].mxu0
    %v3934 = vadd.f32 0.0, %v3933
    %v3935 = vpop.f32.mrb[0].mxu0
    %3936 = vmatprep.mubr.f32.mxu0 0.0
    %3937 = vmatmul.mubr.f32.gmra.mrb[0].mxu0 %v813
    %v3938 = vpop.f32.mrb[0].mxu0
    %v3939 = vadd.f32 0.0, %v3938
    %v3940 = vpop.f32.mrb[0].mxu0
    %3941 = vmatprep.mubr.f32.mxu0 0.0
    %3942 = vmatmul.mubr.f32.gmra.mrb[0].mxu0 %v816
    %v3943 = vpop.f32.mrb[0].mxu0
    %v3944 = vadd.f32 0.0, %v3943
    %v3945 = vpop.f32.mrb[0].mxu0
    %3946 = vmatprep.mubr.f32.mxu0 0.0
    %3947 = vmatmul.mubr.f32.gmra.mrb[0].mxu0 %v819
    %v3948 = vpop.f32.mrb[0].mxu0
    %v3949 = vadd.f32 0.0, %v3948
    %v3950 = vpop.f32.mrb[0].mxu0
    %3951 = vmatprep.mubr.f32.mxu0 0.0
    %3952 = vmatmul.mubr.f32.gmra.mrb[0].mxu0 %v822
    %v3953 = vpop.f32.mrb[0].mxu0
    %v3954 = vadd.f32 0.0, %v3953
    %v3955 = vpop.f32.mrb[0].mxu0
    %3956 = vmatprep.mubr.f32.mxu0 0.0
    %3957 = vmatmul.mubr.f32.gmra.mrb[0].mxu0 %v825
    %v3958 = vpop.f32.mrb[0].mxu0
    %v3959 = vadd.f32 0.0, %v3958
    %v3960 = vpop.f32.mrb[0].mxu0
    %3961 = vmatprep.mubr.f32.mxu0 0.0
    %3962 = vmatmul.mubr.f32.gmra.mrb[0].mxu0 %v828
    %v3963 = vpop.f32.mrb[0].mxu0
    %v3964 = vadd.f32 0.0, %v3963
    %v3965 = vpop.f32.mrb[0].mxu0
    %3966 = vmatprep.mubr.f32.mxu0 0.0
    %3967 = vmatmul.mubr.f32.gmra.mrb[0].mxu0 %v831
    %v3968 = vpop.f32.mrb[0].mxu0
    %v3969 = vadd.f32 0.0, %v3968
    %v3970 = vpop.f32.mrb[0].mxu0
    %3971 = vmatprep.mubr.f32.mxu0 0.0
    %3972 = vmatmul.mubr.f32.gmra.mrb[0].mxu0 %v834
    %v3973 = vpop.f32.mrb[0].mxu0
    %v3974 = vadd.f32 0.0, %v3973
    %v3975 = vpop.f32.mrb[0].mxu0
    %3976 = vmatprep.mubr.f32.mxu0 0.0
    %3977 = vmatmul.mubr.f32.gmra.mrb[0].mxu0 %v837
    %v3978 = vpop.f32.mrb[0].mxu0
    %v3979 = vadd.f32 0.0, %v3978
    %v3980 = vpop.f32.mrb[0].mxu0
    %3981 = vmatprep.mubr.f32.mxu0 0.0
    %3982 = vmatmul.mubr.f32.gmra.mrb[0].mxu0 %v840
    %v3983 = vpop.f32.mrb[0].mxu0
    %v3984 = vadd.f32 0.0, %v3983
    %v3985 = vpop.f32.mrb[0].mxu0
    %3986 = vmatprep.mubr.f32.mxu0 0.0
    %3987 = vmatmul.mubr.f32.gmra.mrb[0].mxu0 %v843
    %v3988 = vpop.f32.mrb[0].mxu0
    %v3989 = vadd.f32 0.0, %v3988
    %v3990 = vpop.f32.mrb[0].mxu0
    %3991 = vmatprep.mubr.f32.mxu0 0.0
    %3992 = vmatmul.mubr.f32.gmra.mrb[0].mxu0 %v846
    %v3993 = vpop.f32.mrb[0].mxu0
    %v3994 = vadd.f32 0.0, %v3993
    %v3995 = vpop.f32.mrb[0].mxu0
    %3996 = vmatprep.mubr.f32.mxu0 0.0
    %3997 = vmatmul.mubr.f32.gmra.mrb[0].mxu0 %v849
    %v3998 = vpop.f32.mrb[0].mxu0
    %v3999 = vadd.f32 0.0, %v3998
    %v4000 = vpop.f32.mrb[0].mxu0
    %4001 = vmatprep.mubr.f32.mxu0 0.0
    %4002 = vmatmul.mubr.f32.gmra.mrb[0].mxu0 %v852
    %v4003 = vpop.f32.mrb[0].mxu0
    %v4004 = vadd.f32 0.0, %v4003
    %v4005 = vpop.f32.mrb[0].mxu0
    %4006 = vmatprep.mubr.f32.mxu0 0.0
    %4007 = vmatmul.mubr.f32.gmra.mrb[0].mxu0 %v855
    %v4008 = vpop.f32.mrb[0].mxu0
    %v4009 = vadd.f32 0.0, %v4008
    %v4010 = vpop.f32.mrb[0].mxu0
    %4011 = vmatprep.mubr.f32.mxu0 0.0
    %4012 = vmatmul.mubr.f32.gmra.mrb[0].mxu0 %v858
    %v4013 = vpop.f32.mrb[0].mxu0
    %v4014 = vadd.f32 0.0, %v4013
    %v4015 = vpop.f32.mrb[0].mxu0
    %4016 = vmatprep.mubr.f32.mxu0 0.0
    %4017 = vmatmul.mubr.f32.gmra.mrb[0].mxu0 %v861
    %v4018 = vpop.f32.mrb[0].mxu0
    %v4019 = vadd.f32 0.0, %v4018
    %v4020 = vpop.f32.mrb[0].mxu0
    %4021 = vmatprep.mubr.f32.mxu0 0.0
    %4022 = vmatmul.mubr.f32.gmra.mrb[0].mxu0 %v864
    %v4023 = vpop.f32.mrb[0].mxu0
    %v4024 = vadd.f32 0.0, %v4023
    %v4025 = vpop.f32.mrb[0].mxu0
    %4026 = vmatprep.mubr.f32.mxu0 0.0
    %4027 = vmatmul.mubr.f32.gmra.mrb[0].mxu0 %v867
    %v4028 = vpop.f32.mrb[0].mxu0
    %v4029 = vadd.f32 0.0, %v4028
    %v4030 = vpop.f32.mrb[0].mxu0
    %4031 = vmatprep.mubr.f32.mxu0 0.0
    %4032 = vmatmul.mubr.f32.gmra.mrb[0].mxu0 %v870
    %v4033 = vpop.f32.mrb[0].mxu0
    %v4034 = vadd.f32 0.0, %v4033
    %v4035 = vpop.f32.mrb[0].mxu0
    %4036 = vmatprep.mubr.f32.mxu0 0.0
    %4037 = vmatmul.mubr.f32.gmra.mrb[0].mxu0 %v873
    %v4038 = vpop.f32.mrb[0].mxu0
    %v4039 = vadd.f32 0.0, %v4038
    %v4040 = vpop.f32.mrb[0].mxu0
    %4041 = vmatprep.mubr.f32.mxu0 0.0
    %4042 = vmatmul.mubr.f32.gmra.mrb[0].mxu0 %v876
    %v4043 = vpop.f32.mrb[0].mxu0
    %v4044 = vadd.f32 0.0, %v4043
    %v4045 = vpop.f32.mrb[0].mxu0
    %4046 = vmatprep.mubr.f32.mxu0 0.0
    %4047 = vmatmul.mubr.f32.gmra.mrb[0].mxu0 %v879
    %v4048 = vpop.f32.mrb[0].mxu0
    %v4049 = vadd.f32 0.0, %v4048
    %v4050 = vpop.f32.mrb[0].mxu0
    %4051 = vmatprep.mubr.f32.mxu0 0.0
    %4052 = vmatmul.mubr.f32.gmra.mrb[0].mxu0 %v882
    %v4053 = vpop.f32.mrb[0].mxu0
    %v4054 = vadd.f32 0.0, %v4053
    %v4055 = vpop.f32.mrb[0].mxu0
    %4056 = vmatprep.mubr.f32.mxu0 0.0
    %4057 = vmatmul.mubr.f32.gmra.mrb[0].mxu0 %v885
    %v4058 = vpop.f32.mrb[0].mxu0
    %v4059 = vadd.f32 0.0, %v4058
    %v4060 = vpop.f32.mrb[0].mxu0
    %4061 = vmatprep.mubr.f32.mxu0 0.0
    %4062 = vmatmul.mubr.f32.gmra.mrb[0].mxu0 %v888
    %v4063 = vpop.f32.mrb[0].mxu0
    %v4064 = vadd.f32 0.0, %v4063
    %v4065 = vpop.f32.mrb[0].mxu0
    %4066 = vmatprep.mubr.f32.mxu0 0.0
    %4067 = vmatmul.mubr.f32.gmra.mrb[0].mxu0 %v891
    %v4068 = vpop.f32.mrb[0].mxu0
    %v4069 = vadd.f32 0.0, %v4068
    %v4070 = vpop.f32.mrb[0].mxu0
    %4071 = vmatprep.mubr.f32.mxu0 0.0
    %4072 = vmatmul.mubr.f32.gmra.mrb[0].mxu0 %v894
    %v4073 = vpop.f32.mrb[0].mxu0
    %v4074 = vadd.f32 0.0, %v4073
    %v4075 = vpop.f32.mrb[0].mxu0
    %4076 = vmatprep.mubr.f32.mxu0 0.0
    %4077 = vmatmul.mubr.f32.gmra.mrb[0].mxu0 %v897
    %v4078 = vpop.f32.mrb[0].mxu0
    %v4079 = vadd.f32 0.0, %v4078
    %v4080 = vpop.f32.mrb[0].mxu0
    %4081 = vmatprep.mubr.f32.mxu0 0.0
    %4082 = vmatmul.mubr.f32.gmra.mrb[0].mxu0 %v900
    %v4083 = vpop.f32.mrb[0].mxu0
    %v4084 = vadd.f32 0.0, %v4083
    %v4085 = vpop.f32.mrb[0].mxu0
    %4086 = vmatprep.mubr.f32.mxu0 0.0
    %4087 = vmatmul.mubr.f32.gmra.mrb[0].mxu0 %v903
    %v4088 = vpop.f32.mrb[0].mxu0
    %v4089 = vadd.f32 0.0, %v4088
    %v4090 = vpop.f32.mrb[0].mxu0
    %4091 = vmatprep.mubr.f32.mxu0 0.0
    %4092 = vmatmul.mubr.f32.gmra.mrb[0].mxu0 %v906
    %v4093 = vpop.f32.mrb[0].mxu0
    %v4094 = vadd.f32 0.0, %v4093
    %v4095 = vpop.f32.mrb[0].mxu0
    %4096 = vmatprep.mubr.f32.mxu0 0.0
    %4097 = vmatmul.mubr.f32.gmra.mrb[0].mxu0 %v909
    %v4098 = vpop.f32.mrb[0].mxu0
    %v4099 = vadd.f32 0.0, %v4098
    %v4100 = vpop.f32.mrb[0].mxu0
    %4101 = vmatprep.mubr.f32.mxu0 0.0
    %4102 = vmatmul.mubr.f32.gmra.mrb[0].mxu0 %v912
    %v4103 = vpop.f32.mrb[0].mxu0
    %v4104 = vadd.f32 0.0, %v4103
    %v4105 = vpop.f32.mrb[0].mxu0
    %4106 = vmatprep.mubr.f32.mxu0 0.0
    %4107 = vmatmul.mubr.f32.gmra.mrb[0].mxu0 %v915
    %v4108 = vpop.f32.mrb[0].mxu0
    %v4109 = vadd.f32 0.0, %v4108
    %v4110 = vpop.f32.mrb[0].mxu0
    %4111 = vmatprep.mubr.f32.mxu0 0.0
    %4112 = vmatmul.mubr.f32.gmra.mrb[0].mxu0 %v918
    %v4113 = vpop.f32.mrb[0].mxu0
    %v4114 = vadd.f32 0.0, %v4113
    %v4115 = vpop.f32.mrb[0].mxu0
    %4116 = vmatprep.mubr.f32.mxu0 0.0
    %4117 = vmatmul.mubr.f32.gmra.mrb[0].mxu0 %v921
    %v4118 = vpop.f32.mrb[0].mxu0
    %v4119 = vadd.f32 0.0, %v4118
    %v4120 = vpop.f32.mrb[0].mxu0
    %4121 = vmatprep.mubr.f32.mxu0 0.0
    %4122 = vmatmul.mubr.f32.gmra.mrb[0].mxu0 %v924
    %v4123 = vpop.f32.mrb[0].mxu0
    %v4124 = vadd.f32 0.0, %v4123
    %v4125 = vpop.f32.mrb[0].mxu0
    %4126 = vmatprep.mubr.f32.mxu0 0.0
    %4127 = vmatmul.mubr.f32.gmra.mrb[0].mxu0 %v927
    %v4128 = vpop.f32.mrb[0].mxu0
    %v4129 = vadd.f32 0.0, %v4128
    %v4130 = vpop.f32.mrb[0].mxu0
    %4131 = vmatprep.mubr.f32.mxu0 0.0
    %4132 = vmatmul.mubr.f32.gmra.mrb[0].mxu0 %v930
    %v4133 = vpop.f32.mrb[0].mxu0
    %v4134 = vadd.f32 0.0, %v4133
    %v4135 = vpop.f32.mrb[0].mxu0
    %4136 = vmatprep.mubr.f32.mxu0 0.0
    %4137 = vmatmul.mubr.f32.gmra.mrb[0].mxu0 %v933
    %v4138 = vpop.f32.mrb[0].mxu0
    %v4139 = vadd.f32 0.0, %v4138
    %v4140 = vpop.f32.mrb[0].mxu0
    %4141 = vmatprep.mubr.f32.mxu0 0.0
    %4142 = vmatmul.mubr.f32.gmra.mrb[0].mxu0 %v936
    %v4143 = vpop.f32.mrb[0].mxu0
    %v4144 = vadd.f32 0.0, %v4143
    %v4145 = vpop.f32.mrb[0].mxu0
    %4146 = vmatprep.mubr.f32.mxu0 0.0
    %4147 = vmatmul.mubr.f32.gmra.mrb[0].mxu0 %v939
    %v4148 = vpop.f32.mrb[0].mxu0
    %v4149 = vadd.f32 0.0, %v4148
    %v4150 = vpop.f32.mrb[0].mxu0
    %4151 = vmatprep.mubr.f32.mxu0 0.0
    %4152 = vmatmul.mubr.f32.gmra.mrb[0].mxu0 %v942
    %v4153 = vpop.f32.mrb[0].mxu0
    %v4154 = vadd.f32 0.0, %v4153
    %v4155 = vpop.f32.mrb[0].mxu0
    %4156 = vmatprep.mubr.f32.mxu0 0.0
    %4157 = vmatmul.mubr.f32.gmra.mrb[0].mxu0 %v945
    %v4158 = vpop.f32.mrb[0].mxu0
    %v4159 = vadd.f32 0.0, %v4158
    %v4160 = vpop.f32.mrb[0].mxu0
    %4161 = vmatprep.mubr.f32.mxu0 0.0
    %4162 = vmatmul.mubr.f32.gmra.mrb[0].mxu0 %v948
    %v4163 = vpop.f32.mrb[0].mxu0
    %v4164 = vadd.f32 0.0, %v4163
    %v4165 = vpop.f32.mrb[0].mxu0
    %4166 = vmatprep.mubr.f32.mxu0 0.0
    %4167 = vmatmul.mubr.f32.gmra.mrb[0].mxu0 %v951
    %v4168 = vpop.f32.mrb[0].mxu0
    %v4169 = vadd.f32 0.0, %v4168
    %v4170 = vpop.f32.mrb[0].mxu0
    %4171 = vmatprep.mubr.f32.mxu0 0.0
    %4172 = vmatmul.mubr.f32.gmra.mrb[0].mxu0 %v954
    %v4173 = vpop.f32.mrb[0].mxu0
    %v4174 = vadd.f32 0.0, %v4173
    %v4175 = vpop.f32.mrb[0].mxu0
    %4176 = vmatprep.mubr.f32.mxu0 0.0
    %4177 = vmatmul.mubr.f32.gmra.mrb[0].mxu0 %v957
    %v4178 = vpop.f32.mrb[0].mxu0
    %v4179 = vadd.f32 0.0, %v4178
    %v4180 = vpop.f32.mrb[0].mxu0
    %4181 = vmatprep.mubr.f32.mxu0 0.0
    %4182 = vmatmul.mubr.f32.gmra.mrb[0].mxu0 %v960
    %v4183 = vpop.f32.mrb[0].mxu0
    %v4184 = vadd.f32 0.0, %v4183
    %v4185 = vpop.f32.mrb[0].mxu0
    %4186 = vmatprep.mubr.f32.mxu0 0.0
    %4187 = vmatmul.mubr.f32.gmra.mrb[0].mxu0 %v963
    %v4188 = vpop.f32.mrb[0].mxu0
    %v4189 = vadd.f32 0.0, %v4188
    %v4190 = vpop.f32.mrb[0].mxu0
    %4191 = vmatprep.mubr.f32.mxu0 0.0
    %4192 = vmatmul.mubr.f32.gmra.mrb[0].mxu0 %v966
    %v4193 = vpop.f32.mrb[0].mxu0
    %v4194 = vadd.f32 0.0, %v4193
    %v4195 = vpop.f32.mrb[0].mxu0
    %4196 = vdwg.mxu0
    %v4197 = vlaneseq
    %v4198 = vshrl.u32 %v4197, 7
    %v4199 = vsub.s32 0, %v4198
    %v4200 = vrot.slane %v3858, %v4199
    %v4201 = vmul.f32 %v3929, %v4200
    %v4202 = vmul.f32 %v3934, %v4200
    %v4203 = vlaneseq
    %v4204 = vshrl.u32 %v4203, 7
    %v4205 = vsub.s32 0, %v4204
    %v4206 = vrot.slane %v3856, %v4205
    %v4207 = vadd.f32 %v4206, %v4201
    %v4208 = vadd.f32 %v4206, %v4202
    %v4209 = vlaneseq
    %v4210 = vshrl.u32 %v4209, 7
    %v4211 = vsub.s32 1, %v4210
    %v4212 = vrot.slane %v3858, %v4211
    %v4213 = vmul.f32 %v3939, %v4212
    %v4214 = vmul.f32 %v3944, %v4212
    %v4215 = vadd.f32 %v4207, %v4213
    %v4216 = vadd.f32 %v4208, %v4214
    %v4217 = vlaneseq
    %v4218 = vshrl.u32 %v4217, 7
    %v4219 = vsub.s32 2, %v4218
    %v4220 = vrot.slane %v3858, %v4219
    %v4221 = vmul.f32 %v3949, %v4220
    %v4222 = vmul.f32 %v3954, %v4220
    %v4223 = vadd.f32 %v4215, %v4221
    %v4224 = vadd.f32 %v4216, %v4222
    %v4225 = vlaneseq
    %v4226 = vshrl.u32 %v4225, 7
    %v4227 = vsub.s32 3, %v4226
    %v4228 = vrot.slane %v3858, %v4227
    %v4229 = vmul.f32 %v3959, %v4228
    %v4230 = vmul.f32 %v3964, %v4228
    %v4231 = vadd.f32 %v4223, %v4229
    %v4232 = vadd.f32 %v4224, %v4230
    %v4233 = vlaneseq
    %v4234 = vshrl.u32 %v4233, 7
    %v4235 = vsub.s32 4, %v4234
    %v4236 = vrot.slane %v3858, %v4235
    %v4237 = vmul.f32 %v3969, %v4236
    %v4238 = vmul.f32 %v3974, %v4236
    %v4239 = vadd.f32 %v4231, %v4237
    %v4240 = vadd.f32 %v4232, %v4238
    %v4241 = vlaneseq
    %v4242 = vshrl.u32 %v4241, 7
    %v4243 = vsub.s32 5, %v4242
    %v4244 = vrot.slane %v3858, %v4243
    %v4245 = vmul.f32 %v3979, %v4244
    %v4246 = vmul.f32 %v3984, %v4244
    %v4247 = vadd.f32 %v4239, %v4245
    %v4248 = vadd.f32 %v4240, %v4246
    %v4249 = vlaneseq
    %v4250 = vshrl.u32 %v4249, 7
    %v4251 = vsub.s32 6, %v4250
    %v4252 = vrot.slane %v3858, %v4251
    %v4253 = vmul.f32 %v3989, %v4252
    %v4254 = vmul.f32 %v3994, %v4252
    %v4255 = vadd.f32 %v4247, %v4253
    %v4256 = vadd.f32 %v4248, %v4254
    %v4257 = vlaneseq
    %v4258 = vshrl.u32 %v4257, 7
    %v4259 = vsub.s32 7, %v4258
    %v4260 = vrot.slane %v3858, %v4259
    %v4261 = vmul.f32 %v3999, %v4260
    %v4262 = vmul.f32 %v4004, %v4260
    %v4263 = vadd.f32 %v4255, %v4261
    %v4264 = vadd.f32 %v4256, %v4262
    %v4265 = vlaneseq
    %v4266 = vshrl.u32 %v4265, 7
    %v4267 = vsub.s32 0, %v4266
    %v4268 = vrot.slane %v3859, %v4267
    %v4269 = vmul.f32 %v4009, %v4268
    %v4270 = vmul.f32 %v4014, %v4268
    %v4271 = vadd.f32 %v4263, %v4269
    %v4272 = vadd.f32 %v4264, %v4270
    %v4273 = vlaneseq
    %v4274 = vshrl.u32 %v4273, 7
    %v4275 = vsub.s32 1, %v4274
    %v4276 = vrot.slane %v3859, %v4275
    %v4277 = vmul.f32 %v4019, %v4276
    %v4278 = vmul.f32 %v4024, %v4276
    %v4279 = vadd.f32 %v4271, %v4277
    %v4280 = vadd.f32 %v4272, %v4278
    %v4281 = vlaneseq
    %v4282 = vshrl.u32 %v4281, 7
    %v4283 = vsub.s32 2, %v4282
    %v4284 = vrot.slane %v3859, %v4283
    %v4285 = vmul.f32 %v4029, %v4284
    %v4286 = vmul.f32 %v4034, %v4284
    %v4287 = vadd.f32 %v4279, %v4285
    %v4288 = vadd.f32 %v4280, %v4286
    %v4289 = vlaneseq
    %v4290 = vshrl.u32 %v4289, 7
    %v4291 = vsub.s32 3, %v4290
    %v4292 = vrot.slane %v3859, %v4291
    %v4293 = vmul.f32 %v4039, %v4292
    %v4294 = vmul.f32 %v4044, %v4292
    %v4295 = vadd.f32 %v4287, %v4293
    %v4296 = vadd.f32 %v4288, %v4294
    %v4297 = vlaneseq
    %v4298 = vshrl.u32 %v4297, 7
    %v4299 = vsub.s32 4, %v4298
    %v4300 = vrot.slane %v3859, %v4299
    %v4301 = vmul.f32 %v4049, %v4300
    %v4302 = vmul.f32 %v4054, %v4300
    %v4303 = vadd.f32 %v4295, %v4301
    %v4304 = vadd.f32 %v4296, %v4302
    %v4305 = vlaneseq
    %v4306 = vshrl.u32 %v4305, 7
    %v4307 = vsub.s32 5, %v4306
    %v4308 = vrot.slane %v3859, %v4307
    %v4309 = vmul.f32 %v4059, %v4308
    %v4310 = vmul.f32 %v4064, %v4308
    %v4311 = vadd.f32 %v4303, %v4309
    %v4312 = vadd.f32 %v4304, %v4310
    %v4313 = vlaneseq
    %v4314 = vshrl.u32 %v4313, 7
    %v4315 = vsub.s32 6, %v4314
    %v4316 = vrot.slane %v3859, %v4315
    %v4317 = vmul.f32 %v4069, %v4316
    %v4318 = vmul.f32 %v4074, %v4316
    %v4319 = vadd.f32 %v4311, %v4317
    %v4320 = vadd.f32 %v4312, %v4318
    %v4321 = vlaneseq
    %v4322 = vshrl.u32 %v4321, 7
    %v4323 = vsub.s32 7, %v4322
    %v4324 = vrot.slane %v3859, %v4323
    %v4325 = vmul.f32 %v4079, %v4324
    %v4326 = vmul.f32 %v4084, %v4324
    %v4327 = vadd.f32 %v4319, %v4325
    %v4328 = vadd.f32 %v4320, %v4326
    %v4329 = vlaneseq
    %v4330 = vshrl.u32 %v4329, 7
    %v4331 = vsub.s32 0, %v4330
    %v4332 = vrot.slane %v3860, %v4331
    %v4333 = vmul.f32 %v4089, %v4332
    %v4334 = vmul.f32 %v4094, %v4332
    %v4335 = vadd.f32 %v4327, %v4333
    %v4336 = vadd.f32 %v4328, %v4334
    %v4337 = vlaneseq
    %v4338 = vshrl.u32 %v4337, 7
    %v4339 = vsub.s32 1, %v4338
    %v4340 = vrot.slane %v3860, %v4339
    %v4341 = vmul.f32 %v4099, %v4340
    %v4342 = vmul.f32 %v4104, %v4340
    %v4343 = vadd.f32 %v4335, %v4341
    %v4344 = vadd.f32 %v4336, %v4342
    %v4345 = vlaneseq
    %v4346 = vshrl.u32 %v4345, 7
    %v4347 = vsub.s32 2, %v4346
    %v4348 = vrot.slane %v3860, %v4347
    %v4349 = vmul.f32 %v4109, %v4348
    %v4350 = vmul.f32 %v4114, %v4348
    %v4351 = vadd.f32 %v4343, %v4349
    %v4352 = vadd.f32 %v4344, %v4350
    %v4353 = vlaneseq
    %v4354 = vshrl.u32 %v4353, 7
    %v4355 = vsub.s32 3, %v4354
    %v4356 = vrot.slane %v3860, %v4355
    %v4357 = vmul.f32 %v4119, %v4356
    %v4358 = vmul.f32 %v4124, %v4356
    %v4359 = vadd.f32 %v4351, %v4357
    %v4360 = vadd.f32 %v4352, %v4358
    %v4361 = vlaneseq
    %v4362 = vshrl.u32 %v4361, 7
    %v4363 = vsub.s32 4, %v4362
    %v4364 = vrot.slane %v3860, %v4363
    %v4365 = vmul.f32 %v4129, %v4364
    %v4366 = vmul.f32 %v4134, %v4364
    %v4367 = vadd.f32 %v4359, %v4365
    %v4368 = vadd.f32 %v4360, %v4366
    %v4369 = vlaneseq
    %v4370 = vshrl.u32 %v4369, 7
    %v4371 = vsub.s32 5, %v4370
    %v4372 = vrot.slane %v3860, %v4371
    %v4373 = vmul.f32 %v4139, %v4372
    %v4374 = vmul.f32 %v4144, %v4372
    %v4375 = vadd.f32 %v4367, %v4373
    %v4376 = vadd.f32 %v4368, %v4374
    %v4377 = vlaneseq
    %v4378 = vshrl.u32 %v4377, 7
    %v4379 = vsub.s32 6, %v4378
    %v4380 = vrot.slane %v3860, %v4379
    %v4381 = vmul.f32 %v4149, %v4380
    %v4382 = vmul.f32 %v4154, %v4380
    %v4383 = vadd.f32 %v4375, %v4381
    %v4384 = vadd.f32 %v4376, %v4382
    %v4385 = vlaneseq
    %v4386 = vshrl.u32 %v4385, 7
    %v4387 = vsub.s32 7, %v4386
    %v4388 = vrot.slane %v3860, %v4387
    %v4389 = vmul.f32 %v4159, %v4388
    %v4390 = vmul.f32 %v4164, %v4388
    %v4391 = vadd.f32 %v4383, %v4389
    %v4392 = vadd.f32 %v4384, %v4390
    %v4393 = vlaneseq
    %v4394 = vshrl.u32 %v4393, 7
    %v4395 = vsub.s32 0, %v4394
    %v4396 = vrot.slane %v3861, %v4395
    %v4397 = vmul.f32 %v4169, %v4396
    %v4398 = vmul.f32 %v4174, %v4396
    %v4399 = vadd.f32 %v4391, %v4397
    %v4400 = vadd.f32 %v4392, %v4398
    %v4401 = vlaneseq
    %v4402 = vshrl.u32 %v4401, 7
    %v4403 = vsub.s32 1, %v4402
    %v4404 = vrot.slane %v3861, %v4403
    %v4405 = vmul.f32 %v4179, %v4404
    %v4406 = vmul.f32 %v4184, %v4404
    %v4407 = vadd.f32 %v4399, %v4405
    %v4408 = vadd.f32 %v4400, %v4406
    %v4409 = vlaneseq
    %v4410 = vshrl.u32 %v4409, 7
    %v4411 = vsub.s32 2, %v4410
    %v4412 = vrot.slane %v3861, %v4411
    %v4413 = vmul.f32 %v4189, %v4412
    %v4414 = vmul.f32 %v4194, %v4412
    %v4415 = vadd.f32 %v4407, %v4413
    %v4416 = vadd.f32 %v4408, %v4414
    %v4417 = vadd.f32 %v3844, %v4415
    %v4418 = vadd.f32 %v3845, %v4416
    %v4419 = vsel %vm97, %v4417, 0.0
    %4420 = vadd.xlane.f32.xlu0 %v4419
    %v4421 = vpop.xlane.xlu0 %4420
    %v4422 = vsel %vm97, %v4418, 0.0
    %4423 = vadd.xlane.f32.xlu0 %v4422
    %v4424 = vpop.xlane.xlu0 %4423
    %v4425 = vmul.f32 %v4421, %v238
    %v4426 = vmul.f32 %v4424, %v238
    %v4427 = vsub.f32 %v4417, %v4425
    %v4428 = vsub.f32 %v4418, %v4426
    %v4429 = vmul.f32 %v4427, %v4427
    %v4430 = vmul.f32 %v4428, %v4428
    %v4431 = vsel %vm97, %v4429, 0.0
    %4432 = vadd.xlane.f32.xlu0 %v4431
    %v4433 = vpop.xlane.xlu0 %4432
    %v4434 = vsel %vm97, %v4430, 0.0
    %4435 = vadd.xlane.f32.xlu0 %v4434
    %v4436 = vpop.xlane.xlu0 %4435
    %v4437 = vmul.f32 %v4433, %v238
    %v4438 = vmul.f32 %v4436, %v238
    %v4439 = vadd.f32 %v4437, 1e-05
    %v4440 = vadd.f32 %v4438, 1e-05
    %v4441 = vrsqrt.pop %v4439
    %v4442 = vrsqrt.pop %v4440
    %v4443 = vmul.f32 %v4427, %v4441
    %v4444 = vmul.f32 %v4428, %v4442
    %v4445 = vlaneseq
    %v4446 = vshrl.u32 %v4445, 7
    %v4447 = vsub.s32 1, %v4446
    %v4448 = vrot.slane %v3856, %v4447
    %v4449 = vmul.f32 %v4443, %v4448
    %v4450 = vmul.f32 %v4444, %v4448
    %v4451 = vlaneseq
    %v4452 = vshrl.u32 %v4451, 7
    %v4453 = vsub.s32 2, %v4452
    %v4454 = vrot.slane %v3856, %v4453
    %v4455 = vadd.f32 %v4449, %v4454
    %v4456 = vadd.f32 %v4450, %v4454
    %s4457 = scalar_lea.vmem %s14, 256
    %v4458 = vld [vmem:[%s4457] sm:$0xff]
    %v4459 = vld [vmem:[%s4457 + $0x8] sm:$0xff]
    %v4460 = vld [vmem:[%s4457 + $0x10] sm:$0xff]
    %v4461 = vld [vmem:[%s4457 + $0x18] sm:$0xff]
    %v4462 = vld [vmem:[%s4457 + $0x20] sm:$0xff]
    %v4463 = vld [vmem:[%s4457 + $0x28] sm:$0xff]
    %v4464 = vld [vmem:[%s4457 + $0x30] sm:$0xff]
    %v4465 = vld [vmem:[%s4457 + $0x38] sm:$0xff]
    %v4466 = vld [vmem:[%s4457 + $0x40] sm:$0xff]
    %v4467 = vld [vmem:[%s4457 + $0x48] sm:$0xff]
    %v4468 = vld [vmem:[%s4457 + $0x50] sm:$0xff]
    %v4469 = vld [vmem:[%s4457 + $0x58] sm:$0xff]
    %v4470 = vld [vmem:[%s4457 + $0x60] sm:$0xff]
    %v4471 = vld [vmem:[%s4457 + $0x68] sm:$0xff]
    %v4472 = vld [vmem:[%s4457 + $0x70] sm:$0xff]
    %v4473 = vld [vmem:[%s4457 + $0x78] sm:$0xff]
    %v4475 = vsel %vm97, %v4455, 0
    %v4478 = vsel %vm97, %v4456, 0
    %4480 = vmatprep.subr.mxu0 %v4459
    %4481 = vmatpush1.msra.mxu0 %v4458
    %4482 = vmatprep.subr.mxu0 %v4461
    %4483 = vmatpush1.msra.mxu0 %v4460
    %4484 = vmatprep.subr.mxu0 %v4463
    %4485 = vmatpush1.msra.mxu0 %v4462
    %4486 = vmatprep.subr.mxu0 %v4465
    %4487 = vmatpush1.msra.mxu0 %v4464
    %4488 = vmatprep.subr.mxu0 %v4467
    %4489 = vmatpush1.msra.mxu0 %v4466
    %4490 = vmatprep.subr.mxu0 %v4469
    %4491 = vmatpush1.msra.mxu0 %v4468
    %4492 = vmatprep.subr.mxu0 %v4471
    %4493 = vmatpush1.msra.mxu0 %v4470
    %4494 = vmatprep.subr.mxu0 %v4473
    %4495 = vmatpush1.msra.mxu0 %v4472
    %4496 = vmatprep.subr.mxu0 0.0
    %4497 = vmatpush1.msra.mxu0 0.0
    %4498 = vmatprep.subr.mxu0 0.0
    %4499 = vmatpush1.msra.mxu0 0.0
    %4500 = vmatprep.subr.mxu0 0.0
    %4501 = vmatpush1.msra.mxu0 0.0
    %4502 = vmatprep.subr.mxu0 0.0
    %4503 = vmatpush1.msra.mxu0 0.0
    %4504 = vmatprep.subr.mxu0 0.0
    %4505 = vmatpush1.msra.mxu0 0.0
    %4506 = vmatprep.subr.mxu0 0.0
    %4507 = vmatpush1.msra.mxu0 0.0
    %4508 = vmatprep.subr.mxu0 0.0
    %4509 = vmatpush1.msra.mxu0 0.0
    %4510 = vmatprep.subr.mxu0 0.0
    %4511 = vmatpush1.msra.mxu0 0.0
    %4512 = vmatprep.subr.mxu0 0.0
    %4513 = vmatpush1.msra.mxu0 0.0
    %4514 = vmatprep.subr.mxu0 0.0
    %4515 = vmatpush1.msra.mxu0 0.0
    %4516 = vmatprep.subr.mxu0 0.0
    %4517 = vmatpush1.msra.mxu0 0.0
    %4518 = vmatprep.subr.mxu0 0.0
    %4519 = vmatpush1.msra.mxu0 0.0
    %4520 = vmatprep.subr.mxu0 0.0
    %4521 = vmatpush1.msra.mxu0 0.0
    %4522 = vmatprep.subr.mxu0 0.0
    %4523 = vmatpush1.msra.mxu0 0.0
    %4524 = vmatprep.subr.mxu0 0.0
    %4525 = vmatpush1.msra.mxu0 0.0
    %4526 = vmatprep.subr.mxu0 0.0
    %4527 = vmatpush1.msra.mxu0 0.0
    %4528 = vmatprep.subr.mxu0 0.0
    %4529 = vmatpush1.msra.mxu0 0.0
    %4530 = vmatprep.subr.mxu0 0.0
    %4531 = vmatpush1.msra.mxu0 0.0
    %4532 = vmatprep.subr.mxu0 0.0
    %4533 = vmatpush1.msra.mxu0 0.0
    %4534 = vmatprep.subr.mxu0 0.0
    %4535 = vmatpush1.msra.mxu0 0.0
    %4536 = vmatprep.subr.mxu0 0.0
    %4537 = vmatpush1.msra.mxu0 0.0
    %4538 = vmatprep.subr.mxu0 0.0
    %4539 = vmatpush1.msra.mxu0 0.0
    %4540 = vmatprep.subr.mxu0 0.0
    %4541 = vmatpush1.msra.mxu0 0.0
    %4542 = vmatprep.subr.mxu0 0.0
    %4543 = vmatpush1.msra.mxu0 0.0
    %4544 = vmatprep.mubr.f32.mxu0 0.0
    %4545 = vmatmul.mubr.f32.gmra.mrb[0].mxu0 %v4475
    %v4546 = vpop.f32.mrb[0].mxu0
    %v4547 = vadd.f32 0.0, %v4546
    %v4548 = vpop.f32.mrb[0].mxu0
    %v4549 = vadd.f32 0.0, %v4548
    %4550 = vmatprep.mubr.f32.mxu0 0.0
    %4551 = vmatmul.mubr.f32.gmra.mrb[0].mxu0 %v4478
    %v4552 = vpop.f32.mrb[0].mxu0
    %v4553 = vadd.f32 0.0, %v4552
    %v4554 = vpop.f32.mrb[0].mxu0
    %v4555 = vadd.f32 0.0, %v4554
    %4556 = vdwg.mxu0
    %v4557 = vmul.f32 %v4547, %v729
    %v4558 = vmul.f32 %v4553, %v730
    %v4559 = vmul.f32 %v4547, %v731
    %v4560 = vmul.f32 %v4553, %v732
    %v4561 = vmul.f32 %v4547, %v733
    %v4562 = vmul.f32 %v4553, %v734
    %v4563 = vmul.f32 %v4547, %v735
    %v4564 = vmul.f32 %v4553, %v736
    %4567 = vrot.lane.b32.xlu0 %v4547, 64
    %v4568 = vpop.permute.xlu0 %4567
    %4569 = vrot.lane.b32.xlu0 %v4553, 64
    %v4570 = vpop.permute.xlu0 %4569
    %v4572 = vsel %vm97, %v4557, 0
    %v4575 = vsel %vm97, %v4558, 0
    %v4578 = vsel %vm97, %v4559, 0
    %v4581 = vsel %vm97, %v4560, 0
    %v4584 = vsel %vm97, %v4561, 0
    %v4587 = vsel %vm97, %v4562, 0
    %v4590 = vsel %vm97, %v4563, 0
    %v4593 = vsel %vm97, %v4564, 0
    %v4595 = vsel %vm97, %v4568, 0
    %v4597 = vsel %vm97, %v4570, 0
    %4599 = vmatprep.subr.mxu0 0.0
    %4600 = vmatpush1.xpose.msra.mxu0 %v4595
    %4601 = vmatprep.subr.mxu0 0.0
    %4602 = vmatpush1.xpose.msra.mxu0 %v4597
    %4603 = vmatprep.subr.mxu0 0.0
    %4604 = vmatpush1.xpose.msra.mxu0 0.0
    %4605 = vmatprep.subr.mxu0 0.0
    %4606 = vmatpush1.xpose.msra.mxu0 0.0
    %4607 = vmatprep.subr.mxu0 0.0
    %4608 = vmatpush1.xpose.msra.mxu0 0.0
    %4609 = vmatprep.subr.mxu0 0.0
    %4610 = vmatpush1.xpose.msra.mxu0 0.0
    %4611 = vmatprep.subr.mxu0 0.0
    %4612 = vmatpush1.xpose.msra.mxu0 0.0
    %4613 = vmatprep.subr.mxu0 0.0
    %4614 = vmatpush1.xpose.msra.mxu0 0.0
    %4615 = vmatprep.subr.mxu0 0.0
    %4616 = vmatpush1.xpose.msra.mxu0 0.0
    %4617 = vmatprep.subr.mxu0 0.0
    %4618 = vmatpush1.xpose.msra.mxu0 0.0
    %4619 = vmatprep.subr.mxu0 0.0
    %4620 = vmatpush1.xpose.msra.mxu0 0.0
    %4621 = vmatprep.subr.mxu0 0.0
    %4622 = vmatpush1.xpose.msra.mxu0 0.0
    %4623 = vmatprep.subr.mxu0 0.0
    %4624 = vmatpush1.xpose.msra.mxu0 0.0
    %4625 = vmatprep.subr.mxu0 0.0
    %4626 = vmatpush1.xpose.msra.mxu0 0.0
    %4627 = vmatprep.subr.mxu0 0.0
    %4628 = vmatpush1.xpose.msra.mxu0 0.0
    %4629 = vmatprep.subr.mxu0 0.0
    %4630 = vmatpush1.xpose.msra.mxu0 0.0
    %4631 = vmatprep.subr.mxu0 0.0
    %4632 = vmatpush1.xpose.msra.mxu0 0.0
    %4633 = vmatprep.subr.mxu0 0.0
    %4634 = vmatpush1.xpose.msra.mxu0 0.0
    %4635 = vmatprep.subr.mxu0 0.0
    %4636 = vmatpush1.xpose.msra.mxu0 0.0
    %4637 = vmatprep.subr.mxu0 0.0
    %4638 = vmatpush1.xpose.msra.mxu0 0.0
    %4639 = vmatprep.subr.mxu0 0.0
    %4640 = vmatpush1.xpose.msra.mxu0 0.0
    %4641 = vmatprep.subr.mxu0 0.0
    %4642 = vmatpush1.xpose.msra.mxu0 0.0
    %4643 = vmatprep.subr.mxu0 0.0
    %4644 = vmatpush1.xpose.msra.mxu0 0.0
    %4645 = vmatprep.subr.mxu0 0.0
    %4646 = vmatpush1.xpose.msra.mxu0 0.0
    %4647 = vmatprep.subr.mxu0 0.0
    %4648 = vmatpush1.xpose.msra.mxu0 0.0
    %4649 = vmatprep.subr.mxu0 0.0
    %4650 = vmatpush1.xpose.msra.mxu0 0.0
    %4651 = vmatprep.subr.mxu0 0.0
    %4652 = vmatpush1.xpose.msra.mxu0 0.0
    %4653 = vmatprep.subr.mxu0 0.0
    %4654 = vmatpush1.xpose.msra.mxu0 0.0
    %4655 = vmatprep.subr.mxu0 0.0
    %4656 = vmatpush1.xpose.msra.mxu0 0.0
    %4657 = vmatprep.subr.mxu0 0.0
    %4658 = vmatpush1.xpose.msra.mxu0 0.0
    %4659 = vmatprep.subr.mxu0 0.0
    %4660 = vmatpush1.xpose.msra.mxu0 0.0
    %4661 = vmatprep.subr.mxu0 0.0
    %4662 = vmatpush1.xpose.msra.mxu0 0.0
    %4663 = vmatprep.mubr.f32.mxu0 0.0
    %4664 = vmatmul.mubr.f32.gmra.mrb[0].mxu0 %v4572
    %v4665 = vpop.f32.mrb[0].mxu0
    %v4666 = vadd.f32 %v3847, %v4665
    %v4667 = vpop.f32.mrb[0].mxu0
    %4668 = vmatprep.mubr.f32.mxu0 0.0
    %4669 = vmatmul.mubr.f32.gmra.mrb[0].mxu0 %v4575
    %v4670 = vpop.f32.mrb[0].mxu0
    %v4671 = vadd.f32 %v3848, %v4670
    %v4672 = vpop.f32.mrb[0].mxu0
    %4673 = vmatprep.mubr.f32.mxu0 0.0
    %4674 = vmatmul.mubr.f32.gmra.mrb[0].mxu0 %v4578
    %v4675 = vpop.f32.mrb[0].mxu0
    %v4676 = vadd.f32 %v3849, %v4675
    %v4677 = vpop.f32.mrb[0].mxu0
    %4678 = vmatprep.mubr.f32.mxu0 0.0
    %4679 = vmatmul.mubr.f32.gmra.mrb[0].mxu0 %v4581
    %v4680 = vpop.f32.mrb[0].mxu0
    %v4681 = vadd.f32 %v3850, %v4680
    %v4682 = vpop.f32.mrb[0].mxu0
    %4683 = vmatprep.mubr.f32.mxu0 0.0
    %4684 = vmatmul.mubr.f32.gmra.mrb[0].mxu0 %v4584
    %v4685 = vpop.f32.mrb[0].mxu0
    %v4686 = vadd.f32 %v3851, %v4685
    %v4687 = vpop.f32.mrb[0].mxu0
    %4688 = vmatprep.mubr.f32.mxu0 0.0
    %4689 = vmatmul.mubr.f32.gmra.mrb[0].mxu0 %v4587
    %v4690 = vpop.f32.mrb[0].mxu0
    %v4691 = vadd.f32 %v3852, %v4690
    %v4692 = vpop.f32.mrb[0].mxu0
    %4693 = vmatprep.mubr.f32.mxu0 0.0
    %4694 = vmatmul.mubr.f32.gmra.mrb[0].mxu0 %v4590
    %v4695 = vpop.f32.mrb[0].mxu0
    %v4696 = vadd.f32 %v3853, %v4695
    %v4697 = vpop.f32.mrb[0].mxu0
    %4698 = vmatprep.mubr.f32.mxu0 0.0
    %4699 = vmatmul.mubr.f32.gmra.mrb[0].mxu0 %v4593
    %v4700 = vpop.f32.mrb[0].mxu0
    %v4701 = vadd.f32 %v3854, %v4700
    %v4702 = vpop.f32.mrb[0].mxu0
    %4703 = vdwg.mxu0
    %v4704 = vsel %vm805, %v4666, -inf
    %4705 = vmax.xlane.f32.xlu0 %v4704
    %v4706 = vpop.xlane.xlu0 %4705
    %v4707 = vsel %vm805, %v4671, -inf
    %4708 = vmax.xlane.f32.xlu0 %v4707
    %v4709 = vpop.xlane.xlu0 %4708
    %v4710 = vsel %vm805, %v4676, -inf
    %4711 = vmax.xlane.f32.xlu0 %v4710
    %v4712 = vpop.xlane.xlu0 %4711
    %v4713 = vsel %vm805, %v4681, -inf
    %4714 = vmax.xlane.f32.xlu0 %v4713
    %v4715 = vpop.xlane.xlu0 %4714
    %v4716 = vsel %vm805, %v4686, -inf
    %4717 = vmax.xlane.f32.xlu0 %v4716
    %v4718 = vpop.xlane.xlu0 %4717
    %v4719 = vsel %vm805, %v4691, -inf
    %4720 = vmax.xlane.f32.xlu0 %v4719
    %v4721 = vpop.xlane.xlu0 %4720
    %v4722 = vsel %vm805, %v4696, -inf
    %4723 = vmax.xlane.f32.xlu0 %v4722
    %v4724 = vpop.xlane.xlu0 %4723
    %v4725 = vsel %vm805, %v4701, -inf
    %4726 = vmax.xlane.f32.xlu0 %v4725
    %v4727 = vpop.xlane.xlu0 %4726
    %v4728 = vsub.f32 %v4666, %v4706
    %v4729 = vsub.f32 %v4671, %v4709
    %v4730 = vsub.f32 %v4676, %v4712
    %v4731 = vsub.f32 %v4681, %v4715
    %v4732 = vsub.f32 %v4686, %v4718
    %v4733 = vsub.f32 %v4691, %v4721
    %v4734 = vsub.f32 %v4696, %v4724
    %v4735 = vsub.f32 %v4701, %v4727
    %v4736 = vmul.f32 %v4728, 1.442695
    %v4737 = vpow.pop %v4736
    %v4738 = vmul.f32 %v4729, 1.442695
    %v4739 = vpow.pop %v4738
    %v4740 = vmul.f32 %v4730, 1.442695
    %v4741 = vpow.pop %v4740
    %v4742 = vmul.f32 %v4731, 1.442695
    %v4743 = vpow.pop %v4742
    %v4744 = vmul.f32 %v4732, 1.442695
    %v4745 = vpow.pop %v4744
    %v4746 = vmul.f32 %v4733, 1.442695
    %v4747 = vpow.pop %v4746
    %v4748 = vmul.f32 %v4734, 1.442695
    %v4749 = vpow.pop %v4748
    %v4750 = vmul.f32 %v4735, 1.442695
    %v4751 = vpow.pop %v4750
    %v4752 = vsel %vm805, %v4737, 0.0
    %4753 = vadd.xlane.f32.xlu0 %v4752
    %v4754 = vpop.xlane.xlu0 %4753
    %v4755 = vsel %vm805, %v4739, 0.0
    %4756 = vadd.xlane.f32.xlu0 %v4755
    %v4757 = vpop.xlane.xlu0 %4756
    %v4758 = vsel %vm805, %v4741, 0.0
    %4759 = vadd.xlane.f32.xlu0 %v4758
    %v4760 = vpop.xlane.xlu0 %4759
    %v4761 = vsel %vm805, %v4743, 0.0
    %4762 = vadd.xlane.f32.xlu0 %v4761
    %v4763 = vpop.xlane.xlu0 %4762
    %v4764 = vsel %vm805, %v4745, 0.0
    %4765 = vadd.xlane.f32.xlu0 %v4764
    %v4766 = vpop.xlane.xlu0 %4765
    %v4767 = vsel %vm805, %v4747, 0.0
    %4768 = vadd.xlane.f32.xlu0 %v4767
    %v4769 = vpop.xlane.xlu0 %4768
    %v4770 = vsel %vm805, %v4749, 0.0
    %4771 = vadd.xlane.f32.xlu0 %v4770
    %v4772 = vpop.xlane.xlu0 %4771
    %v4773 = vsel %vm805, %v4751, 0.0
    %4774 = vadd.xlane.f32.xlu0 %v4773
    %v4775 = vpop.xlane.xlu0 %4774
    %v4776 = vrcp.pop %v4754
    %v4777 = vrcp.pop %v4757
    %v4778 = vrcp.pop %v4760
    %v4779 = vrcp.pop %v4763
    %v4780 = vrcp.pop %v4766
    %v4781 = vrcp.pop %v4769
    %v4782 = vrcp.pop %v4772
    %v4783 = vrcp.pop %v4775
    %v4784 = vmul.f32 %v4737, %v4776
    %v4785 = vmul.f32 %v4739, %v4777
    %v4786 = vmul.f32 %v4741, %v4778
    %v4787 = vmul.f32 %v4743, %v4779
    %v4788 = vmul.f32 %v4745, %v4780
    %v4789 = vmul.f32 %v4747, %v4781
    %v4790 = vmul.f32 %v4749, %v4782
    %v4791 = vmul.f32 %v4751, %v4783
    %v4793 = vsel %vm805, %v4784, 0
    %v4796 = vsel %vm805, %v4785, 0
    %v4799 = vsel %vm805, %v4786, 0
    %v4802 = vsel %vm805, %v4787, 0
    %v4805 = vsel %vm805, %v4788, 0
    %v4808 = vsel %vm805, %v4789, 0
    %v4811 = vsel %vm805, %v4790, 0
    %v4814 = vsel %vm805, %v4791, 0
    %4816 = vmatprep.subr.mxu0 0.0
    %4817 = vmatpush1.msra.mxu0 %v4549
    %4818 = vmatprep.subr.mxu0 0.0
    %4819 = vmatpush1.msra.mxu0 %v4555
    %4820 = vmatprep.subr.mxu0 0.0
    %4821 = vmatpush1.msra.mxu0 0.0
    %4822 = vmatprep.subr.mxu0 0.0
    %4823 = vmatpush1.msra.mxu0 0.0
    %4824 = vmatprep.subr.mxu0 0.0
    %4825 = vmatpush1.msra.mxu0 0.0
    %4826 = vmatprep.subr.mxu0 0.0
    %4827 = vmatpush1.msra.mxu0 0.0
    %4828 = vmatprep.subr.mxu0 0.0
    %4829 = vmatpush1.msra.mxu0 0.0
    %4830 = vmatprep.subr.mxu0 0.0
    %4831 = vmatpush1.msra.mxu0 0.0
    %4832 = vmatprep.subr.mxu0 0.0
    %4833 = vmatpush1.msra.mxu0 0.0
    %4834 = vmatprep.subr.mxu0 0.0
    %4835 = vmatpush1.msra.mxu0 0.0
    %4836 = vmatprep.subr.mxu0 0.0
    %4837 = vmatpush1.msra.mxu0 0.0
    %4838 = vmatprep.subr.mxu0 0.0
    %4839 = vmatpush1.msra.mxu0 0.0
    %4840 = vmatprep.subr.mxu0 0.0
    %4841 = vmatpush1.msra.mxu0 0.0
    %4842 = vmatprep.subr.mxu0 0.0
    %4843 = vmatpush1.msra.mxu0 0.0
    %4844 = vmatprep.subr.mxu0 0.0
    %4845 = vmatpush1.msra.mxu0 0.0
    %4846 = vmatprep.subr.mxu0 0.0
    %4847 = vmatpush1.msra.mxu0 0.0
    %4848 = vmatprep.subr.mxu0 0.0
    %4849 = vmatpush1.msra.mxu0 0.0
    %4850 = vmatprep.subr.mxu0 0.0
    %4851 = vmatpush1.msra.mxu0 0.0
    %4852 = vmatprep.subr.mxu0 0.0
    %4853 = vmatpush1.msra.mxu0 0.0
    %4854 = vmatprep.subr.mxu0 0.0
    %4855 = vmatpush1.msra.mxu0 0.0
    %4856 = vmatprep.subr.mxu0 0.0
    %4857 = vmatpush1.msra.mxu0 0.0
    %4858 = vmatprep.subr.mxu0 0.0
    %4859 = vmatpush1.msra.mxu0 0.0
    %4860 = vmatprep.subr.mxu0 0.0
    %4861 = vmatpush1.msra.mxu0 0.0
    %4862 = vmatprep.subr.mxu0 0.0
    %4863 = vmatpush1.msra.mxu0 0.0
    %4864 = vmatprep.subr.mxu0 0.0
    %4865 = vmatpush1.msra.mxu0 0.0
    %4866 = vmatprep.subr.mxu0 0.0
    %4867 = vmatpush1.msra.mxu0 0.0
    %4868 = vmatprep.subr.mxu0 0.0
    %4869 = vmatpush1.msra.mxu0 0.0
    %4870 = vmatprep.subr.mxu0 0.0
    %4871 = vmatpush1.msra.mxu0 0.0
    %4872 = vmatprep.subr.mxu0 0.0
    %4873 = vmatpush1.msra.mxu0 0.0
    %4874 = vmatprep.subr.mxu0 0.0
    %4875 = vmatpush1.msra.mxu0 0.0
    %4876 = vmatprep.subr.mxu0 0.0
    %4877 = vmatpush1.msra.mxu0 0.0
    %4878 = vmatprep.subr.mxu0 0.0
    %4879 = vmatpush1.msra.mxu0 0.0
    %4880 = vmatprep.mubr.f32.mxu0 0.0
    %4881 = vmatmul.mubr.f32.gmra.mrb[0].mxu0 %v4793
    %v4882 = vpop.f32.mrb[0].mxu0
    %v4883 = vadd.f32 0.0, %v4882
    %v4884 = vpop.f32.mrb[0].mxu0
    %4885 = vmatprep.mubr.f32.mxu0 0.0
    %4886 = vmatmul.mubr.f32.gmra.mrb[0].mxu0 %v4796
    %v4887 = vpop.f32.mrb[0].mxu0
    %v4888 = vadd.f32 0.0, %v4887
    %v4889 = vpop.f32.mrb[0].mxu0
    %4890 = vmatprep.mubr.f32.mxu0 0.0
    %4891 = vmatmul.mubr.f32.gmra.mrb[0].mxu0 %v4799
    %v4892 = vpop.f32.mrb[0].mxu0
    %v4893 = vadd.f32 0.0, %v4892
    %v4894 = vpop.f32.mrb[0].mxu0
    %4895 = vmatprep.mubr.f32.mxu0 0.0
    %4896 = vmatmul.mubr.f32.gmra.mrb[0].mxu0 %v4802
    %v4897 = vpop.f32.mrb[0].mxu0
    %v4898 = vadd.f32 0.0, %v4897
    %v4899 = vpop.f32.mrb[0].mxu0
    %4900 = vmatprep.mubr.f32.mxu0 0.0
    %4901 = vmatmul.mubr.f32.gmra.mrb[0].mxu0 %v4805
    %v4902 = vpop.f32.mrb[0].mxu0
    %v4903 = vadd.f32 0.0, %v4902
    %v4904 = vpop.f32.mrb[0].mxu0
    %4905 = vmatprep.mubr.f32.mxu0 0.0
    %4906 = vmatmul.mubr.f32.gmra.mrb[0].mxu0 %v4808
    %v4907 = vpop.f32.mrb[0].mxu0
    %v4908 = vadd.f32 0.0, %v4907
    %v4909 = vpop.f32.mrb[0].mxu0
    %4910 = vmatprep.mubr.f32.mxu0 0.0
    %4911 = vmatmul.mubr.f32.gmra.mrb[0].mxu0 %v4811
    %v4912 = vpop.f32.mrb[0].mxu0
    %v4913 = vadd.f32 0.0, %v4912
    %v4914 = vpop.f32.mrb[0].mxu0
    %4915 = vmatprep.mubr.f32.mxu0 0.0
    %4916 = vmatmul.mubr.f32.gmra.mrb[0].mxu0 %v4814
    %v4917 = vpop.f32.mrb[0].mxu0
    %v4918 = vadd.f32 0.0, %v4917
    %v4919 = vpop.f32.mrb[0].mxu0
    %4920 = vdwg.mxu0
    %v4921 = vmul.f32 %v4883, %v729
    %v4922 = vmul.f32 %v4888, %v730
    %v4923 = vmul.f32 %v4893, %v731
    %v4924 = vmul.f32 %v4898, %v732
    %v4925 = vmul.f32 %v4903, %v733
    %v4926 = vmul.f32 %v4908, %v734
    %v4927 = vmul.f32 %v4913, %v735
    %v4928 = vmul.f32 %v4918, %v736
    %v4929 = vadd.f32 %v4921, %v4923
    %v4930 = vadd.f32 %v4922, %v4924
    %v4931 = vadd.f32 %v4929, %v4925
    %v4932 = vadd.f32 %v4930, %v4926
    %v4933 = vadd.f32 %v4931, %v4927
    %v4934 = vadd.f32 %v4932, %v4928
    %s4935 = scalar_lea.vmem %s15, 128
    %v4936 = vld [vmem:[%s4935] sm:$0xff]
    %v4937 = vld [vmem:[%s4935 + $0x8] sm:$0xff]
    %v4938 = vld [vmem:[%s4935 + $0x10] sm:$0xff]
    %v4939 = vld [vmem:[%s4935 + $0x18] sm:$0xff]
    %v4940 = vld [vmem:[%s4935 + $0x20] sm:$0xff]
    %v4941 = vld [vmem:[%s4935 + $0x28] sm:$0xff]
    %v4942 = vld [vmem:[%s4935 + $0x30] sm:$0xff]
    %v4943 = vld [vmem:[%s4935 + $0x38] sm:$0xff]
    %v4945 = vsel %vm97, %v4933, 0
    %v4948 = vsel %vm97, %v4934, 0
    %4950 = vmatprep.subr.mxu0 0.0
    %4951 = vmatpush1.msra.mxu0 %v4936
    %4952 = vmatprep.subr.mxu0 0.0
    %4953 = vmatpush1.msra.mxu0 %v4937
    %4954 = vmatprep.subr.mxu0 0.0
    %4955 = vmatpush1.msra.mxu0 %v4938
    %4956 = vmatprep.subr.mxu0 0.0
    %4957 = vmatpush1.msra.mxu0 %v4939
    %4958 = vmatprep.subr.mxu0 0.0
    %4959 = vmatpush1.msra.mxu0 %v4940
    %4960 = vmatprep.subr.mxu0 0.0
    %4961 = vmatpush1.msra.mxu0 %v4941
    %4962 = vmatprep.subr.mxu0 0.0
    %4963 = vmatpush1.msra.mxu0 %v4942
    %4964 = vmatprep.subr.mxu0 0.0
    %4965 = vmatpush1.msra.mxu0 %v4943
    %4966 = vmatprep.subr.mxu0 0.0
    %4967 = vmatpush1.msra.mxu0 0.0
    %4968 = vmatprep.subr.mxu0 0.0
    %4969 = vmatpush1.msra.mxu0 0.0
    %4970 = vmatprep.subr.mxu0 0.0
    %4971 = vmatpush1.msra.mxu0 0.0
    %4972 = vmatprep.subr.mxu0 0.0
    %4973 = vmatpush1.msra.mxu0 0.0
    %4974 = vmatprep.subr.mxu0 0.0
    %4975 = vmatpush1.msra.mxu0 0.0
    %4976 = vmatprep.subr.mxu0 0.0
    %4977 = vmatpush1.msra.mxu0 0.0
    %4978 = vmatprep.subr.mxu0 0.0
    %4979 = vmatpush1.msra.mxu0 0.0
    %4980 = vmatprep.subr.mxu0 0.0
    %4981 = vmatpush1.msra.mxu0 0.0
    %4982 = vmatprep.subr.mxu0 0.0
    %4983 = vmatpush1.msra.mxu0 0.0
    %4984 = vmatprep.subr.mxu0 0.0
    %4985 = vmatpush1.msra.mxu0 0.0
    %4986 = vmatprep.subr.mxu0 0.0
    %4987 = vmatpush1.msra.mxu0 0.0
    %4988 = vmatprep.subr.mxu0 0.0
    %4989 = vmatpush1.msra.mxu0 0.0
    %4990 = vmatprep.subr.mxu0 0.0
    %4991 = vmatpush1.msra.mxu0 0.0
    %4992 = vmatprep.subr.mxu0 0.0
    %4993 = vmatpush1.msra.mxu0 0.0
    %4994 = vmatprep.subr.mxu0 0.0
    %4995 = vmatpush1.msra.mxu0 0.0
    %4996 = vmatprep.subr.mxu0 0.0
    %4997 = vmatpush1.msra.mxu0 0.0
    %4998 = vmatprep.subr.mxu0 0.0
    %4999 = vmatpush1.msra.mxu0 0.0
    %5000 = vmatprep.subr.mxu0 0.0
    %5001 = vmatpush1.msra.mxu0 0.0
    %5002 = vmatprep.subr.mxu0 0.0
    %5003 = vmatpush1.msra.mxu0 0.0
    %5004 = vmatprep.subr.mxu0 0.0
    %5005 = vmatpush1.msra.mxu0 0.0
    %5006 = vmatprep.subr.mxu0 0.0
    %5007 = vmatpush1.msra.mxu0 0.0
    %5008 = vmatprep.subr.mxu0 0.0
    %5009 = vmatpush1.msra.mxu0 0.0
    %5010 = vmatprep.subr.mxu0 0.0
    %5011 = vmatpush1.msra.mxu0 0.0
    %5012 = vmatprep.subr.mxu0 0.0
    %5013 = vmatpush1.msra.mxu0 0.0
    %5014 = vmatprep.mubr.f32.mxu0 0.0
    %5015 = vmatmul.mubr.f32.gmra.mrb[0].mxu0 %v4945
    %v5016 = vpop.f32.mrb[0].mxu0
    %v5017 = vadd.f32 0.0, %v5016
    %v5018 = vpop.f32.mrb[0].mxu0
    %5019 = vmatprep.mubr.f32.mxu0 0.0
    %5020 = vmatmul.mubr.f32.gmra.mrb[0].mxu0 %v4948
    %v5021 = vpop.f32.mrb[0].mxu0
    %v5022 = vadd.f32 0.0, %v5021
    %v5023 = vpop.f32.mrb[0].mxu0
    %5024 = vdwg.mxu0
    %v5025 = vadd.f32 %v4417, %v5017
    %v5026 = vadd.f32 %v4418, %v5022
    %v5027 = vsel %vm97, %v5025, 0.0
    %5028 = vadd.xlane.f32.xlu0 %v5027
    %v5029 = vpop.xlane.xlu0 %5028
    %v5030 = vsel %vm97, %v5026, 0.0
    %5031 = vadd.xlane.f32.xlu0 %v5030
    %v5032 = vpop.xlane.xlu0 %5031
    %v5033 = vmul.f32 %v5029, %v238
    %v5034 = vmul.f32 %v5032, %v238
    %v5035 = vsub.f32 %v5025, %v5033
    %v5036 = vsub.f32 %v5026, %v5034
    %v5037 = vmul.f32 %v5035, %v5035
    %v5038 = vmul.f32 %v5036, %v5036
    %v5039 = vsel %vm97, %v5037, 0.0
    %5040 = vadd.xlane.f32.xlu0 %v5039
    %v5041 = vpop.xlane.xlu0 %5040
    %v5042 = vsel %vm97, %v5038, 0.0
    %5043 = vadd.xlane.f32.xlu0 %v5042
    %v5044 = vpop.xlane.xlu0 %5043
    %v5045 = vmul.f32 %v5041, %v238
    %v5046 = vmul.f32 %v5044, %v238
    %v5047 = vadd.f32 %v5045, 1e-05
    %v5048 = vadd.f32 %v5046, 1e-05
    %v5049 = vrsqrt.pop %v5047
    %v5050 = vrsqrt.pop %v5048
    %v5051 = vmul.f32 %v5035, %v5049
    %v5052 = vmul.f32 %v5036, %v5050
    %v5053 = vlaneseq
    %v5054 = vshrl.u32 %v5053, 7
    %v5055 = vsub.s32 3, %v5054
    %v5056 = vrot.slane %v3856, %v5055
    %v5057 = vmul.f32 %v5051, %v5056
    %v5058 = vmul.f32 %v5052, %v5056
    %v5059 = vlaneseq
    %v5060 = vshrl.u32 %v5059, 7
    %v5061 = vsub.s32 4, %v5060
    %v5062 = vrot.slane %v3856, %v5061
    %v5063 = vadd.f32 %v5057, %v5062
    %v5064 = vadd.f32 %v5058, %v5062
    %s5065 = scalar_lea.vmem %s16, 128
    %v5066 = vld [vmem:[%s5065] sm:$0xff]
    %v5067 = vld [vmem:[%s5065 + $0x8] sm:$0xff]
    %v5068 = vld [vmem:[%s5065 + $0x10] sm:$0xff]
    %v5069 = vld [vmem:[%s5065 + $0x18] sm:$0xff]
    %v5070 = vld [vmem:[%s5065 + $0x20] sm:$0xff]
    %v5071 = vld [vmem:[%s5065 + $0x28] sm:$0xff]
    %v5072 = vld [vmem:[%s5065 + $0x30] sm:$0xff]
    %v5073 = vld [vmem:[%s5065 + $0x38] sm:$0xff]
    %s5074 = scalar_lea.vmem %s13, 2
    %v5075 = vld [vmem:[%s5074] sm:$0x1]
    %v5077 = vlaneseq
    %v5078 = vshrl.u32 %v5077, 7
    %v5079 = vsub.s32 0, %v5078
    %v5080 = vrot.slane %v5075, %v5079
    %v5083 = vsel %vm97, %v5063, 0
    %v5086 = vsel %vm97, %v5064, 0
    %5088 = vmatprep.subr.mxu0 0.0
    %5089 = vmatpush1.msra.mxu0 %v5066
    %5090 = vmatprep.subr.mxu0 0.0
    %5091 = vmatpush1.msra.mxu0 %v5067
    %5092 = vmatprep.subr.mxu0 0.0
    %5093 = vmatpush1.msra.mxu0 %v5068
    %5094 = vmatprep.subr.mxu0 0.0
    %5095 = vmatpush1.msra.mxu0 %v5069
    %5096 = vmatprep.subr.mxu0 0.0
    %5097 = vmatpush1.msra.mxu0 %v5070
    %5098 = vmatprep.subr.mxu0 0.0
    %5099 = vmatpush1.msra.mxu0 %v5071
    %5100 = vmatprep.subr.mxu0 0.0
    %5101 = vmatpush1.msra.mxu0 %v5072
    %5102 = vmatprep.subr.mxu0 0.0
    %5103 = vmatpush1.msra.mxu0 %v5073
    %5104 = vmatprep.subr.mxu0 0.0
    %5105 = vmatpush1.msra.mxu0 0.0
    %5106 = vmatprep.subr.mxu0 0.0
    %5107 = vmatpush1.msra.mxu0 0.0
    %5108 = vmatprep.subr.mxu0 0.0
    %5109 = vmatpush1.msra.mxu0 0.0
    %5110 = vmatprep.subr.mxu0 0.0
    %5111 = vmatpush1.msra.mxu0 0.0
    %5112 = vmatprep.subr.mxu0 0.0
    %5113 = vmatpush1.msra.mxu0 0.0
    %5114 = vmatprep.subr.mxu0 0.0
    %5115 = vmatpush1.msra.mxu0 0.0
    %5116 = vmatprep.subr.mxu0 0.0
    %5117 = vmatpush1.msra.mxu0 0.0
    %5118 = vmatprep.subr.mxu0 0.0
    %5119 = vmatpush1.msra.mxu0 0.0
    %5120 = vmatprep.subr.mxu0 0.0
    %5121 = vmatpush1.msra.mxu0 0.0
    %5122 = vmatprep.subr.mxu0 0.0
    %5123 = vmatpush1.msra.mxu0 0.0
    %5124 = vmatprep.subr.mxu0 0.0
    %5125 = vmatpush1.msra.mxu0 0.0
    %5126 = vmatprep.subr.mxu0 0.0
    %5127 = vmatpush1.msra.mxu0 0.0
    %5128 = vmatprep.subr.mxu0 0.0
    %5129 = vmatpush1.msra.mxu0 0.0
    %5130 = vmatprep.subr.mxu0 0.0
    %5131 = vmatpush1.msra.mxu0 0.0
    %5132 = vmatprep.subr.mxu0 0.0
    %5133 = vmatpush1.msra.mxu0 0.0
    %5134 = vmatprep.subr.mxu0 0.0
    %5135 = vmatpush1.msra.mxu0 0.0
    %5136 = vmatprep.subr.mxu0 0.0
    %5137 = vmatpush1.msra.mxu0 0.0
    %5138 = vmatprep.subr.mxu0 0.0
    %5139 = vmatpush1.msra.mxu0 0.0
    %5140 = vmatprep.subr.mxu0 0.0
    %5141 = vmatpush1.msra.mxu0 0.0
    %5142 = vmatprep.subr.mxu0 0.0
    %5143 = vmatpush1.msra.mxu0 0.0
    %5144 = vmatprep.subr.mxu0 0.0
    %5145 = vmatpush1.msra.mxu0 0.0
    %5146 = vmatprep.subr.mxu0 0.0
    %5147 = vmatpush1.msra.mxu0 0.0
    %5148 = vmatprep.subr.mxu0 0.0
    %5149 = vmatpush1.msra.mxu0 0.0
    %5150 = vmatprep.subr.mxu0 0.0
    %5151 = vmatpush1.msra.mxu0 0.0
    %5152 = vmatprep.mubr.f32.mxu0 0.0
    %5153 = vmatmul.mubr.f32.gmra.mrb[0].mxu0 %v5083
    %v5154 = vpop.f32.mrb[0].mxu0
    %v5155 = vadd.f32 %v5080, %v5154
    %v5156 = vpop.f32.mrb[0].mxu0
    %5157 = vmatprep.mubr.f32.mxu0 0.0
    %5158 = vmatmul.mubr.f32.gmra.mrb[0].mxu0 %v5086
    %v5159 = vpop.f32.mrb[0].mxu0
    %v5160 = vadd.f32 %v5080, %v5159
    %v5161 = vpop.f32.mrb[0].mxu0
    %5162 = vdwg.mxu0
    %v5163 = vmul.f32 %v5155, %v5155
    %v5164 = vmul.f32 %v5160, %v5160
    %v5165 = vmul.f32 %v5155, %v5163
    %v5166 = vmul.f32 %v5160, %v5164
    %v5167 = vmul.f32 %v5165, 0.044715
    %v5168 = vmul.f32 %v5166, 0.044715
    %v5169 = vadd.f32 %v5155, %v5167
    %v5170 = vadd.f32 %v5160, %v5168
    %v5171 = vmul.f32 %v5169, 0.7978846
    %v5172 = vmul.f32 %v5170, 0.7978846
    %v5173 = vtanh.pop %v5171
    %v5174 = vtanh.pop %v5172
    %v5175 = vadd.f32 %v5173, 1.0
    %v5176 = vadd.f32 %v5174, 1.0
    %v5177 = vmul.f32 %v5175, 0.5
    %v5178 = vmul.f32 %v5176, 0.5
    %v5179 = vmul.f32 %v5155, %v5177
    %v5180 = vmul.f32 %v5160, %v5178
    %s5181 = scalar_lea.vmem %s17, 256
    %v5182 = vld [vmem:[%s5181] sm:$0xff]
    %v5183 = vld [vmem:[%s5181 + $0x8] sm:$0xff]
    %v5184 = vld [vmem:[%s5181 + $0x10] sm:$0xff]
    %v5185 = vld [vmem:[%s5181 + $0x18] sm:$0xff]
    %v5186 = vld [vmem:[%s5181 + $0x20] sm:$0xff]
    %v5187 = vld [vmem:[%s5181 + $0x28] sm:$0xff]
    %v5188 = vld [vmem:[%s5181 + $0x30] sm:$0xff]
    %v5189 = vld [vmem:[%s5181 + $0x38] sm:$0xff]
    %v5190 = vld [vmem:[%s5181 + $0x40] sm:$0xff]
    %v5191 = vld [vmem:[%s5181 + $0x48] sm:$0xff]
    %v5192 = vld [vmem:[%s5181 + $0x50] sm:$0xff]
    %v5193 = vld [vmem:[%s5181 + $0x58] sm:$0xff]
    %v5194 = vld [vmem:[%s5181 + $0x60] sm:$0xff]
    %v5195 = vld [vmem:[%s5181 + $0x68] sm:$0xff]
    %v5196 = vld [vmem:[%s5181 + $0x70] sm:$0xff]
    %v5197 = vld [vmem:[%s5181 + $0x78] sm:$0xff]
    %5198 = vmatprep.subr.mxu0 0.0
    %5199 = vmatpush1.msra.mxu0 %v5182
    %5200 = vmatprep.subr.mxu0 0.0
    %5201 = vmatpush1.msra.mxu0 %v5183
    %5202 = vmatprep.subr.mxu0 0.0
    %5203 = vmatpush1.msra.mxu0 %v5184
    %5204 = vmatprep.subr.mxu0 0.0
    %5205 = vmatpush1.msra.mxu0 %v5185
    %5206 = vmatprep.subr.mxu0 0.0
    %5207 = vmatpush1.msra.mxu0 %v5186
    %5208 = vmatprep.subr.mxu0 0.0
    %5209 = vmatpush1.msra.mxu0 %v5187
    %5210 = vmatprep.subr.mxu0 0.0
    %5211 = vmatpush1.msra.mxu0 %v5188
    %5212 = vmatprep.subr.mxu0 0.0
    %5213 = vmatpush1.msra.mxu0 %v5189
    %5214 = vmatprep.subr.mxu0 0.0
    %5215 = vmatpush1.msra.mxu0 %v5190
    %5216 = vmatprep.subr.mxu0 0.0
    %5217 = vmatpush1.msra.mxu0 %v5191
    %5218 = vmatprep.subr.mxu0 0.0
    %5219 = vmatpush1.msra.mxu0 %v5192
    %5220 = vmatprep.subr.mxu0 0.0
    %5221 = vmatpush1.msra.mxu0 %v5193
    %5222 = vmatprep.subr.mxu0 0.0
    %5223 = vmatpush1.msra.mxu0 %v5194
    %5224 = vmatprep.subr.mxu0 0.0
    %5225 = vmatpush1.msra.mxu0 %v5195
    %5226 = vmatprep.subr.mxu0 0.0
    %5227 = vmatpush1.msra.mxu0 %v5196
    %5228 = vmatprep.subr.mxu0 0.0
    %5229 = vmatpush1.msra.mxu0 %v5197
    %5230 = vmatprep.subr.mxu0 0.0
    %5231 = vmatpush1.msra.mxu0 0.0
    %5232 = vmatprep.subr.mxu0 0.0
    %5233 = vmatpush1.msra.mxu0 0.0
    %5234 = vmatprep.subr.mxu0 0.0
    %5235 = vmatpush1.msra.mxu0 0.0
    %5236 = vmatprep.subr.mxu0 0.0
    %5237 = vmatpush1.msra.mxu0 0.0
    %5238 = vmatprep.subr.mxu0 0.0
    %5239 = vmatpush1.msra.mxu0 0.0
    %5240 = vmatprep.subr.mxu0 0.0
    %5241 = vmatpush1.msra.mxu0 0.0
    %5242 = vmatprep.subr.mxu0 0.0
    %5243 = vmatpush1.msra.mxu0 0.0
    %5244 = vmatprep.subr.mxu0 0.0
    %5245 = vmatpush1.msra.mxu0 0.0
    %5246 = vmatprep.subr.mxu0 0.0
    %5247 = vmatpush1.msra.mxu0 0.0
    %5248 = vmatprep.subr.mxu0 0.0
    %5249 = vmatpush1.msra.mxu0 0.0
    %5250 = vmatprep.subr.mxu0 0.0
    %5251 = vmatpush1.msra.mxu0 0.0
    %5252 = vmatprep.subr.mxu0 0.0
    %5253 = vmatpush1.msra.mxu0 0.0
    %5254 = vmatprep.subr.mxu0 0.0
    %5255 = vmatpush1.msra.mxu0 0.0
    %5256 = vmatprep.subr.mxu0 0.0
    %5257 = vmatpush1.msra.mxu0 0.0
    %5258 = vmatprep.subr.mxu0 0.0
    %5259 = vmatpush1.msra.mxu0 0.0
    %5260 = vmatprep.subr.mxu0 0.0
    %5261 = vmatpush1.msra.mxu0 0.0
    %5262 = vmatprep.mubr.f32.mxu0 0.0
    %5263 = vmatmul.mubr.f32.gmra.mrb[0].mxu0 %v5179
    %v5264 = vpop.f32.mrb[0].mxu0
    %v5265 = vadd.f32 0.0, %v5264
    %v5266 = vpop.f32.mrb[0].mxu0
    %5267 = vmatprep.mubr.f32.mxu0 0.0
    %5268 = vmatmul.mubr.f32.gmra.mrb[0].mxu0 %v5180
    %v5269 = vpop.f32.mrb[0].mxu0
    %v5270 = vadd.f32 0.0, %v5269
    %v5271 = vpop.f32.mrb[0].mxu0
    %5272 = vdwg.mxu0
    %v5273 = vadd.f32 %v5025, %v5265
    %v5274 = vadd.f32 %v5026, %v5270
    %v5275 = vlaneseq
    %v5276 = vshrl.u32 %v5275, 7
    %v5277 = vsub.s32 5, %v5276
    %v5278 = vrot.slane %v3856, %v5277
    %v5279 = vadd.f32 %v5273, %v5278
    %v5280 = vadd.f32 %v5274, %v5278
    %s5281 = scalar_lea.vmem %s12, 24
    %v5282 = vld [vmem:[%s5281] sm:$0x3f]
    %s5283 = scalar_lea.vmem %s11, 96
    %v5284 = vld [vmem:[%s5283] sm:$0xff]
    %v5285 = vld [vmem:[%s5283 + $0x8] sm:$0xff]
    %v5286 = vld [vmem:[%s5283 + $0x10] sm:$0xff]
    %v5287 = vld [vmem:[%s5283 + $0x18] sm:$0x7]
    %5288 = vmatprep.subr.mxu0 0.0
    %5289 = vmatpush1.msra.mxu0 %v5279
    %5290 = vmatprep.subr.mxu0 0.0
    %5291 = vmatpush1.msra.mxu0 %v5280
    %5292 = vmatprep.subr.mxu0 0.0
    %5293 = vmatpush1.msra.mxu0 0.0
    %5294 = vmatprep.subr.mxu0 0.0
    %5295 = vmatpush1.msra.mxu0 0.0
    %5296 = vmatprep.subr.mxu0 0.0
    %5297 = vmatpush1.msra.mxu0 0.0
    %5298 = vmatprep.subr.mxu0 0.0
    %5299 = vmatpush1.msra.mxu0 0.0
    %5300 = vmatprep.subr.mxu0 0.0
    %5301 = vmatpush1.msra.mxu0 0.0
    %5302 = vmatprep.subr.mxu0 0.0
    %5303 = vmatpush1.msra.mxu0 0.0
    %5304 = vmatprep.subr.mxu0 0.0
    %5305 = vmatpush1.msra.mxu0 0.0
    %5306 = vmatprep.subr.mxu0 0.0
    %5307 = vmatpush1.msra.mxu0 0.0
    %5308 = vmatprep.subr.mxu0 0.0
    %5309 = vmatpush1.msra.mxu0 0.0
    %5310 = vmatprep.subr.mxu0 0.0
    %5311 = vmatpush1.msra.mxu0 0.0
    %5312 = vmatprep.subr.mxu0 0.0
    %5313 = vmatpush1.msra.mxu0 0.0
    %5314 = vmatprep.subr.mxu0 0.0
    %5315 = vmatpush1.msra.mxu0 0.0
    %5316 = vmatprep.subr.mxu0 0.0
    %5317 = vmatpush1.msra.mxu0 0.0
    %5318 = vmatprep.subr.mxu0 0.0
    %5319 = vmatpush1.msra.mxu0 0.0
    %5320 = vmatprep.subr.mxu0 0.0
    %5321 = vmatpush1.msra.mxu0 0.0
    %5322 = vmatprep.subr.mxu0 0.0
    %5323 = vmatpush1.msra.mxu0 0.0
    %5324 = vmatprep.subr.mxu0 0.0
    %5325 = vmatpush1.msra.mxu0 0.0
    %5326 = vmatprep.subr.mxu0 0.0
    %5327 = vmatpush1.msra.mxu0 0.0
    %5328 = vmatprep.subr.mxu0 0.0
    %5329 = vmatpush1.msra.mxu0 0.0
    %5330 = vmatprep.subr.mxu0 0.0
    %5331 = vmatpush1.msra.mxu0 0.0
    %5332 = vmatprep.subr.mxu0 0.0
    %5333 = vmatpush1.msra.mxu0 0.0
    %5334 = vmatprep.subr.mxu0 0.0
    %5335 = vmatpush1.msra.mxu0 0.0
    %5336 = vmatprep.subr.mxu0 0.0
    %5337 = vmatpush1.msra.mxu0 0.0
    %5338 = vmatprep.subr.mxu0 0.0
    %5339 = vmatpush1.msra.mxu0 0.0
    %5340 = vmatprep.subr.mxu0 0.0
    %5341 = vmatpush1.msra.mxu0 0.0
    %5342 = vmatprep.subr.mxu0 0.0
    %5343 = vmatpush1.msra.mxu0 0.0
    %5344 = vmatprep.subr.mxu0 0.0
    %5345 = vmatpush1.msra.mxu0 0.0
    %5346 = vmatprep.subr.mxu0 0.0
    %5347 = vmatpush1.msra.mxu0 0.0
    %5348 = vmatprep.subr.mxu0 0.0
    %5349 = vmatpush1.msra.mxu0 0.0
    %5350 = vmatprep.subr.mxu0 0.0
    %5351 = vmatpush1.msra.mxu0 0.0
    %5352 = vmatprep.mubr.f32.mxu0 0.0
    %5353 = vmatmul.mubr.f32.gmra.mrb[0].mxu0 %v807
    %v5354 = vpop.f32.mrb[0].mxu0
    %v5355 = vadd.f32 0.0, %v5354
    %v5356 = vpop.f32.mrb[0].mxu0
    %5357 = vmatprep.mubr.f32.mxu0 0.0
    %5358 = vmatmul.mubr.f32.gmra.mrb[0].mxu0 %v810
    %v5359 = vpop.f32.mrb[0].mxu0
    %v5360 = vadd.f32 0.0, %v5359
    %v5361 = vpop.f32.mrb[0].mxu0
    %5362 = vmatprep.mubr.f32.mxu0 0.0
    %5363 = vmatmul.mubr.f32.gmra.mrb[0].mxu0 %v813
    %v5364 = vpop.f32.mrb[0].mxu0
    %v5365 = vadd.f32 0.0, %v5364
    %v5366 = vpop.f32.mrb[0].mxu0
    %5367 = vmatprep.mubr.f32.mxu0 0.0
    %5368 = vmatmul.mubr.f32.gmra.mrb[0].mxu0 %v816
    %v5369 = vpop.f32.mrb[0].mxu0
    %v5370 = vadd.f32 0.0, %v5369
    %v5371 = vpop.f32.mrb[0].mxu0
    %5372 = vmatprep.mubr.f32.mxu0 0.0
    %5373 = vmatmul.mubr.f32.gmra.mrb[0].mxu0 %v819
    %v5374 = vpop.f32.mrb[0].mxu0
    %v5375 = vadd.f32 0.0, %v5374
    %v5376 = vpop.f32.mrb[0].mxu0
    %5377 = vmatprep.mubr.f32.mxu0 0.0
    %5378 = vmatmul.mubr.f32.gmra.mrb[0].mxu0 %v822
    %v5379 = vpop.f32.mrb[0].mxu0
    %v5380 = vadd.f32 0.0, %v5379
    %v5381 = vpop.f32.mrb[0].mxu0
    %5382 = vmatprep.mubr.f32.mxu0 0.0
    %5383 = vmatmul.mubr.f32.gmra.mrb[0].mxu0 %v825
    %v5384 = vpop.f32.mrb[0].mxu0
    %v5385 = vadd.f32 0.0, %v5384
    %v5386 = vpop.f32.mrb[0].mxu0
    %5387 = vmatprep.mubr.f32.mxu0 0.0
    %5388 = vmatmul.mubr.f32.gmra.mrb[0].mxu0 %v828
    %v5389 = vpop.f32.mrb[0].mxu0
    %v5390 = vadd.f32 0.0, %v5389
    %v5391 = vpop.f32.mrb[0].mxu0
    %5392 = vmatprep.mubr.f32.mxu0 0.0
    %5393 = vmatmul.mubr.f32.gmra.mrb[0].mxu0 %v831
    %v5394 = vpop.f32.mrb[0].mxu0
    %v5395 = vadd.f32 0.0, %v5394
    %v5396 = vpop.f32.mrb[0].mxu0
    %5397 = vmatprep.mubr.f32.mxu0 0.0
    %5398 = vmatmul.mubr.f32.gmra.mrb[0].mxu0 %v834
    %v5399 = vpop.f32.mrb[0].mxu0
    %v5400 = vadd.f32 0.0, %v5399
    %v5401 = vpop.f32.mrb[0].mxu0
    %5402 = vmatprep.mubr.f32.mxu0 0.0
    %5403 = vmatmul.mubr.f32.gmra.mrb[0].mxu0 %v837
    %v5404 = vpop.f32.mrb[0].mxu0
    %v5405 = vadd.f32 0.0, %v5404
    %v5406 = vpop.f32.mrb[0].mxu0
    %5407 = vmatprep.mubr.f32.mxu0 0.0
    %5408 = vmatmul.mubr.f32.gmra.mrb[0].mxu0 %v840
    %v5409 = vpop.f32.mrb[0].mxu0
    %v5410 = vadd.f32 0.0, %v5409
    %v5411 = vpop.f32.mrb[0].mxu0
    %5412 = vmatprep.mubr.f32.mxu0 0.0
    %5413 = vmatmul.mubr.f32.gmra.mrb[0].mxu0 %v843
    %v5414 = vpop.f32.mrb[0].mxu0
    %v5415 = vadd.f32 0.0, %v5414
    %v5416 = vpop.f32.mrb[0].mxu0
    %5417 = vmatprep.mubr.f32.mxu0 0.0
    %5418 = vmatmul.mubr.f32.gmra.mrb[0].mxu0 %v846
    %v5419 = vpop.f32.mrb[0].mxu0
    %v5420 = vadd.f32 0.0, %v5419
    %v5421 = vpop.f32.mrb[0].mxu0
    %5422 = vmatprep.mubr.f32.mxu0 0.0
    %5423 = vmatmul.mubr.f32.gmra.mrb[0].mxu0 %v849
    %v5424 = vpop.f32.mrb[0].mxu0
    %v5425 = vadd.f32 0.0, %v5424
    %v5426 = vpop.f32.mrb[0].mxu0
    %5427 = vmatprep.mubr.f32.mxu0 0.0
    %5428 = vmatmul.mubr.f32.gmra.mrb[0].mxu0 %v852
    %v5429 = vpop.f32.mrb[0].mxu0
    %v5430 = vadd.f32 0.0, %v5429
    %v5431 = vpop.f32.mrb[0].mxu0
    %5432 = vmatprep.mubr.f32.mxu0 0.0
    %5433 = vmatmul.mubr.f32.gmra.mrb[0].mxu0 %v855
    %v5434 = vpop.f32.mrb[0].mxu0
    %v5435 = vadd.f32 0.0, %v5434
    %v5436 = vpop.f32.mrb[0].mxu0
    %5437 = vmatprep.mubr.f32.mxu0 0.0
    %5438 = vmatmul.mubr.f32.gmra.mrb[0].mxu0 %v858
    %v5439 = vpop.f32.mrb[0].mxu0
    %v5440 = vadd.f32 0.0, %v5439
    %v5441 = vpop.f32.mrb[0].mxu0
    %5442 = vmatprep.mubr.f32.mxu0 0.0
    %5443 = vmatmul.mubr.f32.gmra.mrb[0].mxu0 %v861
    %v5444 = vpop.f32.mrb[0].mxu0
    %v5445 = vadd.f32 0.0, %v5444
    %v5446 = vpop.f32.mrb[0].mxu0
    %5447 = vmatprep.mubr.f32.mxu0 0.0
    %5448 = vmatmul.mubr.f32.gmra.mrb[0].mxu0 %v864
    %v5449 = vpop.f32.mrb[0].mxu0
    %v5450 = vadd.f32 0.0, %v5449
    %v5451 = vpop.f32.mrb[0].mxu0
    %5452 = vmatprep.mubr.f32.mxu0 0.0
    %5453 = vmatmul.mubr.f32.gmra.mrb[0].mxu0 %v867
    %v5454 = vpop.f32.mrb[0].mxu0
    %v5455 = vadd.f32 0.0, %v5454
    %v5456 = vpop.f32.mrb[0].mxu0
    %5457 = vmatprep.mubr.f32.mxu0 0.0
    %5458 = vmatmul.mubr.f32.gmra.mrb[0].mxu0 %v870
    %v5459 = vpop.f32.mrb[0].mxu0
    %v5460 = vadd.f32 0.0, %v5459
    %v5461 = vpop.f32.mrb[0].mxu0
    %5462 = vmatprep.mubr.f32.mxu0 0.0
    %5463 = vmatmul.mubr.f32.gmra.mrb[0].mxu0 %v873
    %v5464 = vpop.f32.mrb[0].mxu0
    %v5465 = vadd.f32 0.0, %v5464
    %v5466 = vpop.f32.mrb[0].mxu0
    %5467 = vmatprep.mubr.f32.mxu0 0.0
    %5468 = vmatmul.mubr.f32.gmra.mrb[0].mxu0 %v876
    %v5469 = vpop.f32.mrb[0].mxu0
    %v5470 = vadd.f32 0.0, %v5469
    %v5471 = vpop.f32.mrb[0].mxu0
    %5472 = vmatprep.mubr.f32.mxu0 0.0
    %5473 = vmatmul.mubr.f32.gmra.mrb[0].mxu0 %v879
    %v5474 = vpop.f32.mrb[0].mxu0
    %v5475 = vadd.f32 0.0, %v5474
    %v5476 = vpop.f32.mrb[0].mxu0
    %5477 = vmatprep.mubr.f32.mxu0 0.0
    %5478 = vmatmul.mubr.f32.gmra.mrb[0].mxu0 %v882
    %v5479 = vpop.f32.mrb[0].mxu0
    %v5480 = vadd.f32 0.0, %v5479
    %v5481 = vpop.f32.mrb[0].mxu0
    %5482 = vmatprep.mubr.f32.mxu0 0.0
    %5483 = vmatmul.mubr.f32.gmra.mrb[0].mxu0 %v885
    %v5484 = vpop.f32.mrb[0].mxu0
    %v5485 = vadd.f32 0.0, %v5484
    %v5486 = vpop.f32.mrb[0].mxu0
    %5487 = vmatprep.mubr.f32.mxu0 0.0
    %5488 = vmatmul.mubr.f32.gmra.mrb[0].mxu0 %v888
    %v5489 = vpop.f32.mrb[0].mxu0
    %v5490 = vadd.f32 0.0, %v5489
    %v5491 = vpop.f32.mrb[0].mxu0
    %5492 = vmatprep.mubr.f32.mxu0 0.0
    %5493 = vmatmul.mubr.f32.gmra.mrb[0].mxu0 %v891
    %v5494 = vpop.f32.mrb[0].mxu0
    %v5495 = vadd.f32 0.0, %v5494
    %v5496 = vpop.f32.mrb[0].mxu0
    %5497 = vmatprep.mubr.f32.mxu0 0.0
    %5498 = vmatmul.mubr.f32.gmra.mrb[0].mxu0 %v894
    %v5499 = vpop.f32.mrb[0].mxu0
    %v5500 = vadd.f32 0.0, %v5499
    %v5501 = vpop.f32.mrb[0].mxu0
    %5502 = vmatprep.mubr.f32.mxu0 0.0
    %5503 = vmatmul.mubr.f32.gmra.mrb[0].mxu0 %v897
    %v5504 = vpop.f32.mrb[0].mxu0
    %v5505 = vadd.f32 0.0, %v5504
    %v5506 = vpop.f32.mrb[0].mxu0
    %5507 = vmatprep.mubr.f32.mxu0 0.0
    %5508 = vmatmul.mubr.f32.gmra.mrb[0].mxu0 %v900
    %v5509 = vpop.f32.mrb[0].mxu0
    %v5510 = vadd.f32 0.0, %v5509
    %v5511 = vpop.f32.mrb[0].mxu0
    %5512 = vmatprep.mubr.f32.mxu0 0.0
    %5513 = vmatmul.mubr.f32.gmra.mrb[0].mxu0 %v903
    %v5514 = vpop.f32.mrb[0].mxu0
    %v5515 = vadd.f32 0.0, %v5514
    %v5516 = vpop.f32.mrb[0].mxu0
    %5517 = vmatprep.mubr.f32.mxu0 0.0
    %5518 = vmatmul.mubr.f32.gmra.mrb[0].mxu0 %v906
    %v5519 = vpop.f32.mrb[0].mxu0
    %v5520 = vadd.f32 0.0, %v5519
    %v5521 = vpop.f32.mrb[0].mxu0
    %5522 = vmatprep.mubr.f32.mxu0 0.0
    %5523 = vmatmul.mubr.f32.gmra.mrb[0].mxu0 %v909
    %v5524 = vpop.f32.mrb[0].mxu0
    %v5525 = vadd.f32 0.0, %v5524
    %v5526 = vpop.f32.mrb[0].mxu0
    %5527 = vmatprep.mubr.f32.mxu0 0.0
    %5528 = vmatmul.mubr.f32.gmra.mrb[0].mxu0 %v912
    %v5529 = vpop.f32.mrb[0].mxu0
    %v5530 = vadd.f32 0.0, %v5529
    %v5531 = vpop.f32.mrb[0].mxu0
    %5532 = vmatprep.mubr.f32.mxu0 0.0
    %5533 = vmatmul.mubr.f32.gmra.mrb[0].mxu0 %v915
    %v5534 = vpop.f32.mrb[0].mxu0
    %v5535 = vadd.f32 0.0, %v5534
    %v5536 = vpop.f32.mrb[0].mxu0
    %5537 = vmatprep.mubr.f32.mxu0 0.0
    %5538 = vmatmul.mubr.f32.gmra.mrb[0].mxu0 %v918
    %v5539 = vpop.f32.mrb[0].mxu0
    %v5540 = vadd.f32 0.0, %v5539
    %v5541 = vpop.f32.mrb[0].mxu0
    %5542 = vmatprep.mubr.f32.mxu0 0.0
    %5543 = vmatmul.mubr.f32.gmra.mrb[0].mxu0 %v921
    %v5544 = vpop.f32.mrb[0].mxu0
    %v5545 = vadd.f32 0.0, %v5544
    %v5546 = vpop.f32.mrb[0].mxu0
    %5547 = vmatprep.mubr.f32.mxu0 0.0
    %5548 = vmatmul.mubr.f32.gmra.mrb[0].mxu0 %v924
    %v5549 = vpop.f32.mrb[0].mxu0
    %v5550 = vadd.f32 0.0, %v5549
    %v5551 = vpop.f32.mrb[0].mxu0
    %5552 = vmatprep.mubr.f32.mxu0 0.0
    %5553 = vmatmul.mubr.f32.gmra.mrb[0].mxu0 %v927
    %v5554 = vpop.f32.mrb[0].mxu0
    %v5555 = vadd.f32 0.0, %v5554
    %v5556 = vpop.f32.mrb[0].mxu0
    %5557 = vmatprep.mubr.f32.mxu0 0.0
    %5558 = vmatmul.mubr.f32.gmra.mrb[0].mxu0 %v930
    %v5559 = vpop.f32.mrb[0].mxu0
    %v5560 = vadd.f32 0.0, %v5559
    %v5561 = vpop.f32.mrb[0].mxu0
    %5562 = vmatprep.mubr.f32.mxu0 0.0
    %5563 = vmatmul.mubr.f32.gmra.mrb[0].mxu0 %v933
    %v5564 = vpop.f32.mrb[0].mxu0
    %v5565 = vadd.f32 0.0, %v5564
    %v5566 = vpop.f32.mrb[0].mxu0
    %5567 = vmatprep.mubr.f32.mxu0 0.0
    %5568 = vmatmul.mubr.f32.gmra.mrb[0].mxu0 %v936
    %v5569 = vpop.f32.mrb[0].mxu0
    %v5570 = vadd.f32 0.0, %v5569
    %v5571 = vpop.f32.mrb[0].mxu0
    %5572 = vmatprep.mubr.f32.mxu0 0.0
    %5573 = vmatmul.mubr.f32.gmra.mrb[0].mxu0 %v939
    %v5574 = vpop.f32.mrb[0].mxu0
    %v5575 = vadd.f32 0.0, %v5574
    %v5576 = vpop.f32.mrb[0].mxu0
    %5577 = vmatprep.mubr.f32.mxu0 0.0
    %5578 = vmatmul.mubr.f32.gmra.mrb[0].mxu0 %v942
    %v5579 = vpop.f32.mrb[0].mxu0
    %v5580 = vadd.f32 0.0, %v5579
    %v5581 = vpop.f32.mrb[0].mxu0
    %5582 = vmatprep.mubr.f32.mxu0 0.0
    %5583 = vmatmul.mubr.f32.gmra.mrb[0].mxu0 %v945
    %v5584 = vpop.f32.mrb[0].mxu0
    %v5585 = vadd.f32 0.0, %v5584
    %v5586 = vpop.f32.mrb[0].mxu0
    %5587 = vmatprep.mubr.f32.mxu0 0.0
    %5588 = vmatmul.mubr.f32.gmra.mrb[0].mxu0 %v948
    %v5589 = vpop.f32.mrb[0].mxu0
    %v5590 = vadd.f32 0.0, %v5589
    %v5591 = vpop.f32.mrb[0].mxu0
    %5592 = vmatprep.mubr.f32.mxu0 0.0
    %5593 = vmatmul.mubr.f32.gmra.mrb[0].mxu0 %v951
    %v5594 = vpop.f32.mrb[0].mxu0
    %v5595 = vadd.f32 0.0, %v5594
    %v5596 = vpop.f32.mrb[0].mxu0
    %5597 = vmatprep.mubr.f32.mxu0 0.0
    %5598 = vmatmul.mubr.f32.gmra.mrb[0].mxu0 %v954
    %v5599 = vpop.f32.mrb[0].mxu0
    %v5600 = vadd.f32 0.0, %v5599
    %v5601 = vpop.f32.mrb[0].mxu0
    %5602 = vmatprep.mubr.f32.mxu0 0.0
    %5603 = vmatmul.mubr.f32.gmra.mrb[0].mxu0 %v957
    %v5604 = vpop.f32.mrb[0].mxu0
    %v5605 = vadd.f32 0.0, %v5604
    %v5606 = vpop.f32.mrb[0].mxu0
    %5607 = vmatprep.mubr.f32.mxu0 0.0
    %5608 = vmatmul.mubr.f32.gmra.mrb[0].mxu0 %v960
    %v5609 = vpop.f32.mrb[0].mxu0
    %v5610 = vadd.f32 0.0, %v5609
    %v5611 = vpop.f32.mrb[0].mxu0
    %5612 = vmatprep.mubr.f32.mxu0 0.0
    %5613 = vmatmul.mubr.f32.gmra.mrb[0].mxu0 %v963
    %v5614 = vpop.f32.mrb[0].mxu0
    %v5615 = vadd.f32 0.0, %v5614
    %v5616 = vpop.f32.mrb[0].mxu0
    %5617 = vmatprep.mubr.f32.mxu0 0.0
    %5618 = vmatmul.mubr.f32.gmra.mrb[0].mxu0 %v966
    %v5619 = vpop.f32.mrb[0].mxu0
    %v5620 = vadd.f32 0.0, %v5619
    %v5621 = vpop.f32.mrb[0].mxu0
    %5622 = vdwg.mxu0
    %v5623 = vlaneseq
    %v5624 = vshrl.u32 %v5623, 7
    %v5625 = vsub.s32 0, %v5624
    %v5626 = vrot.slane %v5284, %v5625
    %v5627 = vmul.f32 %v5355, %v5626
    %v5628 = vmul.f32 %v5360, %v5626
    %v5629 = vlaneseq
    %v5630 = vshrl.u32 %v5629, 7
    %v5631 = vsub.s32 0, %v5630
    %v5632 = vrot.slane %v5282, %v5631
    %v5633 = vadd.f32 %v5632, %v5627
    %v5634 = vadd.f32 %v5632, %v5628
    %v5635 = vlaneseq
    %v5636 = vshrl.u32 %v5635, 7
    %v5637 = vsub.s32 1, %v5636
    %v5638 = vrot.slane %v5284, %v5637
    %v5639 = vmul.f32 %v5365, %v5638
    %v5640 = vmul.f32 %v5370, %v5638
    %v5641 = vadd.f32 %v5633, %v5639
    %v5642 = vadd.f32 %v5634, %v5640
    %v5643 = vlaneseq
    %v5644 = vshrl.u32 %v5643, 7
    %v5645 = vsub.s32 2, %v5644
    %v5646 = vrot.slane %v5284, %v5645
    %v5647 = vmul.f32 %v5375, %v5646
    %v5648 = vmul.f32 %v5380, %v5646
    %v5649 = vadd.f32 %v5641, %v5647
    %v5650 = vadd.f32 %v5642, %v5648
    %v5651 = vlaneseq
    %v5652 = vshrl.u32 %v5651, 7
    %v5653 = vsub.s32 3, %v5652
    %v5654 = vrot.slane %v5284, %v5653
    %v5655 = vmul.f32 %v5385, %v5654
    %v5656 = vmul.f32 %v5390, %v5654
    %v5657 = vadd.f32 %v5649, %v5655
    %v5658 = vadd.f32 %v5650, %v5656
    %v5659 = vlaneseq
    %v5660 = vshrl.u32 %v5659, 7
    %v5661 = vsub.s32 4, %v5660
    %v5662 = vrot.slane %v5284, %v5661
    %v5663 = vmul.f32 %v5395, %v5662
    %v5664 = vmul.f32 %v5400, %v5662
    %v5665 = vadd.f32 %v5657, %v5663
    %v5666 = vadd.f32 %v5658, %v5664
    %v5667 = vlaneseq
    %v5668 = vshrl.u32 %v5667, 7
    %v5669 = vsub.s32 5, %v5668
    %v5670 = vrot.slane %v5284, %v5669
    %v5671 = vmul.f32 %v5405, %v5670
    %v5672 = vmul.f32 %v5410, %v5670
    %v5673 = vadd.f32 %v5665, %v5671
    %v5674 = vadd.f32 %v5666, %v5672
    %v5675 = vlaneseq
    %v5676 = vshrl.u32 %v5675, 7
    %v5677 = vsub.s32 6, %v5676
    %v5678 = vrot.slane %v5284, %v5677
    %v5679 = vmul.f32 %v5415, %v5678
    %v5680 = vmul.f32 %v5420, %v5678
    %v5681 = vadd.f32 %v5673, %v5679
    %v5682 = vadd.f32 %v5674, %v5680
    %v5683 = vlaneseq
    %v5684 = vshrl.u32 %v5683, 7
    %v5685 = vsub.s32 7, %v5684
    %v5686 = vrot.slane %v5284, %v5685
    %v5687 = vmul.f32 %v5425, %v5686
    %v5688 = vmul.f32 %v5430, %v5686
    %v5689 = vadd.f32 %v5681, %v5687
    %v5690 = vadd.f32 %v5682, %v5688
    %v5691 = vlaneseq
    %v5692 = vshrl.u32 %v5691, 7
    %v5693 = vsub.s32 0, %v5692
    %v5694 = vrot.slane %v5285, %v5693
    %v5695 = vmul.f32 %v5435, %v5694
    %v5696 = vmul.f32 %v5440, %v5694
    %v5697 = vadd.f32 %v5689, %v5695
    %v5698 = vadd.f32 %v5690, %v5696
    %v5699 = vlaneseq
    %v5700 = vshrl.u32 %v5699, 7
    %v5701 = vsub.s32 1, %v5700
    %v5702 = vrot.slane %v5285, %v5701
    %v5703 = vmul.f32 %v5445, %v5702
    %v5704 = vmul.f32 %v5450, %v5702
    %v5705 = vadd.f32 %v5697, %v5703
    %v5706 = vadd.f32 %v5698, %v5704
    %v5707 = vlaneseq
    %v5708 = vshrl.u32 %v5707, 7
    %v5709 = vsub.s32 2, %v5708
    %v5710 = vrot.slane %v5285, %v5709
    %v5711 = vmul.f32 %v5455, %v5710
    %v5712 = vmul.f32 %v5460, %v5710
    %v5713 = vadd.f32 %v5705, %v5711
    %v5714 = vadd.f32 %v5706, %v5712
    %v5715 = vlaneseq
    %v5716 = vshrl.u32 %v5715, 7
    %v5717 = vsub.s32 3, %v5716
    %v5718 = vrot.slane %v5285, %v5717
    %v5719 = vmul.f32 %v5465, %v5718
    %v5720 = vmul.f32 %v5470, %v5718
    %v5721 = vadd.f32 %v5713, %v5719
    %v5722 = vadd.f32 %v5714, %v5720
    %v5723 = vlaneseq
    %v5724 = vshrl.u32 %v5723, 7
    %v5725 = vsub.s32 4, %v5724
    %v5726 = vrot.slane %v5285, %v5725
    %v5727 = vmul.f32 %v5475, %v5726
    %v5728 = vmul.f32 %v5480, %v5726
    %v5729 = vadd.f32 %v5721, %v5727
    %v5730 = vadd.f32 %v5722, %v5728
    %v5731 = vlaneseq
    %v5732 = vshrl.u32 %v5731, 7
    %v5733 = vsub.s32 5, %v5732
    %v5734 = vrot.slane %v5285, %v5733
    %v5735 = vmul.f32 %v5485, %v5734
    %v5736 = vmul.f32 %v5490, %v5734
    %v5737 = vadd.f32 %v5729, %v5735
    %v5738 = vadd.f32 %v5730, %v5736
    %v5739 = vlaneseq
    %v5740 = vshrl.u32 %v5739, 7
    %v5741 = vsub.s32 6, %v5740
    %v5742 = vrot.slane %v5285, %v5741
    %v5743 = vmul.f32 %v5495, %v5742
    %v5744 = vmul.f32 %v5500, %v5742
    %v5745 = vadd.f32 %v5737, %v5743
    %v5746 = vadd.f32 %v5738, %v5744
    %v5747 = vlaneseq
    %v5748 = vshrl.u32 %v5747, 7
    %v5749 = vsub.s32 7, %v5748
    %v5750 = vrot.slane %v5285, %v5749
    %v5751 = vmul.f32 %v5505, %v5750
    %v5752 = vmul.f32 %v5510, %v5750
    %v5753 = vadd.f32 %v5745, %v5751
    %v5754 = vadd.f32 %v5746, %v5752
    %v5755 = vlaneseq
    %v5756 = vshrl.u32 %v5755, 7
    %v5757 = vsub.s32 0, %v5756
    %v5758 = vrot.slane %v5286, %v5757
    %v5759 = vmul.f32 %v5515, %v5758
    %v5760 = vmul.f32 %v5520, %v5758
    %v5761 = vadd.f32 %v5753, %v5759
    %v5762 = vadd.f32 %v5754, %v5760
    %v5763 = vlaneseq
    %v5764 = vshrl.u32 %v5763, 7
    %v5765 = vsub.s32 1, %v5764
    %v5766 = vrot.slane %v5286, %v5765
    %v5767 = vmul.f32 %v5525, %v5766
    %v5768 = vmul.f32 %v5530, %v5766
    %v5769 = vadd.f32 %v5761, %v5767
    %v5770 = vadd.f32 %v5762, %v5768
    %v5771 = vlaneseq
    %v5772 = vshrl.u32 %v5771, 7
    %v5773 = vsub.s32 2, %v5772
    %v5774 = vrot.slane %v5286, %v5773
    %v5775 = vmul.f32 %v5535, %v5774
    %v5776 = vmul.f32 %v5540, %v5774
    %v5777 = vadd.f32 %v5769, %v5775
    %v5778 = vadd.f32 %v5770, %v5776
    %v5779 = vlaneseq
    %v5780 = vshrl.u32 %v5779, 7
    %v5781 = vsub.s32 3, %v5780
    %v5782 = vrot.slane %v5286, %v5781
    %v5783 = vmul.f32 %v5545, %v5782
    %v5784 = vmul.f32 %v5550, %v5782
    %v5785 = vadd.f32 %v5777, %v5783
    %v5786 = vadd.f32 %v5778, %v5784
    %v5787 = vlaneseq
    %v5788 = vshrl.u32 %v5787, 7
    %v5789 = vsub.s32 4, %v5788
    %v5790 = vrot.slane %v5286, %v5789
    %v5791 = vmul.f32 %v5555, %v5790
    %v5792 = vmul.f32 %v5560, %v5790
    %v5793 = vadd.f32 %v5785, %v5791
    %v5794 = vadd.f32 %v5786, %v5792
    %v5795 = vlaneseq
    %v5796 = vshrl.u32 %v5795, 7
    %v5797 = vsub.s32 5, %v5796
    %v5798 = vrot.slane %v5286, %v5797
    %v5799 = vmul.f32 %v5565, %v5798
    %v5800 = vmul.f32 %v5570, %v5798
    %v5801 = vadd.f32 %v5793, %v5799
    %v5802 = vadd.f32 %v5794, %v5800
    %v5803 = vlaneseq
    %v5804 = vshrl.u32 %v5803, 7
    %v5805 = vsub.s32 6, %v5804
    %v5806 = vrot.slane %v5286, %v5805
    %v5807 = vmul.f32 %v5575, %v5806
    %v5808 = vmul.f32 %v5580, %v5806
    %v5809 = vadd.f32 %v5801, %v5807
    %v5810 = vadd.f32 %v5802, %v5808
    %v5811 = vlaneseq
    %v5812 = vshrl.u32 %v5811, 7
    %v5813 = vsub.s32 7, %v5812
    %v5814 = vrot.slane %v5286, %v5813
    %v5815 = vmul.f32 %v5585, %v5814
    %v5816 = vmul.f32 %v5590, %v5814
    %v5817 = vadd.f32 %v5809, %v5815
    %v5818 = vadd.f32 %v5810, %v5816
    %v5819 = vlaneseq
    %v5820 = vshrl.u32 %v5819, 7
    %v5821 = vsub.s32 0, %v5820
    %v5822 = vrot.slane %v5287, %v5821
    %v5823 = vmul.f32 %v5595, %v5822
    %v5824 = vmul.f32 %v5600, %v5822
    %v5825 = vadd.f32 %v5817, %v5823
    %v5826 = vadd.f32 %v5818, %v5824
    %v5827 = vlaneseq
    %v5828 = vshrl.u32 %v5827, 7
    %v5829 = vsub.s32 1, %v5828
    %v5830 = vrot.slane %v5287, %v5829
    %v5831 = vmul.f32 %v5605, %v5830
    %v5832 = vmul.f32 %v5610, %v5830
    %v5833 = vadd.f32 %v5825, %v5831
    %v5834 = vadd.f32 %v5826, %v5832
    %v5835 = vlaneseq
    %v5836 = vshrl.u32 %v5835, 7
    %v5837 = vsub.s32 2, %v5836
    %v5838 = vrot.slane %v5287, %v5837
    %v5839 = vmul.f32 %v5615, %v5838
    %v5840 = vmul.f32 %v5620, %v5838
    %v5841 = vadd.f32 %v5833, %v5839
    %v5842 = vadd.f32 %v5834, %v5840
    %v5843 = vadd.f32 %v5279, %v5841
    %v5844 = vadd.f32 %v5280, %v5842
    %v5845 = vsel %vm97, %v5843, 0.0
    %5846 = vadd.xlane.f32.xlu0 %v5845
    %v5847 = vpop.xlane.xlu0 %5846
    %v5848 = vsel %vm97, %v5844, 0.0
    %5849 = vadd.xlane.f32.xlu0 %v5848
    %v5850 = vpop.xlane.xlu0 %5849
    %v5851 = vmul.f32 %v5847, %v238
    %v5852 = vmul.f32 %v5850, %v238
    %v5853 = vsub.f32 %v5843, %v5851
    %v5854 = vsub.f32 %v5844, %v5852
    %v5855 = vmul.f32 %v5853, %v5853
    %v5856 = vmul.f32 %v5854, %v5854
    %v5857 = vsel %vm97, %v5855, 0.0
    %5858 = vadd.xlane.f32.xlu0 %v5857
    %v5859 = vpop.xlane.xlu0 %5858
    %v5860 = vsel %vm97, %v5856, 0.0
    %5861 = vadd.xlane.f32.xlu0 %v5860
    %v5862 = vpop.xlane.xlu0 %5861
    %v5863 = vmul.f32 %v5859, %v238
    %v5864 = vmul.f32 %v5862, %v238
    %v5865 = vadd.f32 %v5863, 1e-05
    %v5866 = vadd.f32 %v5864, 1e-05
    %v5867 = vrsqrt.pop %v5865
    %v5868 = vrsqrt.pop %v5866
    %v5869 = vmul.f32 %v5853, %v5867
    %v5870 = vmul.f32 %v5854, %v5868
    %v5871 = vlaneseq
    %v5872 = vshrl.u32 %v5871, 7
    %v5873 = vsub.s32 1, %v5872
    %v5874 = vrot.slane %v5282, %v5873
    %v5875 = vmul.f32 %v5869, %v5874
    %v5876 = vmul.f32 %v5870, %v5874
    %v5877 = vlaneseq
    %v5878 = vshrl.u32 %v5877, 7
    %v5879 = vsub.s32 2, %v5878
    %v5880 = vrot.slane %v5282, %v5879
    %v5881 = vadd.f32 %v5875, %v5880
    %v5882 = vadd.f32 %v5876, %v5880
    %s5883 = scalar_lea.vmem %s14, 384
    %v5884 = vld [vmem:[%s5883] sm:$0xff]
    %v5885 = vld [vmem:[%s5883 + $0x8] sm:$0xff]
    %v5886 = vld [vmem:[%s5883 + $0x10] sm:$0xff]
    %v5887 = vld [vmem:[%s5883 + $0x18] sm:$0xff]
    %v5888 = vld [vmem:[%s5883 + $0x20] sm:$0xff]
    %v5889 = vld [vmem:[%s5883 + $0x28] sm:$0xff]
    %v5890 = vld [vmem:[%s5883 + $0x30] sm:$0xff]
    %v5891 = vld [vmem:[%s5883 + $0x38] sm:$0xff]
    %v5892 = vld [vmem:[%s5883 + $0x40] sm:$0xff]
    %v5893 = vld [vmem:[%s5883 + $0x48] sm:$0xff]
    %v5894 = vld [vmem:[%s5883 + $0x50] sm:$0xff]
    %v5895 = vld [vmem:[%s5883 + $0x58] sm:$0xff]
    %v5896 = vld [vmem:[%s5883 + $0x60] sm:$0xff]
    %v5897 = vld [vmem:[%s5883 + $0x68] sm:$0xff]
    %v5898 = vld [vmem:[%s5883 + $0x70] sm:$0xff]
    %v5899 = vld [vmem:[%s5883 + $0x78] sm:$0xff]
    %v5901 = vsel %vm97, %v5881, 0
    %v5904 = vsel %vm97, %v5882, 0
    %5906 = vmatprep.subr.mxu0 %v5885
    %5907 = vmatpush1.msra.mxu0 %v5884
    %5908 = vmatprep.subr.mxu0 %v5887
    %5909 = vmatpush1.msra.mxu0 %v5886
    %5910 = vmatprep.subr.mxu0 %v5889
    %5911 = vmatpush1.msra.mxu0 %v5888
    %5912 = vmatprep.subr.mxu0 %v5891
    %5913 = vmatpush1.msra.mxu0 %v5890
    %5914 = vmatprep.subr.mxu0 %v5893
    %5915 = vmatpush1.msra.mxu0 %v5892
    %5916 = vmatprep.subr.mxu0 %v5895
    %5917 = vmatpush1.msra.mxu0 %v5894
    %5918 = vmatprep.subr.mxu0 %v5897
    %5919 = vmatpush1.msra.mxu0 %v5896
    %5920 = vmatprep.subr.mxu0 %v5899
    %5921 = vmatpush1.msra.mxu0 %v5898
    %5922 = vmatprep.subr.mxu0 0.0
    %5923 = vmatpush1.msra.mxu0 0.0
    %5924 = vmatprep.subr.mxu0 0.0
    %5925 = vmatpush1.msra.mxu0 0.0
    %5926 = vmatprep.subr.mxu0 0.0
    %5927 = vmatpush1.msra.mxu0 0.0
    %5928 = vmatprep.subr.mxu0 0.0
    %5929 = vmatpush1.msra.mxu0 0.0
    %5930 = vmatprep.subr.mxu0 0.0
    %5931 = vmatpush1.msra.mxu0 0.0
    %5932 = vmatprep.subr.mxu0 0.0
    %5933 = vmatpush1.msra.mxu0 0.0
    %5934 = vmatprep.subr.mxu0 0.0
    %5935 = vmatpush1.msra.mxu0 0.0
    %5936 = vmatprep.subr.mxu0 0.0
    %5937 = vmatpush1.msra.mxu0 0.0
    %5938 = vmatprep.subr.mxu0 0.0
    %5939 = vmatpush1.msra.mxu0 0.0
    %5940 = vmatprep.subr.mxu0 0.0
    %5941 = vmatpush1.msra.mxu0 0.0
    %5942 = vmatprep.subr.mxu0 0.0
    %5943 = vmatpush1.msra.mxu0 0.0
    %5944 = vmatprep.subr.mxu0 0.0
    %5945 = vmatpush1.msra.mxu0 0.0
    %5946 = vmatprep.subr.mxu0 0.0
    %5947 = vmatpush1.msra.mxu0 0.0
    %5948 = vmatprep.subr.mxu0 0.0
    %5949 = vmatpush1.msra.mxu0 0.0
    %5950 = vmatprep.subr.mxu0 0.0
    %5951 = vmatpush1.msra.mxu0 0.0
    %5952 = vmatprep.subr.mxu0 0.0
    %5953 = vmatpush1.msra.mxu0 0.0
    %5954 = vmatprep.subr.mxu0 0.0
    %5955 = vmatpush1.msra.mxu0 0.0
    %5956 = vmatprep.subr.mxu0 0.0
    %5957 = vmatpush1.msra.mxu0 0.0
    %5958 = vmatprep.subr.mxu0 0.0
    %5959 = vmatpush1.msra.mxu0 0.0
    %5960 = vmatprep.subr.mxu0 0.0
    %5961 = vmatpush1.msra.mxu0 0.0
    %5962 = vmatprep.subr.mxu0 0.0
    %5963 = vmatpush1.msra.mxu0 0.0
    %5964 = vmatprep.subr.mxu0 0.0
    %5965 = vmatpush1.msra.mxu0 0.0
    %5966 = vmatprep.subr.mxu0 0.0
    %5967 = vmatpush1.msra.mxu0 0.0
    %5968 = vmatprep.subr.mxu0 0.0
    %5969 = vmatpush1.msra.mxu0 0.0
    %5970 = vmatprep.mubr.f32.mxu0 0.0
    %5971 = vmatmul.mubr.f32.gmra.mrb[0].mxu0 %v5901
    %v5972 = vpop.f32.mrb[0].mxu0
    %v5973 = vadd.f32 0.0, %v5972
    %v5974 = vpop.f32.mrb[0].mxu0
    %v5975 = vadd.f32 0.0, %v5974
    %5976 = vmatprep.mubr.f32.mxu0 0.0
    %5977 = vmatmul.mubr.f32.gmra.mrb[0].mxu0 %v5904
    %v5978 = vpop.f32.mrb[0].mxu0
    %v5979 = vadd.f32 0.0, %v5978
    %v5980 = vpop.f32.mrb[0].mxu0
    %v5981 = vadd.f32 0.0, %v5980
    %5982 = vdwg.mxu0
    %v5983 = vmul.f32 %v5973, %v729
    %v5984 = vmul.f32 %v5979, %v730
    %v5985 = vmul.f32 %v5973, %v731
    %v5986 = vmul.f32 %v5979, %v732
    %v5987 = vmul.f32 %v5973, %v733
    %v5988 = vmul.f32 %v5979, %v734
    %v5989 = vmul.f32 %v5973, %v735
    %v5990 = vmul.f32 %v5979, %v736
    %5993 = vrot.lane.b32.xlu0 %v5973, 64
    %v5994 = vpop.permute.xlu0 %5993
    %5995 = vrot.lane.b32.xlu0 %v5979, 64
    %v5996 = vpop.permute.xlu0 %5995
    %v5998 = vsel %vm97, %v5983, 0
    %v6001 = vsel %vm97, %v5984, 0
    %v6004 = vsel %vm97, %v5985, 0
    %v6007 = vsel %vm97, %v5986, 0
    %v6010 = vsel %vm97, %v5987, 0
    %v6013 = vsel %vm97, %v5988, 0
    %v6016 = vsel %vm97, %v5989, 0
    %v6019 = vsel %vm97, %v5990, 0
    %v6021 = vsel %vm97, %v5994, 0
    %v6023 = vsel %vm97, %v5996, 0
    %6025 = vmatprep.subr.mxu0 0.0
    %6026 = vmatpush1.xpose.msra.mxu0 %v6021
    %6027 = vmatprep.subr.mxu0 0.0
    %6028 = vmatpush1.xpose.msra.mxu0 %v6023
    %6029 = vmatprep.subr.mxu0 0.0
    %6030 = vmatpush1.xpose.msra.mxu0 0.0
    %6031 = vmatprep.subr.mxu0 0.0
    %6032 = vmatpush1.xpose.msra.mxu0 0.0
    %6033 = vmatprep.subr.mxu0 0.0
    %6034 = vmatpush1.xpose.msra.mxu0 0.0
    %6035 = vmatprep.subr.mxu0 0.0
    %6036 = vmatpush1.xpose.msra.mxu0 0.0
    %6037 = vmatprep.subr.mxu0 0.0
    %6038 = vmatpush1.xpose.msra.mxu0 0.0
    %6039 = vmatprep.subr.mxu0 0.0
    %6040 = vmatpush1.xpose.msra.mxu0 0.0
    %6041 = vmatprep.subr.mxu0 0.0
    %6042 = vmatpush1.xpose.msra.mxu0 0.0
    %6043 = vmatprep.subr.mxu0 0.0
    %6044 = vmatpush1.xpose.msra.mxu0 0.0
    %6045 = vmatprep.subr.mxu0 0.0
    %6046 = vmatpush1.xpose.msra.mxu0 0.0
    %6047 = vmatprep.subr.mxu0 0.0
    %6048 = vmatpush1.xpose.msra.mxu0 0.0
    %6049 = vmatprep.subr.mxu0 0.0
    %6050 = vmatpush1.xpose.msra.mxu0 0.0
    %6051 = vmatprep.subr.mxu0 0.0
    %6052 = vmatpush1.xpose.msra.mxu0 0.0
    %6053 = vmatprep.subr.mxu0 0.0
    %6054 = vmatpush1.xpose.msra.mxu0 0.0
    %6055 = vmatprep.subr.mxu0 0.0
    %6056 = vmatpush1.xpose.msra.mxu0 0.0
    %6057 = vmatprep.subr.mxu0 0.0
    %6058 = vmatpush1.xpose.msra.mxu0 0.0
    %6059 = vmatprep.subr.mxu0 0.0
    %6060 = vmatpush1.xpose.msra.mxu0 0.0
    %6061 = vmatprep.subr.mxu0 0.0
    %6062 = vmatpush1.xpose.msra.mxu0 0.0
    %6063 = vmatprep.subr.mxu0 0.0
    %6064 = vmatpush1.xpose.msra.mxu0 0.0
    %6065 = vmatprep.subr.mxu0 0.0
    %6066 = vmatpush1.xpose.msra.mxu0 0.0
    %6067 = vmatprep.subr.mxu0 0.0
    %6068 = vmatpush1.xpose.msra.mxu0 0.0
    %6069 = vmatprep.subr.mxu0 0.0
    %6070 = vmatpush1.xpose.msra.mxu0 0.0
    %6071 = vmatprep.subr.mxu0 0.0
    %6072 = vmatpush1.xpose.msra.mxu0 0.0
    %6073 = vmatprep.subr.mxu0 0.0
    %6074 = vmatpush1.xpose.msra.mxu0 0.0
    %6075 = vmatprep.subr.mxu0 0.0
    %6076 = vmatpush1.xpose.msra.mxu0 0.0
    %6077 = vmatprep.subr.mxu0 0.0
    %6078 = vmatpush1.xpose.msra.mxu0 0.0
    %6079 = vmatprep.subr.mxu0 0.0
    %6080 = vmatpush1.xpose.msra.mxu0 0.0
    %6081 = vmatprep.subr.mxu0 0.0
    %6082 = vmatpush1.xpose.msra.mxu0 0.0
    %6083 = vmatprep.subr.mxu0 0.0
    %6084 = vmatpush1.xpose.msra.mxu0 0.0
    %6085 = vmatprep.subr.mxu0 0.0
    %6086 = vmatpush1.xpose.msra.mxu0 0.0
    %6087 = vmatprep.subr.mxu0 0.0
    %6088 = vmatpush1.xpose.msra.mxu0 0.0
    %6089 = vmatprep.mubr.f32.mxu0 0.0
    %6090 = vmatmul.mubr.f32.gmra.mrb[0].mxu0 %v5998
    %v6091 = vpop.f32.mrb[0].mxu0
    %v6092 = vadd.f32 %v3847, %v6091
    %v6093 = vpop.f32.mrb[0].mxu0
    %6094 = vmatprep.mubr.f32.mxu0 0.0
    %6095 = vmatmul.mubr.f32.gmra.mrb[0].mxu0 %v6001
    %v6096 = vpop.f32.mrb[0].mxu0
    %v6097 = vadd.f32 %v3848, %v6096
    %v6098 = vpop.f32.mrb[0].mxu0
    %6099 = vmatprep.mubr.f32.mxu0 0.0
    %6100 = vmatmul.mubr.f32.gmra.mrb[0].mxu0 %v6004
    %v6101 = vpop.f32.mrb[0].mxu0
    %v6102 = vadd.f32 %v3849, %v6101
    %v6103 = vpop.f32.mrb[0].mxu0
    %6104 = vmatprep.mubr.f32.mxu0 0.0
    %6105 = vmatmul.mubr.f32.gmra.mrb[0].mxu0 %v6007
    %v6106 = vpop.f32.mrb[0].mxu0
    %v6107 = vadd.f32 %v3850, %v6106
    %v6108 = vpop.f32.mrb[0].mxu0
    %6109 = vmatprep.mubr.f32.mxu0 0.0
    %6110 = vmatmul.mubr.f32.gmra.mrb[0].mxu0 %v6010
    %v6111 = vpop.f32.mrb[0].mxu0
    %v6112 = vadd.f32 %v3851, %v6111
    %v6113 = vpop.f32.mrb[0].mxu0
    %6114 = vmatprep.mubr.f32.mxu0 0.0
    %6115 = vmatmul.mubr.f32.gmra.mrb[0].mxu0 %v6013
    %v6116 = vpop.f32.mrb[0].mxu0
    %v6117 = vadd.f32 %v3852, %v6116
    %v6118 = vpop.f32.mrb[0].mxu0
    %6119 = vmatprep.mubr.f32.mxu0 0.0
    %6120 = vmatmul.mubr.f32.gmra.mrb[0].mxu0 %v6016
    %v6121 = vpop.f32.mrb[0].mxu0
    %v6122 = vadd.f32 %v3853, %v6121
    %v6123 = vpop.f32.mrb[0].mxu0
    %6124 = vmatprep.mubr.f32.mxu0 0.0
    %6125 = vmatmul.mubr.f32.gmra.mrb[0].mxu0 %v6019
    %v6126 = vpop.f32.mrb[0].mxu0
    %v6127 = vadd.f32 %v3854, %v6126
    %v6128 = vpop.f32.mrb[0].mxu0
    %6129 = vdwg.mxu0
    %v6130 = vsel %vm805, %v6092, -inf
    %6131 = vmax.xlane.f32.xlu0 %v6130
    %v6132 = vpop.xlane.xlu0 %6131
    %v6133 = vsel %vm805, %v6097, -inf
    %6134 = vmax.xlane.f32.xlu0 %v6133
    %v6135 = vpop.xlane.xlu0 %6134
    %v6136 = vsel %vm805, %v6102, -inf
    %6137 = vmax.xlane.f32.xlu0 %v6136
    %v6138 = vpop.xlane.xlu0 %6137
    %v6139 = vsel %vm805, %v6107, -inf
    %6140 = vmax.xlane.f32.xlu0 %v6139
    %v6141 = vpop.xlane.xlu0 %6140
    %v6142 = vsel %vm805, %v6112, -inf
    %6143 = vmax.xlane.f32.xlu0 %v6142
    %v6144 = vpop.xlane.xlu0 %6143
    %v6145 = vsel %vm805, %v6117, -inf
    %6146 = vmax.xlane.f32.xlu0 %v6145
    %v6147 = vpop.xlane.xlu0 %6146
    %v6148 = vsel %vm805, %v6122, -inf
    %6149 = vmax.xlane.f32.xlu0 %v6148
    %v6150 = vpop.xlane.xlu0 %6149
    %v6151 = vsel %vm805, %v6127, -inf
    %6152 = vmax.xlane.f32.xlu0 %v6151
    %v6153 = vpop.xlane.xlu0 %6152
    %v6154 = vsub.f32 %v6092, %v6132
    %v6155 = vsub.f32 %v6097, %v6135
    %v6156 = vsub.f32 %v6102, %v6138
    %v6157 = vsub.f32 %v6107, %v6141
    %v6158 = vsub.f32 %v6112, %v6144
    %v6159 = vsub.f32 %v6117, %v6147
    %v6160 = vsub.f32 %v6122, %v6150
    %v6161 = vsub.f32 %v6127, %v6153
    %v6162 = vmul.f32 %v6154, 1.442695
    %v6163 = vpow.pop %v6162
    %v6164 = vmul.f32 %v6155, 1.442695
    %v6165 = vpow.pop %v6164
    %v6166 = vmul.f32 %v6156, 1.442695
    %v6167 = vpow.pop %v6166
    %v6168 = vmul.f32 %v6157, 1.442695
    %v6169 = vpow.pop %v6168
    %v6170 = vmul.f32 %v6158, 1.442695
    %v6171 = vpow.pop %v6170
    %v6172 = vmul.f32 %v6159, 1.442695
    %v6173 = vpow.pop %v6172
    %v6174 = vmul.f32 %v6160, 1.442695
    %v6175 = vpow.pop %v6174
    %v6176 = vmul.f32 %v6161, 1.442695
    %v6177 = vpow.pop %v6176
    %v6178 = vsel %vm805, %v6163, 0.0
    %6179 = vadd.xlane.f32.xlu0 %v6178
    %v6180 = vpop.xlane.xlu0 %6179
    %v6181 = vsel %vm805, %v6165, 0.0
    %6182 = vadd.xlane.f32.xlu0 %v6181
    %v6183 = vpop.xlane.xlu0 %6182
    %v6184 = vsel %vm805, %v6167, 0.0
    %6185 = vadd.xlane.f32.xlu0 %v6184
    %v6186 = vpop.xlane.xlu0 %6185
    %v6187 = vsel %vm805, %v6169, 0.0
    %6188 = vadd.xlane.f32.xlu0 %v6187
    %v6189 = vpop.xlane.xlu0 %6188
    %v6190 = vsel %vm805, %v6171, 0.0
    %6191 = vadd.xlane.f32.xlu0 %v6190
    %v6192 = vpop.xlane.xlu0 %6191
    %v6193 = vsel %vm805, %v6173, 0.0
    %6194 = vadd.xlane.f32.xlu0 %v6193
    %v6195 = vpop.xlane.xlu0 %6194
    %v6196 = vsel %vm805, %v6175, 0.0
    %6197 = vadd.xlane.f32.xlu0 %v6196
    %v6198 = vpop.xlane.xlu0 %6197
    %v6199 = vsel %vm805, %v6177, 0.0
    %6200 = vadd.xlane.f32.xlu0 %v6199
    %v6201 = vpop.xlane.xlu0 %6200
    %v6202 = vrcp.pop %v6180
    %v6203 = vrcp.pop %v6183
    %v6204 = vrcp.pop %v6186
    %v6205 = vrcp.pop %v6189
    %v6206 = vrcp.pop %v6192
    %v6207 = vrcp.pop %v6195
    %v6208 = vrcp.pop %v6198
    %v6209 = vrcp.pop %v6201
    %v6210 = vmul.f32 %v6163, %v6202
    %v6211 = vmul.f32 %v6165, %v6203
    %v6212 = vmul.f32 %v6167, %v6204
    %v6213 = vmul.f32 %v6169, %v6205
    %v6214 = vmul.f32 %v6171, %v6206
    %v6215 = vmul.f32 %v6173, %v6207
    %v6216 = vmul.f32 %v6175, %v6208
    %v6217 = vmul.f32 %v6177, %v6209
    %v6219 = vsel %vm805, %v6210, 0
    %v6222 = vsel %vm805, %v6211, 0
    %v6225 = vsel %vm805, %v6212, 0
    %v6228 = vsel %vm805, %v6213, 0
    %v6231 = vsel %vm805, %v6214, 0
    %v6234 = vsel %vm805, %v6215, 0
    %v6237 = vsel %vm805, %v6216, 0
    %v6240 = vsel %vm805, %v6217, 0
    %6242 = vmatprep.subr.mxu0 0.0
    %6243 = vmatpush1.msra.mxu0 %v5975
    %6244 = vmatprep.subr.mxu0 0.0
    %6245 = vmatpush1.msra.mxu0 %v5981
    %6246 = vmatprep.subr.mxu0 0.0
    %6247 = vmatpush1.msra.mxu0 0.0
    %6248 = vmatprep.subr.mxu0 0.0
    %6249 = vmatpush1.msra.mxu0 0.0
    %6250 = vmatprep.subr.mxu0 0.0
    %6251 = vmatpush1.msra.mxu0 0.0
    %6252 = vmatprep.subr.mxu0 0.0
    %6253 = vmatpush1.msra.mxu0 0.0
    %6254 = vmatprep.subr.mxu0 0.0
    %6255 = vmatpush1.msra.mxu0 0.0
    %6256 = vmatprep.subr.mxu0 0.0
    %6257 = vmatpush1.msra.mxu0 0.0
    %6258 = vmatprep.subr.mxu0 0.0
    %6259 = vmatpush1.msra.mxu0 0.0
    %6260 = vmatprep.subr.mxu0 0.0
    %6261 = vmatpush1.msra.mxu0 0.0
    %6262 = vmatprep.subr.mxu0 0.0
    %6263 = vmatpush1.msra.mxu0 0.0
    %6264 = vmatprep.subr.mxu0 0.0
    %6265 = vmatpush1.msra.mxu0 0.0
    %6266 = vmatprep.subr.mxu0 0.0
    %6267 = vmatpush1.msra.mxu0 0.0
    %6268 = vmatprep.subr.mxu0 0.0
    %6269 = vmatpush1.msra.mxu0 0.0
    %6270 = vmatprep.subr.mxu0 0.0
    %6271 = vmatpush1.msra.mxu0 0.0
    %6272 = vmatprep.subr.mxu0 0.0
    %6273 = vmatpush1.msra.mxu0 0.0
    %6274 = vmatprep.subr.mxu0 0.0
    %6275 = vmatpush1.msra.mxu0 0.0
    %6276 = vmatprep.subr.mxu0 0.0
    %6277 = vmatpush1.msra.mxu0 0.0
    %6278 = vmatprep.subr.mxu0 0.0
    %6279 = vmatpush1.msra.mxu0 0.0
    %6280 = vmatprep.subr.mxu0 0.0
    %6281 = vmatpush1.msra.mxu0 0.0
    %6282 = vmatprep.subr.mxu0 0.0
    %6283 = vmatpush1.msra.mxu0 0.0
    %6284 = vmatprep.subr.mxu0 0.0
    %6285 = vmatpush1.msra.mxu0 0.0
    %6286 = vmatprep.subr.mxu0 0.0
    %6287 = vmatpush1.msra.mxu0 0.0
    %6288 = vmatprep.subr.mxu0 0.0
    %6289 = vmatpush1.msra.mxu0 0.0
    %6290 = vmatprep.subr.mxu0 0.0
    %6291 = vmatpush1.msra.mxu0 0.0
    %6292 = vmatprep.subr.mxu0 0.0
    %6293 = vmatpush1.msra.mxu0 0.0
    %6294 = vmatprep.subr.mxu0 0.0
    %6295 = vmatpush1.msra.mxu0 0.0
    %6296 = vmatprep.subr.mxu0 0.0
    %6297 = vmatpush1.msra.mxu0 0.0
    %6298 = vmatprep.subr.mxu0 0.0
    %6299 = vmatpush1.msra.mxu0 0.0
    %6300 = vmatprep.subr.mxu0 0.0
    %6301 = vmatpush1.msra.mxu0 0.0
    %6302 = vmatprep.subr.mxu0 0.0
    %6303 = vmatpush1.msra.mxu0 0.0
    %6304 = vmatprep.subr.mxu0 0.0
    %6305 = vmatpush1.msra.mxu0 0.0
    %6306 = vmatprep.mubr.f32.mxu0 0.0
    %6307 = vmatmul.mubr.f32.gmra.mrb[0].mxu0 %v6219
    %v6308 = vpop.f32.mrb[0].mxu0
    %v6309 = vadd.f32 0.0, %v6308
    %v6310 = vpop.f32.mrb[0].mxu0
    %6311 = vmatprep.mubr.f32.mxu0 0.0
    %6312 = vmatmul.mubr.f32.gmra.mrb[0].mxu0 %v6222
    %v6313 = vpop.f32.mrb[0].mxu0
    %v6314 = vadd.f32 0.0, %v6313
    %v6315 = vpop.f32.mrb[0].mxu0
    %6316 = vmatprep.mubr.f32.mxu0 0.0
    %6317 = vmatmul.mubr.f32.gmra.mrb[0].mxu0 %v6225
    %v6318 = vpop.f32.mrb[0].mxu0
    %v6319 = vadd.f32 0.0, %v6318
    %v6320 = vpop.f32.mrb[0].mxu0
    %6321 = vmatprep.mubr.f32.mxu0 0.0
    %6322 = vmatmul.mubr.f32.gmra.mrb[0].mxu0 %v6228
    %v6323 = vpop.f32.mrb[0].mxu0
    %v6324 = vadd.f32 0.0, %v6323
    %v6325 = vpop.f32.mrb[0].mxu0
    %6326 = vmatprep.mubr.f32.mxu0 0.0
    %6327 = vmatmul.mubr.f32.gmra.mrb[0].mxu0 %v6231
    %v6328 = vpop.f32.mrb[0].mxu0
    %v6329 = vadd.f32 0.0, %v6328
    %v6330 = vpop.f32.mrb[0].mxu0
    %6331 = vmatprep.mubr.f32.mxu0 0.0
    %6332 = vmatmul.mubr.f32.gmra.mrb[0].mxu0 %v6234
    %v6333 = vpop.f32.mrb[0].mxu0
    %v6334 = vadd.f32 0.0, %v6333
    %v6335 = vpop.f32.mrb[0].mxu0
    %6336 = vmatprep.mubr.f32.mxu0 0.0
    %6337 = vmatmul.mubr.f32.gmra.mrb[0].mxu0 %v6237
    %v6338 = vpop.f32.mrb[0].mxu0
    %v6339 = vadd.f32 0.0, %v6338
    %v6340 = vpop.f32.mrb[0].mxu0
    %6341 = vmatprep.mubr.f32.mxu0 0.0
    %6342 = vmatmul.mubr.f32.gmra.mrb[0].mxu0 %v6240
    %v6343 = vpop.f32.mrb[0].mxu0
    %v6344 = vadd.f32 0.0, %v6343
    %v6345 = vpop.f32.mrb[0].mxu0
    %6346 = vdwg.mxu0
    %v6347 = vmul.f32 %v6309, %v729
    %v6348 = vmul.f32 %v6314, %v730
    %v6349 = vmul.f32 %v6319, %v731
    %v6350 = vmul.f32 %v6324, %v732
    %v6351 = vmul.f32 %v6329, %v733
    %v6352 = vmul.f32 %v6334, %v734
    %v6353 = vmul.f32 %v6339, %v735
    %v6354 = vmul.f32 %v6344, %v736
    %v6355 = vadd.f32 %v6347, %v6349
    %v6356 = vadd.f32 %v6348, %v6350
    %v6357 = vadd.f32 %v6355, %v6351
    %v6358 = vadd.f32 %v6356, %v6352
    %v6359 = vadd.f32 %v6357, %v6353
    %v6360 = vadd.f32 %v6358, %v6354
    %s6361 = scalar_lea.vmem %s15, 192
    %v6362 = vld [vmem:[%s6361] sm:$0xff]
    %v6363 = vld [vmem:[%s6361 + $0x8] sm:$0xff]
    %v6364 = vld [vmem:[%s6361 + $0x10] sm:$0xff]
    %v6365 = vld [vmem:[%s6361 + $0x18] sm:$0xff]
    %v6366 = vld [vmem:[%s6361 + $0x20] sm:$0xff]
    %v6367 = vld [vmem:[%s6361 + $0x28] sm:$0xff]
    %v6368 = vld [vmem:[%s6361 + $0x30] sm:$0xff]
    %v6369 = vld [vmem:[%s6361 + $0x38] sm:$0xff]
    %v6371 = vsel %vm97, %v6359, 0
    %v6374 = vsel %vm97, %v6360, 0
    %6376 = vmatprep.subr.mxu0 0.0
    %6377 = vmatpush1.msra.mxu0 %v6362
    %6378 = vmatprep.subr.mxu0 0.0
    %6379 = vmatpush1.msra.mxu0 %v6363
    %6380 = vmatprep.subr.mxu0 0.0
    %6381 = vmatpush1.msra.mxu0 %v6364
    %6382 = vmatprep.subr.mxu0 0.0
    %6383 = vmatpush1.msra.mxu0 %v6365
    %6384 = vmatprep.subr.mxu0 0.0
    %6385 = vmatpush1.msra.mxu0 %v6366
    %6386 = vmatprep.subr.mxu0 0.0
    %6387 = vmatpush1.msra.mxu0 %v6367
    %6388 = vmatprep.subr.mxu0 0.0
    %6389 = vmatpush1.msra.mxu0 %v6368
    %6390 = vmatprep.subr.mxu0 0.0
    %6391 = vmatpush1.msra.mxu0 %v6369
    %6392 = vmatprep.subr.mxu0 0.0
    %6393 = vmatpush1.msra.mxu0 0.0
    %6394 = vmatprep.subr.mxu0 0.0
    %6395 = vmatpush1.msra.mxu0 0.0
    %6396 = vmatprep.subr.mxu0 0.0
    %6397 = vmatpush1.msra.mxu0 0.0
    %6398 = vmatprep.subr.mxu0 0.0
    %6399 = vmatpush1.msra.mxu0 0.0
    %6400 = vmatprep.subr.mxu0 0.0
    %6401 = vmatpush1.msra.mxu0 0.0
    %6402 = vmatprep.subr.mxu0 0.0
    %6403 = vmatpush1.msra.mxu0 0.0
    %6404 = vmatprep.subr.mxu0 0.0
    %6405 = vmatpush1.msra.mxu0 0.0
    %6406 = vmatprep.subr.mxu0 0.0
    %6407 = vmatpush1.msra.mxu0 0.0
    %6408 = vmatprep.subr.mxu0 0.0
    %6409 = vmatpush1.msra.mxu0 0.0
    %6410 = vmatprep.subr.mxu0 0.0
    %6411 = vmatpush1.msra.mxu0 0.0
    %6412 = vmatprep.subr.mxu0 0.0
    %6413 = vmatpush1.msra.mxu0 0.0
    %6414 = vmatprep.subr.mxu0 0.0
    %6415 = vmatpush1.msra.mxu0 0.0
    %6416 = vmatprep.subr.mxu0 0.0
    %6417 = vmatpush1.msra.mxu0 0.0
    %6418 = vmatprep.subr.mxu0 0.0
    %6419 = vmatpush1.msra.mxu0 0.0
    %6420 = vmatprep.subr.mxu0 0.0
    %6421 = vmatpush1.msra.mxu0 0.0
    %6422 = vmatprep.subr.mxu0 0.0
    %6423 = vmatpush1.msra.mxu0 0.0
    %6424 = vmatprep.subr.mxu0 0.0
    %6425 = vmatpush1.msra.mxu0 0.0
    %6426 = vmatprep.subr.mxu0 0.0
    %6427 = vmatpush1.msra.mxu0 0.0
    %6428 = vmatprep.subr.mxu0 0.0
    %6429 = vmatpush1.msra.mxu0 0.0
    %6430 = vmatprep.subr.mxu0 0.0
    %6431 = vmatpush1.msra.mxu0 0.0
    %6432 = vmatprep.subr.mxu0 0.0
    %6433 = vmatpush1.msra.mxu0 0.0
    %6434 = vmatprep.subr.mxu0 0.0
    %6435 = vmatpush1.msra.mxu0 0.0
    %6436 = vmatprep.subr.mxu0 0.0
    %6437 = vmatpush1.msra.mxu0 0.0
    %6438 = vmatprep.subr.mxu0 0.0
    %6439 = vmatpush1.msra.mxu0 0.0
    %6440 = vmatprep.mubr.f32.mxu0 0.0
    %6441 = vmatmul.mubr.f32.gmra.mrb[0].mxu0 %v6371
    %v6442 = vpop.f32.mrb[0].mxu0
    %v6443 = vadd.f32 0.0, %v6442
    %v6444 = vpop.f32.mrb[0].mxu0
    %6445 = vmatprep.mubr.f32.mxu0 0.0
    %6446 = vmatmul.mubr.f32.gmra.mrb[0].mxu0 %v6374
    %v6447 = vpop.f32.mrb[0].mxu0
    %v6448 = vadd.f32 0.0, %v6447
    %v6449 = vpop.f32.mrb[0].mxu0
    %6450 = vdwg.mxu0
    %v6451 = vadd.f32 %v5843, %v6443
    %v6452 = vadd.f32 %v5844, %v6448
    %v6453 = vsel %vm97, %v6451, 0.0
    %6454 = vadd.xlane.f32.xlu0 %v6453
    %v6455 = vpop.xlane.xlu0 %6454
    %v6456 = vsel %vm97, %v6452, 0.0
    %6457 = vadd.xlane.f32.xlu0 %v6456
    %v6458 = vpop.xlane.xlu0 %6457
    %v6459 = vmul.f32 %v6455, %v238
    %v6460 = vmul.f32 %v6458, %v238
    %v6461 = vsub.f32 %v6451, %v6459
    %v6462 = vsub.f32 %v6452, %v6460
    %v6463 = vmul.f32 %v6461, %v6461
    %v6464 = vmul.f32 %v6462, %v6462
    %v6465 = vsel %vm97, %v6463, 0.0
    %6466 = vadd.xlane.f32.xlu0 %v6465
    %v6467 = vpop.xlane.xlu0 %6466
    %v6468 = vsel %vm97, %v6464, 0.0
    %6469 = vadd.xlane.f32.xlu0 %v6468
    %v6470 = vpop.xlane.xlu0 %6469
    %v6471 = vmul.f32 %v6467, %v238
    %v6472 = vmul.f32 %v6470, %v238
    %v6473 = vadd.f32 %v6471, 1e-05
    %v6474 = vadd.f32 %v6472, 1e-05
    %v6475 = vrsqrt.pop %v6473
    %v6476 = vrsqrt.pop %v6474
    %v6477 = vmul.f32 %v6461, %v6475
    %v6478 = vmul.f32 %v6462, %v6476
    %v6479 = vlaneseq
    %v6480 = vshrl.u32 %v6479, 7
    %v6481 = vsub.s32 3, %v6480
    %v6482 = vrot.slane %v5282, %v6481
    %v6483 = vmul.f32 %v6477, %v6482
    %v6484 = vmul.f32 %v6478, %v6482
    %v6485 = vlaneseq
    %v6486 = vshrl.u32 %v6485, 7
    %v6487 = vsub.s32 4, %v6486
    %v6488 = vrot.slane %v5282, %v6487
    %v6489 = vadd.f32 %v6483, %v6488
    %v6490 = vadd.f32 %v6484, %v6488
    %s6491 = scalar_lea.vmem %s16, 192
    %v6492 = vld [vmem:[%s6491] sm:$0xff]
    %v6493 = vld [vmem:[%s6491 + $0x8] sm:$0xff]
    %v6494 = vld [vmem:[%s6491 + $0x10] sm:$0xff]
    %v6495 = vld [vmem:[%s6491 + $0x18] sm:$0xff]
    %v6496 = vld [vmem:[%s6491 + $0x20] sm:$0xff]
    %v6497 = vld [vmem:[%s6491 + $0x28] sm:$0xff]
    %v6498 = vld [vmem:[%s6491 + $0x30] sm:$0xff]
    %v6499 = vld [vmem:[%s6491 + $0x38] sm:$0xff]
    %s6500 = scalar_lea.vmem %s13, 3
    %v6501 = vld [vmem:[%s6500] sm:$0x1]
    %v6503 = vlaneseq
    %v6504 = vshrl.u32 %v6503, 7
    %v6505 = vsub.s32 0, %v6504
    %v6506 = vrot.slane %v6501, %v6505
    %v6509 = vsel %vm97, %v6489, 0
    %v6512 = vsel %vm97, %v6490, 0
    %6514 = vmatprep.subr.mxu0 0.0
    %6515 = vmatpush1.msra.mxu0 %v6492
    %6516 = vmatprep.subr.mxu0 0.0
    %6517 = vmatpush1.msra.mxu0 %v6493
    %6518 = vmatprep.subr.mxu0 0.0
    %6519 = vmatpush1.msra.mxu0 %v6494
    %6520 = vmatprep.subr.mxu0 0.0
    %6521 = vmatpush1.msra.mxu0 %v6495
    %6522 = vmatprep.subr.mxu0 0.0
    %6523 = vmatpush1.msra.mxu0 %v6496
    %6524 = vmatprep.subr.mxu0 0.0
    %6525 = vmatpush1.msra.mxu0 %v6497
    %6526 = vmatprep.subr.mxu0 0.0
    %6527 = vmatpush1.msra.mxu0 %v6498
    %6528 = vmatprep.subr.mxu0 0.0
    %6529 = vmatpush1.msra.mxu0 %v6499
    %6530 = vmatprep.subr.mxu0 0.0
    %6531 = vmatpush1.msra.mxu0 0.0
    %6532 = vmatprep.subr.mxu0 0.0
    %6533 = vmatpush1.msra.mxu0 0.0
    %6534 = vmatprep.subr.mxu0 0.0
    %6535 = vmatpush1.msra.mxu0 0.0
    %6536 = vmatprep.subr.mxu0 0.0
    %6537 = vmatpush1.msra.mxu0 0.0
    %6538 = vmatprep.subr.mxu0 0.0
    %6539 = vmatpush1.msra.mxu0 0.0
    %6540 = vmatprep.subr.mxu0 0.0
    %6541 = vmatpush1.msra.mxu0 0.0
    %6542 = vmatprep.subr.mxu0 0.0
    %6543 = vmatpush1.msra.mxu0 0.0
    %6544 = vmatprep.subr.mxu0 0.0
    %6545 = vmatpush1.msra.mxu0 0.0
    %6546 = vmatprep.subr.mxu0 0.0
    %6547 = vmatpush1.msra.mxu0 0.0
    %6548 = vmatprep.subr.mxu0 0.0
    %6549 = vmatpush1.msra.mxu0 0.0
    %6550 = vmatprep.subr.mxu0 0.0
    %6551 = vmatpush1.msra.mxu0 0.0
    %6552 = vmatprep.subr.mxu0 0.0
    %6553 = vmatpush1.msra.mxu0 0.0
    %6554 = vmatprep.subr.mxu0 0.0
    %6555 = vmatpush1.msra.mxu0 0.0
    %6556 = vmatprep.subr.mxu0 0.0
    %6557 = vmatpush1.msra.mxu0 0.0
    %6558 = vmatprep.subr.mxu0 0.0
    %6559 = vmatpush1.msra.mxu0 0.0
    %6560 = vmatprep.subr.mxu0 0.0
    %6561 = vmatpush1.msra.mxu0 0.0
    %6562 = vmatprep.subr.mxu0 0.0
    %6563 = vmatpush1.msra.mxu0 0.0
    %6564 = vmatprep.subr.mxu0 0.0
    %6565 = vmatpush1.msra.mxu0 0.0
    %6566 = vmatprep.subr.mxu0 0.0
    %6567 = vmatpush1.msra.mxu0 0.0
    %6568 = vmatprep.subr.mxu0 0.0
    %6569 = vmatpush1.msra.mxu0 0.0
    %6570 = vmatprep.subr.mxu0 0.0
    %6571 = vmatpush1.msra.mxu0 0.0
    %6572 = vmatprep.subr.mxu0 0.0
    %6573 = vmatpush1.msra.mxu0 0.0
    %6574 = vmatprep.subr.mxu0 0.0
    %6575 = vmatpush1.msra.mxu0 0.0
    %6576 = vmatprep.subr.mxu0 0.0
    %6577 = vmatpush1.msra.mxu0 0.0
    %6578 = vmatprep.mubr.f32.mxu0 0.0
    %6579 = vmatmul.mubr.f32.gmra.mrb[0].mxu0 %v6509
    %v6580 = vpop.f32.mrb[0].mxu0
    %v6581 = vadd.f32 %v6506, %v6580
    %v6582 = vpop.f32.mrb[0].mxu0
    %6583 = vmatprep.mubr.f32.mxu0 0.0
    %6584 = vmatmul.mubr.f32.gmra.mrb[0].mxu0 %v6512
    %v6585 = vpop.f32.mrb[0].mxu0
    %v6586 = vadd.f32 %v6506, %v6585
    %v6587 = vpop.f32.mrb[0].mxu0
    %6588 = vdwg.mxu0
    %v6589 = vmul.f32 %v6581, %v6581
    %v6590 = vmul.f32 %v6586, %v6586
    %v6591 = vmul.f32 %v6581, %v6589
    %v6592 = vmul.f32 %v6586, %v6590
    %v6593 = vmul.f32 %v6591, 0.044715
    %v6594 = vmul.f32 %v6592, 0.044715
    %v6595 = vadd.f32 %v6581, %v6593
    %v6596 = vadd.f32 %v6586, %v6594
    %v6597 = vmul.f32 %v6595, 0.7978846
    %v6598 = vmul.f32 %v6596, 0.7978846
    %v6599 = vtanh.pop %v6597
    %v6600 = vtanh.pop %v6598
    %v6601 = vadd.f32 %v6599, 1.0
    %v6602 = vadd.f32 %v6600, 1.0
    %v6603 = vmul.f32 %v6601, 0.5
    %v6604 = vmul.f32 %v6602, 0.5
    %v6605 = vmul.f32 %v6581, %v6603
    %v6606 = vmul.f32 %v6586, %v6604
    %s6607 = scalar_lea.vmem %s17, 384
    %v6608 = vld [vmem:[%s6607] sm:$0xff]
    %v6609 = vld [vmem:[%s6607 + $0x8] sm:$0xff]
    %v6610 = vld [vmem:[%s6607 + $0x10] sm:$0xff]
    %v6611 = vld [vmem:[%s6607 + $0x18] sm:$0xff]
    %v6612 = vld [vmem:[%s6607 + $0x20] sm:$0xff]
    %v6613 = vld [vmem:[%s6607 + $0x28] sm:$0xff]
    %v6614 = vld [vmem:[%s6607 + $0x30] sm:$0xff]
    %v6615 = vld [vmem:[%s6607 + $0x38] sm:$0xff]
    %v6616 = vld [vmem:[%s6607 + $0x40] sm:$0xff]
    %v6617 = vld [vmem:[%s6607 + $0x48] sm:$0xff]
    %v6618 = vld [vmem:[%s6607 + $0x50] sm:$0xff]
    %v6619 = vld [vmem:[%s6607 + $0x58] sm:$0xff]
    %v6620 = vld [vmem:[%s6607 + $0x60] sm:$0xff]
    %v6621 = vld [vmem:[%s6607 + $0x68] sm:$0xff]
    %v6622 = vld [vmem:[%s6607 + $0x70] sm:$0xff]
    %v6623 = vld [vmem:[%s6607 + $0x78] sm:$0xff]
    %6624 = vmatprep.subr.mxu0 0.0
    %6625 = vmatpush1.msra.mxu0 %v6608
    %6626 = vmatprep.subr.mxu0 0.0
    %6627 = vmatpush1.msra.mxu0 %v6609
    %6628 = vmatprep.subr.mxu0 0.0
    %6629 = vmatpush1.msra.mxu0 %v6610
    %6630 = vmatprep.subr.mxu0 0.0
    %6631 = vmatpush1.msra.mxu0 %v6611
    %6632 = vmatprep.subr.mxu0 0.0
    %6633 = vmatpush1.msra.mxu0 %v6612
    %6634 = vmatprep.subr.mxu0 0.0
    %6635 = vmatpush1.msra.mxu0 %v6613
    %6636 = vmatprep.subr.mxu0 0.0
    %6637 = vmatpush1.msra.mxu0 %v6614
    %6638 = vmatprep.subr.mxu0 0.0
    %6639 = vmatpush1.msra.mxu0 %v6615
    %6640 = vmatprep.subr.mxu0 0.0
    %6641 = vmatpush1.msra.mxu0 %v6616
    %6642 = vmatprep.subr.mxu0 0.0
    %6643 = vmatpush1.msra.mxu0 %v6617
    %6644 = vmatprep.subr.mxu0 0.0
    %6645 = vmatpush1.msra.mxu0 %v6618
    %6646 = vmatprep.subr.mxu0 0.0
    %6647 = vmatpush1.msra.mxu0 %v6619
    %6648 = vmatprep.subr.mxu0 0.0
    %6649 = vmatpush1.msra.mxu0 %v6620
    %6650 = vmatprep.subr.mxu0 0.0
    %6651 = vmatpush1.msra.mxu0 %v6621
    %6652 = vmatprep.subr.mxu0 0.0
    %6653 = vmatpush1.msra.mxu0 %v6622
    %6654 = vmatprep.subr.mxu0 0.0
    %6655 = vmatpush1.msra.mxu0 %v6623
    %6656 = vmatprep.subr.mxu0 0.0
    %6657 = vmatpush1.msra.mxu0 0.0
    %6658 = vmatprep.subr.mxu0 0.0
    %6659 = vmatpush1.msra.mxu0 0.0
    %6660 = vmatprep.subr.mxu0 0.0
    %6661 = vmatpush1.msra.mxu0 0.0
    %6662 = vmatprep.subr.mxu0 0.0
    %6663 = vmatpush1.msra.mxu0 0.0
    %6664 = vmatprep.subr.mxu0 0.0
    %6665 = vmatpush1.msra.mxu0 0.0
    %6666 = vmatprep.subr.mxu0 0.0
    %6667 = vmatpush1.msra.mxu0 0.0
    %6668 = vmatprep.subr.mxu0 0.0
    %6669 = vmatpush1.msra.mxu0 0.0
    %6670 = vmatprep.subr.mxu0 0.0
    %6671 = vmatpush1.msra.mxu0 0.0
    %6672 = vmatprep.subr.mxu0 0.0
    %6673 = vmatpush1.msra.mxu0 0.0
    %6674 = vmatprep.subr.mxu0 0.0
    %6675 = vmatpush1.msra.mxu0 0.0
    %6676 = vmatprep.subr.mxu0 0.0
    %6677 = vmatpush1.msra.mxu0 0.0
    %6678 = vmatprep.subr.mxu0 0.0
    %6679 = vmatpush1.msra.mxu0 0.0
    %6680 = vmatprep.subr.mxu0 0.0
    %6681 = vmatpush1.msra.mxu0 0.0
    %6682 = vmatprep.subr.mxu0 0.0
    %6683 = vmatpush1.msra.mxu0 0.0
    %6684 = vmatprep.subr.mxu0 0.0
    %6685 = vmatpush1.msra.mxu0 0.0
    %6686 = vmatprep.subr.mxu0 0.0
    %6687 = vmatpush1.msra.mxu0 0.0
    %6688 = vmatprep.mubr.f32.mxu0 0.0
    %6689 = vmatmul.mubr.f32.gmra.mrb[0].mxu0 %v6605
    %v6690 = vpop.f32.mrb[0].mxu0
    %v6691 = vadd.f32 0.0, %v6690
    %v6692 = vpop.f32.mrb[0].mxu0
    %6693 = vmatprep.mubr.f32.mxu0 0.0
    %6694 = vmatmul.mubr.f32.gmra.mrb[0].mxu0 %v6606
    %v6695 = vpop.f32.mrb[0].mxu0
    %v6696 = vadd.f32 0.0, %v6695
    %v6697 = vpop.f32.mrb[0].mxu0
    %6698 = vdwg.mxu0
    %v6699 = vadd.f32 %v6451, %v6691
    %v6700 = vadd.f32 %v6452, %v6696
    %v6701 = vlaneseq
    %v6702 = vshrl.u32 %v6701, 7
    %v6703 = vsub.s32 5, %v6702
    %v6704 = vrot.slane %v5282, %v6703
    %v6705 = vadd.f32 %v6699, %v6704
    %v6706 = vadd.f32 %v6700, %v6704
    %v6707 = vsel %vm97, %v6705, 0.0
    %6708 = vadd.xlane.f32.xlu0 %v6707
    %v6709 = vpop.xlane.xlu0 %6708
    %v6710 = vsel %vm97, %v6706, 0.0
    %6711 = vadd.xlane.f32.xlu0 %v6710
    %v6712 = vpop.xlane.xlu0 %6711
    %v6713 = vmul.f32 %v6709, %v238
    %v6714 = vmul.f32 %v6712, %v238
    %v6715 = vsub.f32 %v6705, %v6713
    %v6716 = vsub.f32 %v6706, %v6714
    %v6717 = vmul.f32 %v6715, %v6715
    %v6718 = vmul.f32 %v6716, %v6716
    %v6719 = vsel %vm97, %v6717, 0.0
    %6720 = vadd.xlane.f32.xlu0 %v6719
    %v6721 = vpop.xlane.xlu0 %6720
    %v6722 = vsel %vm97, %v6718, 0.0
    %6723 = vadd.xlane.f32.xlu0 %v6722
    %v6724 = vpop.xlane.xlu0 %6723
    %v6725 = vmul.f32 %v6721, %v238
    %v6726 = vmul.f32 %v6724, %v238
    %v6727 = vadd.f32 %v6725, 1e-05
    %v6728 = vadd.f32 %v6726, 1e-05
    %v6729 = vrsqrt.pop %v6727
    %v6730 = vrsqrt.pop %v6728
    %v6731 = vmul.f32 %v6715, %v6729
    %v6732 = vmul.f32 %v6716, %v6730
    %v6733 = vlaneseq
    %v6734 = vshrl.u32 %v6733, 7
    %v6735 = vsub.s32 2, %v6734
    %v6736 = vrot.slane %v791, %v6735
    %v6737 = vmul.f32 %v6731, %v6736
    %v6738 = vmul.f32 %v6732, %v6736
    %v6739 = vlaneseq
    %v6740 = vshrl.u32 %v6739, 7
    %v6741 = vsub.s32 3, %v6740
    %v6742 = vrot.slane %v791, %v6741
    %v6743 = vadd.f32 %v6737, %v6742
    %v6744 = vadd.f32 %v6738, %v6742
    %6745 = vst.msk [vmem:[#allocation2] sm:$0xff] %vm97, %v6743
    %6746 = vst.msk [vmem:[#allocation2 + $0x8] sm:$0xff] %vm97, %v6744
    // Predicated region
    $region86: #{omnitokenizer_encoder_forward.1} parent=1 // pred_check
      _
    $region87: #{omnitokenizer_encoder_forward.1} parent=1 // pred_check_branch
      %6748 = sbr.rel (0) target = $region89
    $region88: #{omnitokenizer_encoder_forward.1} parent=1 // pred_region
      %s6750 = ssub.s32 256, 256
      %6751 = vsyncadd [#allocation3], %s6750
      %s6752 = sshll.u32 [#allocation2], 4
      %s6753 = int_to_ptr.vmem [resolvable:$true] %s6752
      %6758 = dma.vmem_to_hbm [thread:$0]  %s6753, 256, %s21, [#allocation3], 128, 128, 8
    $region89: #{omnitokenizer_encoder_forward.1} parent=1 // pred_fallthru
      _
    // Predicated region
    $region90: #{omnitokenizer_encoder_forward.1} parent=1 // pred_check
      _
    $region91: #{omnitokenizer_encoder_forward.1} parent=1 // pred_check_branch
      %6760 = sbr.rel (0) target = $region93
    $region92: #{omnitokenizer_encoder_forward.1} parent=1 // pred_region
      %6761 = dma.done [#allocation3], 256
    $region93: #{omnitokenizer_encoder_forward.1} parent=1 // pred_fallthru
      _
    %6762 = vsyncpa [#allocation3], 1

</llo_original>
